<compile_context>
chip_gen: v7x
topology: tpu7x:2x2x1
jax: 0.10.0
libtpu: 0.0.40
codegen_flags: <defaults>
</compile_context>

<pallas_src>
import jax
import jax.numpy as jnp
from jax.experimental import pallas as pl
from jax.experimental.pallas import tpu as pltpu

KERNEL_SIZE = 3
PADDING = KERNEL_SIZE // 2
BN_EPS = 1e-5


def _bottleneck_lstm_kernel(
    stacked_ref, cell_in_ref,
    dw1_ref, g1_ref, b1_ref, pw1_ref, g2_ref, b2_ref,
    dw2_ref, g3_ref, b3_ref, pw2_ref, g4_ref, b4_ref,
    hidden_out_ref, cell_out_ref,
    pad1_ref, pad2_ref,
):
    B, H, W, _ = stacked_ref.shape
    Ch = cell_in_ref.shape[-1]

    def dw_conv3x3(pad_ref, src, w_ref):
        # Depthwise 3x3 conv, stride 1, zero-pad 1, no bias (groups == channels).
        # The halo scratch is written once (interior + 4 thin border strips --
        # no full-buffer zero fill).  Each of the 3 W-shifted column windows is
        # read exactly once; the 3 H taps reuse the loaded value via cheap
        # major-dim slices, so sublane-misaligned relayout traffic is 2 shifted
        # reads + 1 shifted store per conv (the kj=0 window is tile-aligned).
        C = pad_ref.shape[-1]
        w = w_ref[...]                                            # (9, C)
        zero_row = jnp.zeros((B, 1, W + 2, C), jnp.float32)
        zero_col = jnp.zeros((B, H + 2, 1, C), jnp.float32)
        pad_ref[:, 0:1, :, :] = zero_row
        pad_ref[:, H + 1:H + 2, :, :] = zero_row
        pad_ref[:, :, 0:1, :] = zero_col
        pad_ref[:, :, W + 1:W + 2, :] = zero_col
        pad_ref[:, 1:H + 1, 1:W + 1, :] = src
        acc = None
        for kj in range(3):
            cols = pad_ref[:, :, kj:kj + W, :]                    # (B, H+2, W, C)
            for ki in range(3):
                tap = w[ki * 3 + kj:ki * 3 + kj + 1, :]           # (1, C) -> lanes
                term = cols[:, ki:ki + H, :, :] * tap
                acc = term if acc is None else acc + term
        return acc

    def batch_norm(x, g_ref, b_ref):
        # Training-mode BatchNorm2d (module default): single-pass batch stats
        # over (N, H, W) (biased variance), gamma folded into one per-channel
        # scale so normalization is a single multiply-add pass.
        # TODO(synk): running_mean/running_var buffer updates are stateful
        # side effects in torch and are not reproduced here.
        inv_n = 1.0 / float(x.shape[0] * x.shape[1] * x.shape[2])
        s1 = jnp.sum(x, axis=(0, 1, 2), keepdims=True)
        s2 = jnp.sum(x * x, axis=(0, 1, 2), keepdims=True)
        mean = s1 * inv_n
        var = jnp.maximum(s2 * inv_n - mean * mean, 0.0)
        scale = g_ref[...] * jax.lax.rsqrt(var + BN_EPS)
        shift = b_ref[...] - mean * scale
        return x * scale + shift

    def pw_conv(x, w_ref):
        # 1x1 conv (no bias) == channel matmul on the MXU.  Merging the leading
        # (B, H, W) dims is relayout-free since W is a multiple of 8.
        b_, h_, w_, c_ = x.shape
        y = jnp.dot(x.reshape(b_ * h_ * w_, c_), w_ref[...],
                    preferred_element_type=jnp.float32)
        return y.reshape(b_, h_, w_, w_ref.shape[-1])

    relu = lambda v: jnp.maximum(v, 0.0)

    # bottleneck_gate = conv_dw(Cin+Ch -> Ch); the module's trailing extra
    # nn.ReLU() is idempotent after BN+ReLU and is dropped.
    t = dw_conv3x3(pad1_ref, stacked_ref[...], dw1_ref)
    t = relu(batch_norm(t, g1_ref, b1_ref))
    t = pw_conv(t, pw1_ref)
    t = relu(batch_norm(t, g2_ref, b2_ref))

    # Gates = conv_dw(Ch -> 4*Ch).
    g = dw_conv3x3(pad2_ref, t, dw2_ref)
    g = relu(batch_norm(g, g3_ref, b3_ref))
    g = pw_conv(g, pw2_ref)
    g = relu(batch_norm(g, g4_ref, b4_ref))

    # Gate activations on the lane-dense (B,H,W,4*Ch) tensor with a single
    # tanh pass: sigmoid(x) = 0.5*(tanh(x/2)+1) for the first 3*Ch lanes,
    # tanh(x) for the last Ch lanes.  chunk(4) order: in, remember, out, cell.
    lane = jax.lax.broadcasted_iota(jnp.int32, (1, 4 * Ch), 1).reshape(1, 1, 1, 4 * Ch)
    is_cell = lane >= 3 * Ch
    pre = jnp.where(is_cell, 1.0, 0.5)      # input scale (== output scale)
    post_b = jnp.where(is_cell, 0.0, 0.5)   # output offset
    act = jnp.tanh(g * pre) * pre + post_b

    in_gate = act[..., 0 * Ch:1 * Ch]
    remember_gate = act[..., 1 * Ch:2 * Ch]
    out_gate = act[..., 2 * Ch:3 * Ch]
    cell_gate = act[..., 3 * Ch:4 * Ch]

    cell = remember_gate * cell_in_ref[...] + in_gate * cell_gate
    hidden = out_gate * jnp.tanh(cell)

    hidden_out_ref[...] = hidden.astype(hidden_out_ref.dtype)
    cell_out_ref[...] = cell.astype(cell_out_ref.dtype)


def init_params(key, input_size, hidden_size):
    """Deterministic synthetic parameters matching the module's shapes.

    Depthwise weights are stored as (9, C) (taps x channels); 1x1 conv weights
    as (C_in, C_out); BN gamma/beta as (1, C)."""
    ctot = input_size + hidden_size
    ks = jax.random.split(key, 12)
    n = lambda k, s, scale: (scale * jax.random.normal(k, s, jnp.float32))
    p = {
        "dw1": n(ks[0], (9, ctot), 0.2),
        "g1": 1.0 + n(ks[1], (1, ctot), 0.1),
        "b1": n(ks[2], (1, ctot), 0.1),
        "pw1": n(ks[3], (ctot, hidden_size), 1.0 / float(ctot) ** 0.5),
        "g2": 1.0 + n(ks[4], (1, hidden_size), 0.1),
        "b2": n(ks[5], (1, hidden_size), 0.1),
        "dw2": n(ks[6], (9, hidden_size), 0.2),
        "g3": 1.0 + n(ks[7], (1, hidden_size), 0.1),
        "b3": n(ks[8], (1, hidden_size), 0.1),
        "pw2": n(ks[9], (hidden_size, 4 * hidden_size),
                 1.0 / float(hidden_size) ** 0.5),
        "g4": 1.0 + n(ks[10], (1, 4 * hidden_size), 0.1),
        "b4": n(ks[11], (1, 4 * hidden_size), 0.1),
    }
    return p


def bottleneck_lstm_forward(x_nchw, params, hidden_size,
                            hidden_state=None, cell_state=None):
    """One BottleNeckLSTM step. Inputs/outputs are NCHW like the torch module."""
    x = jnp.transpose(x_nchw, (0, 2, 3, 1)).astype(jnp.float32)   # -> NHWC
    B, H, W, Cin = x.shape
    Ch = hidden_size

    if hidden_state is None:
        hidden_state = jnp.zeros((B, Ch, H, W), jnp.float32)
        cell_state = jnp.zeros((B, Ch, H, W), jnp.float32)
    h = jnp.transpose(hidden_state, (0, 2, 3, 1))
    c = jnp.transpose(cell_state, (0, 2, 3, 1))

    # torch.cat((input, hidden), dim=1)  -> channel concat in NHWC
    stacked = jnp.concatenate([x, h], axis=-1)
    Ctot = Cin + Ch

    inputs = [
        stacked, c,
        params["dw1"], params["g1"], params["b1"], params["pw1"],
        params["g2"], params["b2"],
        params["dw2"], params["g3"], params["b3"], params["pw2"],
        params["g4"], params["b4"],
    ]

    def full_spec(shape):
        zeros = (0,) * len(shape)
        return pl.BlockSpec(shape, lambda i, z=zeros: z)

    in_specs = [full_spec(a.shape) for a in inputs]
    out_shape = (jax.ShapeDtypeStruct((B, H, W, Ch), jnp.float32),
                 jax.ShapeDtypeStruct((B, H, W, Ch), jnp.float32))
    out_specs = (full_spec((B, H, W, Ch)), full_spec((B, H, W, Ch)))

    # TODO(synk): for SSD-scale feature maps, tile over H with a 1-row halo on
    # a "parallel" grid axis (2 TCs on v7x, bounded VMEM); that needs a
    # cross-tile reduction for the train-mode BN batch stats, so at these tiny
    # shapes the whole batch is kept resident in one grid step instead.
    hid, cel = pl.pallas_call(
        _bottleneck_lstm_kernel,
        out_shape=out_shape,
        grid=(1,),
        in_specs=in_specs,
        out_specs=out_specs,
        scratch_shapes=[
            pltpu.VMEM((B, H + 2 * PADDING, W + 2 * PADDING, Ctot), jnp.float32),
            pltpu.VMEM((B, H + 2 * PADDING, W + 2 * PADDING, Ch), jnp.float32),
        ],
        compiler_params=pltpu.CompilerParams(
            dimension_semantics=("arbitrary",)),
    )(*inputs)

    # back to NCHW, matching the PyTorch module's return (hidden, cell)
    return (jnp.transpose(hid, (0, 3, 1, 2)),
            jnp.transpose(cel, (0, 3, 1, 2)))


if __name__ == "__main__":
    key = jax.random.PRNGKey(0)
    kx, kp = jax.random.split(key)

    B, Cin, H, W = 2, 4, 16, 16
    hidden_size = 32

    x = jax.random.normal(kx, (B, Cin, H, W), jnp.float32)   # NCHW like torch
    params = init_params(kp, Cin, hidden_size)

    hidden, cell = bottleneck_lstm_forward(x, params, hidden_size)
    jax.block_until_ready((hidden, cell))

    assert hidden.shape == (B, hidden_size, H, W)
    assert cell.shape == (B, hidden_size, H, W)
    assert bool(jnp.all(jnp.isfinite(hidden))) and bool(jnp.all(jnp.isfinite(cell)))
    print("KERNEL_OK")
</pallas_src>

<mosaic_0001>
module attributes {stable_mosaic.version = 11 : i64} {
  func.func @_bottleneck_lstm_kernel(%arg0: i32, %arg1: memref<2x16x16x36xf32, #tpu.memory_space<vmem>>, %arg2: memref<2x16x16x32xf32, #tpu.memory_space<vmem>>, %arg3: memref<9x36xf32, #tpu.memory_space<vmem>>, %arg4: memref<1x36xf32, #tpu.memory_space<vmem>>, %arg5: memref<1x36xf32, #tpu.memory_space<vmem>>, %arg6: memref<36x32xf32, #tpu.memory_space<vmem>>, %arg7: memref<1x32xf32, #tpu.memory_space<vmem>>, %arg8: memref<1x32xf32, #tpu.memory_space<vmem>>, %arg9: memref<9x32xf32, #tpu.memory_space<vmem>>, %arg10: memref<1x32xf32, #tpu.memory_space<vmem>>, %arg11: memref<1x32xf32, #tpu.memory_space<vmem>>, %arg12: memref<32x128xf32, #tpu.memory_space<vmem>>, %arg13: memref<1x128xf32, #tpu.memory_space<vmem>>, %arg14: memref<1x128xf32, #tpu.memory_space<vmem>>, %arg15: memref<2x16x16x32xf32, #tpu.memory_space<vmem>>, %arg16: memref<2x16x16x32xf32, #tpu.memory_space<vmem>>, %arg17: memref<2x18x18x36xf32, #tpu.memory_space<vmem>>, %arg18: memref<2x18x18x32xf32, #tpu.memory_space<vmem>>) attributes {dimension_semantics = [#tpu.dimension_semantics<arbitrary>], iteration_bounds = array<i64: 1>, scalar_prefetch = 0 : i64, scratch_operands = 2 : i64, tpu.core_type = #tpu.core_type<tc>, window_params = [{pipeline_mode = #tpu.pipeline_mode<synchronous>, transform_indices = @transform_0, window_bounds = array<i64: 2, 16, 16, 36>}, {pipeline_mode = #tpu.pipeline_mode<synchronous>, transform_indices = @transform_1, window_bounds = array<i64: 2, 16, 16, 32>}, {pipeline_mode = #tpu.pipeline_mode<synchronous>, transform_indices = @transform_2, window_bounds = array<i64: 9, 36>}, {pipeline_mode = #tpu.pipeline_mode<synchronous>, transform_indices = @transform_3, window_bounds = array<i64: 1, 36>}, {pipeline_mode = #tpu.pipeline_mode<synchronous>, transform_indices = @transform_4, window_bounds = array<i64: 1, 36>}, {pipeline_mode = #tpu.pipeline_mode<synchronous>, transform_indices = @transform_5, window_bounds = array<i64: 36, 32>}, {pipeline_mode = #tpu.pipeline_mode<synchronous>, transform_indices = @transform_6, window_bounds = array<i64: 1, 32>}, {pipeline_mode = #tpu.pipeline_mode<synchronous>, transform_indices = @transform_7, window_bounds = array<i64: 1, 32>}, {pipeline_mode = #tpu.pipeline_mode<synchronous>, transform_indices = @transform_8, window_bounds = array<i64: 9, 32>}, {pipeline_mode = #tpu.pipeline_mode<synchronous>, transform_indices = @transform_9, window_bounds = array<i64: 1, 32>}, {pipeline_mode = #tpu.pipeline_mode<synchronous>, transform_indices = @transform_10, window_bounds = array<i64: 1, 32>}, {pipeline_mode = #tpu.pipeline_mode<synchronous>, transform_indices = @transform_11, window_bounds = array<i64: 32, 128>}, {pipeline_mode = #tpu.pipeline_mode<synchronous>, transform_indices = @transform_12, window_bounds = array<i64: 1, 128>}, {pipeline_mode = #tpu.pipeline_mode<synchronous>, transform_indices = @transform_13, window_bounds = array<i64: 1, 128>}, {pipeline_mode = #tpu.pipeline_mode<synchronous>, transform_indices = @transform_14, window_bounds = array<i64: 2, 16, 16, 32>}, {pipeline_mode = #tpu.pipeline_mode<synchronous>, transform_indices = @transform_15, window_bounds = array<i64: 2, 16, 16, 32>}]} {
    %c0 = arith.constant 0 : index
    %c0_0 = arith.constant 0 : index
    %c0_1 = arith.constant 0 : index
    %c0_2 = arith.constant 0 : index
    %0 = vector.load %arg1[%c0, %c0_0, %c0_1, %c0_2] : memref<2x16x16x36xf32, #tpu.memory_space<vmem>>, vector<2x16x16x36xf32>
    %c0_3 = arith.constant 0 : index
    %c0_4 = arith.constant 0 : index
    %1 = vector.load %arg3[%c0_3, %c0_4] : memref<9x36xf32, #tpu.memory_space<vmem>>, vector<9x36xf32>
    %cst = arith.constant 0.000000e+00 : f32
    %2 = vector.broadcast %cst : f32 to vector<2x1x18x36xf32>
    %cst_5 = arith.constant 0.000000e+00 : f32
    %3 = vector.broadcast %cst_5 : f32 to vector<2x18x1x36xf32>
    %c0_6 = arith.constant 0 : index
    %c0_7 = arith.constant 0 : index
    %c0_8 = arith.constant 0 : index
    %c0_9 = arith.constant 0 : index
    %4 = vector.load %arg17[%c0_6, %c0_7, %c0_8, %c0_9] : memref<2x18x18x36xf32, #tpu.memory_space<vmem>>, vector<2x1x18x36xf32>
    tpu.vector_store %arg17[%c0_6, %c0_7, %c0_8, %c0_9], %2 {strides = array<i32>} : memref<2x18x18x36xf32, #tpu.memory_space<vmem>>, vector<2x1x18x36xf32>,
    %c0_10 = arith.constant 0 : index
    %c17 = arith.constant 17 : index
    %c0_11 = arith.constant 0 : index
    %c0_12 = arith.constant 0 : index
    %5 = vector.load %arg17[%c0_10, %c17, %c0_11, %c0_12] : memref<2x18x18x36xf32, #tpu.memory_space<vmem>>, vector<2x1x18x36xf32>
    tpu.vector_store %arg17[%c0_10, %c17, %c0_11, %c0_12], %2 {strides = array<i32>} : memref<2x18x18x36xf32, #tpu.memory_space<vmem>>, vector<2x1x18x36xf32>,
    %c0_13 = arith.constant 0 : index
    %c0_14 = arith.constant 0 : index
    %c0_15 = arith.constant 0 : index
    %c0_16 = arith.constant 0 : index
    %6 = vector.load %arg17[%c0_13, %c0_14, %c0_15, %c0_16] : memref<2x18x18x36xf32, #tpu.memory_space<vmem>>, vector<2x18x1x36xf32>
    tpu.vector_store %arg17[%c0_13, %c0_14, %c0_15, %c0_16], %3 {strides = array<i32>} : memref<2x18x18x36xf32, #tpu.memory_space<vmem>>, vector<2x18x1x36xf32>,
    %c0_17 = arith.constant 0 : index
    %c0_18 = arith.constant 0 : index
    %c17_19 = arith.constant 17 : index
    %c0_20 = arith.constant 0 : index
    %7 = vector.load %arg17[%c0_17, %c0_18, %c17_19, %c0_20] : memref<2x18x18x36xf32, #tpu.memory_space<vmem>>, vector<2x18x1x36xf32>
    tpu.vector_store %arg17[%c0_17, %c0_18, %c17_19, %c0_20], %3 {strides = array<i32>} : memref<2x18x18x36xf32, #tpu.memory_space<vmem>>, vector<2x18x1x36xf32>,
    %c0_21 = arith.constant 0 : index
    %c1 = arith.constant 1 : index
    %c1_22 = arith.constant 1 : index
    %c0_23 = arith.constant 0 : index
    %8 = vector.load %arg17[%c0_21, %c1, %c1_22, %c0_23] : memref<2x18x18x36xf32, #tpu.memory_space<vmem>>, vector<2x16x16x36xf32>
    tpu.vector_store %arg17[%c0_21, %c1, %c1_22, %c0_23], %0 {strides = array<i32>} : memref<2x18x18x36xf32, #tpu.memory_space<vmem>>, vector<2x16x16x36xf32>,
    %c0_24 = arith.constant 0 : index
    %c0_25 = arith.constant 0 : index
    %c0_26 = arith.constant 0 : index
    %c0_27 = arith.constant 0 : index
    %9 = vector.load %arg17[%c0_24, %c0_25, %c0_26, %c0_27] : memref<2x18x18x36xf32, #tpu.memory_space<vmem>>, vector<2x18x16x36xf32>
    %10 = vector.extract_strided_slice %1 {offsets = [0, 0], sizes = [1, 36], strides = [1, 1]} : vector<9x36xf32> to vector<1x36xf32>
    %11 = vector.extract_strided_slice %9 {offsets = [0, 0, 0, 0], sizes = [2, 16, 16, 36], strides = [1, 1, 1, 1]} : vector<2x18x16x36xf32> to vector<2x16x16x36xf32>
    %12 = vector.shape_cast %10 : vector<1x36xf32> to vector<1x1x1x36xf32>
    %13 = vector.broadcast %12 : vector<1x1x1x36xf32> to vector<2x16x16x36xf32>
    %14 = arith.mulf %11, %13 : vector<2x16x16x36xf32>
    %15 = vector.extract_strided_slice %1 {offsets = [3, 0], sizes = [1, 36], strides = [1, 1]} : vector<9x36xf32> to vector<1x36xf32>
    %16 = vector.extract_strided_slice %9 {offsets = [0, 1, 0, 0], sizes = [2, 16, 16, 36], strides = [1, 1, 1, 1]} : vector<2x18x16x36xf32> to vector<2x16x16x36xf32>
    %17 = vector.shape_cast %15 : vector<1x36xf32> to vector<1x1x1x36xf32>
    %18 = vector.broadcast %17 : vector<1x1x1x36xf32> to vector<2x16x16x36xf32>
    %19 = arith.mulf %16, %18 : vector<2x16x16x36xf32>
    %20 = arith.addf %14, %19 : vector<2x16x16x36xf32>
    %21 = vector.extract_strided_slice %1 {offsets = [6, 0], sizes = [1, 36], strides = [1, 1]} : vector<9x36xf32> to vector<1x36xf32>
    %22 = vector.extract_strided_slice %9 {offsets = [0, 2, 0, 0], sizes = [2, 16, 16, 36], strides = [1, 1, 1, 1]} : vector<2x18x16x36xf32> to vector<2x16x16x36xf32>
    %23 = vector.shape_cast %21 : vector<1x36xf32> to vector<1x1x1x36xf32>
    %24 = vector.broadcast %23 : vector<1x1x1x36xf32> to vector<2x16x16x36xf32>
    %25 = arith.mulf %22, %24 : vector<2x16x16x36xf32>
    %26 = arith.addf %20, %25 : vector<2x16x16x36xf32>
    %c0_28 = arith.constant 0 : index
    %c0_29 = arith.constant 0 : index
    %c1_30 = arith.constant 1 : index
    %c0_31 = arith.constant 0 : index
    %27 = vector.load %arg17[%c0_28, %c0_29, %c1_30, %c0_31] : memref<2x18x18x36xf32, #tpu.memory_space<vmem>>, vector<2x18x16x36xf32>
    %28 = vector.extract_strided_slice %1 {offsets = [1, 0], sizes = [1, 36], strides = [1, 1]} : vector<9x36xf32> to vector<1x36xf32>
    %29 = vector.extract_strided_slice %27 {offsets = [0, 0, 0, 0], sizes = [2, 16, 16, 36], strides = [1, 1, 1, 1]} : vector<2x18x16x36xf32> to vector<2x16x16x36xf32>
    %30 = vector.shape_cast %28 : vector<1x36xf32> to vector<1x1x1x36xf32>
    %31 = vector.broadcast %30 : vector<1x1x1x36xf32> to vector<2x16x16x36xf32>
    %32 = arith.mulf %29, %31 : vector<2x16x16x36xf32>
    %33 = arith.addf %26, %32 : vector<2x16x16x36xf32>
    %34 = vector.extract_strided_slice %1 {offsets = [4, 0], sizes = [1, 36], strides = [1, 1]} : vector<9x36xf32> to vector<1x36xf32>
    %35 = vector.extract_strided_slice %27 {offsets = [0, 1, 0, 0], sizes = [2, 16, 16, 36], strides = [1, 1, 1, 1]} : vector<2x18x16x36xf32> to vector<2x16x16x36xf32>
    %36 = vector.shape_cast %34 : vector<1x36xf32> to vector<1x1x1x36xf32>
    %37 = vector.broadcast %36 : vector<1x1x1x36xf32> to vector<2x16x16x36xf32>
    %38 = arith.mulf %35, %37 : vector<2x16x16x36xf32>
    %39 = arith.addf %33, %38 : vector<2x16x16x36xf32>
    %40 = vector.extract_strided_slice %1 {offsets = [7, 0], sizes = [1, 36], strides = [1, 1]} : vector<9x36xf32> to vector<1x36xf32>
    %41 = vector.extract_strided_slice %27 {offsets = [0, 2, 0, 0], sizes = [2, 16, 16, 36], strides = [1, 1, 1, 1]} : vector<2x18x16x36xf32> to vector<2x16x16x36xf32>
    %42 = vector.shape_cast %40 : vector<1x36xf32> to vector<1x1x1x36xf32>
    %43 = vector.broadcast %42 : vector<1x1x1x36xf32> to vector<2x16x16x36xf32>
    %44 = arith.mulf %41, %43 : vector<2x16x16x36xf32>
    %45 = arith.addf %39, %44 : vector<2x16x16x36xf32>
    %c0_32 = arith.constant 0 : index
    %c0_33 = arith.constant 0 : index
    %c2 = arith.constant 2 : index
    %c0_34 = arith.constant 0 : index
    %46 = vector.load %arg17[%c0_32, %c0_33, %c2, %c0_34] : memref<2x18x18x36xf32, #tpu.memory_space<vmem>>, vector<2x18x16x36xf32>
    %47 = vector.extract_strided_slice %1 {offsets = [2, 0], sizes = [1, 36], strides = [1, 1]} : vector<9x36xf32> to vector<1x36xf32>
    %48 = vector.extract_strided_slice %46 {offsets = [0, 0, 0, 0], sizes = [2, 16, 16, 36], strides = [1, 1, 1, 1]} : vector<2x18x16x36xf32> to vector<2x16x16x36xf32>
    %49 = vector.shape_cast %47 : vector<1x36xf32> to vector<1x1x1x36xf32>
    %50 = vector.broadcast %49 : vector<1x1x1x36xf32> to vector<2x16x16x36xf32>
    %51 = arith.mulf %48, %50 : vector<2x16x16x36xf32>
    %52 = arith.addf %45, %51 : vector<2x16x16x36xf32>
    %53 = vector.extract_strided_slice %1 {offsets = [5, 0], sizes = [1, 36], strides = [1, 1]} : vector<9x36xf32> to vector<1x36xf32>
    %54 = vector.extract_strided_slice %46 {offsets = [0, 1, 0, 0], sizes = [2, 16, 16, 36], strides = [1, 1, 1, 1]} : vector<2x18x16x36xf32> to vector<2x16x16x36xf32>
    %55 = vector.shape_cast %53 : vector<1x36xf32> to vector<1x1x1x36xf32>
    %56 = vector.broadcast %55 : vector<1x1x1x36xf32> to vector<2x16x16x36xf32>
    %57 = arith.mulf %54, %56 : vector<2x16x16x36xf32>
    %58 = arith.addf %52, %57 : vector<2x16x16x36xf32>
    %59 = vector.extract_strided_slice %1 {offsets = [8, 0], sizes = [1, 36], strides = [1, 1]} : vector<9x36xf32> to vector<1x36xf32>
    %60 = vector.extract_strided_slice %46 {offsets = [0, 2, 0, 0], sizes = [2, 16, 16, 36], strides = [1, 1, 1, 1]} : vector<2x18x16x36xf32> to vector<2x16x16x36xf32>
    %61 = vector.shape_cast %59 : vector<1x36xf32> to vector<1x1x1x36xf32>
    %62 = vector.broadcast %61 : vector<1x1x1x36xf32> to vector<2x16x16x36xf32>
    %63 = arith.mulf %60, %62 : vector<2x16x16x36xf32>
    %64 = arith.addf %58, %63 : vector<2x16x16x36xf32>
    %cst_35 = arith.constant dense<0.000000e+00> : vector<36xf32>
    %65 = vector.multi_reduction <add>, %64, %cst_35 [0, 1, 2] : vector<2x16x16x36xf32> to vector<36xf32>
    %66 = vector.shape_cast %65 : vector<36xf32> to vector<1x1x1x36xf32>
    %67 = arith.mulf %64, %64 : vector<2x16x16x36xf32>
    %cst_36 = arith.constant dense<0.000000e+00> : vector<36xf32>
    %68 = vector.multi_reduction <add>, %67, %cst_36 [0, 1, 2] : vector<2x16x16x36xf32> to vector<36xf32>
    %69 = vector.shape_cast %68 : vector<36xf32> to vector<1x1x1x36xf32>
    %cst_37 = arith.constant 0.001953125 : f32
    %70 = vector.broadcast %cst_37 : f32 to vector<1x1x1x36xf32>
    %71 = arith.mulf %66, %70 : vector<1x1x1x36xf32>
    %cst_38 = arith.constant 0.001953125 : f32
    %72 = vector.broadcast %cst_38 : f32 to vector<1x1x1x36xf32>
    %73 = arith.mulf %69, %72 : vector<1x1x1x36xf32>
    %74 = arith.mulf %71, %71 : vector<1x1x1x36xf32>
    %75 = arith.subf %73, %74 : vector<1x1x1x36xf32>
    %cst_39 = arith.constant 0.000000e+00 : f32
    %76 = vector.broadcast %cst_39 : f32 to vector<1x1x1x36xf32>
    %77 = arith.maximumf %75, %76 : vector<1x1x1x36xf32>
    %c0_40 = arith.constant 0 : index
    %c0_41 = arith.constant 0 : index
    %78 = vector.load %arg4[%c0_40, %c0_41] : memref<1x36xf32, #tpu.memory_space<vmem>>, vector<1x36xf32>
    %cst_42 = arith.constant 9.99999974E-6 : f32
    %79 = vector.broadcast %cst_42 : f32 to vector<1x1x1x36xf32>
    %80 = arith.addf %77, %79 : vector<1x1x1x36xf32>
    %81 = math.rsqrt %80 : vector<1x1x1x36xf32>
    %82 = vector.shape_cast %78 : vector<1x36xf32> to vector<1x1x1x36xf32>
    %83 = arith.mulf %82, %81 : vector<1x1x1x36xf32>
    %c0_43 = arith.constant 0 : index
    %c0_44 = arith.constant 0 : index
    %84 = vector.load %arg5[%c0_43, %c0_44] : memref<1x36xf32, #tpu.memory_space<vmem>>, vector<1x36xf32>
    %85 = arith.mulf %71, %83 : vector<1x1x1x36xf32>
    %86 = vector.shape_cast %84 : vector<1x36xf32> to vector<1x1x1x36xf32>
    %87 = arith.subf %86, %85 : vector<1x1x1x36xf32>
    %88 = vector.broadcast %83 : vector<1x1x1x36xf32> to vector<2x16x16x36xf32>
    %89 = arith.mulf %64, %88 : vector<2x16x16x36xf32>
    %90 = vector.broadcast %87 : vector<1x1x1x36xf32> to vector<2x16x16x36xf32>
    %91 = arith.addf %89, %90 : vector<2x16x16x36xf32>
    %cst_45 = arith.constant 0.000000e+00 : f32
    %92 = vector.broadcast %cst_45 : f32 to vector<2x16x16x36xf32>
    %93 = arith.maximumf %91, %92 : vector<2x16x16x36xf32>
    %94 = vector.shape_cast %93 : vector<2x16x16x36xf32> to vector<512x36xf32>
    %c0_46 = arith.constant 0 : index
    %c0_47 = arith.constant 0 : index
    %95 = vector.load %arg6[%c0_46, %c0_47] : memref<36x32xf32, #tpu.memory_space<vmem>>, vector<36x32xf32>
    %cst_48 = arith.constant dense<0.000000e+00> : vector<512x32xf32>
    %96 = tpu.matmul %94, %95, %cst_48 {dimension_numbers = #tpu.dot_dimension_numbers<[1], [0], [0], [1], [0, 0, 1, 1], [], []>} : vector<512x36xf32>, vector<36x32xf32>, vector<512x32xf32> -> vector<512x32xf32>
    %97 = vector.shape_cast %96 : vector<512x32xf32> to vector<2x16x16x32xf32>
    %cst_49 = arith.constant dense<0.000000e+00> : vector<32xf32>
    %98 = vector.multi_reduction <add>, %97, %cst_49 [0, 1, 2] : vector<2x16x16x32xf32> to vector<32xf32>
    %99 = vector.shape_cast %98 : vector<32xf32> to vector<1x1x1x32xf32>
    %100 = arith.mulf %97, %97 : vector<2x16x16x32xf32>
    %cst_50 = arith.constant dense<0.000000e+00> : vector<32xf32>
    %101 = vector.multi_reduction <add>, %100, %cst_50 [0, 1, 2] : vector<2x16x16x32xf32> to vector<32xf32>
    %102 = vector.shape_cast %101 : vector<32xf32> to vector<1x1x1x32xf32>
    %cst_51 = arith.constant 0.001953125 : f32
    %103 = vector.broadcast %cst_51 : f32 to vector<1x1x1x32xf32>
    %104 = arith.mulf %99, %103 : vector<1x1x1x32xf32>
    %cst_52 = arith.constant 0.001953125 : f32
    %105 = vector.broadcast %cst_52 : f32 to vector<1x1x1x32xf32>
    %106 = arith.mulf %102, %105 : vector<1x1x1x32xf32>
    %107 = arith.mulf %104, %104 : vector<1x1x1x32xf32>
    %108 = arith.subf %106, %107 : vector<1x1x1x32xf32>
    %cst_53 = arith.constant 0.000000e+00 : f32
    %109 = vector.broadcast %cst_53 : f32 to vector<1x1x1x32xf32>
    %110 = arith.maximumf %108, %109 : vector<1x1x1x32xf32>
    %c0_54 = arith.constant 0 : index
    %c0_55 = arith.constant 0 : index
    %111 = vector.load %arg7[%c0_54, %c0_55] : memref<1x32xf32, #tpu.memory_space<vmem>>, vector<1x32xf32>
    %cst_56 = arith.constant 9.99999974E-6 : f32
    %112 = vector.broadcast %cst_56 : f32 to vector<1x1x1x32xf32>
    %113 = arith.addf %110, %112 : vector<1x1x1x32xf32>
    %114 = math.rsqrt %113 : vector<1x1x1x32xf32>
    %115 = vector.shape_cast %111 : vector<1x32xf32> to vector<1x1x1x32xf32>
    %116 = arith.mulf %115, %114 : vector<1x1x1x32xf32>
    %c0_57 = arith.constant 0 : index
    %c0_58 = arith.constant 0 : index
    %117 = vector.load %arg8[%c0_57, %c0_58] : memref<1x32xf32, #tpu.memory_space<vmem>>, vector<1x32xf32>
    %118 = arith.mulf %104, %116 : vector<1x1x1x32xf32>
    %119 = vector.shape_cast %117 : vector<1x32xf32> to vector<1x1x1x32xf32>
    %120 = arith.subf %119, %118 : vector<1x1x1x32xf32>
    %121 = vector.broadcast %116 : vector<1x1x1x32xf32> to vector<2x16x16x32xf32>
    %122 = arith.mulf %97, %121 : vector<2x16x16x32xf32>
    %123 = vector.broadcast %120 : vector<1x1x1x32xf32> to vector<2x16x16x32xf32>
    %124 = arith.addf %122, %123 : vector<2x16x16x32xf32>
    %cst_59 = arith.constant 0.000000e+00 : f32
    %125 = vector.broadcast %cst_59 : f32 to vector<2x16x16x32xf32>
    %126 = arith.maximumf %124, %125 : vector<2x16x16x32xf32>
    %c0_60 = arith.constant 0 : index
    %c0_61 = arith.constant 0 : index
    %127 = vector.load %arg9[%c0_60, %c0_61] : memref<9x32xf32, #tpu.memory_space<vmem>>, vector<9x32xf32>
    %cst_62 = arith.constant 0.000000e+00 : f32
    %128 = vector.broadcast %cst_62 : f32 to vector<2x1x18x32xf32>
    %cst_63 = arith.constant 0.000000e+00 : f32
    %129 = vector.broadcast %cst_63 : f32 to vector<2x18x1x32xf32>
    %c0_64 = arith.constant 0 : index
    %c0_65 = arith.constant 0 : index
    %c0_66 = arith.constant 0 : index
    %c0_67 = arith.constant 0 : index
    %130 = vector.load %arg18[%c0_64, %c0_65, %c0_66, %c0_67] : memref<2x18x18x32xf32, #tpu.memory_space<vmem>>, vector<2x1x18x32xf32>
    tpu.vector_store %arg18[%c0_64, %c0_65, %c0_66, %c0_67], %128 {strides = array<i32>} : memref<2x18x18x32xf32, #tpu.memory_space<vmem>>, vector<2x1x18x32xf32>,
    %c0_68 = arith.constant 0 : index
    %c17_69 = arith.constant 17 : index
    %c0_70 = arith.constant 0 : index
    %c0_71 = arith.constant 0 : index
    %131 = vector.load %arg18[%c0_68, %c17_69, %c0_70, %c0_71] : memref<2x18x18x32xf32, #tpu.memory_space<vmem>>, vector<2x1x18x32xf32>
    tpu.vector_store %arg18[%c0_68, %c17_69, %c0_70, %c0_71], %128 {strides = array<i32>} : memref<2x18x18x32xf32, #tpu.memory_space<vmem>>, vector<2x1x18x32xf32>,
    %c0_72 = arith.constant 0 : index
    %c0_73 = arith.constant 0 : index
    %c0_74 = arith.constant 0 : index
    %c0_75 = arith.constant 0 : index
    %132 = vector.load %arg18[%c0_72, %c0_73, %c0_74, %c0_75] : memref<2x18x18x32xf32, #tpu.memory_space<vmem>>, vector<2x18x1x32xf32>
    tpu.vector_store %arg18[%c0_72, %c0_73, %c0_74, %c0_75], %129 {strides = array<i32>} : memref<2x18x18x32xf32, #tpu.memory_space<vmem>>, vector<2x18x1x32xf32>,
    %c0_76 = arith.constant 0 : index
    %c0_77 = arith.constant 0 : index
    %c17_78 = arith.constant 17 : index
    %c0_79 = arith.constant 0 : index
    %133 = vector.load %arg18[%c0_76, %c0_77, %c17_78, %c0_79] : memref<2x18x18x32xf32, #tpu.memory_space<vmem>>, vector<2x18x1x32xf32>
    tpu.vector_store %arg18[%c0_76, %c0_77, %c17_78, %c0_79], %129 {strides = array<i32>} : memref<2x18x18x32xf32, #tpu.memory_space<vmem>>, vector<2x18x1x32xf32>,
    %c0_80 = arith.constant 0 : index
    %c1_81 = arith.constant 1 : index
    %c1_82 = arith.constant 1 : index
    %c0_83 = arith.constant 0 : index
    %134 = vector.load %arg18[%c0_80, %c1_81, %c1_82, %c0_83] : memref<2x18x18x32xf32, #tpu.memory_space<vmem>>, vector<2x16x16x32xf32>
    tpu.vector_store %arg18[%c0_80, %c1_81, %c1_82, %c0_83], %126 {strides = array<i32>} : memref<2x18x18x32xf32, #tpu.memory_space<vmem>>, vector<2x16x16x32xf32>,
    %c0_84 = arith.constant 0 : index
    %c0_85 = arith.constant 0 : index
    %c0_86 = arith.constant 0 : index
    %c0_87 = arith.constant 0 : index
    %135 = vector.load %arg18[%c0_84, %c0_85, %c0_86, %c0_87] : memref<2x18x18x32xf32, #tpu.memory_space<vmem>>, vector<2x18x16x32xf32>
    %136 = vector.extract_strided_slice %127 {offsets = [0, 0], sizes = [1, 32], strides = [1, 1]} : vector<9x32xf32> to vector<1x32xf32>
    %137 = vector.extract_strided_slice %135 {offsets = [0, 0, 0, 0], sizes = [2, 16, 16, 32], strides = [1, 1, 1, 1]} : vector<2x18x16x32xf32> to vector<2x16x16x32xf32>
    %138 = vector.shape_cast %136 : vector<1x32xf32> to vector<1x1x1x32xf32>
    %139 = vector.broadcast %138 : vector<1x1x1x32xf32> to vector<2x16x16x32xf32>
    %140 = arith.mulf %137, %139 : vector<2x16x16x32xf32>
    %141 = vector.extract_strided_slice %127 {offsets = [3, 0], sizes = [1, 32], strides = [1, 1]} : vector<9x32xf32> to vector<1x32xf32>
    %142 = vector.extract_strided_slice %135 {offsets = [0, 1, 0, 0], sizes = [2, 16, 16, 32], strides = [1, 1, 1, 1]} : vector<2x18x16x32xf32> to vector<2x16x16x32xf32>
    %143 = vector.shape_cast %141 : vector<1x32xf32> to vector<1x1x1x32xf32>
    %144 = vector.broadcast %143 : vector<1x1x1x32xf32> to vector<2x16x16x32xf32>
    %145 = arith.mulf %142, %144 : vector<2x16x16x32xf32>
    %146 = arith.addf %140, %145 : vector<2x16x16x32xf32>
    %147 = vector.extract_strided_slice %127 {offsets = [6, 0], sizes = [1, 32], strides = [1, 1]} : vector<9x32xf32> to vector<1x32xf32>
    %148 = vector.extract_strided_slice %135 {offsets = [0, 2, 0, 0], sizes = [2, 16, 16, 32], strides = [1, 1, 1, 1]} : vector<2x18x16x32xf32> to vector<2x16x16x32xf32>
    %149 = vector.shape_cast %147 : vector<1x32xf32> to vector<1x1x1x32xf32>
    %150 = vector.broadcast %149 : vector<1x1x1x32xf32> to vector<2x16x16x32xf32>
    %151 = arith.mulf %148, %150 : vector<2x16x16x32xf32>
    %152 = arith.addf %146, %151 : vector<2x16x16x32xf32>
    %c0_88 = arith.constant 0 : index
    %c0_89 = arith.constant 0 : index
    %c1_90 = arith.constant 1 : index
    %c0_91 = arith.constant 0 : index
    %153 = vector.load %arg18[%c0_88, %c0_89, %c1_90, %c0_91] : memref<2x18x18x32xf32, #tpu.memory_space<vmem>>, vector<2x18x16x32xf32>
    %154 = vector.extract_strided_slice %127 {offsets = [1, 0], sizes = [1, 32], strides = [1, 1]} : vector<9x32xf32> to vector<1x32xf32>
    %155 = vector.extract_strided_slice %153 {offsets = [0, 0, 0, 0], sizes = [2, 16, 16, 32], strides = [1, 1, 1, 1]} : vector<2x18x16x32xf32> to vector<2x16x16x32xf32>
    %156 = vector.shape_cast %154 : vector<1x32xf32> to vector<1x1x1x32xf32>
    %157 = vector.broadcast %156 : vector<1x1x1x32xf32> to vector<2x16x16x32xf32>
    %158 = arith.mulf %155, %157 : vector<2x16x16x32xf32>
    %159 = arith.addf %152, %158 : vector<2x16x16x32xf32>
    %160 = vector.extract_strided_slice %127 {offsets = [4, 0], sizes = [1, 32], strides = [1, 1]} : vector<9x32xf32> to vector<1x32xf32>
    %161 = vector.extract_strided_slice %153 {offsets = [0, 1, 0, 0], sizes = [2, 16, 16, 32], strides = [1, 1, 1, 1]} : vector<2x18x16x32xf32> to vector<2x16x16x32xf32>
    %162 = vector.shape_cast %160 : vector<1x32xf32> to vector<1x1x1x32xf32>
    %163 = vector.broadcast %162 : vector<1x1x1x32xf32> to vector<2x16x16x32xf32>
    %164 = arith.mulf %161, %163 : vector<2x16x16x32xf32>
    %165 = arith.addf %159, %164 : vector<2x16x16x32xf32>
    %166 = vector.extract_strided_slice %127 {offsets = [7, 0], sizes = [1, 32], strides = [1, 1]} : vector<9x32xf32> to vector<1x32xf32>
    %167 = vector.extract_strided_slice %153 {offsets = [0, 2, 0, 0], sizes = [2, 16, 16, 32], strides = [1, 1, 1, 1]} : vector<2x18x16x32xf32> to vector<2x16x16x32xf32>
    %168 = vector.shape_cast %166 : vector<1x32xf32> to vector<1x1x1x32xf32>
    %169 = vector.broadcast %168 : vector<1x1x1x32xf32> to vector<2x16x16x32xf32>
    %170 = arith.mulf %167, %169 : vector<2x16x16x32xf32>
    %171 = arith.addf %165, %170 : vector<2x16x16x32xf32>
    %c0_92 = arith.constant 0 : index
    %c0_93 = arith.constant 0 : index
    %c2_94 = arith.constant 2 : index
    %c0_95 = arith.constant 0 : index
    %172 = vector.load %arg18[%c0_92, %c0_93, %c2_94, %c0_95] : memref<2x18x18x32xf32, #tpu.memory_space<vmem>>, vector<2x18x16x32xf32>
    %173 = vector.extract_strided_slice %127 {offsets = [2, 0], sizes = [1, 32], strides = [1, 1]} : vector<9x32xf32> to vector<1x32xf32>
    %174 = vector.extract_strided_slice %172 {offsets = [0, 0, 0, 0], sizes = [2, 16, 16, 32], strides = [1, 1, 1, 1]} : vector<2x18x16x32xf32> to vector<2x16x16x32xf32>
    %175 = vector.shape_cast %173 : vector<1x32xf32> to vector<1x1x1x32xf32>
    %176 = vector.broadcast %175 : vector<1x1x1x32xf32> to vector<2x16x16x32xf32>
    %177 = arith.mulf %174, %176 : vector<2x16x16x32xf32>
    %178 = arith.addf %171, %177 : vector<2x16x16x32xf32>
    %179 = vector.extract_strided_slice %127 {offsets = [5, 0], sizes = [1, 32], strides = [1, 1]} : vector<9x32xf32> to vector<1x32xf32>
    %180 = vector.extract_strided_slice %172 {offsets = [0, 1, 0, 0], sizes = [2, 16, 16, 32], strides = [1, 1, 1, 1]} : vector<2x18x16x32xf32> to vector<2x16x16x32xf32>
    %181 = vector.shape_cast %179 : vector<1x32xf32> to vector<1x1x1x32xf32>
    %182 = vector.broadcast %181 : vector<1x1x1x32xf32> to vector<2x16x16x32xf32>
    %183 = arith.mulf %180, %182 : vector<2x16x16x32xf32>
    %184 = arith.addf %178, %183 : vector<2x16x16x32xf32>
    %185 = vector.extract_strided_slice %127 {offsets = [8, 0], sizes = [1, 32], strides = [1, 1]} : vector<9x32xf32> to vector<1x32xf32>
    %186 = vector.extract_strided_slice %172 {offsets = [0, 2, 0, 0], sizes = [2, 16, 16, 32], strides = [1, 1, 1, 1]} : vector<2x18x16x32xf32> to vector<2x16x16x32xf32>
    %187 = vector.shape_cast %185 : vector<1x32xf32> to vector<1x1x1x32xf32>
    %188 = vector.broadcast %187 : vector<1x1x1x32xf32> to vector<2x16x16x32xf32>
    %189 = arith.mulf %186, %188 : vector<2x16x16x32xf32>
    %190 = arith.addf %184, %189 : vector<2x16x16x32xf32>
    %cst_96 = arith.constant dense<0.000000e+00> : vector<32xf32>
    %191 = vector.multi_reduction <add>, %190, %cst_96 [0, 1, 2] : vector<2x16x16x32xf32> to vector<32xf32>
    %192 = vector.shape_cast %191 : vector<32xf32> to vector<1x1x1x32xf32>
    %193 = arith.mulf %190, %190 : vector<2x16x16x32xf32>
    %cst_97 = arith.constant dense<0.000000e+00> : vector<32xf32>
    %194 = vector.multi_reduction <add>, %193, %cst_97 [0, 1, 2] : vector<2x16x16x32xf32> to vector<32xf32>
    %195 = vector.shape_cast %194 : vector<32xf32> to vector<1x1x1x32xf32>
    %cst_98 = arith.constant 0.001953125 : f32
    %196 = vector.broadcast %cst_98 : f32 to vector<1x1x1x32xf32>
    %197 = arith.mulf %192, %196 : vector<1x1x1x32xf32>
    %cst_99 = arith.constant 0.001953125 : f32
    %198 = vector.broadcast %cst_99 : f32 to vector<1x1x1x32xf32>
    %199 = arith.mulf %195, %198 : vector<1x1x1x32xf32>
    %200 = arith.mulf %197, %197 : vector<1x1x1x32xf32>
    %201 = arith.subf %199, %200 : vector<1x1x1x32xf32>
    %cst_100 = arith.constant 0.000000e+00 : f32
    %202 = vector.broadcast %cst_100 : f32 to vector<1x1x1x32xf32>
    %203 = arith.maximumf %201, %202 : vector<1x1x1x32xf32>
    %c0_101 = arith.constant 0 : index
    %c0_102 = arith.constant 0 : index
    %204 = vector.load %arg10[%c0_101, %c0_102] : memref<1x32xf32, #tpu.memory_space<vmem>>, vector<1x32xf32>
    %cst_103 = arith.constant 9.99999974E-6 : f32
    %205 = vector.broadcast %cst_103 : f32 to vector<1x1x1x32xf32>
    %206 = arith.addf %203, %205 : vector<1x1x1x32xf32>
    %207 = math.rsqrt %206 : vector<1x1x1x32xf32>
    %208 = vector.shape_cast %204 : vector<1x32xf32> to vector<1x1x1x32xf32>
    %209 = arith.mulf %208, %207 : vector<1x1x1x32xf32>
    %c0_104 = arith.constant 0 : index
    %c0_105 = arith.constant 0 : index
    %210 = vector.load %arg11[%c0_104, %c0_105] : memref<1x32xf32, #tpu.memory_space<vmem>>, vector<1x32xf32>
    %211 = arith.mulf %197, %209 : vector<1x1x1x32xf32>
    %212 = vector.shape_cast %210 : vector<1x32xf32> to vector<1x1x1x32xf32>
    %213 = arith.subf %212, %211 : vector<1x1x1x32xf32>
    %214 = vector.broadcast %209 : vector<1x1x1x32xf32> to vector<2x16x16x32xf32>
    %215 = arith.mulf %190, %214 : vector<2x16x16x32xf32>
    %216 = vector.broadcast %213 : vector<1x1x1x32xf32> to vector<2x16x16x32xf32>
    %217 = arith.addf %215, %216 : vector<2x16x16x32xf32>
    %cst_106 = arith.constant 0.000000e+00 : f32
    %218 = vector.broadcast %cst_106 : f32 to vector<2x16x16x32xf32>
    %219 = arith.maximumf %217, %218 : vector<2x16x16x32xf32>
    %220 = vector.shape_cast %219 : vector<2x16x16x32xf32> to vector<512x32xf32>
    %c0_107 = arith.constant 0 : index
    %c0_108 = arith.constant 0 : index
    %221 = vector.load %arg12[%c0_107, %c0_108] : memref<32x128xf32, #tpu.memory_space<vmem>>, vector<32x128xf32>
    %cst_109 = arith.constant dense<0.000000e+00> : vector<512x128xf32>
    %222 = tpu.matmul %220, %221, %cst_109 {dimension_numbers = #tpu.dot_dimension_numbers<[1], [0], [0], [1], [0, 0, 1, 1], [], []>} : vector<512x32xf32>, vector<32x128xf32>, vector<512x128xf32> -> vector<512x128xf32>
    %223 = vector.shape_cast %222 : vector<512x128xf32> to vector<2x16x16x128xf32>
    %cst_110 = arith.constant dense<0.000000e+00> : vector<128xf32>
    %224 = vector.multi_reduction <add>, %223, %cst_110 [0, 1, 2] : vector<2x16x16x128xf32> to vector<128xf32>
    %225 = vector.shape_cast %224 : vector<128xf32> to vector<1x1x1x128xf32>
    %226 = arith.mulf %223, %223 : vector<2x16x16x128xf32>
    %cst_111 = arith.constant dense<0.000000e+00> : vector<128xf32>
    %227 = vector.multi_reduction <add>, %226, %cst_111 [0, 1, 2] : vector<2x16x16x128xf32> to vector<128xf32>
    %228 = vector.shape_cast %227 : vector<128xf32> to vector<1x1x1x128xf32>
    %cst_112 = arith.constant 0.001953125 : f32
    %229 = vector.broadcast %cst_112 : f32 to vector<1x1x1x128xf32>
    %230 = arith.mulf %225, %229 : vector<1x1x1x128xf32>
    %cst_113 = arith.constant 0.001953125 : f32
    %231 = vector.broadcast %cst_113 : f32 to vector<1x1x1x128xf32>
    %232 = arith.mulf %228, %231 : vector<1x1x1x128xf32>
    %233 = arith.mulf %230, %230 : vector<1x1x1x128xf32>
    %234 = arith.subf %232, %233 : vector<1x1x1x128xf32>
    %cst_114 = arith.constant 0.000000e+00 : f32
    %235 = vector.broadcast %cst_114 : f32 to vector<1x1x1x128xf32>
    %236 = arith.maximumf %234, %235 : vector<1x1x1x128xf32>
    %c0_115 = arith.constant 0 : index
    %c0_116 = arith.constant 0 : index
    %237 = vector.load %arg13[%c0_115, %c0_116] : memref<1x128xf32, #tpu.memory_space<vmem>>, vector<1x128xf32>
    %cst_117 = arith.constant 9.99999974E-6 : f32
    %238 = vector.broadcast %cst_117 : f32 to vector<1x1x1x128xf32>
    %239 = arith.addf %236, %238 : vector<1x1x1x128xf32>
    %240 = math.rsqrt %239 : vector<1x1x1x128xf32>
    %241 = vector.shape_cast %237 : vector<1x128xf32> to vector<1x1x1x128xf32>
    %242 = arith.mulf %241, %240 : vector<1x1x1x128xf32>
    %c0_118 = arith.constant 0 : index
    %c0_119 = arith.constant 0 : index
    %243 = vector.load %arg14[%c0_118, %c0_119] : memref<1x128xf32, #tpu.memory_space<vmem>>, vector<1x128xf32>
    %244 = arith.mulf %230, %242 : vector<1x1x1x128xf32>
    %245 = vector.shape_cast %243 : vector<1x128xf32> to vector<1x1x1x128xf32>
    %246 = arith.subf %245, %244 : vector<1x1x1x128xf32>
    %247 = vector.broadcast %242 : vector<1x1x1x128xf32> to vector<2x16x16x128xf32>
    %248 = arith.mulf %223, %247 : vector<2x16x16x128xf32>
    %249 = vector.broadcast %246 : vector<1x1x1x128xf32> to vector<2x16x16x128xf32>
    %250 = arith.addf %248, %249 : vector<2x16x16x128xf32>
    %cst_120 = arith.constant 0.000000e+00 : f32
    %251 = vector.broadcast %cst_120 : f32 to vector<2x16x16x128xf32>
    %252 = arith.maximumf %250, %251 : vector<2x16x16x128xf32>
    %253 = tpu.iota {dimensions = array<i32: 1>} : vector<1x128xi32>
    %254 = vector.shape_cast %253 : vector<1x128xi32> to vector<1x1x1x128xi32>
    %c96_i32 = arith.constant 96 : i32
    %255 = vector.broadcast %c96_i32 : i32 to vector<1x1x1x128xi32>
    %256 = arith.cmpi sge, %254, %255 : vector<1x1x1x128xi32>
    %cst_121 = arith.constant 1.000000e+00 : f32
    %cst_122 = arith.constant 5.000000e-01 : f32
    %257 = vector.broadcast %cst_121 : f32 to vector<1x1x1x128xf32>
    %258 = vector.broadcast %cst_122 : f32 to vector<1x1x1x128xf32>
    %259 = arith.select %256, %257, %258 : vector<1x1x1x128xi1>, vector<1x1x1x128xf32>
    %cst_123 = arith.constant 0.000000e+00 : f32
    %cst_124 = arith.constant 5.000000e-01 : f32
    %260 = vector.broadcast %cst_123 : f32 to vector<1x1x1x128xf32>
    %261 = vector.broadcast %cst_124 : f32 to vector<1x1x1x128xf32>
    %262 = arith.select %256, %260, %261 : vector<1x1x1x128xi1>, vector<1x1x1x128xf32>
    %263 = vector.broadcast %259 : vector<1x1x1x128xf32> to vector<2x16x16x128xf32>
    %264 = arith.mulf %252, %263 : vector<2x16x16x128xf32>
    %265 = math.tanh %264 : vector<2x16x16x128xf32>
    %266 = vector.broadcast %259 : vector<1x1x1x128xf32> to vector<2x16x16x128xf32>
    %267 = arith.mulf %265, %266 : vector<2x16x16x128xf32>
    %268 = vector.broadcast %262 : vector<1x1x1x128xf32> to vector<2x16x16x128xf32>
    %269 = arith.addf %267, %268 : vector<2x16x16x128xf32>
    %270 = vector.extract_strided_slice %269 {offsets = [0, 0, 0, 0], sizes = [2, 16, 16, 32], strides = [1, 1, 1, 1]} : vector<2x16x16x128xf32> to vector<2x16x16x32xf32>
    %271 = vector.extract_strided_slice %269 {offsets = [0, 0, 0, 32], sizes = [2, 16, 16, 32], strides = [1, 1, 1, 1]} : vector<2x16x16x128xf32> to vector<2x16x16x32xf32>
    %272 = vector.extract_strided_slice %269 {offsets = [0, 0, 0, 64], sizes = [2, 16, 16, 32], strides = [1, 1, 1, 1]} : vector<2x16x16x128xf32> to vector<2x16x16x32xf32>
    %273 = vector.extract_strided_slice %269 {offsets = [0, 0, 0, 96], sizes = [2, 16, 16, 32], strides = [1, 1, 1, 1]} : vector<2x16x16x128xf32> to vector<2x16x16x32xf32>
    %c0_125 = arith.constant 0 : index
    %c0_126 = arith.constant 0 : index
    %c0_127 = arith.constant 0 : index
    %c0_128 = arith.constant 0 : index
    %274 = vector.load %arg2[%c0_125, %c0_126, %c0_127, %c0_128] : memref<2x16x16x32xf32, #tpu.memory_space<vmem>>, vector<2x16x16x32xf32>
    %275 = arith.mulf %271, %274 : vector<2x16x16x32xf32>
    %276 = arith.mulf %270, %273 : vector<2x16x16x32xf32>
    %277 = arith.addf %275, %276 : vector<2x16x16x32xf32>
    %278 = math.tanh %277 : vector<2x16x16x32xf32>
    %279 = arith.mulf %272, %278 : vector<2x16x16x32xf32>
    %c0_129 = arith.constant 0 : index
    %c0_130 = arith.constant 0 : index
    %c0_131 = arith.constant 0 : index
    %c0_132 = arith.constant 0 : index
    %280 = vector.load %arg15[%c0_129, %c0_130, %c0_131, %c0_132] : memref<2x16x16x32xf32, #tpu.memory_space<vmem>>, vector<2x16x16x32xf32>
    tpu.vector_store %arg15[%c0_129, %c0_130, %c0_131, %c0_132], %279 {strides = array<i32>} : memref<2x16x16x32xf32, #tpu.memory_space<vmem>>, vector<2x16x16x32xf32>,
    %c0_133 = arith.constant 0 : index
    %c0_134 = arith.constant 0 : index
    %c0_135 = arith.constant 0 : index
    %c0_136 = arith.constant 0 : index
    %281 = vector.load %arg16[%c0_133, %c0_134, %c0_135, %c0_136] : memref<2x16x16x32xf32, #tpu.memory_space<vmem>>, vector<2x16x16x32xf32>
    tpu.vector_store %arg16[%c0_133, %c0_134, %c0_135, %c0_136], %277 {strides = array<i32>} : memref<2x16x16x32xf32, #tpu.memory_space<vmem>>, vector<2x16x16x32xf32>,
    return
  }
  func.func @transform_0(%arg0: i32) -> (i32, i32, i32, i32) {
    %c0_i32 = arith.constant 0 : i32
    %c0_i32_0 = arith.constant 0 : i32
    %c0_i32_1 = arith.constant 0 : i32
    %c0_i32_2 = arith.constant 0 : i32
    %c0_i32_3 = arith.constant 0 : i32
    return %c0_i32, %c0_i32_0, %c0_i32_1, %c0_i32_2 : i32, i32, i32, i32
  }
  func.func @transform_1(%arg0: i32) -> (i32, i32, i32, i32) {
    %c0_i32 = arith.constant 0 : i32
    %c0_i32_0 = arith.constant 0 : i32
    %c0_i32_1 = arith.constant 0 : i32
    %c0_i32_2 = arith.constant 0 : i32
    %c0_i32_3 = arith.constant 0 : i32
    return %c0_i32, %c0_i32_0, %c0_i32_1, %c0_i32_2 : i32, i32, i32, i32
  }
  func.func @transform_2(%arg0: i32) -> (i32, i32) {
    %c0_i32 = arith.constant 0 : i32
    %c0_i32_0 = arith.constant 0 : i32
    %c0_i32_1 = arith.constant 0 : i32
    return %c0_i32, %c0_i32_0 : i32, i32
  }
  func.func @transform_3(%arg0: i32) -> (i32, i32) {
    %c0_i32 = arith.constant 0 : i32
    %c0_i32_0 = arith.constant 0 : i32
    %c0_i32_1 = arith.constant 0 : i32
    return %c0_i32, %c0_i32_0 : i32, i32
  }
  func.func @transform_4(%arg0: i32) -> (i32, i32) {
    %c0_i32 = arith.constant 0 : i32
    %c0_i32_0 = arith.constant 0 : i32
    %c0_i32_1 = arith.constant 0 : i32
    return %c0_i32, %c0_i32_0 : i32, i32
  }
  func.func @transform_5(%arg0: i32) -> (i32, i32) {
    %c0_i32 = arith.constant 0 : i32
    %c0_i32_0 = arith.constant 0 : i32
    %c0_i32_1 = arith.constant 0 : i32
    return %c0_i32, %c0_i32_0 : i32, i32
  }
  func.func @transform_6(%arg0: i32) -> (i32, i32) {
    %c0_i32 = arith.constant 0 : i32
    %c0_i32_0 = arith.constant 0 : i32
    %c0_i32_1 = arith.constant 0 : i32
    return %c0_i32, %c0_i32_0 : i32, i32
  }
  func.func @transform_7(%arg0: i32) -> (i32, i32) {
    %c0_i32 = arith.constant 0 : i32
    %c0_i32_0 = arith.constant 0 : i32
    %c0_i32_1 = arith.constant 0 : i32
    return %c0_i32, %c0_i32_0 : i32, i32
  }
  func.func @transform_8(%arg0: i32) -> (i32, i32) {
    %c0_i32 = arith.constant 0 : i32
    %c0_i32_0 = arith.constant 0 : i32
    %c0_i32_1 = arith.constant 0 : i32
    return %c0_i32, %c0_i32_0 : i32, i32
  }
  func.func @transform_9(%arg0: i32) -> (i32, i32) {
    %c0_i32 = arith.constant 0 : i32
    %c0_i32_0 = arith.constant 0 : i32
    %c0_i32_1 = arith.constant 0 : i32
    return %c0_i32, %c0_i32_0 : i32, i32
  }
  func.func @transform_10(%arg0: i32) -> (i32, i32) {
    %c0_i32 = arith.constant 0 : i32
    %c0_i32_0 = arith.constant 0 : i32
    %c0_i32_1 = arith.constant 0 : i32
    return %c0_i32, %c0_i32_0 : i32, i32
  }
  func.func @transform_11(%arg0: i32) -> (i32, i32) {
    %c0_i32 = arith.constant 0 : i32
    %c0_i32_0 = arith.constant 0 : i32
    %c0_i32_1 = arith.constant 0 : i32
    return %c0_i32, %c0_i32_0 : i32, i32
  }
  func.func @transform_12(%arg0: i32) -> (i32, i32) {
    %c0_i32 = arith.constant 0 : i32
    %c0_i32_0 = arith.constant 0 : i32
    %c0_i32_1 = arith.constant 0 : i32
    return %c0_i32, %c0_i32_0 : i32, i32
  }
  func.func @transform_13(%arg0: i32) -> (i32, i32) {
    %c0_i32 = arith.constant 0 : i32
    %c0_i32_0 = arith.constant 0 : i32
    %c0_i32_1 = arith.constant 0 : i32
    return %c0_i32, %c0_i32_0 : i32, i32
  }
  func.func @transform_14(%arg0: i32) -> (i32, i32, i32, i32) {
    %c0_i32 = arith.constant 0 : i32
    %c0_i32_0 = arith.constant 0 : i32
    %c0_i32_1 = arith.constant 0 : i32
    %c0_i32_2 = arith.constant 0 : i32
    %c0_i32_3 = arith.constant 0 : i32
    return %c0_i32, %c0_i32_0, %c0_i32_1, %c0_i32_2 : i32, i32, i32, i32
  }
  func.func @transform_15(%arg0: i32) -> (i32, i32, i32, i32) {
    %c0_i32 = arith.constant 0 : i32
    %c0_i32_0 = arith.constant 0 : i32
    %c0_i32_1 = arith.constant 0 : i32
    %c0_i32_2 = arith.constant 0 : i32
    %c0_i32_3 = arith.constant 0 : i32
    return %c0_i32, %c0_i32_0, %c0_i32_1, %c0_i32_2 : i32, i32, i32, i32
  }
}

</mosaic_0001>

<llo_original>
// kernel: tpu_custom_call.1
$region0: #{tpu_custom_call.1}
  #allocation0 [shape = 'u32[]', space=smem, size = 0x4, offset = 0x4, fixed_abs, tag = 'smem constant byte address 0x4 - core index']
  #allocation1 [shape = 'u32[144,128]{1,0:T(1,128)}', space=vmem, size = 0x12000, scoped, tag = 'internal scratch']
  #allocation2 [shape = 'f32[2,18,18,36]{3,2,1,0:T(8,128)}', space=vmem, size = 0x6c000, scoped, tag = 'scratch operand']
  #allocation3 [shape = 'f32[2,18,18,32]{3,2,1,0:T(8,128)}', space=vmem, size = 0x6c000, scoped, tag = 'scratch operand']
  %s0 = inlined_call_operand.hbm [shape: f32[2,16,16,36], index: 0, kind: input, shape index: {}]
  %s1 = inlined_call_operand.hbm [shape: f32[2,16,16,32], index: 1, kind: input, shape index: {}]
  %s2 = inlined_call_operand.vmem [shape: f32[9,36], index: 2, kind: input, shape index: {}]
  %s3 = inlined_call_operand.vmem [shape: f32[1,36], index: 3, kind: input, shape index: {}]
  %s4 = inlined_call_operand.vmem [shape: f32[1,36], index: 4, kind: input, shape index: {}]
  %s5 = inlined_call_operand.vmem [shape: f32[36,32], index: 5, kind: input, shape index: {}]
  %s6 = inlined_call_operand.vmem [shape: f32[1,32], index: 6, kind: input, shape index: {}]
  %s7 = inlined_call_operand.vmem [shape: f32[1,32], index: 7, kind: input, shape index: {}]
  %s8 = inlined_call_operand.vmem [shape: f32[9,32], index: 8, kind: input, shape index: {}]
  %s9 = inlined_call_operand.vmem [shape: f32[1,32], index: 9, kind: input, shape index: {}]
  %s10 = inlined_call_operand.vmem [shape: f32[1,32], index: 10, kind: input, shape index: {}]
  %s11 = inlined_call_operand.vmem [shape: f32[32,128], index: 11, kind: input, shape index: {}]
  %s12 = inlined_call_operand.vmem [shape: f32[1,128], index: 12, kind: input, shape index: {}]
  %s13 = inlined_call_operand.vmem [shape: f32[1,128], index: 13, kind: input, shape index: {}]
  %s14 = inlined_call_operand.hbm [shape: f32[2,16,16,32], index: 14, kind: output, shape index: {0}]
  %s15 = inlined_call_operand.hbm [shape: f32[2,16,16,32], index: 15, kind: output, shape index: {1}]
  %16 = xla_tuple %s14, %s15
  %s17 = sld [smem:[#allocation0]]
  $region82: #{tpu_custom_call.1} parent=0
    _
  %s19 = ssub.s32 1, %s17
  %s20 = scalar_select 0, %s19, %s17
  $region1: #{tpu_custom_call.1} parent=0
    #allocation4 [shape = 'u8[262144]{0}', space=vmem, size = 0x40000, scoped, tag = 'input window, operand 0, single buffered']
    #allocation5 [shape = 's32[1]{0}', space=sflag, size = 0x4, scoped, tag = 'scoped memory for tpu_custom_call.1']
    #allocation6 [shape = 's32[1]{0}', space=sflag, size = 0x4, scoped, tag = 'scoped memory for tpu_custom_call.1']
    #allocation7 [shape = 'u8[262144]{0}', space=vmem, size = 0x40000, scoped, tag = 'input window, operand 1, single buffered']
    #allocation8 [shape = 's32[1]{0}', space=sflag, size = 0x4, scoped, tag = 'scoped memory for tpu_custom_call.1']
    #allocation9 [shape = 'u8[262144]{0}', space=vmem, size = 0x40000, scoped, tag = 'output window, operand 0, single buffered']
    #allocation10 [shape = 'u8[262144]{0}', space=vmem, size = 0x40000, scoped, tag = 'output window, operand 1, single buffered']
    #allocation11 [shape = 's32[1]{0}', space=sflag, size = 0x4, scoped, tag = 'scoped memory for tpu_custom_call.1']
    %21 = vsyncpa [#allocation5], 0
    %22 = vsyncpa [#allocation8], 0
    %23 = vsyncpa [#allocation6], 0
    %24 = vsyncpa [#allocation11], 0
    // Predicated region
    $region2: #{tpu_custom_call.1} parent=1 // pred_check
      _
    $region3: #{tpu_custom_call.1} parent=1 // pred_check_branch
      %26 = sbr.rel (0) target = $region5
    $region4: #{tpu_custom_call.1} parent=1 // pred_region
      %s28 = ssub.s32 8192, 8192
      %29 = vsyncadd [#allocation5], %s28
      %s30 = sshll.u32 [#allocation4], 4
      %s31 = int_to_ptr.vmem [resolvable:$true] %s30
      %36 = dma.hbm_to_vmem [thread:$0]  %s0, 8192, %s31, [#allocation5], 128, 128, 8
    $region5: #{tpu_custom_call.1} parent=1 // pred_fallthru
      _
    // Predicated region
    $region6: #{tpu_custom_call.1} parent=1 // pred_check
      _
    $region7: #{tpu_custom_call.1} parent=1 // pred_check_branch
      %38 = sbr.rel (0) target = $region9
    $region8: #{tpu_custom_call.1} parent=1 // pred_region
      %s40 = ssub.s32 8192, 8192
      %41 = vsyncadd [#allocation8], %s40
      %s42 = sshll.u32 [#allocation7], 4
      %s43 = int_to_ptr.vmem [resolvable:$true] %s42
      %48 = dma.hbm_to_vmem [thread:$0]  %s1, 8192, %s43, [#allocation8], 128, 128, 8
    $region9: #{tpu_custom_call.1} parent=1 // pred_fallthru
      _
    // Predicated region
    $region10: #{tpu_custom_call.1} parent=1 // pred_check
      _
    $region11: #{tpu_custom_call.1} parent=1 // pred_check_branch
      %50 = sbr.rel (0) target = $region13
    $region12: #{tpu_custom_call.1} parent=1 // pred_region
      _
    $region13: #{tpu_custom_call.1} parent=1 // pred_fallthru
      _
    // Predicated region
    $region14: #{tpu_custom_call.1} parent=1 // pred_check
      _
    $region15: #{tpu_custom_call.1} parent=1 // pred_check_branch
      %52 = sbr.rel (0) target = $region17
    $region16: #{tpu_custom_call.1} parent=1 // pred_region
      _
    $region17: #{tpu_custom_call.1} parent=1 // pred_fallthru
      _
    // Predicated region
    $region18: #{tpu_custom_call.1} parent=1 // pred_check
      _
    $region19: #{tpu_custom_call.1} parent=1 // pred_check_branch
      %54 = sbr.rel (0) target = $region21
    $region20: #{tpu_custom_call.1} parent=1 // pred_region
      _
    $region21: #{tpu_custom_call.1} parent=1 // pred_fallthru
      _
    // Predicated region
    $region22: #{tpu_custom_call.1} parent=1 // pred_check
      _
    $region23: #{tpu_custom_call.1} parent=1 // pred_check_branch
      %56 = sbr.rel (0) target = $region25
    $region24: #{tpu_custom_call.1} parent=1 // pred_region
      _
    $region25: #{tpu_custom_call.1} parent=1 // pred_fallthru
      _
    // Predicated region
    $region26: #{tpu_custom_call.1} parent=1 // pred_check
      _
    $region27: #{tpu_custom_call.1} parent=1 // pred_check_branch
      %58 = sbr.rel (0) target = $region29
    $region28: #{tpu_custom_call.1} parent=1 // pred_region
      _
    $region29: #{tpu_custom_call.1} parent=1 // pred_fallthru
      _
    // Predicated region
    $region30: #{tpu_custom_call.1} parent=1 // pred_check
      _
    $region31: #{tpu_custom_call.1} parent=1 // pred_check_branch
      %60 = sbr.rel (0) target = $region33
    $region32: #{tpu_custom_call.1} parent=1 // pred_region
      _
    $region33: #{tpu_custom_call.1} parent=1 // pred_fallthru
      _
    // Predicated region
    $region34: #{tpu_custom_call.1} parent=1 // pred_check
      _
    $region35: #{tpu_custom_call.1} parent=1 // pred_check_branch
      %62 = sbr.rel (0) target = $region37
    $region36: #{tpu_custom_call.1} parent=1 // pred_region
      _
    $region37: #{tpu_custom_call.1} parent=1 // pred_fallthru
      _
    // Predicated region
    $region38: #{tpu_custom_call.1} parent=1 // pred_check
      _
    $region39: #{tpu_custom_call.1} parent=1 // pred_check_branch
      %64 = sbr.rel (0) target = $region41
    $region40: #{tpu_custom_call.1} parent=1 // pred_region
      _
    $region41: #{tpu_custom_call.1} parent=1 // pred_fallthru
      _
    // Predicated region
    $region42: #{tpu_custom_call.1} parent=1 // pred_check
      _
    $region43: #{tpu_custom_call.1} parent=1 // pred_check_branch
      %66 = sbr.rel (0) target = $region45
    $region44: #{tpu_custom_call.1} parent=1 // pred_region
      _
    $region45: #{tpu_custom_call.1} parent=1 // pred_fallthru
      _
    // Predicated region
    $region46: #{tpu_custom_call.1} parent=1 // pred_check
      _
    $region47: #{tpu_custom_call.1} parent=1 // pred_check_branch
      %68 = sbr.rel (0) target = $region49
    $region48: #{tpu_custom_call.1} parent=1 // pred_region
      _
    $region49: #{tpu_custom_call.1} parent=1 // pred_fallthru
      _
    // Predicated region
    $region50: #{tpu_custom_call.1} parent=1 // pred_check
      _
    $region51: #{tpu_custom_call.1} parent=1 // pred_check_branch
      %70 = sbr.rel (0) target = $region53
    $region52: #{tpu_custom_call.1} parent=1 // pred_region
      _
    $region53: #{tpu_custom_call.1} parent=1 // pred_fallthru
      _
    // Predicated region
    $region54: #{tpu_custom_call.1} parent=1 // pred_check
      _
    $region55: #{tpu_custom_call.1} parent=1 // pred_check_branch
      %72 = sbr.rel (0) target = $region57
    $region56: #{tpu_custom_call.1} parent=1 // pred_region
      _
    $region57: #{tpu_custom_call.1} parent=1 // pred_fallthru
      _
    // Predicated region
    $region58: #{tpu_custom_call.1} parent=1 // pred_check
      _
    $region59: #{tpu_custom_call.1} parent=1 // pred_check_branch
      %74 = sbr.rel (0) target = $region61
    $region60: #{tpu_custom_call.1} parent=1 // pred_region
      %75 = dma.done [#allocation5], 8192
    $region61: #{tpu_custom_call.1} parent=1 // pred_fallthru
      _
    // Predicated region
    $region62: #{tpu_custom_call.1} parent=1 // pred_check
      _
    $region63: #{tpu_custom_call.1} parent=1 // pred_check_branch
      %77 = sbr.rel (0) target = $region65
    $region64: #{tpu_custom_call.1} parent=1 // pred_region
      %78 = dma.done [#allocation8], 8192
    $region65: #{tpu_custom_call.1} parent=1 // pred_fallthru
      _
    %v79 = vld [vmem:[#allocation4] sm:$0xff]
    %v80 = vld [vmem:[#allocation4 + $0x8] sm:$0xff]
    %v81 = vld [vmem:[#allocation4 + $0x10] sm:$0xff]
    %v82 = vld [vmem:[#allocation4 + $0x18] sm:$0xff]
    %v83 = vld [vmem:[#allocation4 + $0x20] sm:$0xff]
    %v84 = vld [vmem:[#allocation4 + $0x28] sm:$0xff]
    %v85 = vld [vmem:[#allocation4 + $0x30] sm:$0xff]
    %v86 = vld [vmem:[#allocation4 + $0x38] sm:$0xff]
    %v87 = vld [vmem:[#allocation4 + $0x40] sm:$0xff]
    %v88 = vld [vmem:[#allocation4 + $0x48] sm:$0xff]
    %v89 = vld [vmem:[#allocation4 + $0x50] sm:$0xff]
    %v90 = vld [vmem:[#allocation4 + $0x58] sm:$0xff]
    %v91 = vld [vmem:[#allocation4 + $0x60] sm:$0xff]
    %v92 = vld [vmem:[#allocation4 + $0x68] sm:$0xff]
    %v93 = vld [vmem:[#allocation4 + $0x70] sm:$0xff]
    %v94 = vld [vmem:[#allocation4 + $0x78] sm:$0xff]
    %v95 = vld [vmem:[#allocation4 + $0x80] sm:$0xff]
    %v96 = vld [vmem:[#allocation4 + $0x88] sm:$0xff]
    %v97 = vld [vmem:[#allocation4 + $0x90] sm:$0xff]
    %v98 = vld [vmem:[#allocation4 + $0x98] sm:$0xff]
    %v99 = vld [vmem:[#allocation4 + $0xa0] sm:$0xff]
    %v100 = vld [vmem:[#allocation4 + $0xa8] sm:$0xff]
    %v101 = vld [vmem:[#allocation4 + $0xb0] sm:$0xff]
    %v102 = vld [vmem:[#allocation4 + $0xb8] sm:$0xff]
    %v103 = vld [vmem:[#allocation4 + $0xc0] sm:$0xff]
    %v104 = vld [vmem:[#allocation4 + $0xc8] sm:$0xff]
    %v105 = vld [vmem:[#allocation4 + $0xd0] sm:$0xff]
    %v106 = vld [vmem:[#allocation4 + $0xd8] sm:$0xff]
    %v107 = vld [vmem:[#allocation4 + $0xe0] sm:$0xff]
    %v108 = vld [vmem:[#allocation4 + $0xe8] sm:$0xff]
    %v109 = vld [vmem:[#allocation4 + $0xf0] sm:$0xff]
    %v110 = vld [vmem:[#allocation4 + $0xf8] sm:$0xff]
    %v111 = vld [vmem:[#allocation4 + $0x100] sm:$0xff]
    %v112 = vld [vmem:[#allocation4 + $0x108] sm:$0xff]
    %v113 = vld [vmem:[#allocation4 + $0x110] sm:$0xff]
    %v114 = vld [vmem:[#allocation4 + $0x118] sm:$0xff]
    %v115 = vld [vmem:[#allocation4 + $0x120] sm:$0xff]
    %v116 = vld [vmem:[#allocation4 + $0x128] sm:$0xff]
    %v117 = vld [vmem:[#allocation4 + $0x130] sm:$0xff]
    %v118 = vld [vmem:[#allocation4 + $0x138] sm:$0xff]
    %v119 = vld [vmem:[#allocation4 + $0x140] sm:$0xff]
    %v120 = vld [vmem:[#allocation4 + $0x148] sm:$0xff]
    %v121 = vld [vmem:[#allocation4 + $0x150] sm:$0xff]
    %v122 = vld [vmem:[#allocation4 + $0x158] sm:$0xff]
    %v123 = vld [vmem:[#allocation4 + $0x160] sm:$0xff]
    %v124 = vld [vmem:[#allocation4 + $0x168] sm:$0xff]
    %v125 = vld [vmem:[#allocation4 + $0x170] sm:$0xff]
    %v126 = vld [vmem:[#allocation4 + $0x178] sm:$0xff]
    %v127 = vld [vmem:[#allocation4 + $0x180] sm:$0xff]
    %v128 = vld [vmem:[#allocation4 + $0x188] sm:$0xff]
    %v129 = vld [vmem:[#allocation4 + $0x190] sm:$0xff]
    %v130 = vld [vmem:[#allocation4 + $0x198] sm:$0xff]
    %v131 = vld [vmem:[#allocation4 + $0x1a0] sm:$0xff]
    %v132 = vld [vmem:[#allocation4 + $0x1a8] sm:$0xff]
    %v133 = vld [vmem:[#allocation4 + $0x1b0] sm:$0xff]
    %v134 = vld [vmem:[#allocation4 + $0x1b8] sm:$0xff]
    %v135 = vld [vmem:[#allocation4 + $0x1c0] sm:$0xff]
    %v136 = vld [vmem:[#allocation4 + $0x1c8] sm:$0xff]
    %v137 = vld [vmem:[#allocation4 + $0x1d0] sm:$0xff]
    %v138 = vld [vmem:[#allocation4 + $0x1d8] sm:$0xff]
    %v139 = vld [vmem:[#allocation4 + $0x1e0] sm:$0xff]
    %v140 = vld [vmem:[#allocation4 + $0x1e8] sm:$0xff]
    %v141 = vld [vmem:[#allocation4 + $0x1f0] sm:$0xff]
    %v142 = vld [vmem:[#allocation4 + $0x1f8] sm:$0xff]
    %v143 = vld [vmem:[%s2] sm:$0xff]
    %v144 = vld [vmem:[%s2 + $0x8] sm:$0x1]
    %vm145 = vcmask 293888
    %146 = vst.msk [vmem:[#allocation2] sm:$0xff] %vm145, 0.0
    %147 = vst.msk [vmem:[#allocation2 + $0x8] sm:$0xff] %vm145, 0.0
    %vm148 = vcmask 287744
    %149 = vst.msk [vmem:[#allocation2 + $0x10] sm:$0x3] %vm148, 0.0
    %150 = vst.msk [vmem:[#allocation2 + $0x1b0] sm:$0xff] %vm145, 0.0
    %151 = vst.msk [vmem:[#allocation2 + $0x1b8] sm:$0xff] %vm145, 0.0
    %152 = vst.msk [vmem:[#allocation2 + $0x1c0] sm:$0x3] %vm148, 0.0
    %s153 = scalar_lea.vmem [#allocation2], 408
    %154 = vst.msk [vmem:[%s153] sm:$0xff] %vm145, 0.0
    %155 = vst.msk [vmem:[%s153 + $0x8] sm:$0xff] %vm145, 0.0
    %156 = vst.msk [vmem:[%s153 + $0x10] sm:$0x3] %vm148, 0.0
    %157 = vst.msk [vmem:[%s153 + $0x1b0] sm:$0xff] %vm145, 0.0
    %158 = vst.msk [vmem:[%s153 + $0x1b8] sm:$0xff] %vm145, 0.0
    %159 = vst.msk [vmem:[%s153 + $0x1c0] sm:$0x3] %vm148, 0.0
    %vm160 = vcmask 286720
    %161 = vst.msk [vmem:[#allocation2] sm:$0x1] %vm160, 0.0
    %162 = vst.msk [vmem:[#allocation2 + $0x18] sm:$0x1] %vm160, 0.0
    %163 = vst.msk [vmem:[#allocation2 + $0x30] sm:$0x1] %vm160, 0.0
    %164 = vst.msk [vmem:[#allocation2 + $0x48] sm:$0x1] %vm160, 0.0
    %165 = vst.msk [vmem:[#allocation2 + $0x60] sm:$0x1] %vm160, 0.0
    %166 = vst.msk [vmem:[#allocation2 + $0x78] sm:$0x1] %vm160, 0.0
    %167 = vst.msk [vmem:[#allocation2 + $0x90] sm:$0x1] %vm160, 0.0
    %168 = vst.msk [vmem:[#allocation2 + $0xa8] sm:$0x1] %vm160, 0.0
    %169 = vst.msk [vmem:[#allocation2 + $0xc0] sm:$0x1] %vm160, 0.0
    %170 = vst.msk [vmem:[#allocation2 + $0xd8] sm:$0x1] %vm160, 0.0
    %171 = vst.msk [vmem:[#allocation2 + $0xf0] sm:$0x1] %vm160, 0.0
    %172 = vst.msk [vmem:[#allocation2 + $0x108] sm:$0x1] %vm160, 0.0
    %173 = vst.msk [vmem:[#allocation2 + $0x120] sm:$0x1] %vm160, 0.0
    %174 = vst.msk [vmem:[#allocation2 + $0x138] sm:$0x1] %vm160, 0.0
    %175 = vst.msk [vmem:[#allocation2 + $0x150] sm:$0x1] %vm160, 0.0
    %176 = vst.msk [vmem:[#allocation2 + $0x168] sm:$0x1] %vm160, 0.0
    %177 = vst.msk [vmem:[#allocation2 + $0x180] sm:$0x1] %vm160, 0.0
    %178 = vst.msk [vmem:[#allocation2 + $0x198] sm:$0x1] %vm160, 0.0
    %179 = vst.msk [vmem:[#allocation2 + $0x1b0] sm:$0x1] %vm160, 0.0
    %180 = vst.msk [vmem:[#allocation2 + $0x1c8] sm:$0x1] %vm160, 0.0
    %181 = vst.msk [vmem:[#allocation2 + $0x1e0] sm:$0x1] %vm160, 0.0
    %182 = vst.msk [vmem:[#allocation2 + $0x1f8] sm:$0x1] %vm160, 0.0
    %183 = vst.msk [vmem:[#allocation2 + $0x210] sm:$0x1] %vm160, 0.0
    %184 = vst.msk [vmem:[#allocation2 + $0x228] sm:$0x1] %vm160, 0.0
    %185 = vst.msk [vmem:[#allocation2 + $0x240] sm:$0x1] %vm160, 0.0
    %186 = vst.msk [vmem:[#allocation2 + $0x258] sm:$0x1] %vm160, 0.0
    %187 = vst.msk [vmem:[#allocation2 + $0x270] sm:$0x1] %vm160, 0.0
    %188 = vst.msk [vmem:[#allocation2 + $0x288] sm:$0x1] %vm160, 0.0
    %189 = vst.msk [vmem:[#allocation2 + $0x2a0] sm:$0x1] %vm160, 0.0
    %190 = vst.msk [vmem:[#allocation2 + $0x2b8] sm:$0x1] %vm160, 0.0
    %191 = vst.msk [vmem:[#allocation2 + $0x2d0] sm:$0x1] %vm160, 0.0
    %192 = vst.msk [vmem:[#allocation2 + $0x2e8] sm:$0x1] %vm160, 0.0
    %193 = vst.msk [vmem:[#allocation2 + $0x300] sm:$0x1] %vm160, 0.0
    %194 = vst.msk [vmem:[#allocation2 + $0x318] sm:$0x1] %vm160, 0.0
    %195 = vst.msk [vmem:[#allocation2 + $0x330] sm:$0x1] %vm160, 0.0
    %196 = vst.msk [vmem:[#allocation2 + $0x348] sm:$0x1] %vm160, 0.0
    %197 = vst.msk [vmem:[#allocation2 + $0x11] sm:$0x1] %vm160, 0.0
    %198 = vst.msk [vmem:[#allocation2 + $0x29] sm:$0x1] %vm160, 0.0
    %199 = vst.msk [vmem:[#allocation2 + $0x41] sm:$0x1] %vm160, 0.0
    %200 = vst.msk [vmem:[#allocation2 + $0x59] sm:$0x1] %vm160, 0.0
    %201 = vst.msk [vmem:[#allocation2 + $0x71] sm:$0x1] %vm160, 0.0
    %202 = vst.msk [vmem:[#allocation2 + $0x89] sm:$0x1] %vm160, 0.0
    %203 = vst.msk [vmem:[#allocation2 + $0xa1] sm:$0x1] %vm160, 0.0
    %204 = vst.msk [vmem:[#allocation2 + $0xb9] sm:$0x1] %vm160, 0.0
    %205 = vst.msk [vmem:[#allocation2 + $0xd1] sm:$0x1] %vm160, 0.0
    %206 = vst.msk [vmem:[#allocation2 + $0xe9] sm:$0x1] %vm160, 0.0
    %207 = vst.msk [vmem:[#allocation2 + $0x101] sm:$0x1] %vm160, 0.0
    %208 = vst.msk [vmem:[#allocation2 + $0x119] sm:$0x1] %vm160, 0.0
    %209 = vst.msk [vmem:[#allocation2 + $0x131] sm:$0x1] %vm160, 0.0
    %210 = vst.msk [vmem:[#allocation2 + $0x149] sm:$0x1] %vm160, 0.0
    %211 = vst.msk [vmem:[#allocation2 + $0x161] sm:$0x1] %vm160, 0.0
    %212 = vst.msk [vmem:[#allocation2 + $0x179] sm:$0x1] %vm160, 0.0
    %213 = vst.msk [vmem:[#allocation2 + $0x191] sm:$0x1] %vm160, 0.0
    %214 = vst.msk [vmem:[#allocation2 + $0x1a9] sm:$0x1] %vm160, 0.0
    %215 = vst.msk [vmem:[#allocation2 + $0x1c1] sm:$0x1] %vm160, 0.0
    %216 = vst.msk [vmem:[#allocation2 + $0x1d9] sm:$0x1] %vm160, 0.0
    %217 = vst.msk [vmem:[#allocation2 + $0x1f1] sm:$0x1] %vm160, 0.0
    %218 = vst.msk [vmem:[#allocation2 + $0x209] sm:$0x1] %vm160, 0.0
    %219 = vst.msk [vmem:[#allocation2 + $0x221] sm:$0x1] %vm160, 0.0
    %220 = vst.msk [vmem:[#allocation2 + $0x239] sm:$0x1] %vm160, 0.0
    %221 = vst.msk [vmem:[#allocation2 + $0x251] sm:$0x1] %vm160, 0.0
    %222 = vst.msk [vmem:[#allocation2 + $0x269] sm:$0x1] %vm160, 0.0
    %223 = vst.msk [vmem:[#allocation2 + $0x281] sm:$0x1] %vm160, 0.0
    %224 = vst.msk [vmem:[#allocation2 + $0x299] sm:$0x1] %vm160, 0.0
    %225 = vst.msk [vmem:[#allocation2 + $0x2b1] sm:$0x1] %vm160, 0.0
    %226 = vst.msk [vmem:[#allocation2 + $0x2c9] sm:$0x1] %vm160, 0.0
    %227 = vst.msk [vmem:[#allocation2 + $0x2e1] sm:$0x1] %vm160, 0.0
    %228 = vst.msk [vmem:[#allocation2 + $0x2f9] sm:$0x1] %vm160, 0.0
    %229 = vst.msk [vmem:[#allocation2 + $0x311] sm:$0x1] %vm160, 0.0
    %230 = vst.msk [vmem:[#allocation2 + $0x329] sm:$0x1] %vm160, 0.0
    %231 = vst.msk [vmem:[#allocation2 + $0x341] sm:$0x1] %vm160, 0.0
    %232 = vst.msk [vmem:[#allocation2 + $0x359] sm:$0x1] %vm160, 0.0
    %s233 = scalar_lea.vmem [#allocation2], 24
    %234 = vst.msk [vmem:[%s233 + $0x1] sm:$0xff] %vm145, %v79
    %235 = vst.msk [vmem:[%s233 + $0x9] sm:$0xff] %vm145, %v80
    %236 = vst.msk [vmem:[%s233 + $0x19] sm:$0xff] %vm145, %v81
    %237 = vst.msk [vmem:[%s233 + $0x21] sm:$0xff] %vm145, %v82
    %238 = vst.msk [vmem:[%s233 + $0x31] sm:$0xff] %vm145, %v83
    %239 = vst.msk [vmem:[%s233 + $0x39] sm:$0xff] %vm145, %v84
    %240 = vst.msk [vmem:[%s233 + $0x49] sm:$0xff] %vm145, %v85
    %241 = vst.msk [vmem:[%s233 + $0x51] sm:$0xff] %vm145, %v86
    %242 = vst.msk [vmem:[%s233 + $0x61] sm:$0xff] %vm145, %v87
    %243 = vst.msk [vmem:[%s233 + $0x69] sm:$0xff] %vm145, %v88
    %244 = vst.msk [vmem:[%s233 + $0x79] sm:$0xff] %vm145, %v89
    %245 = vst.msk [vmem:[%s233 + $0x81] sm:$0xff] %vm145, %v90
    %246 = vst.msk [vmem:[%s233 + $0x91] sm:$0xff] %vm145, %v91
    %247 = vst.msk [vmem:[%s233 + $0x99] sm:$0xff] %vm145, %v92
    %248 = vst.msk [vmem:[%s233 + $0xa9] sm:$0xff] %vm145, %v93
    %249 = vst.msk [vmem:[%s233 + $0xb1] sm:$0xff] %vm145, %v94
    %250 = vst.msk [vmem:[%s233 + $0xc1] sm:$0xff] %vm145, %v95
    %251 = vst.msk [vmem:[%s233 + $0xc9] sm:$0xff] %vm145, %v96
    %252 = vst.msk [vmem:[%s233 + $0xd9] sm:$0xff] %vm145, %v97
    %253 = vst.msk [vmem:[%s233 + $0xe1] sm:$0xff] %vm145, %v98
    %254 = vst.msk [vmem:[%s233 + $0xf1] sm:$0xff] %vm145, %v99
    %255 = vst.msk [vmem:[%s233 + $0xf9] sm:$0xff] %vm145, %v100
    %256 = vst.msk [vmem:[%s233 + $0x109] sm:$0xff] %vm145, %v101
    %257 = vst.msk [vmem:[%s233 + $0x111] sm:$0xff] %vm145, %v102
    %258 = vst.msk [vmem:[%s233 + $0x121] sm:$0xff] %vm145, %v103
    %259 = vst.msk [vmem:[%s233 + $0x129] sm:$0xff] %vm145, %v104
    %260 = vst.msk [vmem:[%s233 + $0x139] sm:$0xff] %vm145, %v105
    %261 = vst.msk [vmem:[%s233 + $0x141] sm:$0xff] %vm145, %v106
    %262 = vst.msk [vmem:[%s233 + $0x151] sm:$0xff] %vm145, %v107
    %263 = vst.msk [vmem:[%s233 + $0x159] sm:$0xff] %vm145, %v108
    %264 = vst.msk [vmem:[%s233 + $0x169] sm:$0xff] %vm145, %v109
    %265 = vst.msk [vmem:[%s233 + $0x171] sm:$0xff] %vm145, %v110
    %266 = vst.msk [vmem:[%s233 + $0x1b1] sm:$0xff] %vm145, %v111
    %267 = vst.msk [vmem:[%s233 + $0x1b9] sm:$0xff] %vm145, %v112
    %268 = vst.msk [vmem:[%s233 + $0x1c9] sm:$0xff] %vm145, %v113
    %269 = vst.msk [vmem:[%s233 + $0x1d1] sm:$0xff] %vm145, %v114
    %270 = vst.msk [vmem:[%s233 + $0x1e1] sm:$0xff] %vm145, %v115
    %271 = vst.msk [vmem:[%s233 + $0x1e9] sm:$0xff] %vm145, %v116
    %272 = vst.msk [vmem:[%s233 + $0x1f9] sm:$0xff] %vm145, %v117
    %273 = vst.msk [vmem:[%s233 + $0x201] sm:$0xff] %vm145, %v118
    %274 = vst.msk [vmem:[%s233 + $0x211] sm:$0xff] %vm145, %v119
    %275 = vst.msk [vmem:[%s233 + $0x219] sm:$0xff] %vm145, %v120
    %276 = vst.msk [vmem:[%s233 + $0x229] sm:$0xff] %vm145, %v121
    %277 = vst.msk [vmem:[%s233 + $0x231] sm:$0xff] %vm145, %v122
    %278 = vst.msk [vmem:[%s233 + $0x241] sm:$0xff] %vm145, %v123
    %279 = vst.msk [vmem:[%s233 + $0x249] sm:$0xff] %vm145, %v124
    %280 = vst.msk [vmem:[%s233 + $0x259] sm:$0xff] %vm145, %v125
    %281 = vst.msk [vmem:[%s233 + $0x261] sm:$0xff] %vm145, %v126
    %282 = vst.msk [vmem:[%s233 + $0x271] sm:$0xff] %vm145, %v127
    %283 = vst.msk [vmem:[%s233 + $0x279] sm:$0xff] %vm145, %v128
    %284 = vst.msk [vmem:[%s233 + $0x289] sm:$0xff] %vm145, %v129
    %285 = vst.msk [vmem:[%s233 + $0x291] sm:$0xff] %vm145, %v130
    %286 = vst.msk [vmem:[%s233 + $0x2a1] sm:$0xff] %vm145, %v131
    %287 = vst.msk [vmem:[%s233 + $0x2a9] sm:$0xff] %vm145, %v132
    %288 = vst.msk [vmem:[%s233 + $0x2b9] sm:$0xff] %vm145, %v133
    %289 = vst.msk [vmem:[%s233 + $0x2c1] sm:$0xff] %vm145, %v134
    %290 = vst.msk [vmem:[%s233 + $0x2d1] sm:$0xff] %vm145, %v135
    %291 = vst.msk [vmem:[%s233 + $0x2d9] sm:$0xff] %vm145, %v136
    %292 = vst.msk [vmem:[%s233 + $0x2e9] sm:$0xff] %vm145, %v137
    %293 = vst.msk [vmem:[%s233 + $0x2f1] sm:$0xff] %vm145, %v138
    %294 = vst.msk [vmem:[%s233 + $0x301] sm:$0xff] %vm145, %v139
    %295 = vst.msk [vmem:[%s233 + $0x309] sm:$0xff] %vm145, %v140
    %296 = vst.msk [vmem:[%s233 + $0x319] sm:$0xff] %vm145, %v141
    %297 = vst.msk [vmem:[%s233 + $0x321] sm:$0xff] %vm145, %v142
    %v298 = vld [vmem:[#allocation2] sm:$0xff]
    %v299 = vld [vmem:[#allocation2 + $0x8] sm:$0xff]
    %v300 = vld [vmem:[#allocation2 + $0x18] sm:$0xff]
    %v301 = vld [vmem:[#allocation2 + $0x20] sm:$0xff]
    %v302 = vld [vmem:[#allocation2 + $0x30] sm:$0xff]
    %v303 = vld [vmem:[#allocation2 + $0x38] sm:$0xff]
    %v304 = vld [vmem:[#allocation2 + $0x48] sm:$0xff]
    %v305 = vld [vmem:[#allocation2 + $0x50] sm:$0xff]
    %v306 = vld [vmem:[#allocation2 + $0x60] sm:$0xff]
    %v307 = vld [vmem:[#allocation2 + $0x68] sm:$0xff]
    %v308 = vld [vmem:[#allocation2 + $0x78] sm:$0xff]
    %v309 = vld [vmem:[#allocation2 + $0x80] sm:$0xff]
    %v310 = vld [vmem:[#allocation2 + $0x90] sm:$0xff]
    %v311 = vld [vmem:[#allocation2 + $0x98] sm:$0xff]
    %v312 = vld [vmem:[#allocation2 + $0xa8] sm:$0xff]
    %v313 = vld [vmem:[#allocation2 + $0xb0] sm:$0xff]
    %v314 = vld [vmem:[#allocation2 + $0xc0] sm:$0xff]
    %v315 = vld [vmem:[#allocation2 + $0xc8] sm:$0xff]
    %v316 = vld [vmem:[#allocation2 + $0xd8] sm:$0xff]
    %v317 = vld [vmem:[#allocation2 + $0xe0] sm:$0xff]
    %v318 = vld [vmem:[#allocation2 + $0xf0] sm:$0xff]
    %v319 = vld [vmem:[#allocation2 + $0xf8] sm:$0xff]
    %v320 = vld [vmem:[#allocation2 + $0x108] sm:$0xff]
    %v321 = vld [vmem:[#allocation2 + $0x110] sm:$0xff]
    %v322 = vld [vmem:[#allocation2 + $0x120] sm:$0xff]
    %v323 = vld [vmem:[#allocation2 + $0x128] sm:$0xff]
    %v324 = vld [vmem:[#allocation2 + $0x138] sm:$0xff]
    %v325 = vld [vmem:[#allocation2 + $0x140] sm:$0xff]
    %v326 = vld [vmem:[#allocation2 + $0x150] sm:$0xff]
    %v327 = vld [vmem:[#allocation2 + $0x158] sm:$0xff]
    %v328 = vld [vmem:[#allocation2 + $0x168] sm:$0xff]
    %v329 = vld [vmem:[#allocation2 + $0x170] sm:$0xff]
    %v330 = vld [vmem:[#allocation2 + $0x180] sm:$0xff]
    %v331 = vld [vmem:[#allocation2 + $0x188] sm:$0xff]
    %v332 = vld [vmem:[#allocation2 + $0x198] sm:$0xff]
    %v333 = vld [vmem:[#allocation2 + $0x1a0] sm:$0xff]
    %v334 = vld [vmem:[#allocation2 + $0x1b0] sm:$0xff]
    %v335 = vld [vmem:[#allocation2 + $0x1b8] sm:$0xff]
    %v336 = vld [vmem:[#allocation2 + $0x1c8] sm:$0xff]
    %v337 = vld [vmem:[#allocation2 + $0x1d0] sm:$0xff]
    %v338 = vld [vmem:[#allocation2 + $0x1e0] sm:$0xff]
    %v339 = vld [vmem:[#allocation2 + $0x1e8] sm:$0xff]
    %v340 = vld [vmem:[#allocation2 + $0x1f8] sm:$0xff]
    %v341 = vld [vmem:[#allocation2 + $0x200] sm:$0xff]
    %v342 = vld [vmem:[#allocation2 + $0x210] sm:$0xff]
    %v343 = vld [vmem:[#allocation2 + $0x218] sm:$0xff]
    %v344 = vld [vmem:[#allocation2 + $0x228] sm:$0xff]
    %v345 = vld [vmem:[#allocation2 + $0x230] sm:$0xff]
    %v346 = vld [vmem:[#allocation2 + $0x240] sm:$0xff]
    %v347 = vld [vmem:[#allocation2 + $0x248] sm:$0xff]
    %v348 = vld [vmem:[#allocation2 + $0x258] sm:$0xff]
    %v349 = vld [vmem:[#allocation2 + $0x260] sm:$0xff]
    %v350 = vld [vmem:[#allocation2 + $0x270] sm:$0xff]
    %v351 = vld [vmem:[#allocation2 + $0x278] sm:$0xff]
    %v352 = vld [vmem:[#allocation2 + $0x288] sm:$0xff]
    %v353 = vld [vmem:[#allocation2 + $0x290] sm:$0xff]
    %v354 = vld [vmem:[#allocation2 + $0x2a0] sm:$0xff]
    %v355 = vld [vmem:[#allocation2 + $0x2a8] sm:$0xff]
    %v356 = vld [vmem:[#allocation2 + $0x2b8] sm:$0xff]
    %v357 = vld [vmem:[#allocation2 + $0x2c0] sm:$0xff]
    %v358 = vld [vmem:[#allocation2 + $0x2d0] sm:$0xff]
    %v359 = vld [vmem:[#allocation2 + $0x2d8] sm:$0xff]
    %v360 = vld [vmem:[#allocation2 + $0x2e8] sm:$0xff]
    %v361 = vld [vmem:[#allocation2 + $0x2f0] sm:$0xff]
    %v362 = vld [vmem:[#allocation2 + $0x300] sm:$0xff]
    %v363 = vld [vmem:[#allocation2 + $0x308] sm:$0xff]
    %v364 = vld [vmem:[#allocation2 + $0x318] sm:$0xff]
    %v365 = vld [vmem:[#allocation2 + $0x320] sm:$0xff]
    %v366 = vld [vmem:[#allocation2 + $0x330] sm:$0xff]
    %v367 = vld [vmem:[#allocation2 + $0x338] sm:$0xff]
    %v368 = vld [vmem:[#allocation2 + $0x348] sm:$0xff]
    %v369 = vld [vmem:[#allocation2 + $0x350] sm:$0xff]
    %v370 = vlaneseq
    %v371 = vshrl.u32 %v370, 7
    %v372 = vsub.s32 0, %v371
    %v373 = vrot.slane %v143, %v372
    %v374 = vmul.f32 %v298, %v373
    %v375 = vmul.f32 %v299, %v373
    %v376 = vmul.f32 %v300, %v373
    %v377 = vmul.f32 %v301, %v373
    %v378 = vmul.f32 %v302, %v373
    %v379 = vmul.f32 %v303, %v373
    %v380 = vmul.f32 %v304, %v373
    %v381 = vmul.f32 %v305, %v373
    %v382 = vmul.f32 %v306, %v373
    %v383 = vmul.f32 %v307, %v373
    %v384 = vmul.f32 %v308, %v373
    %v385 = vmul.f32 %v309, %v373
    %v386 = vmul.f32 %v310, %v373
    %v387 = vmul.f32 %v311, %v373
    %v388 = vmul.f32 %v312, %v373
    %v389 = vmul.f32 %v313, %v373
    %v390 = vmul.f32 %v314, %v373
    %v391 = vmul.f32 %v315, %v373
    %v392 = vmul.f32 %v316, %v373
    %v393 = vmul.f32 %v317, %v373
    %v394 = vmul.f32 %v318, %v373
    %v395 = vmul.f32 %v319, %v373
    %v396 = vmul.f32 %v320, %v373
    %v397 = vmul.f32 %v321, %v373
    %v398 = vmul.f32 %v322, %v373
    %v399 = vmul.f32 %v323, %v373
    %v400 = vmul.f32 %v324, %v373
    %v401 = vmul.f32 %v325, %v373
    %v402 = vmul.f32 %v326, %v373
    %v403 = vmul.f32 %v327, %v373
    %v404 = vmul.f32 %v328, %v373
    %v405 = vmul.f32 %v329, %v373
    %v406 = vmul.f32 %v334, %v373
    %v407 = vmul.f32 %v335, %v373
    %v408 = vmul.f32 %v336, %v373
    %v409 = vmul.f32 %v337, %v373
    %v410 = vmul.f32 %v338, %v373
    %v411 = vmul.f32 %v339, %v373
    %v412 = vmul.f32 %v340, %v373
    %v413 = vmul.f32 %v341, %v373
    %v414 = vmul.f32 %v342, %v373
    %v415 = vmul.f32 %v343, %v373
    %v416 = vmul.f32 %v344, %v373
    %v417 = vmul.f32 %v345, %v373
    %v418 = vmul.f32 %v346, %v373
    %v419 = vmul.f32 %v347, %v373
    %v420 = vmul.f32 %v348, %v373
    %v421 = vmul.f32 %v349, %v373
    %v422 = vmul.f32 %v350, %v373
    %v423 = vmul.f32 %v351, %v373
    %v424 = vmul.f32 %v352, %v373
    %v425 = vmul.f32 %v353, %v373
    %v426 = vmul.f32 %v354, %v373
    %v427 = vmul.f32 %v355, %v373
    %v428 = vmul.f32 %v356, %v373
    %v429 = vmul.f32 %v357, %v373
    %v430 = vmul.f32 %v358, %v373
    %v431 = vmul.f32 %v359, %v373
    %v432 = vmul.f32 %v360, %v373
    %v433 = vmul.f32 %v361, %v373
    %v434 = vmul.f32 %v362, %v373
    %v435 = vmul.f32 %v363, %v373
    %v436 = vmul.f32 %v364, %v373
    %v437 = vmul.f32 %v365, %v373
    %v438 = vlaneseq
    %v439 = vshrl.u32 %v438, 7
    %v440 = vsub.s32 3, %v439
    %v441 = vrot.slane %v143, %v440
    %v442 = vmul.f32 %v300, %v441
    %v443 = vmul.f32 %v301, %v441
    %v444 = vmul.f32 %v302, %v441
    %v445 = vmul.f32 %v303, %v441
    %v446 = vmul.f32 %v304, %v441
    %v447 = vmul.f32 %v305, %v441
    %v448 = vmul.f32 %v306, %v441
    %v449 = vmul.f32 %v307, %v441
    %v450 = vmul.f32 %v308, %v441
    %v451 = vmul.f32 %v309, %v441
    %v452 = vmul.f32 %v310, %v441
    %v453 = vmul.f32 %v311, %v441
    %v454 = vmul.f32 %v312, %v441
    %v455 = vmul.f32 %v313, %v441
    %v456 = vmul.f32 %v314, %v441
    %v457 = vmul.f32 %v315, %v441
    %v458 = vmul.f32 %v316, %v441
    %v459 = vmul.f32 %v317, %v441
    %v460 = vmul.f32 %v318, %v441
    %v461 = vmul.f32 %v319, %v441
    %v462 = vmul.f32 %v320, %v441
    %v463 = vmul.f32 %v321, %v441
    %v464 = vmul.f32 %v322, %v441
    %v465 = vmul.f32 %v323, %v441
    %v466 = vmul.f32 %v324, %v441
    %v467 = vmul.f32 %v325, %v441
    %v468 = vmul.f32 %v326, %v441
    %v469 = vmul.f32 %v327, %v441
    %v470 = vmul.f32 %v328, %v441
    %v471 = vmul.f32 %v329, %v441
    %v472 = vmul.f32 %v330, %v441
    %v473 = vmul.f32 %v331, %v441
    %v474 = vmul.f32 %v336, %v441
    %v475 = vmul.f32 %v337, %v441
    %v476 = vmul.f32 %v338, %v441
    %v477 = vmul.f32 %v339, %v441
    %v478 = vmul.f32 %v340, %v441
    %v479 = vmul.f32 %v341, %v441
    %v480 = vmul.f32 %v342, %v441
    %v481 = vmul.f32 %v343, %v441
    %v482 = vmul.f32 %v344, %v441
    %v483 = vmul.f32 %v345, %v441
    %v484 = vmul.f32 %v346, %v441
    %v485 = vmul.f32 %v347, %v441
    %v486 = vmul.f32 %v348, %v441
    %v487 = vmul.f32 %v349, %v441
    %v488 = vmul.f32 %v350, %v441
    %v489 = vmul.f32 %v351, %v441
    %v490 = vmul.f32 %v352, %v441
    %v491 = vmul.f32 %v353, %v441
    %v492 = vmul.f32 %v354, %v441
    %v493 = vmul.f32 %v355, %v441
    %v494 = vmul.f32 %v356, %v441
    %v495 = vmul.f32 %v357, %v441
    %v496 = vmul.f32 %v358, %v441
    %v497 = vmul.f32 %v359, %v441
    %v498 = vmul.f32 %v360, %v441
    %v499 = vmul.f32 %v361, %v441
    %v500 = vmul.f32 %v362, %v441
    %v501 = vmul.f32 %v363, %v441
    %v502 = vmul.f32 %v364, %v441
    %v503 = vmul.f32 %v365, %v441
    %v504 = vmul.f32 %v366, %v441
    %v505 = vmul.f32 %v367, %v441
    %v506 = vadd.f32 %v374, %v442
    %v507 = vadd.f32 %v375, %v443
    %v508 = vadd.f32 %v376, %v444
    %v509 = vadd.f32 %v377, %v445
    %v510 = vadd.f32 %v378, %v446
    %v511 = vadd.f32 %v379, %v447
    %v512 = vadd.f32 %v380, %v448
    %v513 = vadd.f32 %v381, %v449
    %v514 = vadd.f32 %v382, %v450
    %v515 = vadd.f32 %v383, %v451
    %v516 = vadd.f32 %v384, %v452
    %v517 = vadd.f32 %v385, %v453
    %v518 = vadd.f32 %v386, %v454
    %v519 = vadd.f32 %v387, %v455
    %v520 = vadd.f32 %v388, %v456
    %v521 = vadd.f32 %v389, %v457
    %v522 = vadd.f32 %v390, %v458
    %v523 = vadd.f32 %v391, %v459
    %v524 = vadd.f32 %v392, %v460
    %v525 = vadd.f32 %v393, %v461
    %v526 = vadd.f32 %v394, %v462
    %v527 = vadd.f32 %v395, %v463
    %v528 = vadd.f32 %v396, %v464
    %v529 = vadd.f32 %v397, %v465
    %v530 = vadd.f32 %v398, %v466
    %v531 = vadd.f32 %v399, %v467
    %v532 = vadd.f32 %v400, %v468
    %v533 = vadd.f32 %v401, %v469
    %v534 = vadd.f32 %v402, %v470
    %v535 = vadd.f32 %v403, %v471
    %v536 = vadd.f32 %v404, %v472
    %v537 = vadd.f32 %v405, %v473
    %v538 = vadd.f32 %v406, %v474
    %v539 = vadd.f32 %v407, %v475
    %v540 = vadd.f32 %v408, %v476
    %v541 = vadd.f32 %v409, %v477
    %v542 = vadd.f32 %v410, %v478
    %v543 = vadd.f32 %v411, %v479
    %v544 = vadd.f32 %v412, %v480
    %v545 = vadd.f32 %v413, %v481
    %v546 = vadd.f32 %v414, %v482
    %v547 = vadd.f32 %v415, %v483
    %v548 = vadd.f32 %v416, %v484
    %v549 = vadd.f32 %v417, %v485
    %v550 = vadd.f32 %v418, %v486
    %v551 = vadd.f32 %v419, %v487
    %v552 = vadd.f32 %v420, %v488
    %v553 = vadd.f32 %v421, %v489
    %v554 = vadd.f32 %v422, %v490
    %v555 = vadd.f32 %v423, %v491
    %v556 = vadd.f32 %v424, %v492
    %v557 = vadd.f32 %v425, %v493
    %v558 = vadd.f32 %v426, %v494
    %v559 = vadd.f32 %v427, %v495
    %v560 = vadd.f32 %v428, %v496
    %v561 = vadd.f32 %v429, %v497
    %v562 = vadd.f32 %v430, %v498
    %v563 = vadd.f32 %v431, %v499
    %v564 = vadd.f32 %v432, %v500
    %v565 = vadd.f32 %v433, %v501
    %v566 = vadd.f32 %v434, %v502
    %v567 = vadd.f32 %v435, %v503
    %v568 = vadd.f32 %v436, %v504
    %v569 = vadd.f32 %v437, %v505
    %v570 = vlaneseq
    %v571 = vshrl.u32 %v570, 7
    %v572 = vsub.s32 6, %v571
    %v573 = vrot.slane %v143, %v572
    %v574 = vmul.f32 %v302, %v573
    %v575 = vmul.f32 %v303, %v573
    %v576 = vmul.f32 %v304, %v573
    %v577 = vmul.f32 %v305, %v573
    %v578 = vmul.f32 %v306, %v573
    %v579 = vmul.f32 %v307, %v573
    %v580 = vmul.f32 %v308, %v573
    %v581 = vmul.f32 %v309, %v573
    %v582 = vmul.f32 %v310, %v573
    %v583 = vmul.f32 %v311, %v573
    %v584 = vmul.f32 %v312, %v573
    %v585 = vmul.f32 %v313, %v573
    %v586 = vmul.f32 %v314, %v573
    %v587 = vmul.f32 %v315, %v573
    %v588 = vmul.f32 %v316, %v573
    %v589 = vmul.f32 %v317, %v573
    %v590 = vmul.f32 %v318, %v573
    %v591 = vmul.f32 %v319, %v573
    %v592 = vmul.f32 %v320, %v573
    %v593 = vmul.f32 %v321, %v573
    %v594 = vmul.f32 %v322, %v573
    %v595 = vmul.f32 %v323, %v573
    %v596 = vmul.f32 %v324, %v573
    %v597 = vmul.f32 %v325, %v573
    %v598 = vmul.f32 %v326, %v573
    %v599 = vmul.f32 %v327, %v573
    %v600 = vmul.f32 %v328, %v573
    %v601 = vmul.f32 %v329, %v573
    %v602 = vmul.f32 %v330, %v573
    %v603 = vmul.f32 %v331, %v573
    %v604 = vmul.f32 %v332, %v573
    %v605 = vmul.f32 %v333, %v573
    %v606 = vmul.f32 %v338, %v573
    %v607 = vmul.f32 %v339, %v573
    %v608 = vmul.f32 %v340, %v573
    %v609 = vmul.f32 %v341, %v573
    %v610 = vmul.f32 %v342, %v573
    %v611 = vmul.f32 %v343, %v573
    %v612 = vmul.f32 %v344, %v573
    %v613 = vmul.f32 %v345, %v573
    %v614 = vmul.f32 %v346, %v573
    %v615 = vmul.f32 %v347, %v573
    %v616 = vmul.f32 %v348, %v573
    %v617 = vmul.f32 %v349, %v573
    %v618 = vmul.f32 %v350, %v573
    %v619 = vmul.f32 %v351, %v573
    %v620 = vmul.f32 %v352, %v573
    %v621 = vmul.f32 %v353, %v573
    %v622 = vmul.f32 %v354, %v573
    %v623 = vmul.f32 %v355, %v573
    %v624 = vmul.f32 %v356, %v573
    %v625 = vmul.f32 %v357, %v573
    %v626 = vmul.f32 %v358, %v573
    %v627 = vmul.f32 %v359, %v573
    %v628 = vmul.f32 %v360, %v573
    %v629 = vmul.f32 %v361, %v573
    %v630 = vmul.f32 %v362, %v573
    %v631 = vmul.f32 %v363, %v573
    %v632 = vmul.f32 %v364, %v573
    %v633 = vmul.f32 %v365, %v573
    %v634 = vmul.f32 %v366, %v573
    %v635 = vmul.f32 %v367, %v573
    %v636 = vmul.f32 %v368, %v573
    %v637 = vmul.f32 %v369, %v573
    %v638 = vadd.f32 %v506, %v574
    %v639 = vadd.f32 %v507, %v575
    %v640 = vadd.f32 %v508, %v576
    %v641 = vadd.f32 %v509, %v577
    %v642 = vadd.f32 %v510, %v578
    %v643 = vadd.f32 %v511, %v579
    %v644 = vadd.f32 %v512, %v580
    %v645 = vadd.f32 %v513, %v581
    %v646 = vadd.f32 %v514, %v582
    %v647 = vadd.f32 %v515, %v583
    %v648 = vadd.f32 %v516, %v584
    %v649 = vadd.f32 %v517, %v585
    %v650 = vadd.f32 %v518, %v586
    %v651 = vadd.f32 %v519, %v587
    %v652 = vadd.f32 %v520, %v588
    %v653 = vadd.f32 %v521, %v589
    %v654 = vadd.f32 %v522, %v590
    %v655 = vadd.f32 %v523, %v591
    %v656 = vadd.f32 %v524, %v592
    %v657 = vadd.f32 %v525, %v593
    %v658 = vadd.f32 %v526, %v594
    %v659 = vadd.f32 %v527, %v595
    %v660 = vadd.f32 %v528, %v596
    %v661 = vadd.f32 %v529, %v597
    %v662 = vadd.f32 %v530, %v598
    %v663 = vadd.f32 %v531, %v599
    %v664 = vadd.f32 %v532, %v600
    %v665 = vadd.f32 %v533, %v601
    %v666 = vadd.f32 %v534, %v602
    %v667 = vadd.f32 %v535, %v603
    %v668 = vadd.f32 %v536, %v604
    %v669 = vadd.f32 %v537, %v605
    %v670 = vadd.f32 %v538, %v606
    %v671 = vadd.f32 %v539, %v607
    %v672 = vadd.f32 %v540, %v608
    %v673 = vadd.f32 %v541, %v609
    %v674 = vadd.f32 %v542, %v610
    %v675 = vadd.f32 %v543, %v611
    %v676 = vadd.f32 %v544, %v612
    %v677 = vadd.f32 %v545, %v613
    %v678 = vadd.f32 %v546, %v614
    %v679 = vadd.f32 %v547, %v615
    %v680 = vadd.f32 %v548, %v616
    %v681 = vadd.f32 %v549, %v617
    %v682 = vadd.f32 %v550, %v618
    %v683 = vadd.f32 %v551, %v619
    %v684 = vadd.f32 %v552, %v620
    %v685 = vadd.f32 %v553, %v621
    %v686 = vadd.f32 %v554, %v622
    %v687 = vadd.f32 %v555, %v623
    %v688 = vadd.f32 %v556, %v624
    %v689 = vadd.f32 %v557, %v625
    %v690 = vadd.f32 %v558, %v626
    %v691 = vadd.f32 %v559, %v627
    %v692 = vadd.f32 %v560, %v628
    %v693 = vadd.f32 %v561, %v629
    %v694 = vadd.f32 %v562, %v630
    %v695 = vadd.f32 %v563, %v631
    %v696 = vadd.f32 %v564, %v632
    %v697 = vadd.f32 %v565, %v633
    %v698 = vadd.f32 %v566, %v634
    %v699 = vadd.f32 %v567, %v635
    %v700 = vadd.f32 %v568, %v636
    %v701 = vadd.f32 %v569, %v637
    %v702 = vld [vmem:[#allocation2 + $0x1] sm:$0xff]
    %v703 = vld [vmem:[#allocation2 + $0x9] sm:$0xff]
    %v704 = vld [vmem:[#allocation2 + $0x19] sm:$0xff]
    %v705 = vld [vmem:[#allocation2 + $0x21] sm:$0xff]
    %v706 = vld [vmem:[#allocation2 + $0x31] sm:$0xff]
    %v707 = vld [vmem:[#allocation2 + $0x39] sm:$0xff]
    %v708 = vld [vmem:[#allocation2 + $0x49] sm:$0xff]
    %v709 = vld [vmem:[#allocation2 + $0x51] sm:$0xff]
    %v710 = vld [vmem:[#allocation2 + $0x61] sm:$0xff]
    %v711 = vld [vmem:[#allocation2 + $0x69] sm:$0xff]
    %v712 = vld [vmem:[#allocation2 + $0x79] sm:$0xff]
    %v713 = vld [vmem:[#allocation2 + $0x81] sm:$0xff]
    %v714 = vld [vmem:[#allocation2 + $0x91] sm:$0xff]
    %v715 = vld [vmem:[#allocation2 + $0x99] sm:$0xff]
    %v716 = vld [vmem:[#allocation2 + $0xa9] sm:$0xff]
    %v717 = vld [vmem:[#allocation2 + $0xb1] sm:$0xff]
    %v718 = vld [vmem:[#allocation2 + $0xc1] sm:$0xff]
    %v719 = vld [vmem:[#allocation2 + $0xc9] sm:$0xff]
    %v720 = vld [vmem:[#allocation2 + $0xd9] sm:$0xff]
    %v721 = vld [vmem:[#allocation2 + $0xe1] sm:$0xff]
    %v722 = vld [vmem:[#allocation2 + $0xf1] sm:$0xff]
    %v723 = vld [vmem:[#allocation2 + $0xf9] sm:$0xff]
    %v724 = vld [vmem:[#allocation2 + $0x109] sm:$0xff]
    %v725 = vld [vmem:[#allocation2 + $0x111] sm:$0xff]
    %v726 = vld [vmem:[#allocation2 + $0x121] sm:$0xff]
    %v727 = vld [vmem:[#allocation2 + $0x129] sm:$0xff]
    %v728 = vld [vmem:[#allocation2 + $0x139] sm:$0xff]
    %v729 = vld [vmem:[#allocation2 + $0x141] sm:$0xff]
    %v730 = vld [vmem:[#allocation2 + $0x151] sm:$0xff]
    %v731 = vld [vmem:[#allocation2 + $0x159] sm:$0xff]
    %v732 = vld [vmem:[#allocation2 + $0x169] sm:$0xff]
    %v733 = vld [vmem:[#allocation2 + $0x171] sm:$0xff]
    %v734 = vld [vmem:[#allocation2 + $0x181] sm:$0xff]
    %v735 = vld [vmem:[#allocation2 + $0x189] sm:$0xff]
    %v736 = vld [vmem:[#allocation2 + $0x199] sm:$0xff]
    %v737 = vld [vmem:[#allocation2 + $0x1a1] sm:$0xff]
    %v738 = vld [vmem:[#allocation2 + $0x1b1] sm:$0xff]
    %v739 = vld [vmem:[#allocation2 + $0x1b9] sm:$0xff]
    %v740 = vld [vmem:[#allocation2 + $0x1c9] sm:$0xff]
    %v741 = vld [vmem:[#allocation2 + $0x1d1] sm:$0xff]
    %v742 = vld [vmem:[#allocation2 + $0x1e1] sm:$0xff]
    %v743 = vld [vmem:[#allocation2 + $0x1e9] sm:$0xff]
    %v744 = vld [vmem:[#allocation2 + $0x1f9] sm:$0xff]
    %v745 = vld [vmem:[#allocation2 + $0x201] sm:$0xff]
    %v746 = vld [vmem:[#allocation2 + $0x211] sm:$0xff]
    %v747 = vld [vmem:[#allocation2 + $0x219] sm:$0xff]
    %v748 = vld [vmem:[#allocation2 + $0x229] sm:$0xff]
    %v749 = vld [vmem:[#allocation2 + $0x231] sm:$0xff]
    %v750 = vld [vmem:[#allocation2 + $0x241] sm:$0xff]
    %v751 = vld [vmem:[#allocation2 + $0x249] sm:$0xff]
    %v752 = vld [vmem:[#allocation2 + $0x259] sm:$0xff]
    %v753 = vld [vmem:[#allocation2 + $0x261] sm:$0xff]
    %v754 = vld [vmem:[#allocation2 + $0x271] sm:$0xff]
    %v755 = vld [vmem:[#allocation2 + $0x279] sm:$0xff]
    %v756 = vld [vmem:[#allocation2 + $0x289] sm:$0xff]
    %v757 = vld [vmem:[#allocation2 + $0x291] sm:$0xff]
    %v758 = vld [vmem:[#allocation2 + $0x2a1] sm:$0xff]
    %v759 = vld [vmem:[#allocation2 + $0x2a9] sm:$0xff]
    %v760 = vld [vmem:[#allocation2 + $0x2b9] sm:$0xff]
    %v761 = vld [vmem:[#allocation2 + $0x2c1] sm:$0xff]
    %v762 = vld [vmem:[#allocation2 + $0x2d1] sm:$0xff]
    %v763 = vld [vmem:[#allocation2 + $0x2d9] sm:$0xff]
    %v764 = vld [vmem:[#allocation2 + $0x2e9] sm:$0xff]
    %v765 = vld [vmem:[#allocation2 + $0x2f1] sm:$0xff]
    %v766 = vld [vmem:[#allocation2 + $0x301] sm:$0xff]
    %v767 = vld [vmem:[#allocation2 + $0x309] sm:$0xff]
    %v768 = vld [vmem:[#allocation2 + $0x319] sm:$0xff]
    %v769 = vld [vmem:[#allocation2 + $0x321] sm:$0xff]
    %v770 = vld [vmem:[#allocation2 + $0x331] sm:$0xff]
    %v771 = vld [vmem:[#allocation2 + $0x339] sm:$0xff]
    %v772 = vld [vmem:[#allocation2 + $0x349] sm:$0xff]
    %v773 = vld [vmem:[#allocation2 + $0x351] sm:$0xff]
    %v774 = vlaneseq
    %v775 = vshrl.u32 %v774, 7
    %v776 = vsub.s32 1, %v775
    %v777 = vrot.slane %v143, %v776
    %v778 = vmul.f32 %v702, %v777
    %v779 = vmul.f32 %v703, %v777
    %v780 = vmul.f32 %v704, %v777
    %v781 = vmul.f32 %v705, %v777
    %v782 = vmul.f32 %v706, %v777
    %v783 = vmul.f32 %v707, %v777
    %v784 = vmul.f32 %v708, %v777
    %v785 = vmul.f32 %v709, %v777
    %v786 = vmul.f32 %v710, %v777
    %v787 = vmul.f32 %v711, %v777
    %v788 = vmul.f32 %v712, %v777
    %v789 = vmul.f32 %v713, %v777
    %v790 = vmul.f32 %v714, %v777
    %v791 = vmul.f32 %v715, %v777
    %v792 = vmul.f32 %v716, %v777
    %v793 = vmul.f32 %v717, %v777
    %v794 = vmul.f32 %v718, %v777
    %v795 = vmul.f32 %v719, %v777
    %v796 = vmul.f32 %v720, %v777
    %v797 = vmul.f32 %v721, %v777
    %v798 = vmul.f32 %v722, %v777
    %v799 = vmul.f32 %v723, %v777
    %v800 = vmul.f32 %v724, %v777
    %v801 = vmul.f32 %v725, %v777
    %v802 = vmul.f32 %v726, %v777
    %v803 = vmul.f32 %v727, %v777
    %v804 = vmul.f32 %v728, %v777
    %v805 = vmul.f32 %v729, %v777
    %v806 = vmul.f32 %v730, %v777
    %v807 = vmul.f32 %v731, %v777
    %v808 = vmul.f32 %v732, %v777
    %v809 = vmul.f32 %v733, %v777
    %v810 = vmul.f32 %v738, %v777
    %v811 = vmul.f32 %v739, %v777
    %v812 = vmul.f32 %v740, %v777
    %v813 = vmul.f32 %v741, %v777
    %v814 = vmul.f32 %v742, %v777
    %v815 = vmul.f32 %v743, %v777
    %v816 = vmul.f32 %v744, %v777
    %v817 = vmul.f32 %v745, %v777
    %v818 = vmul.f32 %v746, %v777
    %v819 = vmul.f32 %v747, %v777
    %v820 = vmul.f32 %v748, %v777
    %v821 = vmul.f32 %v749, %v777
    %v822 = vmul.f32 %v750, %v777
    %v823 = vmul.f32 %v751, %v777
    %v824 = vmul.f32 %v752, %v777
    %v825 = vmul.f32 %v753, %v777
    %v826 = vmul.f32 %v754, %v777
    %v827 = vmul.f32 %v755, %v777
    %v828 = vmul.f32 %v756, %v777
    %v829 = vmul.f32 %v757, %v777
    %v830 = vmul.f32 %v758, %v777
    %v831 = vmul.f32 %v759, %v777
    %v832 = vmul.f32 %v760, %v777
    %v833 = vmul.f32 %v761, %v777
    %v834 = vmul.f32 %v762, %v777
    %v835 = vmul.f32 %v763, %v777
    %v836 = vmul.f32 %v764, %v777
    %v837 = vmul.f32 %v765, %v777
    %v838 = vmul.f32 %v766, %v777
    %v839 = vmul.f32 %v767, %v777
    %v840 = vmul.f32 %v768, %v777
    %v841 = vmul.f32 %v769, %v777
    %v842 = vadd.f32 %v638, %v778
    %v843 = vadd.f32 %v639, %v779
    %v844 = vadd.f32 %v640, %v780
    %v845 = vadd.f32 %v641, %v781
    %v846 = vadd.f32 %v642, %v782
    %v847 = vadd.f32 %v643, %v783
    %v848 = vadd.f32 %v644, %v784
    %v849 = vadd.f32 %v645, %v785
    %v850 = vadd.f32 %v646, %v786
    %v851 = vadd.f32 %v647, %v787
    %v852 = vadd.f32 %v648, %v788
    %v853 = vadd.f32 %v649, %v789
    %v854 = vadd.f32 %v650, %v790
    %v855 = vadd.f32 %v651, %v791
    %v856 = vadd.f32 %v652, %v792
    %v857 = vadd.f32 %v653, %v793
    %v858 = vadd.f32 %v654, %v794
    %v859 = vadd.f32 %v655, %v795
    %v860 = vadd.f32 %v656, %v796
    %v861 = vadd.f32 %v657, %v797
    %v862 = vadd.f32 %v658, %v798
    %v863 = vadd.f32 %v659, %v799
    %v864 = vadd.f32 %v660, %v800
    %v865 = vadd.f32 %v661, %v801
    %v866 = vadd.f32 %v662, %v802
    %v867 = vadd.f32 %v663, %v803
    %v868 = vadd.f32 %v664, %v804
    %v869 = vadd.f32 %v665, %v805
    %v870 = vadd.f32 %v666, %v806
    %v871 = vadd.f32 %v667, %v807
    %v872 = vadd.f32 %v668, %v808
    %v873 = vadd.f32 %v669, %v809
    %v874 = vadd.f32 %v670, %v810
    %v875 = vadd.f32 %v671, %v811
    %v876 = vadd.f32 %v672, %v812
    %v877 = vadd.f32 %v673, %v813
    %v878 = vadd.f32 %v674, %v814
    %v879 = vadd.f32 %v675, %v815
    %v880 = vadd.f32 %v676, %v816
    %v881 = vadd.f32 %v677, %v817
    %v882 = vadd.f32 %v678, %v818
    %v883 = vadd.f32 %v679, %v819
    %v884 = vadd.f32 %v680, %v820
    %v885 = vadd.f32 %v681, %v821
    %v886 = vadd.f32 %v682, %v822
    %v887 = vadd.f32 %v683, %v823
    %v888 = vadd.f32 %v684, %v824
    %v889 = vadd.f32 %v685, %v825
    %v890 = vadd.f32 %v686, %v826
    %v891 = vadd.f32 %v687, %v827
    %v892 = vadd.f32 %v688, %v828
    %v893 = vadd.f32 %v689, %v829
    %v894 = vadd.f32 %v690, %v830
    %v895 = vadd.f32 %v691, %v831
    %v896 = vadd.f32 %v692, %v832
    %v897 = vadd.f32 %v693, %v833
    %v898 = vadd.f32 %v694, %v834
    %v899 = vadd.f32 %v695, %v835
    %v900 = vadd.f32 %v696, %v836
    %v901 = vadd.f32 %v697, %v837
    %v902 = vadd.f32 %v698, %v838
    %v903 = vadd.f32 %v699, %v839
    %v904 = vadd.f32 %v700, %v840
    %v905 = vadd.f32 %v701, %v841
    %v906 = vlaneseq
    %v907 = vshrl.u32 %v906, 7
    %v908 = vsub.s32 4, %v907
    %v909 = vrot.slane %v143, %v908
    %v910 = vmul.f32 %v704, %v909
    %v911 = vmul.f32 %v705, %v909
    %v912 = vmul.f32 %v706, %v909
    %v913 = vmul.f32 %v707, %v909
    %v914 = vmul.f32 %v708, %v909
    %v915 = vmul.f32 %v709, %v909
    %v916 = vmul.f32 %v710, %v909
    %v917 = vmul.f32 %v711, %v909
    %v918 = vmul.f32 %v712, %v909
    %v919 = vmul.f32 %v713, %v909
    %v920 = vmul.f32 %v714, %v909
    %v921 = vmul.f32 %v715, %v909
    %v922 = vmul.f32 %v716, %v909
    %v923 = vmul.f32 %v717, %v909
    %v924 = vmul.f32 %v718, %v909
    %v925 = vmul.f32 %v719, %v909
    %v926 = vmul.f32 %v720, %v909
    %v927 = vmul.f32 %v721, %v909
    %v928 = vmul.f32 %v722, %v909
    %v929 = vmul.f32 %v723, %v909
    %v930 = vmul.f32 %v724, %v909
    %v931 = vmul.f32 %v725, %v909
    %v932 = vmul.f32 %v726, %v909
    %v933 = vmul.f32 %v727, %v909
    %v934 = vmul.f32 %v728, %v909
    %v935 = vmul.f32 %v729, %v909
    %v936 = vmul.f32 %v730, %v909
    %v937 = vmul.f32 %v731, %v909
    %v938 = vmul.f32 %v732, %v909
    %v939 = vmul.f32 %v733, %v909
    %v940 = vmul.f32 %v734, %v909
    %v941 = vmul.f32 %v735, %v909
    %v942 = vmul.f32 %v740, %v909
    %v943 = vmul.f32 %v741, %v909
    %v944 = vmul.f32 %v742, %v909
    %v945 = vmul.f32 %v743, %v909
    %v946 = vmul.f32 %v744, %v909
    %v947 = vmul.f32 %v745, %v909
    %v948 = vmul.f32 %v746, %v909
    %v949 = vmul.f32 %v747, %v909
    %v950 = vmul.f32 %v748, %v909
    %v951 = vmul.f32 %v749, %v909
    %v952 = vmul.f32 %v750, %v909
    %v953 = vmul.f32 %v751, %v909
    %v954 = vmul.f32 %v752, %v909
    %v955 = vmul.f32 %v753, %v909
    %v956 = vmul.f32 %v754, %v909
    %v957 = vmul.f32 %v755, %v909
    %v958 = vmul.f32 %v756, %v909
    %v959 = vmul.f32 %v757, %v909
    %v960 = vmul.f32 %v758, %v909
    %v961 = vmul.f32 %v759, %v909
    %v962 = vmul.f32 %v760, %v909
    %v963 = vmul.f32 %v761, %v909
    %v964 = vmul.f32 %v762, %v909
    %v965 = vmul.f32 %v763, %v909
    %v966 = vmul.f32 %v764, %v909
    %v967 = vmul.f32 %v765, %v909
    %v968 = vmul.f32 %v766, %v909
    %v969 = vmul.f32 %v767, %v909
    %v970 = vmul.f32 %v768, %v909
    %v971 = vmul.f32 %v769, %v909
    %v972 = vmul.f32 %v770, %v909
    %v973 = vmul.f32 %v771, %v909
    %v974 = vadd.f32 %v842, %v910
    %v975 = vadd.f32 %v843, %v911
    %v976 = vadd.f32 %v844, %v912
    %v977 = vadd.f32 %v845, %v913
    %v978 = vadd.f32 %v846, %v914
    %v979 = vadd.f32 %v847, %v915
    %v980 = vadd.f32 %v848, %v916
    %v981 = vadd.f32 %v849, %v917
    %v982 = vadd.f32 %v850, %v918
    %v983 = vadd.f32 %v851, %v919
    %v984 = vadd.f32 %v852, %v920
    %v985 = vadd.f32 %v853, %v921
    %v986 = vadd.f32 %v854, %v922
    %v987 = vadd.f32 %v855, %v923
    %v988 = vadd.f32 %v856, %v924
    %v989 = vadd.f32 %v857, %v925
    %v990 = vadd.f32 %v858, %v926
    %v991 = vadd.f32 %v859, %v927
    %v992 = vadd.f32 %v860, %v928
    %v993 = vadd.f32 %v861, %v929
    %v994 = vadd.f32 %v862, %v930
    %v995 = vadd.f32 %v863, %v931
    %v996 = vadd.f32 %v864, %v932
    %v997 = vadd.f32 %v865, %v933
    %v998 = vadd.f32 %v866, %v934
    %v999 = vadd.f32 %v867, %v935
    %v1000 = vadd.f32 %v868, %v936
    %v1001 = vadd.f32 %v869, %v937
    %v1002 = vadd.f32 %v870, %v938
    %v1003 = vadd.f32 %v871, %v939
    %v1004 = vadd.f32 %v872, %v940
    %v1005 = vadd.f32 %v873, %v941
    %v1006 = vadd.f32 %v874, %v942
    %v1007 = vadd.f32 %v875, %v943
    %v1008 = vadd.f32 %v876, %v944
    %v1009 = vadd.f32 %v877, %v945
    %v1010 = vadd.f32 %v878, %v946
    %v1011 = vadd.f32 %v879, %v947
    %v1012 = vadd.f32 %v880, %v948
    %v1013 = vadd.f32 %v881, %v949
    %v1014 = vadd.f32 %v882, %v950
    %v1015 = vadd.f32 %v883, %v951
    %v1016 = vadd.f32 %v884, %v952
    %v1017 = vadd.f32 %v885, %v953
    %v1018 = vadd.f32 %v886, %v954
    %v1019 = vadd.f32 %v887, %v955
    %v1020 = vadd.f32 %v888, %v956
    %v1021 = vadd.f32 %v889, %v957
    %v1022 = vadd.f32 %v890, %v958
    %v1023 = vadd.f32 %v891, %v959
    %v1024 = vadd.f32 %v892, %v960
    %v1025 = vadd.f32 %v893, %v961
    %v1026 = vadd.f32 %v894, %v962
    %v1027 = vadd.f32 %v895, %v963
    %v1028 = vadd.f32 %v896, %v964
    %v1029 = vadd.f32 %v897, %v965
    %v1030 = vadd.f32 %v898, %v966
    %v1031 = vadd.f32 %v899, %v967
    %v1032 = vadd.f32 %v900, %v968
    %v1033 = vadd.f32 %v901, %v969
    %v1034 = vadd.f32 %v902, %v970
    %v1035 = vadd.f32 %v903, %v971
    %v1036 = vadd.f32 %v904, %v972
    %v1037 = vadd.f32 %v905, %v973
    %v1038 = vlaneseq
    %v1039 = vshrl.u32 %v1038, 7
    %v1040 = vsub.s32 7, %v1039
    %v1041 = vrot.slane %v143, %v1040
    %v1042 = vmul.f32 %v706, %v1041
    %v1043 = vmul.f32 %v707, %v1041
    %v1044 = vmul.f32 %v708, %v1041
    %v1045 = vmul.f32 %v709, %v1041
    %v1046 = vmul.f32 %v710, %v1041
    %v1047 = vmul.f32 %v711, %v1041
    %v1048 = vmul.f32 %v712, %v1041
    %v1049 = vmul.f32 %v713, %v1041
    %v1050 = vmul.f32 %v714, %v1041
    %v1051 = vmul.f32 %v715, %v1041
    %v1052 = vmul.f32 %v716, %v1041
    %v1053 = vmul.f32 %v717, %v1041
    %v1054 = vmul.f32 %v718, %v1041
    %v1055 = vmul.f32 %v719, %v1041
    %v1056 = vmul.f32 %v720, %v1041
    %v1057 = vmul.f32 %v721, %v1041
    %v1058 = vmul.f32 %v722, %v1041
    %v1059 = vmul.f32 %v723, %v1041
    %v1060 = vmul.f32 %v724, %v1041
    %v1061 = vmul.f32 %v725, %v1041
    %v1062 = vmul.f32 %v726, %v1041
    %v1063 = vmul.f32 %v727, %v1041
    %v1064 = vmul.f32 %v728, %v1041
    %v1065 = vmul.f32 %v729, %v1041
    %v1066 = vmul.f32 %v730, %v1041
    %v1067 = vmul.f32 %v731, %v1041
    %v1068 = vmul.f32 %v732, %v1041
    %v1069 = vmul.f32 %v733, %v1041
    %v1070 = vmul.f32 %v734, %v1041
    %v1071 = vmul.f32 %v735, %v1041
    %v1072 = vmul.f32 %v736, %v1041
    %v1073 = vmul.f32 %v737, %v1041
    %v1074 = vmul.f32 %v742, %v1041
    %v1075 = vmul.f32 %v743, %v1041
    %v1076 = vmul.f32 %v744, %v1041
    %v1077 = vmul.f32 %v745, %v1041
    %v1078 = vmul.f32 %v746, %v1041
    %v1079 = vmul.f32 %v747, %v1041
    %v1080 = vmul.f32 %v748, %v1041
    %v1081 = vmul.f32 %v749, %v1041
    %v1082 = vmul.f32 %v750, %v1041
    %v1083 = vmul.f32 %v751, %v1041
    %v1084 = vmul.f32 %v752, %v1041
    %v1085 = vmul.f32 %v753, %v1041
    %v1086 = vmul.f32 %v754, %v1041
    %v1087 = vmul.f32 %v755, %v1041
    %v1088 = vmul.f32 %v756, %v1041
    %v1089 = vmul.f32 %v757, %v1041
    %v1090 = vmul.f32 %v758, %v1041
    %v1091 = vmul.f32 %v759, %v1041
    %v1092 = vmul.f32 %v760, %v1041
    %v1093 = vmul.f32 %v761, %v1041
    %v1094 = vmul.f32 %v762, %v1041
    %v1095 = vmul.f32 %v763, %v1041
    %v1096 = vmul.f32 %v764, %v1041
    %v1097 = vmul.f32 %v765, %v1041
    %v1098 = vmul.f32 %v766, %v1041
    %v1099 = vmul.f32 %v767, %v1041
    %v1100 = vmul.f32 %v768, %v1041
    %v1101 = vmul.f32 %v769, %v1041
    %v1102 = vmul.f32 %v770, %v1041
    %v1103 = vmul.f32 %v771, %v1041
    %v1104 = vmul.f32 %v772, %v1041
    %v1105 = vmul.f32 %v773, %v1041
    %v1106 = vadd.f32 %v974, %v1042
    %v1107 = vadd.f32 %v975, %v1043
    %v1108 = vadd.f32 %v976, %v1044
    %v1109 = vadd.f32 %v977, %v1045
    %v1110 = vadd.f32 %v978, %v1046
    %v1111 = vadd.f32 %v979, %v1047
    %v1112 = vadd.f32 %v980, %v1048
    %v1113 = vadd.f32 %v981, %v1049
    %v1114 = vadd.f32 %v982, %v1050
    %v1115 = vadd.f32 %v983, %v1051
    %v1116 = vadd.f32 %v984, %v1052
    %v1117 = vadd.f32 %v985, %v1053
    %v1118 = vadd.f32 %v986, %v1054
    %v1119 = vadd.f32 %v987, %v1055
    %v1120 = vadd.f32 %v988, %v1056
    %v1121 = vadd.f32 %v989, %v1057
    %v1122 = vadd.f32 %v990, %v1058
    %v1123 = vadd.f32 %v991, %v1059
    %v1124 = vadd.f32 %v992, %v1060
    %v1125 = vadd.f32 %v993, %v1061
    %v1126 = vadd.f32 %v994, %v1062
    %v1127 = vadd.f32 %v995, %v1063
    %v1128 = vadd.f32 %v996, %v1064
    %v1129 = vadd.f32 %v997, %v1065
    %v1130 = vadd.f32 %v998, %v1066
    %v1131 = vadd.f32 %v999, %v1067
    %v1132 = vadd.f32 %v1000, %v1068
    %v1133 = vadd.f32 %v1001, %v1069
    %v1134 = vadd.f32 %v1002, %v1070
    %v1135 = vadd.f32 %v1003, %v1071
    %v1136 = vadd.f32 %v1004, %v1072
    %v1137 = vadd.f32 %v1005, %v1073
    %v1138 = vadd.f32 %v1006, %v1074
    %v1139 = vadd.f32 %v1007, %v1075
    %v1140 = vadd.f32 %v1008, %v1076
    %v1141 = vadd.f32 %v1009, %v1077
    %v1142 = vadd.f32 %v1010, %v1078
    %v1143 = vadd.f32 %v1011, %v1079
    %v1144 = vadd.f32 %v1012, %v1080
    %v1145 = vadd.f32 %v1013, %v1081
    %v1146 = vadd.f32 %v1014, %v1082
    %v1147 = vadd.f32 %v1015, %v1083
    %v1148 = vadd.f32 %v1016, %v1084
    %v1149 = vadd.f32 %v1017, %v1085
    %v1150 = vadd.f32 %v1018, %v1086
    %v1151 = vadd.f32 %v1019, %v1087
    %v1152 = vadd.f32 %v1020, %v1088
    %v1153 = vadd.f32 %v1021, %v1089
    %v1154 = vadd.f32 %v1022, %v1090
    %v1155 = vadd.f32 %v1023, %v1091
    %v1156 = vadd.f32 %v1024, %v1092
    %v1157 = vadd.f32 %v1025, %v1093
    %v1158 = vadd.f32 %v1026, %v1094
    %v1159 = vadd.f32 %v1027, %v1095
    %v1160 = vadd.f32 %v1028, %v1096
    %v1161 = vadd.f32 %v1029, %v1097
    %v1162 = vadd.f32 %v1030, %v1098
    %v1163 = vadd.f32 %v1031, %v1099
    %v1164 = vadd.f32 %v1032, %v1100
    %v1165 = vadd.f32 %v1033, %v1101
    %v1166 = vadd.f32 %v1034, %v1102
    %v1167 = vadd.f32 %v1035, %v1103
    %v1168 = vadd.f32 %v1036, %v1104
    %v1169 = vadd.f32 %v1037, %v1105
    %v1170 = vld [vmem:[#allocation2 + $0x2] sm:$0xff]
    %v1171 = vld [vmem:[#allocation2 + $0xa] sm:$0xff]
    %v1172 = vld [vmem:[#allocation2 + $0x1a] sm:$0xff]
    %v1173 = vld [vmem:[#allocation2 + $0x22] sm:$0xff]
    %v1174 = vld [vmem:[#allocation2 + $0x32] sm:$0xff]
    %v1175 = vld [vmem:[#allocation2 + $0x3a] sm:$0xff]
    %v1176 = vld [vmem:[#allocation2 + $0x4a] sm:$0xff]
    %v1177 = vld [vmem:[#allocation2 + $0x52] sm:$0xff]
    %v1178 = vld [vmem:[#allocation2 + $0x62] sm:$0xff]
    %v1179 = vld [vmem:[#allocation2 + $0x6a] sm:$0xff]
    %v1180 = vld [vmem:[#allocation2 + $0x7a] sm:$0xff]
    %v1181 = vld [vmem:[#allocation2 + $0x82] sm:$0xff]
    %v1182 = vld [vmem:[#allocation2 + $0x92] sm:$0xff]
    %v1183 = vld [vmem:[#allocation2 + $0x9a] sm:$0xff]
    %v1184 = vld [vmem:[#allocation2 + $0xaa] sm:$0xff]
    %v1185 = vld [vmem:[#allocation2 + $0xb2] sm:$0xff]
    %v1186 = vld [vmem:[#allocation2 + $0xc2] sm:$0xff]
    %v1187 = vld [vmem:[#allocation2 + $0xca] sm:$0xff]
    %v1188 = vld [vmem:[#allocation2 + $0xda] sm:$0xff]
    %v1189 = vld [vmem:[#allocation2 + $0xe2] sm:$0xff]
    %v1190 = vld [vmem:[#allocation2 + $0xf2] sm:$0xff]
    %v1191 = vld [vmem:[#allocation2 + $0xfa] sm:$0xff]
    %v1192 = vld [vmem:[#allocation2 + $0x10a] sm:$0xff]
    %v1193 = vld [vmem:[#allocation2 + $0x112] sm:$0xff]
    %v1194 = vld [vmem:[#allocation2 + $0x122] sm:$0xff]
    %v1195 = vld [vmem:[#allocation2 + $0x12a] sm:$0xff]
    %v1196 = vld [vmem:[#allocation2 + $0x13a] sm:$0xff]
    %v1197 = vld [vmem:[#allocation2 + $0x142] sm:$0xff]
    %v1198 = vld [vmem:[#allocation2 + $0x152] sm:$0xff]
    %v1199 = vld [vmem:[#allocation2 + $0x15a] sm:$0xff]
    %v1200 = vld [vmem:[#allocation2 + $0x16a] sm:$0xff]
    %v1201 = vld [vmem:[#allocation2 + $0x172] sm:$0xff]
    %v1202 = vld [vmem:[#allocation2 + $0x182] sm:$0xff]
    %v1203 = vld [vmem:[#allocation2 + $0x18a] sm:$0xff]
    %v1204 = vld [vmem:[#allocation2 + $0x19a] sm:$0xff]
    %v1205 = vld [vmem:[#allocation2 + $0x1a2] sm:$0xff]
    %v1206 = vld [vmem:[#allocation2 + $0x1b2] sm:$0xff]
    %v1207 = vld [vmem:[#allocation2 + $0x1ba] sm:$0xff]
    %v1208 = vld [vmem:[#allocation2 + $0x1ca] sm:$0xff]
    %v1209 = vld [vmem:[#allocation2 + $0x1d2] sm:$0xff]
    %v1210 = vld [vmem:[#allocation2 + $0x1e2] sm:$0xff]
    %v1211 = vld [vmem:[#allocation2 + $0x1ea] sm:$0xff]
    %v1212 = vld [vmem:[#allocation2 + $0x1fa] sm:$0xff]
    %v1213 = vld [vmem:[#allocation2 + $0x202] sm:$0xff]
    %v1214 = vld [vmem:[#allocation2 + $0x212] sm:$0xff]
    %v1215 = vld [vmem:[#allocation2 + $0x21a] sm:$0xff]
    %v1216 = vld [vmem:[#allocation2 + $0x22a] sm:$0xff]
    %v1217 = vld [vmem:[#allocation2 + $0x232] sm:$0xff]
    %v1218 = vld [vmem:[#allocation2 + $0x242] sm:$0xff]
    %v1219 = vld [vmem:[#allocation2 + $0x24a] sm:$0xff]
    %v1220 = vld [vmem:[#allocation2 + $0x25a] sm:$0xff]
    %v1221 = vld [vmem:[#allocation2 + $0x262] sm:$0xff]
    %v1222 = vld [vmem:[#allocation2 + $0x272] sm:$0xff]
    %v1223 = vld [vmem:[#allocation2 + $0x27a] sm:$0xff]
    %v1224 = vld [vmem:[#allocation2 + $0x28a] sm:$0xff]
    %v1225 = vld [vmem:[#allocation2 + $0x292] sm:$0xff]
    %v1226 = vld [vmem:[#allocation2 + $0x2a2] sm:$0xff]
    %v1227 = vld [vmem:[#allocation2 + $0x2aa] sm:$0xff]
    %v1228 = vld [vmem:[#allocation2 + $0x2ba] sm:$0xff]
    %v1229 = vld [vmem:[#allocation2 + $0x2c2] sm:$0xff]
    %v1230 = vld [vmem:[#allocation2 + $0x2d2] sm:$0xff]
    %v1231 = vld [vmem:[#allocation2 + $0x2da] sm:$0xff]
    %v1232 = vld [vmem:[#allocation2 + $0x2ea] sm:$0xff]
    %v1233 = vld [vmem:[#allocation2 + $0x2f2] sm:$0xff]
    %v1234 = vld [vmem:[#allocation2 + $0x302] sm:$0xff]
    %v1235 = vld [vmem:[#allocation2 + $0x30a] sm:$0xff]
    %v1236 = vld [vmem:[#allocation2 + $0x31a] sm:$0xff]
    %v1237 = vld [vmem:[#allocation2 + $0x322] sm:$0xff]
    %v1238 = vld [vmem:[#allocation2 + $0x332] sm:$0xff]
    %v1239 = vld [vmem:[#allocation2 + $0x33a] sm:$0xff]
    %v1240 = vld [vmem:[#allocation2 + $0x34a] sm:$0xff]
    %v1241 = vld [vmem:[#allocation2 + $0x352] sm:$0xff]
    %v1242 = vlaneseq
    %v1243 = vshrl.u32 %v1242, 7
    %v1244 = vsub.s32 2, %v1243
    %v1245 = vrot.slane %v143, %v1244
    %v1246 = vmul.f32 %v1170, %v1245
    %v1247 = vmul.f32 %v1171, %v1245
    %v1248 = vmul.f32 %v1172, %v1245
    %v1249 = vmul.f32 %v1173, %v1245
    %v1250 = vmul.f32 %v1174, %v1245
    %v1251 = vmul.f32 %v1175, %v1245
    %v1252 = vmul.f32 %v1176, %v1245
    %v1253 = vmul.f32 %v1177, %v1245
    %v1254 = vmul.f32 %v1178, %v1245
    %v1255 = vmul.f32 %v1179, %v1245
    %v1256 = vmul.f32 %v1180, %v1245
    %v1257 = vmul.f32 %v1181, %v1245
    %v1258 = vmul.f32 %v1182, %v1245
    %v1259 = vmul.f32 %v1183, %v1245
    %v1260 = vmul.f32 %v1184, %v1245
    %v1261 = vmul.f32 %v1185, %v1245
    %v1262 = vmul.f32 %v1186, %v1245
    %v1263 = vmul.f32 %v1187, %v1245
    %v1264 = vmul.f32 %v1188, %v1245
    %v1265 = vmul.f32 %v1189, %v1245
    %v1266 = vmul.f32 %v1190, %v1245
    %v1267 = vmul.f32 %v1191, %v1245
    %v1268 = vmul.f32 %v1192, %v1245
    %v1269 = vmul.f32 %v1193, %v1245
    %v1270 = vmul.f32 %v1194, %v1245
    %v1271 = vmul.f32 %v1195, %v1245
    %v1272 = vmul.f32 %v1196, %v1245
    %v1273 = vmul.f32 %v1197, %v1245
    %v1274 = vmul.f32 %v1198, %v1245
    %v1275 = vmul.f32 %v1199, %v1245
    %v1276 = vmul.f32 %v1200, %v1245
    %v1277 = vmul.f32 %v1201, %v1245
    %v1278 = vmul.f32 %v1206, %v1245
    %v1279 = vmul.f32 %v1207, %v1245
    %v1280 = vmul.f32 %v1208, %v1245
    %v1281 = vmul.f32 %v1209, %v1245
    %v1282 = vmul.f32 %v1210, %v1245
    %v1283 = vmul.f32 %v1211, %v1245
    %v1284 = vmul.f32 %v1212, %v1245
    %v1285 = vmul.f32 %v1213, %v1245
    %v1286 = vmul.f32 %v1214, %v1245
    %v1287 = vmul.f32 %v1215, %v1245
    %v1288 = vmul.f32 %v1216, %v1245
    %v1289 = vmul.f32 %v1217, %v1245
    %v1290 = vmul.f32 %v1218, %v1245
    %v1291 = vmul.f32 %v1219, %v1245
    %v1292 = vmul.f32 %v1220, %v1245
    %v1293 = vmul.f32 %v1221, %v1245
    %v1294 = vmul.f32 %v1222, %v1245
    %v1295 = vmul.f32 %v1223, %v1245
    %v1296 = vmul.f32 %v1224, %v1245
    %v1297 = vmul.f32 %v1225, %v1245
    %v1298 = vmul.f32 %v1226, %v1245
    %v1299 = vmul.f32 %v1227, %v1245
    %v1300 = vmul.f32 %v1228, %v1245
    %v1301 = vmul.f32 %v1229, %v1245
    %v1302 = vmul.f32 %v1230, %v1245
    %v1303 = vmul.f32 %v1231, %v1245
    %v1304 = vmul.f32 %v1232, %v1245
    %v1305 = vmul.f32 %v1233, %v1245
    %v1306 = vmul.f32 %v1234, %v1245
    %v1307 = vmul.f32 %v1235, %v1245
    %v1308 = vmul.f32 %v1236, %v1245
    %v1309 = vmul.f32 %v1237, %v1245
    %v1310 = vadd.f32 %v1106, %v1246
    %v1311 = vadd.f32 %v1107, %v1247
    %v1312 = vadd.f32 %v1108, %v1248
    %v1313 = vadd.f32 %v1109, %v1249
    %v1314 = vadd.f32 %v1110, %v1250
    %v1315 = vadd.f32 %v1111, %v1251
    %v1316 = vadd.f32 %v1112, %v1252
    %v1317 = vadd.f32 %v1113, %v1253
    %v1318 = vadd.f32 %v1114, %v1254
    %v1319 = vadd.f32 %v1115, %v1255
    %v1320 = vadd.f32 %v1116, %v1256
    %v1321 = vadd.f32 %v1117, %v1257
    %v1322 = vadd.f32 %v1118, %v1258
    %v1323 = vadd.f32 %v1119, %v1259
    %v1324 = vadd.f32 %v1120, %v1260
    %v1325 = vadd.f32 %v1121, %v1261
    %v1326 = vadd.f32 %v1122, %v1262
    %v1327 = vadd.f32 %v1123, %v1263
    %v1328 = vadd.f32 %v1124, %v1264
    %v1329 = vadd.f32 %v1125, %v1265
    %v1330 = vadd.f32 %v1126, %v1266
    %v1331 = vadd.f32 %v1127, %v1267
    %v1332 = vadd.f32 %v1128, %v1268
    %v1333 = vadd.f32 %v1129, %v1269
    %v1334 = vadd.f32 %v1130, %v1270
    %v1335 = vadd.f32 %v1131, %v1271
    %v1336 = vadd.f32 %v1132, %v1272
    %v1337 = vadd.f32 %v1133, %v1273
    %v1338 = vadd.f32 %v1134, %v1274
    %v1339 = vadd.f32 %v1135, %v1275
    %v1340 = vadd.f32 %v1136, %v1276
    %v1341 = vadd.f32 %v1137, %v1277
    %v1342 = vadd.f32 %v1138, %v1278
    %v1343 = vadd.f32 %v1139, %v1279
    %v1344 = vadd.f32 %v1140, %v1280
    %v1345 = vadd.f32 %v1141, %v1281
    %v1346 = vadd.f32 %v1142, %v1282
    %v1347 = vadd.f32 %v1143, %v1283
    %v1348 = vadd.f32 %v1144, %v1284
    %v1349 = vadd.f32 %v1145, %v1285
    %v1350 = vadd.f32 %v1146, %v1286
    %v1351 = vadd.f32 %v1147, %v1287
    %v1352 = vadd.f32 %v1148, %v1288
    %v1353 = vadd.f32 %v1149, %v1289
    %v1354 = vadd.f32 %v1150, %v1290
    %v1355 = vadd.f32 %v1151, %v1291
    %v1356 = vadd.f32 %v1152, %v1292
    %v1357 = vadd.f32 %v1153, %v1293
    %v1358 = vadd.f32 %v1154, %v1294
    %v1359 = vadd.f32 %v1155, %v1295
    %v1360 = vadd.f32 %v1156, %v1296
    %v1361 = vadd.f32 %v1157, %v1297
    %v1362 = vadd.f32 %v1158, %v1298
    %v1363 = vadd.f32 %v1159, %v1299
    %v1364 = vadd.f32 %v1160, %v1300
    %v1365 = vadd.f32 %v1161, %v1301
    %v1366 = vadd.f32 %v1162, %v1302
    %v1367 = vadd.f32 %v1163, %v1303
    %v1368 = vadd.f32 %v1164, %v1304
    %v1369 = vadd.f32 %v1165, %v1305
    %v1370 = vadd.f32 %v1166, %v1306
    %v1371 = vadd.f32 %v1167, %v1307
    %v1372 = vadd.f32 %v1168, %v1308
    %v1373 = vadd.f32 %v1169, %v1309
    %v1374 = vlaneseq
    %v1375 = vshrl.u32 %v1374, 7
    %v1376 = vsub.s32 5, %v1375
    %v1377 = vrot.slane %v143, %v1376
    %v1378 = vmul.f32 %v1172, %v1377
    %v1379 = vmul.f32 %v1173, %v1377
    %v1380 = vmul.f32 %v1174, %v1377
    %v1381 = vmul.f32 %v1175, %v1377
    %v1382 = vmul.f32 %v1176, %v1377
    %v1383 = vmul.f32 %v1177, %v1377
    %v1384 = vmul.f32 %v1178, %v1377
    %v1385 = vmul.f32 %v1179, %v1377
    %v1386 = vmul.f32 %v1180, %v1377
    %v1387 = vmul.f32 %v1181, %v1377
    %v1388 = vmul.f32 %v1182, %v1377
    %v1389 = vmul.f32 %v1183, %v1377
    %v1390 = vmul.f32 %v1184, %v1377
    %v1391 = vmul.f32 %v1185, %v1377
    %v1392 = vmul.f32 %v1186, %v1377
    %v1393 = vmul.f32 %v1187, %v1377
    %v1394 = vmul.f32 %v1188, %v1377
    %v1395 = vmul.f32 %v1189, %v1377
    %v1396 = vmul.f32 %v1190, %v1377
    %v1397 = vmul.f32 %v1191, %v1377
    %v1398 = vmul.f32 %v1192, %v1377
    %v1399 = vmul.f32 %v1193, %v1377
    %v1400 = vmul.f32 %v1194, %v1377
    %v1401 = vmul.f32 %v1195, %v1377
    %v1402 = vmul.f32 %v1196, %v1377
    %v1403 = vmul.f32 %v1197, %v1377
    %v1404 = vmul.f32 %v1198, %v1377
    %v1405 = vmul.f32 %v1199, %v1377
    %v1406 = vmul.f32 %v1200, %v1377
    %v1407 = vmul.f32 %v1201, %v1377
    %v1408 = vmul.f32 %v1202, %v1377
    %v1409 = vmul.f32 %v1203, %v1377
    %v1410 = vmul.f32 %v1208, %v1377
    %v1411 = vmul.f32 %v1209, %v1377
    %v1412 = vmul.f32 %v1210, %v1377
    %v1413 = vmul.f32 %v1211, %v1377
    %v1414 = vmul.f32 %v1212, %v1377
    %v1415 = vmul.f32 %v1213, %v1377
    %v1416 = vmul.f32 %v1214, %v1377
    %v1417 = vmul.f32 %v1215, %v1377
    %v1418 = vmul.f32 %v1216, %v1377
    %v1419 = vmul.f32 %v1217, %v1377
    %v1420 = vmul.f32 %v1218, %v1377
    %v1421 = vmul.f32 %v1219, %v1377
    %v1422 = vmul.f32 %v1220, %v1377
    %v1423 = vmul.f32 %v1221, %v1377
    %v1424 = vmul.f32 %v1222, %v1377
    %v1425 = vmul.f32 %v1223, %v1377
    %v1426 = vmul.f32 %v1224, %v1377
    %v1427 = vmul.f32 %v1225, %v1377
    %v1428 = vmul.f32 %v1226, %v1377
    %v1429 = vmul.f32 %v1227, %v1377
    %v1430 = vmul.f32 %v1228, %v1377
    %v1431 = vmul.f32 %v1229, %v1377
    %v1432 = vmul.f32 %v1230, %v1377
    %v1433 = vmul.f32 %v1231, %v1377
    %v1434 = vmul.f32 %v1232, %v1377
    %v1435 = vmul.f32 %v1233, %v1377
    %v1436 = vmul.f32 %v1234, %v1377
    %v1437 = vmul.f32 %v1235, %v1377
    %v1438 = vmul.f32 %v1236, %v1377
    %v1439 = vmul.f32 %v1237, %v1377
    %v1440 = vmul.f32 %v1238, %v1377
    %v1441 = vmul.f32 %v1239, %v1377
    %v1442 = vadd.f32 %v1310, %v1378
    %v1443 = vadd.f32 %v1311, %v1379
    %v1444 = vadd.f32 %v1312, %v1380
    %v1445 = vadd.f32 %v1313, %v1381
    %v1446 = vadd.f32 %v1314, %v1382
    %v1447 = vadd.f32 %v1315, %v1383
    %v1448 = vadd.f32 %v1316, %v1384
    %v1449 = vadd.f32 %v1317, %v1385
    %v1450 = vadd.f32 %v1318, %v1386
    %v1451 = vadd.f32 %v1319, %v1387
    %v1452 = vadd.f32 %v1320, %v1388
    %v1453 = vadd.f32 %v1321, %v1389
    %v1454 = vadd.f32 %v1322, %v1390
    %v1455 = vadd.f32 %v1323, %v1391
    %v1456 = vadd.f32 %v1324, %v1392
    %v1457 = vadd.f32 %v1325, %v1393
    %v1458 = vadd.f32 %v1326, %v1394
    %v1459 = vadd.f32 %v1327, %v1395
    %v1460 = vadd.f32 %v1328, %v1396
    %v1461 = vadd.f32 %v1329, %v1397
    %v1462 = vadd.f32 %v1330, %v1398
    %v1463 = vadd.f32 %v1331, %v1399
    %v1464 = vadd.f32 %v1332, %v1400
    %v1465 = vadd.f32 %v1333, %v1401
    %v1466 = vadd.f32 %v1334, %v1402
    %v1467 = vadd.f32 %v1335, %v1403
    %v1468 = vadd.f32 %v1336, %v1404
    %v1469 = vadd.f32 %v1337, %v1405
    %v1470 = vadd.f32 %v1338, %v1406
    %v1471 = vadd.f32 %v1339, %v1407
    %v1472 = vadd.f32 %v1340, %v1408
    %v1473 = vadd.f32 %v1341, %v1409
    %v1474 = vadd.f32 %v1342, %v1410
    %v1475 = vadd.f32 %v1343, %v1411
    %v1476 = vadd.f32 %v1344, %v1412
    %v1477 = vadd.f32 %v1345, %v1413
    %v1478 = vadd.f32 %v1346, %v1414
    %v1479 = vadd.f32 %v1347, %v1415
    %v1480 = vadd.f32 %v1348, %v1416
    %v1481 = vadd.f32 %v1349, %v1417
    %v1482 = vadd.f32 %v1350, %v1418
    %v1483 = vadd.f32 %v1351, %v1419
    %v1484 = vadd.f32 %v1352, %v1420
    %v1485 = vadd.f32 %v1353, %v1421
    %v1486 = vadd.f32 %v1354, %v1422
    %v1487 = vadd.f32 %v1355, %v1423
    %v1488 = vadd.f32 %v1356, %v1424
    %v1489 = vadd.f32 %v1357, %v1425
    %v1490 = vadd.f32 %v1358, %v1426
    %v1491 = vadd.f32 %v1359, %v1427
    %v1492 = vadd.f32 %v1360, %v1428
    %v1493 = vadd.f32 %v1361, %v1429
    %v1494 = vadd.f32 %v1362, %v1430
    %v1495 = vadd.f32 %v1363, %v1431
    %v1496 = vadd.f32 %v1364, %v1432
    %v1497 = vadd.f32 %v1365, %v1433
    %v1498 = vadd.f32 %v1366, %v1434
    %v1499 = vadd.f32 %v1367, %v1435
    %v1500 = vadd.f32 %v1368, %v1436
    %v1501 = vadd.f32 %v1369, %v1437
    %v1502 = vadd.f32 %v1370, %v1438
    %v1503 = vadd.f32 %v1371, %v1439
    %v1504 = vadd.f32 %v1372, %v1440
    %v1505 = vadd.f32 %v1373, %v1441
    %v1506 = vlaneseq
    %v1507 = vshrl.u32 %v1506, 7
    %v1508 = vsub.s32 0, %v1507
    %v1509 = vrot.slane %v144, %v1508
    %v1510 = vmul.f32 %v1174, %v1509
    %v1511 = vmul.f32 %v1175, %v1509
    %v1512 = vmul.f32 %v1176, %v1509
    %v1513 = vmul.f32 %v1177, %v1509
    %v1514 = vmul.f32 %v1178, %v1509
    %v1515 = vmul.f32 %v1179, %v1509
    %v1516 = vmul.f32 %v1180, %v1509
    %v1517 = vmul.f32 %v1181, %v1509
    %v1518 = vmul.f32 %v1182, %v1509
    %v1519 = vmul.f32 %v1183, %v1509
    %v1520 = vmul.f32 %v1184, %v1509
    %v1521 = vmul.f32 %v1185, %v1509
    %v1522 = vmul.f32 %v1186, %v1509
    %v1523 = vmul.f32 %v1187, %v1509
    %v1524 = vmul.f32 %v1188, %v1509
    %v1525 = vmul.f32 %v1189, %v1509
    %v1526 = vmul.f32 %v1190, %v1509
    %v1527 = vmul.f32 %v1191, %v1509
    %v1528 = vmul.f32 %v1192, %v1509
    %v1529 = vmul.f32 %v1193, %v1509
    %v1530 = vmul.f32 %v1194, %v1509
    %v1531 = vmul.f32 %v1195, %v1509
    %v1532 = vmul.f32 %v1196, %v1509
    %v1533 = vmul.f32 %v1197, %v1509
    %v1534 = vmul.f32 %v1198, %v1509
    %v1535 = vmul.f32 %v1199, %v1509
    %v1536 = vmul.f32 %v1200, %v1509
    %v1537 = vmul.f32 %v1201, %v1509
    %v1538 = vmul.f32 %v1202, %v1509
    %v1539 = vmul.f32 %v1203, %v1509
    %v1540 = vmul.f32 %v1204, %v1509
    %v1541 = vmul.f32 %v1205, %v1509
    %v1542 = vmul.f32 %v1210, %v1509
    %v1543 = vmul.f32 %v1211, %v1509
    %v1544 = vmul.f32 %v1212, %v1509
    %v1545 = vmul.f32 %v1213, %v1509
    %v1546 = vmul.f32 %v1214, %v1509
    %v1547 = vmul.f32 %v1215, %v1509
    %v1548 = vmul.f32 %v1216, %v1509
    %v1549 = vmul.f32 %v1217, %v1509
    %v1550 = vmul.f32 %v1218, %v1509
    %v1551 = vmul.f32 %v1219, %v1509
    %v1552 = vmul.f32 %v1220, %v1509
    %v1553 = vmul.f32 %v1221, %v1509
    %v1554 = vmul.f32 %v1222, %v1509
    %v1555 = vmul.f32 %v1223, %v1509
    %v1556 = vmul.f32 %v1224, %v1509
    %v1557 = vmul.f32 %v1225, %v1509
    %v1558 = vmul.f32 %v1226, %v1509
    %v1559 = vmul.f32 %v1227, %v1509
    %v1560 = vmul.f32 %v1228, %v1509
    %v1561 = vmul.f32 %v1229, %v1509
    %v1562 = vmul.f32 %v1230, %v1509
    %v1563 = vmul.f32 %v1231, %v1509
    %v1564 = vmul.f32 %v1232, %v1509
    %v1565 = vmul.f32 %v1233, %v1509
    %v1566 = vmul.f32 %v1234, %v1509
    %v1567 = vmul.f32 %v1235, %v1509
    %v1568 = vmul.f32 %v1236, %v1509
    %v1569 = vmul.f32 %v1237, %v1509
    %v1570 = vmul.f32 %v1238, %v1509
    %v1571 = vmul.f32 %v1239, %v1509
    %v1572 = vmul.f32 %v1240, %v1509
    %v1573 = vmul.f32 %v1241, %v1509
    %v1574 = vadd.f32 %v1442, %v1510
    %v1575 = vadd.f32 %v1443, %v1511
    %v1576 = vadd.f32 %v1444, %v1512
    %v1577 = vadd.f32 %v1445, %v1513
    %v1578 = vadd.f32 %v1446, %v1514
    %v1579 = vadd.f32 %v1447, %v1515
    %v1580 = vadd.f32 %v1448, %v1516
    %v1581 = vadd.f32 %v1449, %v1517
    %v1582 = vadd.f32 %v1450, %v1518
    %v1583 = vadd.f32 %v1451, %v1519
    %v1584 = vadd.f32 %v1452, %v1520
    %v1585 = vadd.f32 %v1453, %v1521
    %v1586 = vadd.f32 %v1454, %v1522
    %v1587 = vadd.f32 %v1455, %v1523
    %v1588 = vadd.f32 %v1456, %v1524
    %v1589 = vadd.f32 %v1457, %v1525
    %v1590 = vadd.f32 %v1458, %v1526
    %v1591 = vadd.f32 %v1459, %v1527
    %v1592 = vadd.f32 %v1460, %v1528
    %v1593 = vadd.f32 %v1461, %v1529
    %v1594 = vadd.f32 %v1462, %v1530
    %v1595 = vadd.f32 %v1463, %v1531
    %v1596 = vadd.f32 %v1464, %v1532
    %v1597 = vadd.f32 %v1465, %v1533
    %v1598 = vadd.f32 %v1466, %v1534
    %v1599 = vadd.f32 %v1467, %v1535
    %v1600 = vadd.f32 %v1468, %v1536
    %v1601 = vadd.f32 %v1469, %v1537
    %v1602 = vadd.f32 %v1470, %v1538
    %v1603 = vadd.f32 %v1471, %v1539
    %v1604 = vadd.f32 %v1472, %v1540
    %v1605 = vadd.f32 %v1473, %v1541
    %v1606 = vadd.f32 %v1474, %v1542
    %v1607 = vadd.f32 %v1475, %v1543
    %v1608 = vadd.f32 %v1476, %v1544
    %v1609 = vadd.f32 %v1477, %v1545
    %v1610 = vadd.f32 %v1478, %v1546
    %v1611 = vadd.f32 %v1479, %v1547
    %v1612 = vadd.f32 %v1480, %v1548
    %v1613 = vadd.f32 %v1481, %v1549
    %v1614 = vadd.f32 %v1482, %v1550
    %v1615 = vadd.f32 %v1483, %v1551
    %v1616 = vadd.f32 %v1484, %v1552
    %v1617 = vadd.f32 %v1485, %v1553
    %v1618 = vadd.f32 %v1486, %v1554
    %v1619 = vadd.f32 %v1487, %v1555
    %v1620 = vadd.f32 %v1488, %v1556
    %v1621 = vadd.f32 %v1489, %v1557
    %v1622 = vadd.f32 %v1490, %v1558
    %v1623 = vadd.f32 %v1491, %v1559
    %v1624 = vadd.f32 %v1492, %v1560
    %v1625 = vadd.f32 %v1493, %v1561
    %v1626 = vadd.f32 %v1494, %v1562
    %v1627 = vadd.f32 %v1495, %v1563
    %v1628 = vadd.f32 %v1496, %v1564
    %v1629 = vadd.f32 %v1497, %v1565
    %v1630 = vadd.f32 %v1498, %v1566
    %v1631 = vadd.f32 %v1499, %v1567
    %v1632 = vadd.f32 %v1500, %v1568
    %v1633 = vadd.f32 %v1501, %v1569
    %v1634 = vadd.f32 %v1502, %v1570
    %v1635 = vadd.f32 %v1503, %v1571
    %v1636 = vadd.f32 %v1504, %v1572
    %v1637 = vadd.f32 %v1505, %v1573
    %v1638 = vsel %vm145, %v1574, 0.0
    %v1639 = vsel %vm145, %v1575, 0.0
    %v1640 = vadd.f32 %v1638, %v1639
    %v1641 = vsel %vm145, %v1576, 0.0
    %v1642 = vadd.f32 %v1640, %v1641
    %v1643 = vsel %vm145, %v1577, 0.0
    %v1644 = vadd.f32 %v1642, %v1643
    %v1645 = vsel %vm145, %v1578, 0.0
    %v1646 = vadd.f32 %v1644, %v1645
    %v1647 = vsel %vm145, %v1579, 0.0
    %v1648 = vadd.f32 %v1646, %v1647
    %v1649 = vsel %vm145, %v1580, 0.0
    %v1650 = vadd.f32 %v1648, %v1649
    %v1651 = vsel %vm145, %v1581, 0.0
    %v1652 = vadd.f32 %v1650, %v1651
    %v1653 = vsel %vm145, %v1582, 0.0
    %v1654 = vadd.f32 %v1652, %v1653
    %v1655 = vsel %vm145, %v1583, 0.0
    %v1656 = vadd.f32 %v1654, %v1655
    %v1657 = vsel %vm145, %v1584, 0.0
    %v1658 = vadd.f32 %v1656, %v1657
    %v1659 = vsel %vm145, %v1585, 0.0
    %v1660 = vadd.f32 %v1658, %v1659
    %v1661 = vsel %vm145, %v1586, 0.0
    %v1662 = vadd.f32 %v1660, %v1661
    %v1663 = vsel %vm145, %v1587, 0.0
    %v1664 = vadd.f32 %v1662, %v1663
    %v1665 = vsel %vm145, %v1588, 0.0
    %v1666 = vadd.f32 %v1664, %v1665
    %v1667 = vsel %vm145, %v1589, 0.0
    %v1668 = vadd.f32 %v1666, %v1667
    %v1669 = vsel %vm145, %v1590, 0.0
    %v1670 = vadd.f32 %v1668, %v1669
    %v1671 = vsel %vm145, %v1591, 0.0
    %v1672 = vadd.f32 %v1670, %v1671
    %v1673 = vsel %vm145, %v1592, 0.0
    %v1674 = vadd.f32 %v1672, %v1673
    %v1675 = vsel %vm145, %v1593, 0.0
    %v1676 = vadd.f32 %v1674, %v1675
    %v1677 = vsel %vm145, %v1594, 0.0
    %v1678 = vadd.f32 %v1676, %v1677
    %v1679 = vsel %vm145, %v1595, 0.0
    %v1680 = vadd.f32 %v1678, %v1679
    %v1681 = vsel %vm145, %v1596, 0.0
    %v1682 = vadd.f32 %v1680, %v1681
    %v1683 = vsel %vm145, %v1597, 0.0
    %v1684 = vadd.f32 %v1682, %v1683
    %v1685 = vsel %vm145, %v1598, 0.0
    %v1686 = vadd.f32 %v1684, %v1685
    %v1687 = vsel %vm145, %v1599, 0.0
    %v1688 = vadd.f32 %v1686, %v1687
    %v1689 = vsel %vm145, %v1600, 0.0
    %v1690 = vadd.f32 %v1688, %v1689
    %v1691 = vsel %vm145, %v1601, 0.0
    %v1692 = vadd.f32 %v1690, %v1691
    %v1693 = vsel %vm145, %v1602, 0.0
    %v1694 = vadd.f32 %v1692, %v1693
    %v1695 = vsel %vm145, %v1603, 0.0
    %v1696 = vadd.f32 %v1694, %v1695
    %v1697 = vsel %vm145, %v1604, 0.0
    %v1698 = vadd.f32 %v1696, %v1697
    %v1699 = vsel %vm145, %v1605, 0.0
    %v1700 = vadd.f32 %v1698, %v1699
    %v1701 = vsel %vm145, %v1606, 0.0
    %v1702 = vadd.f32 %v1700, %v1701
    %v1703 = vsel %vm145, %v1607, 0.0
    %v1704 = vadd.f32 %v1702, %v1703
    %v1705 = vsel %vm145, %v1608, 0.0
    %v1706 = vadd.f32 %v1704, %v1705
    %v1707 = vsel %vm145, %v1609, 0.0
    %v1708 = vadd.f32 %v1706, %v1707
    %v1709 = vsel %vm145, %v1610, 0.0
    %v1710 = vadd.f32 %v1708, %v1709
    %v1711 = vsel %vm145, %v1611, 0.0
    %v1712 = vadd.f32 %v1710, %v1711
    %v1713 = vsel %vm145, %v1612, 0.0
    %v1714 = vadd.f32 %v1712, %v1713
    %v1715 = vsel %vm145, %v1613, 0.0
    %v1716 = vadd.f32 %v1714, %v1715
    %v1717 = vsel %vm145, %v1614, 0.0
    %v1718 = vadd.f32 %v1716, %v1717
    %v1719 = vsel %vm145, %v1615, 0.0
    %v1720 = vadd.f32 %v1718, %v1719
    %v1721 = vsel %vm145, %v1616, 0.0
    %v1722 = vadd.f32 %v1720, %v1721
    %v1723 = vsel %vm145, %v1617, 0.0
    %v1724 = vadd.f32 %v1722, %v1723
    %v1725 = vsel %vm145, %v1618, 0.0
    %v1726 = vadd.f32 %v1724, %v1725
    %v1727 = vsel %vm145, %v1619, 0.0
    %v1728 = vadd.f32 %v1726, %v1727
    %v1729 = vsel %vm145, %v1620, 0.0
    %v1730 = vadd.f32 %v1728, %v1729
    %v1731 = vsel %vm145, %v1621, 0.0
    %v1732 = vadd.f32 %v1730, %v1731
    %v1733 = vsel %vm145, %v1622, 0.0
    %v1734 = vadd.f32 %v1732, %v1733
    %v1735 = vsel %vm145, %v1623, 0.0
    %v1736 = vadd.f32 %v1734, %v1735
    %v1737 = vsel %vm145, %v1624, 0.0
    %v1738 = vadd.f32 %v1736, %v1737
    %v1739 = vsel %vm145, %v1625, 0.0
    %v1740 = vadd.f32 %v1738, %v1739
    %v1741 = vsel %vm145, %v1626, 0.0
    %v1742 = vadd.f32 %v1740, %v1741
    %v1743 = vsel %vm145, %v1627, 0.0
    %v1744 = vadd.f32 %v1742, %v1743
    %v1745 = vsel %vm145, %v1628, 0.0
    %v1746 = vadd.f32 %v1744, %v1745
    %v1747 = vsel %vm145, %v1629, 0.0
    %v1748 = vadd.f32 %v1746, %v1747
    %v1749 = vsel %vm145, %v1630, 0.0
    %v1750 = vadd.f32 %v1748, %v1749
    %v1751 = vsel %vm145, %v1631, 0.0
    %v1752 = vadd.f32 %v1750, %v1751
    %v1753 = vsel %vm145, %v1632, 0.0
    %v1754 = vadd.f32 %v1752, %v1753
    %v1755 = vsel %vm145, %v1633, 0.0
    %v1756 = vadd.f32 %v1754, %v1755
    %v1757 = vsel %vm145, %v1634, 0.0
    %v1758 = vadd.f32 %v1756, %v1757
    %v1759 = vsel %vm145, %v1635, 0.0
    %v1760 = vadd.f32 %v1758, %v1759
    %v1761 = vsel %vm145, %v1636, 0.0
    %v1762 = vadd.f32 %v1760, %v1761
    %v1763 = vsel %vm145, %v1637, 0.0
    %v1764 = vadd.f32 %v1762, %v1763
    %v1765 = vrot.slane %v1764, 4
    %v1766 = vadd.f32 %v1764, %v1765
    %v1767 = vrot.slane %v1766, 2
    %v1768 = vadd.f32 %v1766, %v1767
    %v1769 = vrot.slane %v1768, 1
    %v1770 = vadd.f32 %v1768, %v1769
    %v1771 = vmul.f32 %v1574, %v1574
    %v1772 = vmul.f32 %v1575, %v1575
    %v1773 = vmul.f32 %v1576, %v1576
    %v1774 = vmul.f32 %v1577, %v1577
    %v1775 = vmul.f32 %v1578, %v1578
    %v1776 = vmul.f32 %v1579, %v1579
    %v1777 = vmul.f32 %v1580, %v1580
    %v1778 = vmul.f32 %v1581, %v1581
    %v1779 = vmul.f32 %v1582, %v1582
    %v1780 = vmul.f32 %v1583, %v1583
    %v1781 = vmul.f32 %v1584, %v1584
    %v1782 = vmul.f32 %v1585, %v1585
    %v1783 = vmul.f32 %v1586, %v1586
    %v1784 = vmul.f32 %v1587, %v1587
    %v1785 = vmul.f32 %v1588, %v1588
    %v1786 = vmul.f32 %v1589, %v1589
    %v1787 = vmul.f32 %v1590, %v1590
    %v1788 = vmul.f32 %v1591, %v1591
    %v1789 = vmul.f32 %v1592, %v1592
    %v1790 = vmul.f32 %v1593, %v1593
    %v1791 = vmul.f32 %v1594, %v1594
    %v1792 = vmul.f32 %v1595, %v1595
    %v1793 = vmul.f32 %v1596, %v1596
    %v1794 = vmul.f32 %v1597, %v1597
    %v1795 = vmul.f32 %v1598, %v1598
    %v1796 = vmul.f32 %v1599, %v1599
    %v1797 = vmul.f32 %v1600, %v1600
    %v1798 = vmul.f32 %v1601, %v1601
    %v1799 = vmul.f32 %v1602, %v1602
    %v1800 = vmul.f32 %v1603, %v1603
    %v1801 = vmul.f32 %v1604, %v1604
    %v1802 = vmul.f32 %v1605, %v1605
    %v1803 = vmul.f32 %v1606, %v1606
    %v1804 = vmul.f32 %v1607, %v1607
    %v1805 = vmul.f32 %v1608, %v1608
    %v1806 = vmul.f32 %v1609, %v1609
    %v1807 = vmul.f32 %v1610, %v1610
    %v1808 = vmul.f32 %v1611, %v1611
    %v1809 = vmul.f32 %v1612, %v1612
    %v1810 = vmul.f32 %v1613, %v1613
    %v1811 = vmul.f32 %v1614, %v1614
    %v1812 = vmul.f32 %v1615, %v1615
    %v1813 = vmul.f32 %v1616, %v1616
    %v1814 = vmul.f32 %v1617, %v1617
    %v1815 = vmul.f32 %v1618, %v1618
    %v1816 = vmul.f32 %v1619, %v1619
    %v1817 = vmul.f32 %v1620, %v1620
    %v1818 = vmul.f32 %v1621, %v1621
    %v1819 = vmul.f32 %v1622, %v1622
    %v1820 = vmul.f32 %v1623, %v1623
    %v1821 = vmul.f32 %v1624, %v1624
    %v1822 = vmul.f32 %v1625, %v1625
    %v1823 = vmul.f32 %v1626, %v1626
    %v1824 = vmul.f32 %v1627, %v1627
    %v1825 = vmul.f32 %v1628, %v1628
    %v1826 = vmul.f32 %v1629, %v1629
    %v1827 = vmul.f32 %v1630, %v1630
    %v1828 = vmul.f32 %v1631, %v1631
    %v1829 = vmul.f32 %v1632, %v1632
    %v1830 = vmul.f32 %v1633, %v1633
    %v1831 = vmul.f32 %v1634, %v1634
    %v1832 = vmul.f32 %v1635, %v1635
    %v1833 = vmul.f32 %v1636, %v1636
    %v1834 = vmul.f32 %v1637, %v1637
    %v1835 = vsel %vm145, %v1771, 0.0
    %v1836 = vsel %vm145, %v1772, 0.0
    %v1837 = vadd.f32 %v1835, %v1836
    %v1838 = vsel %vm145, %v1773, 0.0
    %v1839 = vadd.f32 %v1837, %v1838
    %v1840 = vsel %vm145, %v1774, 0.0
    %v1841 = vadd.f32 %v1839, %v1840
    %v1842 = vsel %vm145, %v1775, 0.0
    %v1843 = vadd.f32 %v1841, %v1842
    %v1844 = vsel %vm145, %v1776, 0.0
    %v1845 = vadd.f32 %v1843, %v1844
    %v1846 = vsel %vm145, %v1777, 0.0
    %v1847 = vadd.f32 %v1845, %v1846
    %v1848 = vsel %vm145, %v1778, 0.0
    %v1849 = vadd.f32 %v1847, %v1848
    %v1850 = vsel %vm145, %v1779, 0.0
    %v1851 = vadd.f32 %v1849, %v1850
    %v1852 = vsel %vm145, %v1780, 0.0
    %v1853 = vadd.f32 %v1851, %v1852
    %v1854 = vsel %vm145, %v1781, 0.0
    %v1855 = vadd.f32 %v1853, %v1854
    %v1856 = vsel %vm145, %v1782, 0.0
    %v1857 = vadd.f32 %v1855, %v1856
    %v1858 = vsel %vm145, %v1783, 0.0
    %v1859 = vadd.f32 %v1857, %v1858
    %v1860 = vsel %vm145, %v1784, 0.0
    %v1861 = vadd.f32 %v1859, %v1860
    %v1862 = vsel %vm145, %v1785, 0.0
    %v1863 = vadd.f32 %v1861, %v1862
    %v1864 = vsel %vm145, %v1786, 0.0
    %v1865 = vadd.f32 %v1863, %v1864
    %v1866 = vsel %vm145, %v1787, 0.0
    %v1867 = vadd.f32 %v1865, %v1866
    %v1868 = vsel %vm145, %v1788, 0.0
    %v1869 = vadd.f32 %v1867, %v1868
    %v1870 = vsel %vm145, %v1789, 0.0
    %v1871 = vadd.f32 %v1869, %v1870
    %v1872 = vsel %vm145, %v1790, 0.0
    %v1873 = vadd.f32 %v1871, %v1872
    %v1874 = vsel %vm145, %v1791, 0.0
    %v1875 = vadd.f32 %v1873, %v1874
    %v1876 = vsel %vm145, %v1792, 0.0
    %v1877 = vadd.f32 %v1875, %v1876
    %v1878 = vsel %vm145, %v1793, 0.0
    %v1879 = vadd.f32 %v1877, %v1878
    %v1880 = vsel %vm145, %v1794, 0.0
    %v1881 = vadd.f32 %v1879, %v1880
    %v1882 = vsel %vm145, %v1795, 0.0
    %v1883 = vadd.f32 %v1881, %v1882
    %v1884 = vsel %vm145, %v1796, 0.0
    %v1885 = vadd.f32 %v1883, %v1884
    %v1886 = vsel %vm145, %v1797, 0.0
    %v1887 = vadd.f32 %v1885, %v1886
    %v1888 = vsel %vm145, %v1798, 0.0
    %v1889 = vadd.f32 %v1887, %v1888
    %v1890 = vsel %vm145, %v1799, 0.0
    %v1891 = vadd.f32 %v1889, %v1890
    %v1892 = vsel %vm145, %v1800, 0.0
    %v1893 = vadd.f32 %v1891, %v1892
    %v1894 = vsel %vm145, %v1801, 0.0
    %v1895 = vadd.f32 %v1893, %v1894
    %v1896 = vsel %vm145, %v1802, 0.0
    %v1897 = vadd.f32 %v1895, %v1896
    %v1898 = vsel %vm145, %v1803, 0.0
    %v1899 = vadd.f32 %v1897, %v1898
    %v1900 = vsel %vm145, %v1804, 0.0
    %v1901 = vadd.f32 %v1899, %v1900
    %v1902 = vsel %vm145, %v1805, 0.0
    %v1903 = vadd.f32 %v1901, %v1902
    %v1904 = vsel %vm145, %v1806, 0.0
    %v1905 = vadd.f32 %v1903, %v1904
    %v1906 = vsel %vm145, %v1807, 0.0
    %v1907 = vadd.f32 %v1905, %v1906
    %v1908 = vsel %vm145, %v1808, 0.0
    %v1909 = vadd.f32 %v1907, %v1908
    %v1910 = vsel %vm145, %v1809, 0.0
    %v1911 = vadd.f32 %v1909, %v1910
    %v1912 = vsel %vm145, %v1810, 0.0
    %v1913 = vadd.f32 %v1911, %v1912
    %v1914 = vsel %vm145, %v1811, 0.0
    %v1915 = vadd.f32 %v1913, %v1914
    %v1916 = vsel %vm145, %v1812, 0.0
    %v1917 = vadd.f32 %v1915, %v1916
    %v1918 = vsel %vm145, %v1813, 0.0
    %v1919 = vadd.f32 %v1917, %v1918
    %v1920 = vsel %vm145, %v1814, 0.0
    %v1921 = vadd.f32 %v1919, %v1920
    %v1922 = vsel %vm145, %v1815, 0.0
    %v1923 = vadd.f32 %v1921, %v1922
    %v1924 = vsel %vm145, %v1816, 0.0
    %v1925 = vadd.f32 %v1923, %v1924
    %v1926 = vsel %vm145, %v1817, 0.0
    %v1927 = vadd.f32 %v1925, %v1926
    %v1928 = vsel %vm145, %v1818, 0.0
    %v1929 = vadd.f32 %v1927, %v1928
    %v1930 = vsel %vm145, %v1819, 0.0
    %v1931 = vadd.f32 %v1929, %v1930
    %v1932 = vsel %vm145, %v1820, 0.0
    %v1933 = vadd.f32 %v1931, %v1932
    %v1934 = vsel %vm145, %v1821, 0.0
    %v1935 = vadd.f32 %v1933, %v1934
    %v1936 = vsel %vm145, %v1822, 0.0
    %v1937 = vadd.f32 %v1935, %v1936
    %v1938 = vsel %vm145, %v1823, 0.0
    %v1939 = vadd.f32 %v1937, %v1938
    %v1940 = vsel %vm145, %v1824, 0.0
    %v1941 = vadd.f32 %v1939, %v1940
    %v1942 = vsel %vm145, %v1825, 0.0
    %v1943 = vadd.f32 %v1941, %v1942
    %v1944 = vsel %vm145, %v1826, 0.0
    %v1945 = vadd.f32 %v1943, %v1944
    %v1946 = vsel %vm145, %v1827, 0.0
    %v1947 = vadd.f32 %v1945, %v1946
    %v1948 = vsel %vm145, %v1828, 0.0
    %v1949 = vadd.f32 %v1947, %v1948
    %v1950 = vsel %vm145, %v1829, 0.0
    %v1951 = vadd.f32 %v1949, %v1950
    %v1952 = vsel %vm145, %v1830, 0.0
    %v1953 = vadd.f32 %v1951, %v1952
    %v1954 = vsel %vm145, %v1831, 0.0
    %v1955 = vadd.f32 %v1953, %v1954
    %v1956 = vsel %vm145, %v1832, 0.0
    %v1957 = vadd.f32 %v1955, %v1956
    %v1958 = vsel %vm145, %v1833, 0.0
    %v1959 = vadd.f32 %v1957, %v1958
    %v1960 = vsel %vm145, %v1834, 0.0
    %v1961 = vadd.f32 %v1959, %v1960
    %v1962 = vrot.slane %v1961, 4
    %v1963 = vadd.f32 %v1961, %v1962
    %v1964 = vrot.slane %v1963, 2
    %v1965 = vadd.f32 %v1963, %v1964
    %v1966 = vrot.slane %v1965, 1
    %v1967 = vadd.f32 %v1965, %v1966
    %v1968 = vmul.f32 %v1770, 0.001953125
    %v1969 = vmul.f32 %v1967, 0.001953125
    %v1970 = vmul.f32 %v1968, %v1968
    %v1971 = vsub.f32 %v1969, %v1970
    %v1972 = vmax.f32 %v1971, 0.0
    %v1973 = vld [vmem:[%s3] sm:$0x1]
    %v1974 = vadd.f32 %v1972, 1e-05
    %v1975 = vrsqrt.pop %v1974
    %v1976 = vmul.f32 %v1973, %v1975
    %v1977 = vld [vmem:[%s4] sm:$0x1]
    %v1978 = vmul.f32 %v1968, %v1976
    %v1979 = vsub.f32 %v1977, %v1978
    %v1981 = vlaneseq
    %v1982 = vshrl.u32 %v1981, 7
    %v1983 = vsub.s32 0, %v1982
    %v1984 = vrot.slane %v1976, %v1983
    %v1986 = vmul.f32 %v1574, %v1984
    %v1987 = vmul.f32 %v1575, %v1984
    %v1988 = vmul.f32 %v1576, %v1984
    %v1989 = vmul.f32 %v1577, %v1984
    %v1990 = vmul.f32 %v1578, %v1984
    %v1991 = vmul.f32 %v1579, %v1984
    %v1992 = vmul.f32 %v1580, %v1984
    %v1993 = vmul.f32 %v1581, %v1984
    %v1994 = vmul.f32 %v1582, %v1984
    %v1995 = vmul.f32 %v1583, %v1984
    %v1996 = vmul.f32 %v1584, %v1984
    %v1997 = vmul.f32 %v1585, %v1984
    %v1998 = vmul.f32 %v1586, %v1984
    %v1999 = vmul.f32 %v1587, %v1984
    %v2000 = vmul.f32 %v1588, %v1984
    %v2001 = vmul.f32 %v1589, %v1984
    %v2002 = vmul.f32 %v1590, %v1984
    %v2003 = vmul.f32 %v1591, %v1984
    %v2004 = vmul.f32 %v1592, %v1984
    %v2005 = vmul.f32 %v1593, %v1984
    %v2006 = vmul.f32 %v1594, %v1984
    %v2007 = vmul.f32 %v1595, %v1984
    %v2008 = vmul.f32 %v1596, %v1984
    %v2009 = vmul.f32 %v1597, %v1984
    %v2010 = vmul.f32 %v1598, %v1984
    %v2011 = vmul.f32 %v1599, %v1984
    %v2012 = vmul.f32 %v1600, %v1984
    %v2013 = vmul.f32 %v1601, %v1984
    %v2014 = vmul.f32 %v1602, %v1984
    %v2015 = vmul.f32 %v1603, %v1984
    %v2016 = vmul.f32 %v1604, %v1984
    %v2017 = vmul.f32 %v1605, %v1984
    %v2018 = vmul.f32 %v1606, %v1984
    %v2019 = vmul.f32 %v1607, %v1984
    %v2020 = vmul.f32 %v1608, %v1984
    %v2021 = vmul.f32 %v1609, %v1984
    %v2022 = vmul.f32 %v1610, %v1984
    %v2023 = vmul.f32 %v1611, %v1984
    %v2024 = vmul.f32 %v1612, %v1984
    %v2025 = vmul.f32 %v1613, %v1984
    %v2026 = vmul.f32 %v1614, %v1984
    %v2027 = vmul.f32 %v1615, %v1984
    %v2028 = vmul.f32 %v1616, %v1984
    %v2029 = vmul.f32 %v1617, %v1984
    %v2030 = vmul.f32 %v1618, %v1984
    %v2031 = vmul.f32 %v1619, %v1984
    %v2032 = vmul.f32 %v1620, %v1984
    %v2033 = vmul.f32 %v1621, %v1984
    %v2034 = vmul.f32 %v1622, %v1984
    %v2035 = vmul.f32 %v1623, %v1984
    %v2036 = vmul.f32 %v1624, %v1984
    %v2037 = vmul.f32 %v1625, %v1984
    %v2038 = vmul.f32 %v1626, %v1984
    %v2039 = vmul.f32 %v1627, %v1984
    %v2040 = vmul.f32 %v1628, %v1984
    %v2041 = vmul.f32 %v1629, %v1984
    %v2042 = vmul.f32 %v1630, %v1984
    %v2043 = vmul.f32 %v1631, %v1984
    %v2044 = vmul.f32 %v1632, %v1984
    %v2045 = vmul.f32 %v1633, %v1984
    %v2046 = vmul.f32 %v1634, %v1984
    %v2047 = vmul.f32 %v1635, %v1984
    %v2048 = vmul.f32 %v1636, %v1984
    %v2049 = vmul.f32 %v1637, %v1984
    %v2051 = vlaneseq
    %v2052 = vshrl.u32 %v2051, 7
    %v2053 = vsub.s32 0, %v2052
    %v2054 = vrot.slane %v1979, %v2053
    %v2056 = vadd.f32 %v1986, %v2054
    %v2057 = vadd.f32 %v1987, %v2054
    %v2058 = vadd.f32 %v1988, %v2054
    %v2059 = vadd.f32 %v1989, %v2054
    %v2060 = vadd.f32 %v1990, %v2054
    %v2061 = vadd.f32 %v1991, %v2054
    %v2062 = vadd.f32 %v1992, %v2054
    %v2063 = vadd.f32 %v1993, %v2054
    %v2064 = vadd.f32 %v1994, %v2054
    %v2065 = vadd.f32 %v1995, %v2054
    %v2066 = vadd.f32 %v1996, %v2054
    %v2067 = vadd.f32 %v1997, %v2054
    %v2068 = vadd.f32 %v1998, %v2054
    %v2069 = vadd.f32 %v1999, %v2054
    %v2070 = vadd.f32 %v2000, %v2054
    %v2071 = vadd.f32 %v2001, %v2054
    %v2072 = vadd.f32 %v2002, %v2054
    %v2073 = vadd.f32 %v2003, %v2054
    %v2074 = vadd.f32 %v2004, %v2054
    %v2075 = vadd.f32 %v2005, %v2054
    %v2076 = vadd.f32 %v2006, %v2054
    %v2077 = vadd.f32 %v2007, %v2054
    %v2078 = vadd.f32 %v2008, %v2054
    %v2079 = vadd.f32 %v2009, %v2054
    %v2080 = vadd.f32 %v2010, %v2054
    %v2081 = vadd.f32 %v2011, %v2054
    %v2082 = vadd.f32 %v2012, %v2054
    %v2083 = vadd.f32 %v2013, %v2054
    %v2084 = vadd.f32 %v2014, %v2054
    %v2085 = vadd.f32 %v2015, %v2054
    %v2086 = vadd.f32 %v2016, %v2054
    %v2087 = vadd.f32 %v2017, %v2054
    %v2088 = vadd.f32 %v2018, %v2054
    %v2089 = vadd.f32 %v2019, %v2054
    %v2090 = vadd.f32 %v2020, %v2054
    %v2091 = vadd.f32 %v2021, %v2054
    %v2092 = vadd.f32 %v2022, %v2054
    %v2093 = vadd.f32 %v2023, %v2054
    %v2094 = vadd.f32 %v2024, %v2054
    %v2095 = vadd.f32 %v2025, %v2054
    %v2096 = vadd.f32 %v2026, %v2054
    %v2097 = vadd.f32 %v2027, %v2054
    %v2098 = vadd.f32 %v2028, %v2054
    %v2099 = vadd.f32 %v2029, %v2054
    %v2100 = vadd.f32 %v2030, %v2054
    %v2101 = vadd.f32 %v2031, %v2054
    %v2102 = vadd.f32 %v2032, %v2054
    %v2103 = vadd.f32 %v2033, %v2054
    %v2104 = vadd.f32 %v2034, %v2054
    %v2105 = vadd.f32 %v2035, %v2054
    %v2106 = vadd.f32 %v2036, %v2054
    %v2107 = vadd.f32 %v2037, %v2054
    %v2108 = vadd.f32 %v2038, %v2054
    %v2109 = vadd.f32 %v2039, %v2054
    %v2110 = vadd.f32 %v2040, %v2054
    %v2111 = vadd.f32 %v2041, %v2054
    %v2112 = vadd.f32 %v2042, %v2054
    %v2113 = vadd.f32 %v2043, %v2054
    %v2114 = vadd.f32 %v2044, %v2054
    %v2115 = vadd.f32 %v2045, %v2054
    %v2116 = vadd.f32 %v2046, %v2054
    %v2117 = vadd.f32 %v2047, %v2054
    %v2118 = vadd.f32 %v2048, %v2054
    %v2119 = vadd.f32 %v2049, %v2054
    %v2120 = vmax.f32 %v2056, 0.0
    %v2121 = vmax.f32 %v2057, 0.0
    %v2122 = vmax.f32 %v2058, 0.0
    %v2123 = vmax.f32 %v2059, 0.0
    %v2124 = vmax.f32 %v2060, 0.0
    %v2125 = vmax.f32 %v2061, 0.0
    %v2126 = vmax.f32 %v2062, 0.0
    %v2127 = vmax.f32 %v2063, 0.0
    %v2128 = vmax.f32 %v2064, 0.0
    %v2129 = vmax.f32 %v2065, 0.0
    %v2130 = vmax.f32 %v2066, 0.0
    %v2131 = vmax.f32 %v2067, 0.0
    %v2132 = vmax.f32 %v2068, 0.0
    %v2133 = vmax.f32 %v2069, 0.0
    %v2134 = vmax.f32 %v2070, 0.0
    %v2135 = vmax.f32 %v2071, 0.0
    %v2136 = vmax.f32 %v2072, 0.0
    %v2137 = vmax.f32 %v2073, 0.0
    %v2138 = vmax.f32 %v2074, 0.0
    %v2139 = vmax.f32 %v2075, 0.0
    %v2140 = vmax.f32 %v2076, 0.0
    %v2141 = vmax.f32 %v2077, 0.0
    %v2142 = vmax.f32 %v2078, 0.0
    %v2143 = vmax.f32 %v2079, 0.0
    %v2144 = vmax.f32 %v2080, 0.0
    %v2145 = vmax.f32 %v2081, 0.0
    %v2146 = vmax.f32 %v2082, 0.0
    %v2147 = vmax.f32 %v2083, 0.0
    %v2148 = vmax.f32 %v2084, 0.0
    %v2149 = vmax.f32 %v2085, 0.0
    %v2150 = vmax.f32 %v2086, 0.0
    %v2151 = vmax.f32 %v2087, 0.0
    %v2152 = vmax.f32 %v2088, 0.0
    %v2153 = vmax.f32 %v2089, 0.0
    %v2154 = vmax.f32 %v2090, 0.0
    %v2155 = vmax.f32 %v2091, 0.0
    %v2156 = vmax.f32 %v2092, 0.0
    %v2157 = vmax.f32 %v2093, 0.0
    %v2158 = vmax.f32 %v2094, 0.0
    %v2159 = vmax.f32 %v2095, 0.0
    %v2160 = vmax.f32 %v2096, 0.0
    %v2161 = vmax.f32 %v2097, 0.0
    %v2162 = vmax.f32 %v2098, 0.0
    %v2163 = vmax.f32 %v2099, 0.0
    %v2164 = vmax.f32 %v2100, 0.0
    %v2165 = vmax.f32 %v2101, 0.0
    %v2166 = vmax.f32 %v2102, 0.0
    %v2167 = vmax.f32 %v2103, 0.0
    %v2168 = vmax.f32 %v2104, 0.0
    %v2169 = vmax.f32 %v2105, 0.0
    %v2170 = vmax.f32 %v2106, 0.0
    %v2171 = vmax.f32 %v2107, 0.0
    %v2172 = vmax.f32 %v2108, 0.0
    %v2173 = vmax.f32 %v2109, 0.0
    %v2174 = vmax.f32 %v2110, 0.0
    %v2175 = vmax.f32 %v2111, 0.0
    %v2176 = vmax.f32 %v2112, 0.0
    %v2177 = vmax.f32 %v2113, 0.0
    %v2178 = vmax.f32 %v2114, 0.0
    %v2179 = vmax.f32 %v2115, 0.0
    %v2180 = vmax.f32 %v2116, 0.0
    %v2181 = vmax.f32 %v2117, 0.0
    %v2182 = vmax.f32 %v2118, 0.0
    %v2183 = vmax.f32 %v2119, 0.0
    %v2184 = vld [vmem:[%s5] sm:$0xff]
    %v2185 = vld [vmem:[%s5 + $0x8] sm:$0xff]
    %v2186 = vld [vmem:[%s5 + $0x10] sm:$0xff]
    %v2187 = vld [vmem:[%s5 + $0x18] sm:$0xff]
    %v2188 = vld [vmem:[%s5 + $0x20] sm:$0xf]
    %v2190 = vsel %vm145, %v2120, 0
    %v2193 = vsel %vm145, %v2121, 0
    %v2196 = vsel %vm145, %v2122, 0
    %v2199 = vsel %vm145, %v2123, 0
    %v2202 = vsel %vm145, %v2124, 0
    %v2205 = vsel %vm145, %v2125, 0
    %v2208 = vsel %vm145, %v2126, 0
    %v2211 = vsel %vm145, %v2127, 0
    %v2214 = vsel %vm145, %v2128, 0
    %v2217 = vsel %vm145, %v2129, 0
    %v2220 = vsel %vm145, %v2130, 0
    %v2223 = vsel %vm145, %v2131, 0
    %v2226 = vsel %vm145, %v2132, 0
    %v2229 = vsel %vm145, %v2133, 0
    %v2232 = vsel %vm145, %v2134, 0
    %v2235 = vsel %vm145, %v2135, 0
    %v2238 = vsel %vm145, %v2136, 0
    %v2241 = vsel %vm145, %v2137, 0
    %v2244 = vsel %vm145, %v2138, 0
    %v2247 = vsel %vm145, %v2139, 0
    %v2250 = vsel %vm145, %v2140, 0
    %v2253 = vsel %vm145, %v2141, 0
    %v2256 = vsel %vm145, %v2142, 0
    %v2259 = vsel %vm145, %v2143, 0
    %v2262 = vsel %vm145, %v2144, 0
    %v2265 = vsel %vm145, %v2145, 0
    %v2268 = vsel %vm145, %v2146, 0
    %v2271 = vsel %vm145, %v2147, 0
    %v2274 = vsel %vm145, %v2148, 0
    %v2277 = vsel %vm145, %v2149, 0
    %v2280 = vsel %vm145, %v2150, 0
    %v2283 = vsel %vm145, %v2151, 0
    %v2286 = vsel %vm145, %v2152, 0
    %v2289 = vsel %vm145, %v2153, 0
    %v2292 = vsel %vm145, %v2154, 0
    %v2295 = vsel %vm145, %v2155, 0
    %v2298 = vsel %vm145, %v2156, 0
    %v2301 = vsel %vm145, %v2157, 0
    %v2304 = vsel %vm145, %v2158, 0
    %v2307 = vsel %vm145, %v2159, 0
    %v2310 = vsel %vm145, %v2160, 0
    %v2313 = vsel %vm145, %v2161, 0
    %v2316 = vsel %vm145, %v2162, 0
    %v2319 = vsel %vm145, %v2163, 0
    %v2322 = vsel %vm145, %v2164, 0
    %v2325 = vsel %vm145, %v2165, 0
    %v2328 = vsel %vm145, %v2166, 0
    %v2331 = vsel %vm145, %v2167, 0
    %v2334 = vsel %vm145, %v2168, 0
    %v2337 = vsel %vm145, %v2169, 0
    %v2340 = vsel %vm145, %v2170, 0
    %v2343 = vsel %vm145, %v2171, 0
    %v2346 = vsel %vm145, %v2172, 0
    %v2349 = vsel %vm145, %v2173, 0
    %v2352 = vsel %vm145, %v2174, 0
    %v2355 = vsel %vm145, %v2175, 0
    %v2358 = vsel %vm145, %v2176, 0
    %v2361 = vsel %vm145, %v2177, 0
    %v2364 = vsel %vm145, %v2178, 0
    %v2367 = vsel %vm145, %v2179, 0
    %v2370 = vsel %vm145, %v2180, 0
    %v2373 = vsel %vm145, %v2181, 0
    %v2376 = vsel %vm145, %v2182, 0
    %v2379 = vsel %vm145, %v2183, 0
    %vm2381 = vcmask 1043456
    %v2383 = vsel %vm2381, %v2188, 0
    %2385 = vmatprep.subr.mxu0 0.0
    %2386 = vmatpush1.msra.mxu0 %v2184
    %2387 = vmatprep.subr.mxu0 0.0
    %2388 = vmatpush1.msra.mxu0 %v2185
    %2389 = vmatprep.subr.mxu0 0.0
    %2390 = vmatpush1.msra.mxu0 %v2186
    %2391 = vmatprep.subr.mxu0 0.0
    %2392 = vmatpush1.msra.mxu0 %v2187
    %2393 = vmatprep.subr.mxu0 0.0
    %2394 = vmatpush1.msra.mxu0 %v2383
    %2395 = vmatprep.subr.mxu0 0.0
    %2396 = vmatpush1.msra.mxu0 0.0
    %2397 = vmatprep.subr.mxu0 0.0
    %2398 = vmatpush1.msra.mxu0 0.0
    %2399 = vmatprep.subr.mxu0 0.0
    %2400 = vmatpush1.msra.mxu0 0.0
    %2401 = vmatprep.subr.mxu0 0.0
    %2402 = vmatpush1.msra.mxu0 0.0
    %2403 = vmatprep.subr.mxu0 0.0
    %2404 = vmatpush1.msra.mxu0 0.0
    %2405 = vmatprep.subr.mxu0 0.0
    %2406 = vmatpush1.msra.mxu0 0.0
    %2407 = vmatprep.subr.mxu0 0.0
    %2408 = vmatpush1.msra.mxu0 0.0
    %2409 = vmatprep.subr.mxu0 0.0
    %2410 = vmatpush1.msra.mxu0 0.0
    %2411 = vmatprep.subr.mxu0 0.0
    %2412 = vmatpush1.msra.mxu0 0.0
    %2413 = vmatprep.subr.mxu0 0.0
    %2414 = vmatpush1.msra.mxu0 0.0
    %2415 = vmatprep.subr.mxu0 0.0
    %2416 = vmatpush1.msra.mxu0 0.0
    %2417 = vmatprep.subr.mxu0 0.0
    %2418 = vmatpush1.msra.mxu0 0.0
    %2419 = vmatprep.subr.mxu0 0.0
    %2420 = vmatpush1.msra.mxu0 0.0
    %2421 = vmatprep.subr.mxu0 0.0
    %2422 = vmatpush1.msra.mxu0 0.0
    %2423 = vmatprep.subr.mxu0 0.0
    %2424 = vmatpush1.msra.mxu0 0.0
    %2425 = vmatprep.subr.mxu0 0.0
    %2426 = vmatpush1.msra.mxu0 0.0
    %2427 = vmatprep.subr.mxu0 0.0
    %2428 = vmatpush1.msra.mxu0 0.0
    %2429 = vmatprep.subr.mxu0 0.0
    %2430 = vmatpush1.msra.mxu0 0.0
    %2431 = vmatprep.subr.mxu0 0.0
    %2432 = vmatpush1.msra.mxu0 0.0
    %2433 = vmatprep.subr.mxu0 0.0
    %2434 = vmatpush1.msra.mxu0 0.0
    %2435 = vmatprep.subr.mxu0 0.0
    %2436 = vmatpush1.msra.mxu0 0.0
    %2437 = vmatprep.subr.mxu0 0.0
    %2438 = vmatpush1.msra.mxu0 0.0
    %2439 = vmatprep.subr.mxu0 0.0
    %2440 = vmatpush1.msra.mxu0 0.0
    %2441 = vmatprep.subr.mxu0 0.0
    %2442 = vmatpush1.msra.mxu0 0.0
    %2443 = vmatprep.subr.mxu0 0.0
    %2444 = vmatpush1.msra.mxu0 0.0
    %2445 = vmatprep.subr.mxu0 0.0
    %2446 = vmatpush1.msra.mxu0 0.0
    %2447 = vmatprep.subr.mxu0 0.0
    %2448 = vmatpush1.msra.mxu0 0.0
    %2449 = vmatprep.mubr.f32.mxu0 0.0
    %2450 = vmatmul.mubr.f32.gmra.mrb[0].mxu0 %v2190
    %v2451 = vpop.f32.mrb[0].mxu0
    %v2452 = vadd.f32 0.0, %v2451
    %v2453 = vpop.f32.mrb[0].mxu0
    %2454 = vmatprep.mubr.f32.mxu0 0.0
    %2455 = vmatmul.mubr.f32.gmra.mrb[0].mxu0 %v2193
    %v2456 = vpop.f32.mrb[0].mxu0
    %v2457 = vadd.f32 0.0, %v2456
    %v2458 = vpop.f32.mrb[0].mxu0
    %2459 = vmatprep.mubr.f32.mxu0 0.0
    %2460 = vmatmul.mubr.f32.gmra.mrb[0].mxu0 %v2196
    %v2461 = vpop.f32.mrb[0].mxu0
    %v2462 = vadd.f32 0.0, %v2461
    %v2463 = vpop.f32.mrb[0].mxu0
    %2464 = vmatprep.mubr.f32.mxu0 0.0
    %2465 = vmatmul.mubr.f32.gmra.mrb[0].mxu0 %v2199
    %v2466 = vpop.f32.mrb[0].mxu0
    %v2467 = vadd.f32 0.0, %v2466
    %v2468 = vpop.f32.mrb[0].mxu0
    %2469 = vmatprep.mubr.f32.mxu0 0.0
    %2470 = vmatmul.mubr.f32.gmra.mrb[0].mxu0 %v2202
    %v2471 = vpop.f32.mrb[0].mxu0
    %v2472 = vadd.f32 0.0, %v2471
    %v2473 = vpop.f32.mrb[0].mxu0
    %2474 = vmatprep.mubr.f32.mxu0 0.0
    %2475 = vmatmul.mubr.f32.gmra.mrb[0].mxu0 %v2205
    %v2476 = vpop.f32.mrb[0].mxu0
    %v2477 = vadd.f32 0.0, %v2476
    %v2478 = vpop.f32.mrb[0].mxu0
    %2479 = vmatprep.mubr.f32.mxu0 0.0
    %2480 = vmatmul.mubr.f32.gmra.mrb[0].mxu0 %v2208
    %v2481 = vpop.f32.mrb[0].mxu0
    %v2482 = vadd.f32 0.0, %v2481
    %v2483 = vpop.f32.mrb[0].mxu0
    %2484 = vmatprep.mubr.f32.mxu0 0.0
    %2485 = vmatmul.mubr.f32.gmra.mrb[0].mxu0 %v2211
    %v2486 = vpop.f32.mrb[0].mxu0
    %v2487 = vadd.f32 0.0, %v2486
    %v2488 = vpop.f32.mrb[0].mxu0
    %2489 = vmatprep.mubr.f32.mxu0 0.0
    %2490 = vmatmul.mubr.f32.gmra.mrb[0].mxu0 %v2214
    %v2491 = vpop.f32.mrb[0].mxu0
    %v2492 = vadd.f32 0.0, %v2491
    %v2493 = vpop.f32.mrb[0].mxu0
    %2494 = vmatprep.mubr.f32.mxu0 0.0
    %2495 = vmatmul.mubr.f32.gmra.mrb[0].mxu0 %v2217
    %v2496 = vpop.f32.mrb[0].mxu0
    %v2497 = vadd.f32 0.0, %v2496
    %v2498 = vpop.f32.mrb[0].mxu0
    %2499 = vmatprep.mubr.f32.mxu0 0.0
    %2500 = vmatmul.mubr.f32.gmra.mrb[0].mxu0 %v2220
    %v2501 = vpop.f32.mrb[0].mxu0
    %v2502 = vadd.f32 0.0, %v2501
    %v2503 = vpop.f32.mrb[0].mxu0
    %2504 = vmatprep.mubr.f32.mxu0 0.0
    %2505 = vmatmul.mubr.f32.gmra.mrb[0].mxu0 %v2223
    %v2506 = vpop.f32.mrb[0].mxu0
    %v2507 = vadd.f32 0.0, %v2506
    %v2508 = vpop.f32.mrb[0].mxu0
    %2509 = vmatprep.mubr.f32.mxu0 0.0
    %2510 = vmatmul.mubr.f32.gmra.mrb[0].mxu0 %v2226
    %v2511 = vpop.f32.mrb[0].mxu0
    %v2512 = vadd.f32 0.0, %v2511
    %v2513 = vpop.f32.mrb[0].mxu0
    %2514 = vmatprep.mubr.f32.mxu0 0.0
    %2515 = vmatmul.mubr.f32.gmra.mrb[0].mxu0 %v2229
    %v2516 = vpop.f32.mrb[0].mxu0
    %v2517 = vadd.f32 0.0, %v2516
    %v2518 = vpop.f32.mrb[0].mxu0
    %2519 = vmatprep.mubr.f32.mxu0 0.0
    %2520 = vmatmul.mubr.f32.gmra.mrb[0].mxu0 %v2232
    %v2521 = vpop.f32.mrb[0].mxu0
    %v2522 = vadd.f32 0.0, %v2521
    %v2523 = vpop.f32.mrb[0].mxu0
    %2524 = vmatprep.mubr.f32.mxu0 0.0
    %2525 = vmatmul.mubr.f32.gmra.mrb[0].mxu0 %v2235
    %v2526 = vpop.f32.mrb[0].mxu0
    %v2527 = vadd.f32 0.0, %v2526
    %v2528 = vpop.f32.mrb[0].mxu0
    %2529 = vmatprep.mubr.f32.mxu0 0.0
    %2530 = vmatmul.mubr.f32.gmra.mrb[0].mxu0 %v2238
    %v2531 = vpop.f32.mrb[0].mxu0
    %v2532 = vadd.f32 0.0, %v2531
    %v2533 = vpop.f32.mrb[0].mxu0
    %2534 = vmatprep.mubr.f32.mxu0 0.0
    %2535 = vmatmul.mubr.f32.gmra.mrb[0].mxu0 %v2241
    %v2536 = vpop.f32.mrb[0].mxu0
    %v2537 = vadd.f32 0.0, %v2536
    %v2538 = vpop.f32.mrb[0].mxu0
    %2539 = vmatprep.mubr.f32.mxu0 0.0
    %2540 = vmatmul.mubr.f32.gmra.mrb[0].mxu0 %v2244
    %v2541 = vpop.f32.mrb[0].mxu0
    %v2542 = vadd.f32 0.0, %v2541
    %v2543 = vpop.f32.mrb[0].mxu0
    %2544 = vmatprep.mubr.f32.mxu0 0.0
    %2545 = vmatmul.mubr.f32.gmra.mrb[0].mxu0 %v2247
    %v2546 = vpop.f32.mrb[0].mxu0
    %v2547 = vadd.f32 0.0, %v2546
    %v2548 = vpop.f32.mrb[0].mxu0
    %2549 = vmatprep.mubr.f32.mxu0 0.0
    %2550 = vmatmul.mubr.f32.gmra.mrb[0].mxu0 %v2250
    %v2551 = vpop.f32.mrb[0].mxu0
    %v2552 = vadd.f32 0.0, %v2551
    %v2553 = vpop.f32.mrb[0].mxu0
    %2554 = vmatprep.mubr.f32.mxu0 0.0
    %2555 = vmatmul.mubr.f32.gmra.mrb[0].mxu0 %v2253
    %v2556 = vpop.f32.mrb[0].mxu0
    %v2557 = vadd.f32 0.0, %v2556
    %v2558 = vpop.f32.mrb[0].mxu0
    %2559 = vmatprep.mubr.f32.mxu0 0.0
    %2560 = vmatmul.mubr.f32.gmra.mrb[0].mxu0 %v2256
    %v2561 = vpop.f32.mrb[0].mxu0
    %v2562 = vadd.f32 0.0, %v2561
    %v2563 = vpop.f32.mrb[0].mxu0
    %2564 = vmatprep.mubr.f32.mxu0 0.0
    %2565 = vmatmul.mubr.f32.gmra.mrb[0].mxu0 %v2259
    %v2566 = vpop.f32.mrb[0].mxu0
    %v2567 = vadd.f32 0.0, %v2566
    %v2568 = vpop.f32.mrb[0].mxu0
    %2569 = vmatprep.mubr.f32.mxu0 0.0
    %2570 = vmatmul.mubr.f32.gmra.mrb[0].mxu0 %v2262
    %v2571 = vpop.f32.mrb[0].mxu0
    %v2572 = vadd.f32 0.0, %v2571
    %v2573 = vpop.f32.mrb[0].mxu0
    %2574 = vmatprep.mubr.f32.mxu0 0.0
    %2575 = vmatmul.mubr.f32.gmra.mrb[0].mxu0 %v2265
    %v2576 = vpop.f32.mrb[0].mxu0
    %v2577 = vadd.f32 0.0, %v2576
    %v2578 = vpop.f32.mrb[0].mxu0
    %2579 = vmatprep.mubr.f32.mxu0 0.0
    %2580 = vmatmul.mubr.f32.gmra.mrb[0].mxu0 %v2268
    %v2581 = vpop.f32.mrb[0].mxu0
    %v2582 = vadd.f32 0.0, %v2581
    %v2583 = vpop.f32.mrb[0].mxu0
    %2584 = vmatprep.mubr.f32.mxu0 0.0
    %2585 = vmatmul.mubr.f32.gmra.mrb[0].mxu0 %v2271
    %v2586 = vpop.f32.mrb[0].mxu0
    %v2587 = vadd.f32 0.0, %v2586
    %v2588 = vpop.f32.mrb[0].mxu0
    %2589 = vmatprep.mubr.f32.mxu0 0.0
    %2590 = vmatmul.mubr.f32.gmra.mrb[0].mxu0 %v2274
    %v2591 = vpop.f32.mrb[0].mxu0
    %v2592 = vadd.f32 0.0, %v2591
    %v2593 = vpop.f32.mrb[0].mxu0
    %2594 = vmatprep.mubr.f32.mxu0 0.0
    %2595 = vmatmul.mubr.f32.gmra.mrb[0].mxu0 %v2277
    %v2596 = vpop.f32.mrb[0].mxu0
    %v2597 = vadd.f32 0.0, %v2596
    %v2598 = vpop.f32.mrb[0].mxu0
    %2599 = vmatprep.mubr.f32.mxu0 0.0
    %2600 = vmatmul.mubr.f32.gmra.mrb[0].mxu0 %v2280
    %v2601 = vpop.f32.mrb[0].mxu0
    %v2602 = vadd.f32 0.0, %v2601
    %v2603 = vpop.f32.mrb[0].mxu0
    %2604 = vmatprep.mubr.f32.mxu0 0.0
    %2605 = vmatmul.mubr.f32.gmra.mrb[0].mxu0 %v2283
    %v2606 = vpop.f32.mrb[0].mxu0
    %v2607 = vadd.f32 0.0, %v2606
    %v2608 = vpop.f32.mrb[0].mxu0
    %2609 = vmatprep.mubr.f32.mxu0 0.0
    %2610 = vmatmul.mubr.f32.gmra.mrb[0].mxu0 %v2286
    %v2611 = vpop.f32.mrb[0].mxu0
    %v2612 = vadd.f32 0.0, %v2611
    %v2613 = vpop.f32.mrb[0].mxu0
    %2614 = vmatprep.mubr.f32.mxu0 0.0
    %2615 = vmatmul.mubr.f32.gmra.mrb[0].mxu0 %v2289
    %v2616 = vpop.f32.mrb[0].mxu0
    %v2617 = vadd.f32 0.0, %v2616
    %v2618 = vpop.f32.mrb[0].mxu0
    %2619 = vmatprep.mubr.f32.mxu0 0.0
    %2620 = vmatmul.mubr.f32.gmra.mrb[0].mxu0 %v2292
    %v2621 = vpop.f32.mrb[0].mxu0
    %v2622 = vadd.f32 0.0, %v2621
    %v2623 = vpop.f32.mrb[0].mxu0
    %2624 = vmatprep.mubr.f32.mxu0 0.0
    %2625 = vmatmul.mubr.f32.gmra.mrb[0].mxu0 %v2295
    %v2626 = vpop.f32.mrb[0].mxu0
    %v2627 = vadd.f32 0.0, %v2626
    %v2628 = vpop.f32.mrb[0].mxu0
    %2629 = vmatprep.mubr.f32.mxu0 0.0
    %2630 = vmatmul.mubr.f32.gmra.mrb[0].mxu0 %v2298
    %v2631 = vpop.f32.mrb[0].mxu0
    %v2632 = vadd.f32 0.0, %v2631
    %v2633 = vpop.f32.mrb[0].mxu0
    %2634 = vmatprep.mubr.f32.mxu0 0.0
    %2635 = vmatmul.mubr.f32.gmra.mrb[0].mxu0 %v2301
    %v2636 = vpop.f32.mrb[0].mxu0
    %v2637 = vadd.f32 0.0, %v2636
    %v2638 = vpop.f32.mrb[0].mxu0
    %2639 = vmatprep.mubr.f32.mxu0 0.0
    %2640 = vmatmul.mubr.f32.gmra.mrb[0].mxu0 %v2304
    %v2641 = vpop.f32.mrb[0].mxu0
    %v2642 = vadd.f32 0.0, %v2641
    %v2643 = vpop.f32.mrb[0].mxu0
    %2644 = vmatprep.mubr.f32.mxu0 0.0
    %2645 = vmatmul.mubr.f32.gmra.mrb[0].mxu0 %v2307
    %v2646 = vpop.f32.mrb[0].mxu0
    %v2647 = vadd.f32 0.0, %v2646
    %v2648 = vpop.f32.mrb[0].mxu0
    %2649 = vmatprep.mubr.f32.mxu0 0.0
    %2650 = vmatmul.mubr.f32.gmra.mrb[0].mxu0 %v2310
    %v2651 = vpop.f32.mrb[0].mxu0
    %v2652 = vadd.f32 0.0, %v2651
    %v2653 = vpop.f32.mrb[0].mxu0
    %2654 = vmatprep.mubr.f32.mxu0 0.0
    %2655 = vmatmul.mubr.f32.gmra.mrb[0].mxu0 %v2313
    %v2656 = vpop.f32.mrb[0].mxu0
    %v2657 = vadd.f32 0.0, %v2656
    %v2658 = vpop.f32.mrb[0].mxu0
    %2659 = vmatprep.mubr.f32.mxu0 0.0
    %2660 = vmatmul.mubr.f32.gmra.mrb[0].mxu0 %v2316
    %v2661 = vpop.f32.mrb[0].mxu0
    %v2662 = vadd.f32 0.0, %v2661
    %v2663 = vpop.f32.mrb[0].mxu0
    %2664 = vmatprep.mubr.f32.mxu0 0.0
    %2665 = vmatmul.mubr.f32.gmra.mrb[0].mxu0 %v2319
    %v2666 = vpop.f32.mrb[0].mxu0
    %v2667 = vadd.f32 0.0, %v2666
    %v2668 = vpop.f32.mrb[0].mxu0
    %2669 = vmatprep.mubr.f32.mxu0 0.0
    %2670 = vmatmul.mubr.f32.gmra.mrb[0].mxu0 %v2322
    %v2671 = vpop.f32.mrb[0].mxu0
    %v2672 = vadd.f32 0.0, %v2671
    %v2673 = vpop.f32.mrb[0].mxu0
    %2674 = vmatprep.mubr.f32.mxu0 0.0
    %2675 = vmatmul.mubr.f32.gmra.mrb[0].mxu0 %v2325
    %v2676 = vpop.f32.mrb[0].mxu0
    %v2677 = vadd.f32 0.0, %v2676
    %v2678 = vpop.f32.mrb[0].mxu0
    %2679 = vmatprep.mubr.f32.mxu0 0.0
    %2680 = vmatmul.mubr.f32.gmra.mrb[0].mxu0 %v2328
    %v2681 = vpop.f32.mrb[0].mxu0
    %v2682 = vadd.f32 0.0, %v2681
    %v2683 = vpop.f32.mrb[0].mxu0
    %2684 = vmatprep.mubr.f32.mxu0 0.0
    %2685 = vmatmul.mubr.f32.gmra.mrb[0].mxu0 %v2331
    %v2686 = vpop.f32.mrb[0].mxu0
    %v2687 = vadd.f32 0.0, %v2686
    %v2688 = vpop.f32.mrb[0].mxu0
    %2689 = vmatprep.mubr.f32.mxu0 0.0
    %2690 = vmatmul.mubr.f32.gmra.mrb[0].mxu0 %v2334
    %v2691 = vpop.f32.mrb[0].mxu0
    %v2692 = vadd.f32 0.0, %v2691
    %v2693 = vpop.f32.mrb[0].mxu0
    %2694 = vmatprep.mubr.f32.mxu0 0.0
    %2695 = vmatmul.mubr.f32.gmra.mrb[0].mxu0 %v2337
    %v2696 = vpop.f32.mrb[0].mxu0
    %v2697 = vadd.f32 0.0, %v2696
    %v2698 = vpop.f32.mrb[0].mxu0
    %2699 = vmatprep.mubr.f32.mxu0 0.0
    %2700 = vmatmul.mubr.f32.gmra.mrb[0].mxu0 %v2340
    %v2701 = vpop.f32.mrb[0].mxu0
    %v2702 = vadd.f32 0.0, %v2701
    %v2703 = vpop.f32.mrb[0].mxu0
    %2704 = vmatprep.mubr.f32.mxu0 0.0
    %2705 = vmatmul.mubr.f32.gmra.mrb[0].mxu0 %v2343
    %v2706 = vpop.f32.mrb[0].mxu0
    %v2707 = vadd.f32 0.0, %v2706
    %v2708 = vpop.f32.mrb[0].mxu0
    %2709 = vmatprep.mubr.f32.mxu0 0.0
    %2710 = vmatmul.mubr.f32.gmra.mrb[0].mxu0 %v2346
    %v2711 = vpop.f32.mrb[0].mxu0
    %v2712 = vadd.f32 0.0, %v2711
    %v2713 = vpop.f32.mrb[0].mxu0
    %2714 = vmatprep.mubr.f32.mxu0 0.0
    %2715 = vmatmul.mubr.f32.gmra.mrb[0].mxu0 %v2349
    %v2716 = vpop.f32.mrb[0].mxu0
    %v2717 = vadd.f32 0.0, %v2716
    %v2718 = vpop.f32.mrb[0].mxu0
    %2719 = vmatprep.mubr.f32.mxu0 0.0
    %2720 = vmatmul.mubr.f32.gmra.mrb[0].mxu0 %v2352
    %v2721 = vpop.f32.mrb[0].mxu0
    %v2722 = vadd.f32 0.0, %v2721
    %v2723 = vpop.f32.mrb[0].mxu0
    %2724 = vmatprep.mubr.f32.mxu0 0.0
    %2725 = vmatmul.mubr.f32.gmra.mrb[0].mxu0 %v2355
    %v2726 = vpop.f32.mrb[0].mxu0
    %v2727 = vadd.f32 0.0, %v2726
    %v2728 = vpop.f32.mrb[0].mxu0
    %2729 = vmatprep.mubr.f32.mxu0 0.0
    %2730 = vmatmul.mubr.f32.gmra.mrb[0].mxu0 %v2358
    %v2731 = vpop.f32.mrb[0].mxu0
    %v2732 = vadd.f32 0.0, %v2731
    %v2733 = vpop.f32.mrb[0].mxu0
    %2734 = vmatprep.mubr.f32.mxu0 0.0
    %2735 = vmatmul.mubr.f32.gmra.mrb[0].mxu0 %v2361
    %v2736 = vpop.f32.mrb[0].mxu0
    %v2737 = vadd.f32 0.0, %v2736
    %v2738 = vpop.f32.mrb[0].mxu0
    %2739 = vmatprep.mubr.f32.mxu0 0.0
    %2740 = vmatmul.mubr.f32.gmra.mrb[0].mxu0 %v2364
    %v2741 = vpop.f32.mrb[0].mxu0
    %v2742 = vadd.f32 0.0, %v2741
    %v2743 = vpop.f32.mrb[0].mxu0
    %2744 = vmatprep.mubr.f32.mxu0 0.0
    %2745 = vmatmul.mubr.f32.gmra.mrb[0].mxu0 %v2367
    %v2746 = vpop.f32.mrb[0].mxu0
    %v2747 = vadd.f32 0.0, %v2746
    %v2748 = vpop.f32.mrb[0].mxu0
    %2749 = vmatprep.mubr.f32.mxu0 0.0
    %2750 = vmatmul.mubr.f32.gmra.mrb[0].mxu0 %v2370
    %v2751 = vpop.f32.mrb[0].mxu0
    %v2752 = vadd.f32 0.0, %v2751
    %v2753 = vpop.f32.mrb[0].mxu0
    %2754 = vmatprep.mubr.f32.mxu0 0.0
    %2755 = vmatmul.mubr.f32.gmra.mrb[0].mxu0 %v2373
    %v2756 = vpop.f32.mrb[0].mxu0
    %v2757 = vadd.f32 0.0, %v2756
    %v2758 = vpop.f32.mrb[0].mxu0
    %2759 = vmatprep.mubr.f32.mxu0 0.0
    %2760 = vmatmul.mubr.f32.gmra.mrb[0].mxu0 %v2376
    %v2761 = vpop.f32.mrb[0].mxu0
    %v2762 = vadd.f32 0.0, %v2761
    %v2763 = vpop.f32.mrb[0].mxu0
    %2764 = vmatprep.mubr.f32.mxu0 0.0
    %2765 = vmatmul.mubr.f32.gmra.mrb[0].mxu0 %v2379
    %v2766 = vpop.f32.mrb[0].mxu0
    %v2767 = vadd.f32 0.0, %v2766
    %v2768 = vpop.f32.mrb[0].mxu0
    %2769 = vdwg.mxu0
    %vm2770 = vcmask 261120
    %v2771 = vsel %vm2770, %v2452, 0.0
    %v2772 = vsel %vm2770, %v2457, 0.0
    %v2773 = vadd.f32 %v2771, %v2772
    %v2774 = vsel %vm2770, %v2462, 0.0
    %v2775 = vadd.f32 %v2773, %v2774
    %v2776 = vsel %vm2770, %v2467, 0.0
    %v2777 = vadd.f32 %v2775, %v2776
    %v2778 = vsel %vm2770, %v2472, 0.0
    %v2779 = vadd.f32 %v2777, %v2778
    %v2780 = vsel %vm2770, %v2477, 0.0
    %v2781 = vadd.f32 %v2779, %v2780
    %v2782 = vsel %vm2770, %v2482, 0.0
    %v2783 = vadd.f32 %v2781, %v2782
    %v2784 = vsel %vm2770, %v2487, 0.0
    %v2785 = vadd.f32 %v2783, %v2784
    %v2786 = vsel %vm2770, %v2492, 0.0
    %v2787 = vadd.f32 %v2785, %v2786
    %v2788 = vsel %vm2770, %v2497, 0.0
    %v2789 = vadd.f32 %v2787, %v2788
    %v2790 = vsel %vm2770, %v2502, 0.0
    %v2791 = vadd.f32 %v2789, %v2790
    %v2792 = vsel %vm2770, %v2507, 0.0
    %v2793 = vadd.f32 %v2791, %v2792
    %v2794 = vsel %vm2770, %v2512, 0.0
    %v2795 = vadd.f32 %v2793, %v2794
    %v2796 = vsel %vm2770, %v2517, 0.0
    %v2797 = vadd.f32 %v2795, %v2796
    %v2798 = vsel %vm2770, %v2522, 0.0
    %v2799 = vadd.f32 %v2797, %v2798
    %v2800 = vsel %vm2770, %v2527, 0.0
    %v2801 = vadd.f32 %v2799, %v2800
    %v2802 = vsel %vm2770, %v2532, 0.0
    %v2803 = vadd.f32 %v2801, %v2802
    %v2804 = vsel %vm2770, %v2537, 0.0
    %v2805 = vadd.f32 %v2803, %v2804
    %v2806 = vsel %vm2770, %v2542, 0.0
    %v2807 = vadd.f32 %v2805, %v2806
    %v2808 = vsel %vm2770, %v2547, 0.0
    %v2809 = vadd.f32 %v2807, %v2808
    %v2810 = vsel %vm2770, %v2552, 0.0
    %v2811 = vadd.f32 %v2809, %v2810
    %v2812 = vsel %vm2770, %v2557, 0.0
    %v2813 = vadd.f32 %v2811, %v2812
    %v2814 = vsel %vm2770, %v2562, 0.0
    %v2815 = vadd.f32 %v2813, %v2814
    %v2816 = vsel %vm2770, %v2567, 0.0
    %v2817 = vadd.f32 %v2815, %v2816
    %v2818 = vsel %vm2770, %v2572, 0.0
    %v2819 = vadd.f32 %v2817, %v2818
    %v2820 = vsel %vm2770, %v2577, 0.0
    %v2821 = vadd.f32 %v2819, %v2820
    %v2822 = vsel %vm2770, %v2582, 0.0
    %v2823 = vadd.f32 %v2821, %v2822
    %v2824 = vsel %vm2770, %v2587, 0.0
    %v2825 = vadd.f32 %v2823, %v2824
    %v2826 = vsel %vm2770, %v2592, 0.0
    %v2827 = vadd.f32 %v2825, %v2826
    %v2828 = vsel %vm2770, %v2597, 0.0
    %v2829 = vadd.f32 %v2827, %v2828
    %v2830 = vsel %vm2770, %v2602, 0.0
    %v2831 = vadd.f32 %v2829, %v2830
    %v2832 = vsel %vm2770, %v2607, 0.0
    %v2833 = vadd.f32 %v2831, %v2832
    %v2834 = vsel %vm2770, %v2612, 0.0
    %v2835 = vadd.f32 %v2833, %v2834
    %v2836 = vsel %vm2770, %v2617, 0.0
    %v2837 = vadd.f32 %v2835, %v2836
    %v2838 = vsel %vm2770, %v2622, 0.0
    %v2839 = vadd.f32 %v2837, %v2838
    %v2840 = vsel %vm2770, %v2627, 0.0
    %v2841 = vadd.f32 %v2839, %v2840
    %v2842 = vsel %vm2770, %v2632, 0.0
    %v2843 = vadd.f32 %v2841, %v2842
    %v2844 = vsel %vm2770, %v2637, 0.0
    %v2845 = vadd.f32 %v2843, %v2844
    %v2846 = vsel %vm2770, %v2642, 0.0
    %v2847 = vadd.f32 %v2845, %v2846
    %v2848 = vsel %vm2770, %v2647, 0.0
    %v2849 = vadd.f32 %v2847, %v2848
    %v2850 = vsel %vm2770, %v2652, 0.0
    %v2851 = vadd.f32 %v2849, %v2850
    %v2852 = vsel %vm2770, %v2657, 0.0
    %v2853 = vadd.f32 %v2851, %v2852
    %v2854 = vsel %vm2770, %v2662, 0.0
    %v2855 = vadd.f32 %v2853, %v2854
    %v2856 = vsel %vm2770, %v2667, 0.0
    %v2857 = vadd.f32 %v2855, %v2856
    %v2858 = vsel %vm2770, %v2672, 0.0
    %v2859 = vadd.f32 %v2857, %v2858
    %v2860 = vsel %vm2770, %v2677, 0.0
    %v2861 = vadd.f32 %v2859, %v2860
    %v2862 = vsel %vm2770, %v2682, 0.0
    %v2863 = vadd.f32 %v2861, %v2862
    %v2864 = vsel %vm2770, %v2687, 0.0
    %v2865 = vadd.f32 %v2863, %v2864
    %v2866 = vsel %vm2770, %v2692, 0.0
    %v2867 = vadd.f32 %v2865, %v2866
    %v2868 = vsel %vm2770, %v2697, 0.0
    %v2869 = vadd.f32 %v2867, %v2868
    %v2870 = vsel %vm2770, %v2702, 0.0
    %v2871 = vadd.f32 %v2869, %v2870
    %v2872 = vsel %vm2770, %v2707, 0.0
    %v2873 = vadd.f32 %v2871, %v2872
    %v2874 = vsel %vm2770, %v2712, 0.0
    %v2875 = vadd.f32 %v2873, %v2874
    %v2876 = vsel %vm2770, %v2717, 0.0
    %v2877 = vadd.f32 %v2875, %v2876
    %v2878 = vsel %vm2770, %v2722, 0.0
    %v2879 = vadd.f32 %v2877, %v2878
    %v2880 = vsel %vm2770, %v2727, 0.0
    %v2881 = vadd.f32 %v2879, %v2880
    %v2882 = vsel %vm2770, %v2732, 0.0
    %v2883 = vadd.f32 %v2881, %v2882
    %v2884 = vsel %vm2770, %v2737, 0.0
    %v2885 = vadd.f32 %v2883, %v2884
    %v2886 = vsel %vm2770, %v2742, 0.0
    %v2887 = vadd.f32 %v2885, %v2886
    %v2888 = vsel %vm2770, %v2747, 0.0
    %v2889 = vadd.f32 %v2887, %v2888
    %v2890 = vsel %vm2770, %v2752, 0.0
    %v2891 = vadd.f32 %v2889, %v2890
    %v2892 = vsel %vm2770, %v2757, 0.0
    %v2893 = vadd.f32 %v2891, %v2892
    %v2894 = vsel %vm2770, %v2762, 0.0
    %v2895 = vadd.f32 %v2893, %v2894
    %v2896 = vsel %vm2770, %v2767, 0.0
    %v2897 = vadd.f32 %v2895, %v2896
    %v2898 = vrot.slane %v2897, 4
    %v2899 = vadd.f32 %v2897, %v2898
    %v2900 = vrot.slane %v2899, 2
    %v2901 = vadd.f32 %v2899, %v2900
    %v2902 = vrot.slane %v2901, 1
    %v2903 = vadd.f32 %v2901, %v2902
    %v2904 = vmul.f32 %v2452, %v2452
    %v2905 = vmul.f32 %v2457, %v2457
    %v2906 = vmul.f32 %v2462, %v2462
    %v2907 = vmul.f32 %v2467, %v2467
    %v2908 = vmul.f32 %v2472, %v2472
    %v2909 = vmul.f32 %v2477, %v2477
    %v2910 = vmul.f32 %v2482, %v2482
    %v2911 = vmul.f32 %v2487, %v2487
    %v2912 = vmul.f32 %v2492, %v2492
    %v2913 = vmul.f32 %v2497, %v2497
    %v2914 = vmul.f32 %v2502, %v2502
    %v2915 = vmul.f32 %v2507, %v2507
    %v2916 = vmul.f32 %v2512, %v2512
    %v2917 = vmul.f32 %v2517, %v2517
    %v2918 = vmul.f32 %v2522, %v2522
    %v2919 = vmul.f32 %v2527, %v2527
    %v2920 = vmul.f32 %v2532, %v2532
    %v2921 = vmul.f32 %v2537, %v2537
    %v2922 = vmul.f32 %v2542, %v2542
    %v2923 = vmul.f32 %v2547, %v2547
    %v2924 = vmul.f32 %v2552, %v2552
    %v2925 = vmul.f32 %v2557, %v2557
    %v2926 = vmul.f32 %v2562, %v2562
    %v2927 = vmul.f32 %v2567, %v2567
    %v2928 = vmul.f32 %v2572, %v2572
    %v2929 = vmul.f32 %v2577, %v2577
    %v2930 = vmul.f32 %v2582, %v2582
    %v2931 = vmul.f32 %v2587, %v2587
    %v2932 = vmul.f32 %v2592, %v2592
    %v2933 = vmul.f32 %v2597, %v2597
    %v2934 = vmul.f32 %v2602, %v2602
    %v2935 = vmul.f32 %v2607, %v2607
    %v2936 = vmul.f32 %v2612, %v2612
    %v2937 = vmul.f32 %v2617, %v2617
    %v2938 = vmul.f32 %v2622, %v2622
    %v2939 = vmul.f32 %v2627, %v2627
    %v2940 = vmul.f32 %v2632, %v2632
    %v2941 = vmul.f32 %v2637, %v2637
    %v2942 = vmul.f32 %v2642, %v2642
    %v2943 = vmul.f32 %v2647, %v2647
    %v2944 = vmul.f32 %v2652, %v2652
    %v2945 = vmul.f32 %v2657, %v2657
    %v2946 = vmul.f32 %v2662, %v2662
    %v2947 = vmul.f32 %v2667, %v2667
    %v2948 = vmul.f32 %v2672, %v2672
    %v2949 = vmul.f32 %v2677, %v2677
    %v2950 = vmul.f32 %v2682, %v2682
    %v2951 = vmul.f32 %v2687, %v2687
    %v2952 = vmul.f32 %v2692, %v2692
    %v2953 = vmul.f32 %v2697, %v2697
    %v2954 = vmul.f32 %v2702, %v2702
    %v2955 = vmul.f32 %v2707, %v2707
    %v2956 = vmul.f32 %v2712, %v2712
    %v2957 = vmul.f32 %v2717, %v2717
    %v2958 = vmul.f32 %v2722, %v2722
    %v2959 = vmul.f32 %v2727, %v2727
    %v2960 = vmul.f32 %v2732, %v2732
    %v2961 = vmul.f32 %v2737, %v2737
    %v2962 = vmul.f32 %v2742, %v2742
    %v2963 = vmul.f32 %v2747, %v2747
    %v2964 = vmul.f32 %v2752, %v2752
    %v2965 = vmul.f32 %v2757, %v2757
    %v2966 = vmul.f32 %v2762, %v2762
    %v2967 = vmul.f32 %v2767, %v2767
    %v2968 = vsel %vm2770, %v2904, 0.0
    %v2969 = vsel %vm2770, %v2905, 0.0
    %v2970 = vadd.f32 %v2968, %v2969
    %v2971 = vsel %vm2770, %v2906, 0.0
    %v2972 = vadd.f32 %v2970, %v2971
    %v2973 = vsel %vm2770, %v2907, 0.0
    %v2974 = vadd.f32 %v2972, %v2973
    %v2975 = vsel %vm2770, %v2908, 0.0
    %v2976 = vadd.f32 %v2974, %v2975
    %v2977 = vsel %vm2770, %v2909, 0.0
    %v2978 = vadd.f32 %v2976, %v2977
    %v2979 = vsel %vm2770, %v2910, 0.0
    %v2980 = vadd.f32 %v2978, %v2979
    %v2981 = vsel %vm2770, %v2911, 0.0
    %v2982 = vadd.f32 %v2980, %v2981
    %v2983 = vsel %vm2770, %v2912, 0.0
    %v2984 = vadd.f32 %v2982, %v2983
    %v2985 = vsel %vm2770, %v2913, 0.0
    %v2986 = vadd.f32 %v2984, %v2985
    %v2987 = vsel %vm2770, %v2914, 0.0
    %v2988 = vadd.f32 %v2986, %v2987
    %v2989 = vsel %vm2770, %v2915, 0.0
    %v2990 = vadd.f32 %v2988, %v2989
    %v2991 = vsel %vm2770, %v2916, 0.0
    %v2992 = vadd.f32 %v2990, %v2991
    %v2993 = vsel %vm2770, %v2917, 0.0
    %v2994 = vadd.f32 %v2992, %v2993
    %v2995 = vsel %vm2770, %v2918, 0.0
    %v2996 = vadd.f32 %v2994, %v2995
    %v2997 = vsel %vm2770, %v2919, 0.0
    %v2998 = vadd.f32 %v2996, %v2997
    %v2999 = vsel %vm2770, %v2920, 0.0
    %v3000 = vadd.f32 %v2998, %v2999
    %v3001 = vsel %vm2770, %v2921, 0.0
    %v3002 = vadd.f32 %v3000, %v3001
    %v3003 = vsel %vm2770, %v2922, 0.0
    %v3004 = vadd.f32 %v3002, %v3003
    %v3005 = vsel %vm2770, %v2923, 0.0
    %v3006 = vadd.f32 %v3004, %v3005
    %v3007 = vsel %vm2770, %v2924, 0.0
    %v3008 = vadd.f32 %v3006, %v3007
    %v3009 = vsel %vm2770, %v2925, 0.0
    %v3010 = vadd.f32 %v3008, %v3009
    %v3011 = vsel %vm2770, %v2926, 0.0
    %v3012 = vadd.f32 %v3010, %v3011
    %v3013 = vsel %vm2770, %v2927, 0.0
    %v3014 = vadd.f32 %v3012, %v3013
    %v3015 = vsel %vm2770, %v2928, 0.0
    %v3016 = vadd.f32 %v3014, %v3015
    %v3017 = vsel %vm2770, %v2929, 0.0
    %v3018 = vadd.f32 %v3016, %v3017
    %v3019 = vsel %vm2770, %v2930, 0.0
    %v3020 = vadd.f32 %v3018, %v3019
    %v3021 = vsel %vm2770, %v2931, 0.0
    %v3022 = vadd.f32 %v3020, %v3021
    %v3023 = vsel %vm2770, %v2932, 0.0
    %v3024 = vadd.f32 %v3022, %v3023
    %v3025 = vsel %vm2770, %v2933, 0.0
    %v3026 = vadd.f32 %v3024, %v3025
    %v3027 = vsel %vm2770, %v2934, 0.0
    %v3028 = vadd.f32 %v3026, %v3027
    %v3029 = vsel %vm2770, %v2935, 0.0
    %v3030 = vadd.f32 %v3028, %v3029
    %v3031 = vsel %vm2770, %v2936, 0.0
    %v3032 = vadd.f32 %v3030, %v3031
    %v3033 = vsel %vm2770, %v2937, 0.0
    %v3034 = vadd.f32 %v3032, %v3033
    %v3035 = vsel %vm2770, %v2938, 0.0
    %v3036 = vadd.f32 %v3034, %v3035
    %v3037 = vsel %vm2770, %v2939, 0.0
    %v3038 = vadd.f32 %v3036, %v3037
    %v3039 = vsel %vm2770, %v2940, 0.0
    %v3040 = vadd.f32 %v3038, %v3039
    %v3041 = vsel %vm2770, %v2941, 0.0
    %v3042 = vadd.f32 %v3040, %v3041
    %v3043 = vsel %vm2770, %v2942, 0.0
    %v3044 = vadd.f32 %v3042, %v3043
    %v3045 = vsel %vm2770, %v2943, 0.0
    %v3046 = vadd.f32 %v3044, %v3045
    %v3047 = vsel %vm2770, %v2944, 0.0
    %v3048 = vadd.f32 %v3046, %v3047
    %v3049 = vsel %vm2770, %v2945, 0.0
    %v3050 = vadd.f32 %v3048, %v3049
    %v3051 = vsel %vm2770, %v2946, 0.0
    %v3052 = vadd.f32 %v3050, %v3051
    %v3053 = vsel %vm2770, %v2947, 0.0
    %v3054 = vadd.f32 %v3052, %v3053
    %v3055 = vsel %vm2770, %v2948, 0.0
    %v3056 = vadd.f32 %v3054, %v3055
    %v3057 = vsel %vm2770, %v2949, 0.0
    %v3058 = vadd.f32 %v3056, %v3057
    %v3059 = vsel %vm2770, %v2950, 0.0
    %v3060 = vadd.f32 %v3058, %v3059
    %v3061 = vsel %vm2770, %v2951, 0.0
    %v3062 = vadd.f32 %v3060, %v3061
    %v3063 = vsel %vm2770, %v2952, 0.0
    %v3064 = vadd.f32 %v3062, %v3063
    %v3065 = vsel %vm2770, %v2953, 0.0
    %v3066 = vadd.f32 %v3064, %v3065
    %v3067 = vsel %vm2770, %v2954, 0.0
    %v3068 = vadd.f32 %v3066, %v3067
    %v3069 = vsel %vm2770, %v2955, 0.0
    %v3070 = vadd.f32 %v3068, %v3069
    %v3071 = vsel %vm2770, %v2956, 0.0
    %v3072 = vadd.f32 %v3070, %v3071
    %v3073 = vsel %vm2770, %v2957, 0.0
    %v3074 = vadd.f32 %v3072, %v3073
    %v3075 = vsel %vm2770, %v2958, 0.0
    %v3076 = vadd.f32 %v3074, %v3075
    %v3077 = vsel %vm2770, %v2959, 0.0
    %v3078 = vadd.f32 %v3076, %v3077
    %v3079 = vsel %vm2770, %v2960, 0.0
    %v3080 = vadd.f32 %v3078, %v3079
    %v3081 = vsel %vm2770, %v2961, 0.0
    %v3082 = vadd.f32 %v3080, %v3081
    %v3083 = vsel %vm2770, %v2962, 0.0
    %v3084 = vadd.f32 %v3082, %v3083
    %v3085 = vsel %vm2770, %v2963, 0.0
    %v3086 = vadd.f32 %v3084, %v3085
    %v3087 = vsel %vm2770, %v2964, 0.0
    %v3088 = vadd.f32 %v3086, %v3087
    %v3089 = vsel %vm2770, %v2965, 0.0
    %v3090 = vadd.f32 %v3088, %v3089
    %v3091 = vsel %vm2770, %v2966, 0.0
    %v3092 = vadd.f32 %v3090, %v3091
    %v3093 = vsel %vm2770, %v2967, 0.0
    %v3094 = vadd.f32 %v3092, %v3093
    %v3095 = vrot.slane %v3094, 4
    %v3096 = vadd.f32 %v3094, %v3095
    %v3097 = vrot.slane %v3096, 2
    %v3098 = vadd.f32 %v3096, %v3097
    %v3099 = vrot.slane %v3098, 1
    %v3100 = vadd.f32 %v3098, %v3099
    %v3101 = vmul.f32 %v2903, 0.001953125
    %v3102 = vmul.f32 %v3100, 0.001953125
    %v3103 = vmul.f32 %v3101, %v3101
    %v3104 = vsub.f32 %v3102, %v3103
    %v3105 = vmax.f32 %v3104, 0.0
    %v3106 = vld [vmem:[%s6] sm:$0x1]
    %v3107 = vadd.f32 %v3105, 1e-05
    %v3108 = vrsqrt.pop %v3107
    %v3109 = vmul.f32 %v3106, %v3108
    %v3110 = vld [vmem:[%s7] sm:$0x1]
    %v3111 = vmul.f32 %v3101, %v3109
    %v3112 = vsub.f32 %v3110, %v3111
    %v3114 = vlaneseq
    %v3115 = vshrl.u32 %v3114, 7
    %v3116 = vsub.s32 0, %v3115
    %v3117 = vrot.slane %v3109, %v3116
    %v3119 = vmul.f32 %v2452, %v3117
    %v3120 = vmul.f32 %v2457, %v3117
    %v3121 = vmul.f32 %v2462, %v3117
    %v3122 = vmul.f32 %v2467, %v3117
    %v3123 = vmul.f32 %v2472, %v3117
    %v3124 = vmul.f32 %v2477, %v3117
    %v3125 = vmul.f32 %v2482, %v3117
    %v3126 = vmul.f32 %v2487, %v3117
    %v3127 = vmul.f32 %v2492, %v3117
    %v3128 = vmul.f32 %v2497, %v3117
    %v3129 = vmul.f32 %v2502, %v3117
    %v3130 = vmul.f32 %v2507, %v3117
    %v3131 = vmul.f32 %v2512, %v3117
    %v3132 = vmul.f32 %v2517, %v3117
    %v3133 = vmul.f32 %v2522, %v3117
    %v3134 = vmul.f32 %v2527, %v3117
    %v3135 = vmul.f32 %v2532, %v3117
    %v3136 = vmul.f32 %v2537, %v3117
    %v3137 = vmul.f32 %v2542, %v3117
    %v3138 = vmul.f32 %v2547, %v3117
    %v3139 = vmul.f32 %v2552, %v3117
    %v3140 = vmul.f32 %v2557, %v3117
    %v3141 = vmul.f32 %v2562, %v3117
    %v3142 = vmul.f32 %v2567, %v3117
    %v3143 = vmul.f32 %v2572, %v3117
    %v3144 = vmul.f32 %v2577, %v3117
    %v3145 = vmul.f32 %v2582, %v3117
    %v3146 = vmul.f32 %v2587, %v3117
    %v3147 = vmul.f32 %v2592, %v3117
    %v3148 = vmul.f32 %v2597, %v3117
    %v3149 = vmul.f32 %v2602, %v3117
    %v3150 = vmul.f32 %v2607, %v3117
    %v3151 = vmul.f32 %v2612, %v3117
    %v3152 = vmul.f32 %v2617, %v3117
    %v3153 = vmul.f32 %v2622, %v3117
    %v3154 = vmul.f32 %v2627, %v3117
    %v3155 = vmul.f32 %v2632, %v3117
    %v3156 = vmul.f32 %v2637, %v3117
    %v3157 = vmul.f32 %v2642, %v3117
    %v3158 = vmul.f32 %v2647, %v3117
    %v3159 = vmul.f32 %v2652, %v3117
    %v3160 = vmul.f32 %v2657, %v3117
    %v3161 = vmul.f32 %v2662, %v3117
    %v3162 = vmul.f32 %v2667, %v3117
    %v3163 = vmul.f32 %v2672, %v3117
    %v3164 = vmul.f32 %v2677, %v3117
    %v3165 = vmul.f32 %v2682, %v3117
    %v3166 = vmul.f32 %v2687, %v3117
    %v3167 = vmul.f32 %v2692, %v3117
    %v3168 = vmul.f32 %v2697, %v3117
    %v3169 = vmul.f32 %v2702, %v3117
    %v3170 = vmul.f32 %v2707, %v3117
    %v3171 = vmul.f32 %v2712, %v3117
    %v3172 = vmul.f32 %v2717, %v3117
    %v3173 = vmul.f32 %v2722, %v3117
    %v3174 = vmul.f32 %v2727, %v3117
    %v3175 = vmul.f32 %v2732, %v3117
    %v3176 = vmul.f32 %v2737, %v3117
    %v3177 = vmul.f32 %v2742, %v3117
    %v3178 = vmul.f32 %v2747, %v3117
    %v3179 = vmul.f32 %v2752, %v3117
    %v3180 = vmul.f32 %v2757, %v3117
    %v3181 = vmul.f32 %v2762, %v3117
    %v3182 = vmul.f32 %v2767, %v3117
    %v3184 = vlaneseq
    %v3185 = vshrl.u32 %v3184, 7
    %v3186 = vsub.s32 0, %v3185
    %v3187 = vrot.slane %v3112, %v3186
    %v3189 = vadd.f32 %v3119, %v3187
    %v3190 = vadd.f32 %v3120, %v3187
    %v3191 = vadd.f32 %v3121, %v3187
    %v3192 = vadd.f32 %v3122, %v3187
    %v3193 = vadd.f32 %v3123, %v3187
    %v3194 = vadd.f32 %v3124, %v3187
    %v3195 = vadd.f32 %v3125, %v3187
    %v3196 = vadd.f32 %v3126, %v3187
    %v3197 = vadd.f32 %v3127, %v3187
    %v3198 = vadd.f32 %v3128, %v3187
    %v3199 = vadd.f32 %v3129, %v3187
    %v3200 = vadd.f32 %v3130, %v3187
    %v3201 = vadd.f32 %v3131, %v3187
    %v3202 = vadd.f32 %v3132, %v3187
    %v3203 = vadd.f32 %v3133, %v3187
    %v3204 = vadd.f32 %v3134, %v3187
    %v3205 = vadd.f32 %v3135, %v3187
    %v3206 = vadd.f32 %v3136, %v3187
    %v3207 = vadd.f32 %v3137, %v3187
    %v3208 = vadd.f32 %v3138, %v3187
    %v3209 = vadd.f32 %v3139, %v3187
    %v3210 = vadd.f32 %v3140, %v3187
    %v3211 = vadd.f32 %v3141, %v3187
    %v3212 = vadd.f32 %v3142, %v3187
    %v3213 = vadd.f32 %v3143, %v3187
    %v3214 = vadd.f32 %v3144, %v3187
    %v3215 = vadd.f32 %v3145, %v3187
    %v3216 = vadd.f32 %v3146, %v3187
    %v3217 = vadd.f32 %v3147, %v3187
    %v3218 = vadd.f32 %v3148, %v3187
    %v3219 = vadd.f32 %v3149, %v3187
    %v3220 = vadd.f32 %v3150, %v3187
    %v3221 = vadd.f32 %v3151, %v3187
    %v3222 = vadd.f32 %v3152, %v3187
    %v3223 = vadd.f32 %v3153, %v3187
    %v3224 = vadd.f32 %v3154, %v3187
    %v3225 = vadd.f32 %v3155, %v3187
    %v3226 = vadd.f32 %v3156, %v3187
    %v3227 = vadd.f32 %v3157, %v3187
    %v3228 = vadd.f32 %v3158, %v3187
    %v3229 = vadd.f32 %v3159, %v3187
    %v3230 = vadd.f32 %v3160, %v3187
    %v3231 = vadd.f32 %v3161, %v3187
    %v3232 = vadd.f32 %v3162, %v3187
    %v3233 = vadd.f32 %v3163, %v3187
    %v3234 = vadd.f32 %v3164, %v3187
    %v3235 = vadd.f32 %v3165, %v3187
    %v3236 = vadd.f32 %v3166, %v3187
    %v3237 = vadd.f32 %v3167, %v3187
    %v3238 = vadd.f32 %v3168, %v3187
    %v3239 = vadd.f32 %v3169, %v3187
    %v3240 = vadd.f32 %v3170, %v3187
    %v3241 = vadd.f32 %v3171, %v3187
    %v3242 = vadd.f32 %v3172, %v3187
    %v3243 = vadd.f32 %v3173, %v3187
    %v3244 = vadd.f32 %v3174, %v3187
    %v3245 = vadd.f32 %v3175, %v3187
    %v3246 = vadd.f32 %v3176, %v3187
    %v3247 = vadd.f32 %v3177, %v3187
    %v3248 = vadd.f32 %v3178, %v3187
    %v3249 = vadd.f32 %v3179, %v3187
    %v3250 = vadd.f32 %v3180, %v3187
    %v3251 = vadd.f32 %v3181, %v3187
    %v3252 = vadd.f32 %v3182, %v3187
    %v3253 = vmax.f32 %v3189, 0.0
    %v3254 = vmax.f32 %v3190, 0.0
    %v3255 = vmax.f32 %v3191, 0.0
    %v3256 = vmax.f32 %v3192, 0.0
    %v3257 = vmax.f32 %v3193, 0.0
    %v3258 = vmax.f32 %v3194, 0.0
    %v3259 = vmax.f32 %v3195, 0.0
    %v3260 = vmax.f32 %v3196, 0.0
    %v3261 = vmax.f32 %v3197, 0.0
    %v3262 = vmax.f32 %v3198, 0.0
    %v3263 = vmax.f32 %v3199, 0.0
    %v3264 = vmax.f32 %v3200, 0.0
    %v3265 = vmax.f32 %v3201, 0.0
    %v3266 = vmax.f32 %v3202, 0.0
    %v3267 = vmax.f32 %v3203, 0.0
    %v3268 = vmax.f32 %v3204, 0.0
    %v3269 = vmax.f32 %v3205, 0.0
    %v3270 = vmax.f32 %v3206, 0.0
    %v3271 = vmax.f32 %v3207, 0.0
    %v3272 = vmax.f32 %v3208, 0.0
    %v3273 = vmax.f32 %v3209, 0.0
    %v3274 = vmax.f32 %v3210, 0.0
    %v3275 = vmax.f32 %v3211, 0.0
    %v3276 = vmax.f32 %v3212, 0.0
    %v3277 = vmax.f32 %v3213, 0.0
    %v3278 = vmax.f32 %v3214, 0.0
    %v3279 = vmax.f32 %v3215, 0.0
    %v3280 = vmax.f32 %v3216, 0.0
    %v3281 = vmax.f32 %v3217, 0.0
    %v3282 = vmax.f32 %v3218, 0.0
    %v3283 = vmax.f32 %v3219, 0.0
    %v3284 = vmax.f32 %v3220, 0.0
    %v3285 = vmax.f32 %v3221, 0.0
    %v3286 = vmax.f32 %v3222, 0.0
    %v3287 = vmax.f32 %v3223, 0.0
    %v3288 = vmax.f32 %v3224, 0.0
    %v3289 = vmax.f32 %v3225, 0.0
    %v3290 = vmax.f32 %v3226, 0.0
    %v3291 = vmax.f32 %v3227, 0.0
    %v3292 = vmax.f32 %v3228, 0.0
    %v3293 = vmax.f32 %v3229, 0.0
    %v3294 = vmax.f32 %v3230, 0.0
    %v3295 = vmax.f32 %v3231, 0.0
    %v3296 = vmax.f32 %v3232, 0.0
    %v3297 = vmax.f32 %v3233, 0.0
    %v3298 = vmax.f32 %v3234, 0.0
    %v3299 = vmax.f32 %v3235, 0.0
    %v3300 = vmax.f32 %v3236, 0.0
    %v3301 = vmax.f32 %v3237, 0.0
    %v3302 = vmax.f32 %v3238, 0.0
    %v3303 = vmax.f32 %v3239, 0.0
    %v3304 = vmax.f32 %v3240, 0.0
    %v3305 = vmax.f32 %v3241, 0.0
    %v3306 = vmax.f32 %v3242, 0.0
    %v3307 = vmax.f32 %v3243, 0.0
    %v3308 = vmax.f32 %v3244, 0.0
    %v3309 = vmax.f32 %v3245, 0.0
    %v3310 = vmax.f32 %v3246, 0.0
    %v3311 = vmax.f32 %v3247, 0.0
    %v3312 = vmax.f32 %v3248, 0.0
    %v3313 = vmax.f32 %v3249, 0.0
    %v3314 = vmax.f32 %v3250, 0.0
    %v3315 = vmax.f32 %v3251, 0.0
    %v3316 = vmax.f32 %v3252, 0.0
    %v3317 = vld [vmem:[%s8] sm:$0xff]
    %v3318 = vld [vmem:[%s8 + $0x8] sm:$0x1]
    %3319 = vst.msk [vmem:[#allocation3] sm:$0xff] %vm2770, 0.0
    %3320 = vst.msk [vmem:[#allocation3 + $0x8] sm:$0xff] %vm2770, 0.0
    %vm3321 = vcmask 254976
    %3322 = vst.msk [vmem:[#allocation3 + $0x10] sm:$0x3] %vm3321, 0.0
    %3323 = vst.msk [vmem:[#allocation3 + $0x1b0] sm:$0xff] %vm2770, 0.0
    %3324 = vst.msk [vmem:[#allocation3 + $0x1b8] sm:$0xff] %vm2770, 0.0
    %3325 = vst.msk [vmem:[#allocation3 + $0x1c0] sm:$0x3] %vm3321, 0.0
    %s3326 = scalar_lea.vmem [#allocation3], 408
    %3327 = vst.msk [vmem:[%s3326] sm:$0xff] %vm2770, 0.0
    %3328 = vst.msk [vmem:[%s3326 + $0x8] sm:$0xff] %vm2770, 0.0
    %3329 = vst.msk [vmem:[%s3326 + $0x10] sm:$0x3] %vm3321, 0.0
    %3330 = vst.msk [vmem:[%s3326 + $0x1b0] sm:$0xff] %vm2770, 0.0
    %3331 = vst.msk [vmem:[%s3326 + $0x1b8] sm:$0xff] %vm2770, 0.0
    %3332 = vst.msk [vmem:[%s3326 + $0x1c0] sm:$0x3] %vm3321, 0.0
    %vm3333 = vcmask 253952
    %3334 = vst.msk [vmem:[#allocation3] sm:$0x1] %vm3333, 0.0
    %3335 = vst.msk [vmem:[#allocation3 + $0x18] sm:$0x1] %vm3333, 0.0
    %3336 = vst.msk [vmem:[#allocation3 + $0x30] sm:$0x1] %vm3333, 0.0
    %3337 = vst.msk [vmem:[#allocation3 + $0x48] sm:$0x1] %vm3333, 0.0
    %3338 = vst.msk [vmem:[#allocation3 + $0x60] sm:$0x1] %vm3333, 0.0
    %3339 = vst.msk [vmem:[#allocation3 + $0x78] sm:$0x1] %vm3333, 0.0
    %3340 = vst.msk [vmem:[#allocation3 + $0x90] sm:$0x1] %vm3333, 0.0
    %3341 = vst.msk [vmem:[#allocation3 + $0xa8] sm:$0x1] %vm3333, 0.0
    %3342 = vst.msk [vmem:[#allocation3 + $0xc0] sm:$0x1] %vm3333, 0.0
    %3343 = vst.msk [vmem:[#allocation3 + $0xd8] sm:$0x1] %vm3333, 0.0
    %3344 = vst.msk [vmem:[#allocation3 + $0xf0] sm:$0x1] %vm3333, 0.0
    %3345 = vst.msk [vmem:[#allocation3 + $0x108] sm:$0x1] %vm3333, 0.0
    %3346 = vst.msk [vmem:[#allocation3 + $0x120] sm:$0x1] %vm3333, 0.0
    %3347 = vst.msk [vmem:[#allocation3 + $0x138] sm:$0x1] %vm3333, 0.0
    %3348 = vst.msk [vmem:[#allocation3 + $0x150] sm:$0x1] %vm3333, 0.0
    %3349 = vst.msk [vmem:[#allocation3 + $0x168] sm:$0x1] %vm3333, 0.0
    %3350 = vst.msk [vmem:[#allocation3 + $0x180] sm:$0x1] %vm3333, 0.0
    %3351 = vst.msk [vmem:[#allocation3 + $0x198] sm:$0x1] %vm3333, 0.0
    %3352 = vst.msk [vmem:[#allocation3 + $0x1b0] sm:$0x1] %vm3333, 0.0
    %3353 = vst.msk [vmem:[#allocation3 + $0x1c8] sm:$0x1] %vm3333, 0.0
    %3354 = vst.msk [vmem:[#allocation3 + $0x1e0] sm:$0x1] %vm3333, 0.0
    %3355 = vst.msk [vmem:[#allocation3 + $0x1f8] sm:$0x1] %vm3333, 0.0
    %3356 = vst.msk [vmem:[#allocation3 + $0x210] sm:$0x1] %vm3333, 0.0
    %3357 = vst.msk [vmem:[#allocation3 + $0x228] sm:$0x1] %vm3333, 0.0
    %3358 = vst.msk [vmem:[#allocation3 + $0x240] sm:$0x1] %vm3333, 0.0
    %3359 = vst.msk [vmem:[#allocation3 + $0x258] sm:$0x1] %vm3333, 0.0
    %3360 = vst.msk [vmem:[#allocation3 + $0x270] sm:$0x1] %vm3333, 0.0
    %3361 = vst.msk [vmem:[#allocation3 + $0x288] sm:$0x1] %vm3333, 0.0
    %3362 = vst.msk [vmem:[#allocation3 + $0x2a0] sm:$0x1] %vm3333, 0.0
    %3363 = vst.msk [vmem:[#allocation3 + $0x2b8] sm:$0x1] %vm3333, 0.0
    %3364 = vst.msk [vmem:[#allocation3 + $0x2d0] sm:$0x1] %vm3333, 0.0
    %3365 = vst.msk [vmem:[#allocation3 + $0x2e8] sm:$0x1] %vm3333, 0.0
    %3366 = vst.msk [vmem:[#allocation3 + $0x300] sm:$0x1] %vm3333, 0.0
    %3367 = vst.msk [vmem:[#allocation3 + $0x318] sm:$0x1] %vm3333, 0.0
    %3368 = vst.msk [vmem:[#allocation3 + $0x330] sm:$0x1] %vm3333, 0.0
    %3369 = vst.msk [vmem:[#allocation3 + $0x348] sm:$0x1] %vm3333, 0.0
    %3370 = vst.msk [vmem:[#allocation3 + $0x11] sm:$0x1] %vm3333, 0.0
    %3371 = vst.msk [vmem:[#allocation3 + $0x29] sm:$0x1] %vm3333, 0.0
    %3372 = vst.msk [vmem:[#allocation3 + $0x41] sm:$0x1] %vm3333, 0.0
    %3373 = vst.msk [vmem:[#allocation3 + $0x59] sm:$0x1] %vm3333, 0.0
    %3374 = vst.msk [vmem:[#allocation3 + $0x71] sm:$0x1] %vm3333, 0.0
    %3375 = vst.msk [vmem:[#allocation3 + $0x89] sm:$0x1] %vm3333, 0.0
    %3376 = vst.msk [vmem:[#allocation3 + $0xa1] sm:$0x1] %vm3333, 0.0
    %3377 = vst.msk [vmem:[#allocation3 + $0xb9] sm:$0x1] %vm3333, 0.0
    %3378 = vst.msk [vmem:[#allocation3 + $0xd1] sm:$0x1] %vm3333, 0.0
    %3379 = vst.msk [vmem:[#allocation3 + $0xe9] sm:$0x1] %vm3333, 0.0
    %3380 = vst.msk [vmem:[#allocation3 + $0x101] sm:$0x1] %vm3333, 0.0
    %3381 = vst.msk [vmem:[#allocation3 + $0x119] sm:$0x1] %vm3333, 0.0
    %3382 = vst.msk [vmem:[#allocation3 + $0x131] sm:$0x1] %vm3333, 0.0
    %3383 = vst.msk [vmem:[#allocation3 + $0x149] sm:$0x1] %vm3333, 0.0
    %3384 = vst.msk [vmem:[#allocation3 + $0x161] sm:$0x1] %vm3333, 0.0
    %3385 = vst.msk [vmem:[#allocation3 + $0x179] sm:$0x1] %vm3333, 0.0
    %3386 = vst.msk [vmem:[#allocation3 + $0x191] sm:$0x1] %vm3333, 0.0
    %3387 = vst.msk [vmem:[#allocation3 + $0x1a9] sm:$0x1] %vm3333, 0.0
    %3388 = vst.msk [vmem:[#allocation3 + $0x1c1] sm:$0x1] %vm3333, 0.0
    %3389 = vst.msk [vmem:[#allocation3 + $0x1d9] sm:$0x1] %vm3333, 0.0
    %3390 = vst.msk [vmem:[#allocation3 + $0x1f1] sm:$0x1] %vm3333, 0.0
    %3391 = vst.msk [vmem:[#allocation3 + $0x209] sm:$0x1] %vm3333, 0.0
    %3392 = vst.msk [vmem:[#allocation3 + $0x221] sm:$0x1] %vm3333, 0.0
    %3393 = vst.msk [vmem:[#allocation3 + $0x239] sm:$0x1] %vm3333, 0.0
    %3394 = vst.msk [vmem:[#allocation3 + $0x251] sm:$0x1] %vm3333, 0.0
    %3395 = vst.msk [vmem:[#allocation3 + $0x269] sm:$0x1] %vm3333, 0.0
    %3396 = vst.msk [vmem:[#allocation3 + $0x281] sm:$0x1] %vm3333, 0.0
    %3397 = vst.msk [vmem:[#allocation3 + $0x299] sm:$0x1] %vm3333, 0.0
    %3398 = vst.msk [vmem:[#allocation3 + $0x2b1] sm:$0x1] %vm3333, 0.0
    %3399 = vst.msk [vmem:[#allocation3 + $0x2c9] sm:$0x1] %vm3333, 0.0
    %3400 = vst.msk [vmem:[#allocation3 + $0x2e1] sm:$0x1] %vm3333, 0.0
    %3401 = vst.msk [vmem:[#allocation3 + $0x2f9] sm:$0x1] %vm3333, 0.0
    %3402 = vst.msk [vmem:[#allocation3 + $0x311] sm:$0x1] %vm3333, 0.0
    %3403 = vst.msk [vmem:[#allocation3 + $0x329] sm:$0x1] %vm3333, 0.0
    %3404 = vst.msk [vmem:[#allocation3 + $0x341] sm:$0x1] %vm3333, 0.0
    %3405 = vst.msk [vmem:[#allocation3 + $0x359] sm:$0x1] %vm3333, 0.0
    %s3406 = scalar_lea.vmem [#allocation3], 24
    %3407 = vst.msk [vmem:[%s3406 + $0x1] sm:$0xff] %vm2770, %v3253
    %3408 = vst.msk [vmem:[%s3406 + $0x9] sm:$0xff] %vm2770, %v3254
    %3409 = vst.msk [vmem:[%s3406 + $0x19] sm:$0xff] %vm2770, %v3255
    %3410 = vst.msk [vmem:[%s3406 + $0x21] sm:$0xff] %vm2770, %v3256
    %3411 = vst.msk [vmem:[%s3406 + $0x31] sm:$0xff] %vm2770, %v3257
    %3412 = vst.msk [vmem:[%s3406 + $0x39] sm:$0xff] %vm2770, %v3258
    %3413 = vst.msk [vmem:[%s3406 + $0x49] sm:$0xff] %vm2770, %v3259
    %3414 = vst.msk [vmem:[%s3406 + $0x51] sm:$0xff] %vm2770, %v3260
    %3415 = vst.msk [vmem:[%s3406 + $0x61] sm:$0xff] %vm2770, %v3261
    %3416 = vst.msk [vmem:[%s3406 + $0x69] sm:$0xff] %vm2770, %v3262
    %3417 = vst.msk [vmem:[%s3406 + $0x79] sm:$0xff] %vm2770, %v3263
    %3418 = vst.msk [vmem:[%s3406 + $0x81] sm:$0xff] %vm2770, %v3264
    %3419 = vst.msk [vmem:[%s3406 + $0x91] sm:$0xff] %vm2770, %v3265
    %3420 = vst.msk [vmem:[%s3406 + $0x99] sm:$0xff] %vm2770, %v3266
    %3421 = vst.msk [vmem:[%s3406 + $0xa9] sm:$0xff] %vm2770, %v3267
    %3422 = vst.msk [vmem:[%s3406 + $0xb1] sm:$0xff] %vm2770, %v3268
    %3423 = vst.msk [vmem:[%s3406 + $0xc1] sm:$0xff] %vm2770, %v3269
    %3424 = vst.msk [vmem:[%s3406 + $0xc9] sm:$0xff] %vm2770, %v3270
    %3425 = vst.msk [vmem:[%s3406 + $0xd9] sm:$0xff] %vm2770, %v3271
    %3426 = vst.msk [vmem:[%s3406 + $0xe1] sm:$0xff] %vm2770, %v3272
    %3427 = vst.msk [vmem:[%s3406 + $0xf1] sm:$0xff] %vm2770, %v3273
    %3428 = vst.msk [vmem:[%s3406 + $0xf9] sm:$0xff] %vm2770, %v3274
    %3429 = vst.msk [vmem:[%s3406 + $0x109] sm:$0xff] %vm2770, %v3275
    %3430 = vst.msk [vmem:[%s3406 + $0x111] sm:$0xff] %vm2770, %v3276
    %3431 = vst.msk [vmem:[%s3406 + $0x121] sm:$0xff] %vm2770, %v3277
    %3432 = vst.msk [vmem:[%s3406 + $0x129] sm:$0xff] %vm2770, %v3278
    %3433 = vst.msk [vmem:[%s3406 + $0x139] sm:$0xff] %vm2770, %v3279
    %3434 = vst.msk [vmem:[%s3406 + $0x141] sm:$0xff] %vm2770, %v3280
    %3435 = vst.msk [vmem:[%s3406 + $0x151] sm:$0xff] %vm2770, %v3281
    %3436 = vst.msk [vmem:[%s3406 + $0x159] sm:$0xff] %vm2770, %v3282
    %3437 = vst.msk [vmem:[%s3406 + $0x169] sm:$0xff] %vm2770, %v3283
    %3438 = vst.msk [vmem:[%s3406 + $0x171] sm:$0xff] %vm2770, %v3284
    %3439 = vst.msk [vmem:[%s3406 + $0x1b1] sm:$0xff] %vm2770, %v3285
    %3440 = vst.msk [vmem:[%s3406 + $0x1b9] sm:$0xff] %vm2770, %v3286
    %3441 = vst.msk [vmem:[%s3406 + $0x1c9] sm:$0xff] %vm2770, %v3287
    %3442 = vst.msk [vmem:[%s3406 + $0x1d1] sm:$0xff] %vm2770, %v3288
    %3443 = vst.msk [vmem:[%s3406 + $0x1e1] sm:$0xff] %vm2770, %v3289
    %3444 = vst.msk [vmem:[%s3406 + $0x1e9] sm:$0xff] %vm2770, %v3290
    %3445 = vst.msk [vmem:[%s3406 + $0x1f9] sm:$0xff] %vm2770, %v3291
    %3446 = vst.msk [vmem:[%s3406 + $0x201] sm:$0xff] %vm2770, %v3292
    %3447 = vst.msk [vmem:[%s3406 + $0x211] sm:$0xff] %vm2770, %v3293
    %3448 = vst.msk [vmem:[%s3406 + $0x219] sm:$0xff] %vm2770, %v3294
    %3449 = vst.msk [vmem:[%s3406 + $0x229] sm:$0xff] %vm2770, %v3295
    %3450 = vst.msk [vmem:[%s3406 + $0x231] sm:$0xff] %vm2770, %v3296
    %3451 = vst.msk [vmem:[%s3406 + $0x241] sm:$0xff] %vm2770, %v3297
    %3452 = vst.msk [vmem:[%s3406 + $0x249] sm:$0xff] %vm2770, %v3298
    %3453 = vst.msk [vmem:[%s3406 + $0x259] sm:$0xff] %vm2770, %v3299
    %3454 = vst.msk [vmem:[%s3406 + $0x261] sm:$0xff] %vm2770, %v3300
    %3455 = vst.msk [vmem:[%s3406 + $0x271] sm:$0xff] %vm2770, %v3301
    %3456 = vst.msk [vmem:[%s3406 + $0x279] sm:$0xff] %vm2770, %v3302
    %3457 = vst.msk [vmem:[%s3406 + $0x289] sm:$0xff] %vm2770, %v3303
    %3458 = vst.msk [vmem:[%s3406 + $0x291] sm:$0xff] %vm2770, %v3304
    %3459 = vst.msk [vmem:[%s3406 + $0x2a1] sm:$0xff] %vm2770, %v3305
    %3460 = vst.msk [vmem:[%s3406 + $0x2a9] sm:$0xff] %vm2770, %v3306
    %3461 = vst.msk [vmem:[%s3406 + $0x2b9] sm:$0xff] %vm2770, %v3307
    %3462 = vst.msk [vmem:[%s3406 + $0x2c1] sm:$0xff] %vm2770, %v3308
    %3463 = vst.msk [vmem:[%s3406 + $0x2d1] sm:$0xff] %vm2770, %v3309
    %3464 = vst.msk [vmem:[%s3406 + $0x2d9] sm:$0xff] %vm2770, %v3310
    %3465 = vst.msk [vmem:[%s3406 + $0x2e9] sm:$0xff] %vm2770, %v3311
    %3466 = vst.msk [vmem:[%s3406 + $0x2f1] sm:$0xff] %vm2770, %v3312
    %3467 = vst.msk [vmem:[%s3406 + $0x301] sm:$0xff] %vm2770, %v3313
    %3468 = vst.msk [vmem:[%s3406 + $0x309] sm:$0xff] %vm2770, %v3314
    %3469 = vst.msk [vmem:[%s3406 + $0x319] sm:$0xff] %vm2770, %v3315
    %3470 = vst.msk [vmem:[%s3406 + $0x321] sm:$0xff] %vm2770, %v3316
    %v3471 = vld [vmem:[#allocation3] sm:$0xff]
    %v3472 = vld [vmem:[#allocation3 + $0x8] sm:$0xff]
    %v3473 = vld [vmem:[#allocation3 + $0x18] sm:$0xff]
    %v3474 = vld [vmem:[#allocation3 + $0x20] sm:$0xff]
    %v3475 = vld [vmem:[#allocation3 + $0x30] sm:$0xff]
    %v3476 = vld [vmem:[#allocation3 + $0x38] sm:$0xff]
    %v3477 = vld [vmem:[#allocation3 + $0x48] sm:$0xff]
    %v3478 = vld [vmem:[#allocation3 + $0x50] sm:$0xff]
    %v3479 = vld [vmem:[#allocation3 + $0x60] sm:$0xff]
    %v3480 = vld [vmem:[#allocation3 + $0x68] sm:$0xff]
    %v3481 = vld [vmem:[#allocation3 + $0x78] sm:$0xff]
    %v3482 = vld [vmem:[#allocation3 + $0x80] sm:$0xff]
    %v3483 = vld [vmem:[#allocation3 + $0x90] sm:$0xff]
    %v3484 = vld [vmem:[#allocation3 + $0x98] sm:$0xff]
    %v3485 = vld [vmem:[#allocation3 + $0xa8] sm:$0xff]
    %v3486 = vld [vmem:[#allocation3 + $0xb0] sm:$0xff]
    %v3487 = vld [vmem:[#allocation3 + $0xc0] sm:$0xff]
    %v3488 = vld [vmem:[#allocation3 + $0xc8] sm:$0xff]
    %v3489 = vld [vmem:[#allocation3 + $0xd8] sm:$0xff]
    %v3490 = vld [vmem:[#allocation3 + $0xe0] sm:$0xff]
    %v3491 = vld [vmem:[#allocation3 + $0xf0] sm:$0xff]
    %v3492 = vld [vmem:[#allocation3 + $0xf8] sm:$0xff]
    %v3493 = vld [vmem:[#allocation3 + $0x108] sm:$0xff]
    %v3494 = vld [vmem:[#allocation3 + $0x110] sm:$0xff]
    %v3495 = vld [vmem:[#allocation3 + $0x120] sm:$0xff]
    %v3496 = vld [vmem:[#allocation3 + $0x128] sm:$0xff]
    %v3497 = vld [vmem:[#allocation3 + $0x138] sm:$0xff]
    %v3498 = vld [vmem:[#allocation3 + $0x140] sm:$0xff]
    %v3499 = vld [vmem:[#allocation3 + $0x150] sm:$0xff]
    %v3500 = vld [vmem:[#allocation3 + $0x158] sm:$0xff]
    %v3501 = vld [vmem:[#allocation3 + $0x168] sm:$0xff]
    %v3502 = vld [vmem:[#allocation3 + $0x170] sm:$0xff]
    %v3503 = vld [vmem:[#allocation3 + $0x180] sm:$0xff]
    %v3504 = vld [vmem:[#allocation3 + $0x188] sm:$0xff]
    %v3505 = vld [vmem:[#allocation3 + $0x198] sm:$0xff]
    %v3506 = vld [vmem:[#allocation3 + $0x1a0] sm:$0xff]
    %v3507 = vld [vmem:[#allocation3 + $0x1b0] sm:$0xff]
    %v3508 = vld [vmem:[#allocation3 + $0x1b8] sm:$0xff]
    %v3509 = vld [vmem:[#allocation3 + $0x1c8] sm:$0xff]
    %v3510 = vld [vmem:[#allocation3 + $0x1d0] sm:$0xff]
    %v3511 = vld [vmem:[#allocation3 + $0x1e0] sm:$0xff]
    %v3512 = vld [vmem:[#allocation3 + $0x1e8] sm:$0xff]
    %v3513 = vld [vmem:[#allocation3 + $0x1f8] sm:$0xff]
    %v3514 = vld [vmem:[#allocation3 + $0x200] sm:$0xff]
    %v3515 = vld [vmem:[#allocation3 + $0x210] sm:$0xff]
    %v3516 = vld [vmem:[#allocation3 + $0x218] sm:$0xff]
    %v3517 = vld [vmem:[#allocation3 + $0x228] sm:$0xff]
    %v3518 = vld [vmem:[#allocation3 + $0x230] sm:$0xff]
    %v3519 = vld [vmem:[#allocation3 + $0x240] sm:$0xff]
    %v3520 = vld [vmem:[#allocation3 + $0x248] sm:$0xff]
    %v3521 = vld [vmem:[#allocation3 + $0x258] sm:$0xff]
    %v3522 = vld [vmem:[#allocation3 + $0x260] sm:$0xff]
    %v3523 = vld [vmem:[#allocation3 + $0x270] sm:$0xff]
    %v3524 = vld [vmem:[#allocation3 + $0x278] sm:$0xff]
    %v3525 = vld [vmem:[#allocation3 + $0x288] sm:$0xff]
    %v3526 = vld [vmem:[#allocation3 + $0x290] sm:$0xff]
    %v3527 = vld [vmem:[#allocation3 + $0x2a0] sm:$0xff]
    %v3528 = vld [vmem:[#allocation3 + $0x2a8] sm:$0xff]
    %v3529 = vld [vmem:[#allocation3 + $0x2b8] sm:$0xff]
    %v3530 = vld [vmem:[#allocation3 + $0x2c0] sm:$0xff]
    %v3531 = vld [vmem:[#allocation3 + $0x2d0] sm:$0xff]
    %v3532 = vld [vmem:[#allocation3 + $0x2d8] sm:$0xff]
    %v3533 = vld [vmem:[#allocation3 + $0x2e8] sm:$0xff]
    %v3534 = vld [vmem:[#allocation3 + $0x2f0] sm:$0xff]
    %v3535 = vld [vmem:[#allocation3 + $0x300] sm:$0xff]
    %v3536 = vld [vmem:[#allocation3 + $0x308] sm:$0xff]
    %v3537 = vld [vmem:[#allocation3 + $0x318] sm:$0xff]
    %v3538 = vld [vmem:[#allocation3 + $0x320] sm:$0xff]
    %v3539 = vld [vmem:[#allocation3 + $0x330] sm:$0xff]
    %v3540 = vld [vmem:[#allocation3 + $0x338] sm:$0xff]
    %v3541 = vld [vmem:[#allocation3 + $0x348] sm:$0xff]
    %v3542 = vld [vmem:[#allocation3 + $0x350] sm:$0xff]
    %v3543 = vlaneseq
    %v3544 = vshrl.u32 %v3543, 7
    %v3545 = vsub.s32 0, %v3544
    %v3546 = vrot.slane %v3317, %v3545
    %v3547 = vmul.f32 %v3471, %v3546
    %v3548 = vmul.f32 %v3472, %v3546
    %v3549 = vmul.f32 %v3473, %v3546
    %v3550 = vmul.f32 %v3474, %v3546
    %v3551 = vmul.f32 %v3475, %v3546
    %v3552 = vmul.f32 %v3476, %v3546
    %v3553 = vmul.f32 %v3477, %v3546
    %v3554 = vmul.f32 %v3478, %v3546
    %v3555 = vmul.f32 %v3479, %v3546
    %v3556 = vmul.f32 %v3480, %v3546
    %v3557 = vmul.f32 %v3481, %v3546
    %v3558 = vmul.f32 %v3482, %v3546
    %v3559 = vmul.f32 %v3483, %v3546
    %v3560 = vmul.f32 %v3484, %v3546
    %v3561 = vmul.f32 %v3485, %v3546
    %v3562 = vmul.f32 %v3486, %v3546
    %v3563 = vmul.f32 %v3487, %v3546
    %v3564 = vmul.f32 %v3488, %v3546
    %v3565 = vmul.f32 %v3489, %v3546
    %v3566 = vmul.f32 %v3490, %v3546
    %v3567 = vmul.f32 %v3491, %v3546
    %v3568 = vmul.f32 %v3492, %v3546
    %v3569 = vmul.f32 %v3493, %v3546
    %v3570 = vmul.f32 %v3494, %v3546
    %v3571 = vmul.f32 %v3495, %v3546
    %v3572 = vmul.f32 %v3496, %v3546
    %v3573 = vmul.f32 %v3497, %v3546
    %v3574 = vmul.f32 %v3498, %v3546
    %v3575 = vmul.f32 %v3499, %v3546
    %v3576 = vmul.f32 %v3500, %v3546
    %v3577 = vmul.f32 %v3501, %v3546
    %v3578 = vmul.f32 %v3502, %v3546
    %v3579 = vmul.f32 %v3507, %v3546
    %v3580 = vmul.f32 %v3508, %v3546
    %v3581 = vmul.f32 %v3509, %v3546
    %v3582 = vmul.f32 %v3510, %v3546
    %v3583 = vmul.f32 %v3511, %v3546
    %v3584 = vmul.f32 %v3512, %v3546
    %v3585 = vmul.f32 %v3513, %v3546
    %v3586 = vmul.f32 %v3514, %v3546
    %v3587 = vmul.f32 %v3515, %v3546
    %v3588 = vmul.f32 %v3516, %v3546
    %v3589 = vmul.f32 %v3517, %v3546
    %v3590 = vmul.f32 %v3518, %v3546
    %v3591 = vmul.f32 %v3519, %v3546
    %v3592 = vmul.f32 %v3520, %v3546
    %v3593 = vmul.f32 %v3521, %v3546
    %v3594 = vmul.f32 %v3522, %v3546
    %v3595 = vmul.f32 %v3523, %v3546
    %v3596 = vmul.f32 %v3524, %v3546
    %v3597 = vmul.f32 %v3525, %v3546
    %v3598 = vmul.f32 %v3526, %v3546
    %v3599 = vmul.f32 %v3527, %v3546
    %v3600 = vmul.f32 %v3528, %v3546
    %v3601 = vmul.f32 %v3529, %v3546
    %v3602 = vmul.f32 %v3530, %v3546
    %v3603 = vmul.f32 %v3531, %v3546
    %v3604 = vmul.f32 %v3532, %v3546
    %v3605 = vmul.f32 %v3533, %v3546
    %v3606 = vmul.f32 %v3534, %v3546
    %v3607 = vmul.f32 %v3535, %v3546
    %v3608 = vmul.f32 %v3536, %v3546
    %v3609 = vmul.f32 %v3537, %v3546
    %v3610 = vmul.f32 %v3538, %v3546
    %v3611 = vlaneseq
    %v3612 = vshrl.u32 %v3611, 7
    %v3613 = vsub.s32 3, %v3612
    %v3614 = vrot.slane %v3317, %v3613
    %v3615 = vmul.f32 %v3473, %v3614
    %v3616 = vmul.f32 %v3474, %v3614
    %v3617 = vmul.f32 %v3475, %v3614
    %v3618 = vmul.f32 %v3476, %v3614
    %v3619 = vmul.f32 %v3477, %v3614
    %v3620 = vmul.f32 %v3478, %v3614
    %v3621 = vmul.f32 %v3479, %v3614
    %v3622 = vmul.f32 %v3480, %v3614
    %v3623 = vmul.f32 %v3481, %v3614
    %v3624 = vmul.f32 %v3482, %v3614
    %v3625 = vmul.f32 %v3483, %v3614
    %v3626 = vmul.f32 %v3484, %v3614
    %v3627 = vmul.f32 %v3485, %v3614
    %v3628 = vmul.f32 %v3486, %v3614
    %v3629 = vmul.f32 %v3487, %v3614
    %v3630 = vmul.f32 %v3488, %v3614
    %v3631 = vmul.f32 %v3489, %v3614
    %v3632 = vmul.f32 %v3490, %v3614
    %v3633 = vmul.f32 %v3491, %v3614
    %v3634 = vmul.f32 %v3492, %v3614
    %v3635 = vmul.f32 %v3493, %v3614
    %v3636 = vmul.f32 %v3494, %v3614
    %v3637 = vmul.f32 %v3495, %v3614
    %v3638 = vmul.f32 %v3496, %v3614
    %v3639 = vmul.f32 %v3497, %v3614
    %v3640 = vmul.f32 %v3498, %v3614
    %v3641 = vmul.f32 %v3499, %v3614
    %v3642 = vmul.f32 %v3500, %v3614
    %v3643 = vmul.f32 %v3501, %v3614
    %v3644 = vmul.f32 %v3502, %v3614
    %v3645 = vmul.f32 %v3503, %v3614
    %v3646 = vmul.f32 %v3504, %v3614
    %v3647 = vmul.f32 %v3509, %v3614
    %v3648 = vmul.f32 %v3510, %v3614
    %v3649 = vmul.f32 %v3511, %v3614
    %v3650 = vmul.f32 %v3512, %v3614
    %v3651 = vmul.f32 %v3513, %v3614
    %v3652 = vmul.f32 %v3514, %v3614
    %v3653 = vmul.f32 %v3515, %v3614
    %v3654 = vmul.f32 %v3516, %v3614
    %v3655 = vmul.f32 %v3517, %v3614
    %v3656 = vmul.f32 %v3518, %v3614
    %v3657 = vmul.f32 %v3519, %v3614
    %v3658 = vmul.f32 %v3520, %v3614
    %v3659 = vmul.f32 %v3521, %v3614
    %v3660 = vmul.f32 %v3522, %v3614
    %v3661 = vmul.f32 %v3523, %v3614
    %v3662 = vmul.f32 %v3524, %v3614
    %v3663 = vmul.f32 %v3525, %v3614
    %v3664 = vmul.f32 %v3526, %v3614
    %v3665 = vmul.f32 %v3527, %v3614
    %v3666 = vmul.f32 %v3528, %v3614
    %v3667 = vmul.f32 %v3529, %v3614
    %v3668 = vmul.f32 %v3530, %v3614
    %v3669 = vmul.f32 %v3531, %v3614
    %v3670 = vmul.f32 %v3532, %v3614
    %v3671 = vmul.f32 %v3533, %v3614
    %v3672 = vmul.f32 %v3534, %v3614
    %v3673 = vmul.f32 %v3535, %v3614
    %v3674 = vmul.f32 %v3536, %v3614
    %v3675 = vmul.f32 %v3537, %v3614
    %v3676 = vmul.f32 %v3538, %v3614
    %v3677 = vmul.f32 %v3539, %v3614
    %v3678 = vmul.f32 %v3540, %v3614
    %v3679 = vadd.f32 %v3547, %v3615
    %v3680 = vadd.f32 %v3548, %v3616
    %v3681 = vadd.f32 %v3549, %v3617
    %v3682 = vadd.f32 %v3550, %v3618
    %v3683 = vadd.f32 %v3551, %v3619
    %v3684 = vadd.f32 %v3552, %v3620
    %v3685 = vadd.f32 %v3553, %v3621
    %v3686 = vadd.f32 %v3554, %v3622
    %v3687 = vadd.f32 %v3555, %v3623
    %v3688 = vadd.f32 %v3556, %v3624
    %v3689 = vadd.f32 %v3557, %v3625
    %v3690 = vadd.f32 %v3558, %v3626
    %v3691 = vadd.f32 %v3559, %v3627
    %v3692 = vadd.f32 %v3560, %v3628
    %v3693 = vadd.f32 %v3561, %v3629
    %v3694 = vadd.f32 %v3562, %v3630
    %v3695 = vadd.f32 %v3563, %v3631
    %v3696 = vadd.f32 %v3564, %v3632
    %v3697 = vadd.f32 %v3565, %v3633
    %v3698 = vadd.f32 %v3566, %v3634
    %v3699 = vadd.f32 %v3567, %v3635
    %v3700 = vadd.f32 %v3568, %v3636
    %v3701 = vadd.f32 %v3569, %v3637
    %v3702 = vadd.f32 %v3570, %v3638
    %v3703 = vadd.f32 %v3571, %v3639
    %v3704 = vadd.f32 %v3572, %v3640
    %v3705 = vadd.f32 %v3573, %v3641
    %v3706 = vadd.f32 %v3574, %v3642
    %v3707 = vadd.f32 %v3575, %v3643
    %v3708 = vadd.f32 %v3576, %v3644
    %v3709 = vadd.f32 %v3577, %v3645
    %v3710 = vadd.f32 %v3578, %v3646
    %v3711 = vadd.f32 %v3579, %v3647
    %v3712 = vadd.f32 %v3580, %v3648
    %v3713 = vadd.f32 %v3581, %v3649
    %v3714 = vadd.f32 %v3582, %v3650
    %v3715 = vadd.f32 %v3583, %v3651
    %v3716 = vadd.f32 %v3584, %v3652
    %v3717 = vadd.f32 %v3585, %v3653
    %v3718 = vadd.f32 %v3586, %v3654
    %v3719 = vadd.f32 %v3587, %v3655
    %v3720 = vadd.f32 %v3588, %v3656
    %v3721 = vadd.f32 %v3589, %v3657
    %v3722 = vadd.f32 %v3590, %v3658
    %v3723 = vadd.f32 %v3591, %v3659
    %v3724 = vadd.f32 %v3592, %v3660
    %v3725 = vadd.f32 %v3593, %v3661
    %v3726 = vadd.f32 %v3594, %v3662
    %v3727 = vadd.f32 %v3595, %v3663
    %v3728 = vadd.f32 %v3596, %v3664
    %v3729 = vadd.f32 %v3597, %v3665
    %v3730 = vadd.f32 %v3598, %v3666
    %v3731 = vadd.f32 %v3599, %v3667
    %v3732 = vadd.f32 %v3600, %v3668
    %v3733 = vadd.f32 %v3601, %v3669
    %v3734 = vadd.f32 %v3602, %v3670
    %v3735 = vadd.f32 %v3603, %v3671
    %v3736 = vadd.f32 %v3604, %v3672
    %v3737 = vadd.f32 %v3605, %v3673
    %v3738 = vadd.f32 %v3606, %v3674
    %v3739 = vadd.f32 %v3607, %v3675
    %v3740 = vadd.f32 %v3608, %v3676
    %v3741 = vadd.f32 %v3609, %v3677
    %v3742 = vadd.f32 %v3610, %v3678
    %v3743 = vlaneseq
    %v3744 = vshrl.u32 %v3743, 7
    %v3745 = vsub.s32 6, %v3744
    %v3746 = vrot.slane %v3317, %v3745
    %v3747 = vmul.f32 %v3475, %v3746
    %v3748 = vmul.f32 %v3476, %v3746
    %v3749 = vmul.f32 %v3477, %v3746
    %v3750 = vmul.f32 %v3478, %v3746
    %v3751 = vmul.f32 %v3479, %v3746
    %v3752 = vmul.f32 %v3480, %v3746
    %v3753 = vmul.f32 %v3481, %v3746
    %v3754 = vmul.f32 %v3482, %v3746
    %v3755 = vmul.f32 %v3483, %v3746
    %v3756 = vmul.f32 %v3484, %v3746
    %v3757 = vmul.f32 %v3485, %v3746
    %v3758 = vmul.f32 %v3486, %v3746
    %v3759 = vmul.f32 %v3487, %v3746
    %v3760 = vmul.f32 %v3488, %v3746
    %v3761 = vmul.f32 %v3489, %v3746
    %v3762 = vmul.f32 %v3490, %v3746
    %v3763 = vmul.f32 %v3491, %v3746
    %v3764 = vmul.f32 %v3492, %v3746
    %v3765 = vmul.f32 %v3493, %v3746
    %v3766 = vmul.f32 %v3494, %v3746
    %v3767 = vmul.f32 %v3495, %v3746
    %v3768 = vmul.f32 %v3496, %v3746
    %v3769 = vmul.f32 %v3497, %v3746
    %v3770 = vmul.f32 %v3498, %v3746
    %v3771 = vmul.f32 %v3499, %v3746
    %v3772 = vmul.f32 %v3500, %v3746
    %v3773 = vmul.f32 %v3501, %v3746
    %v3774 = vmul.f32 %v3502, %v3746
    %v3775 = vmul.f32 %v3503, %v3746
    %v3776 = vmul.f32 %v3504, %v3746
    %v3777 = vmul.f32 %v3505, %v3746
    %v3778 = vmul.f32 %v3506, %v3746
    %v3779 = vmul.f32 %v3511, %v3746
    %v3780 = vmul.f32 %v3512, %v3746
    %v3781 = vmul.f32 %v3513, %v3746
    %v3782 = vmul.f32 %v3514, %v3746
    %v3783 = vmul.f32 %v3515, %v3746
    %v3784 = vmul.f32 %v3516, %v3746
    %v3785 = vmul.f32 %v3517, %v3746
    %v3786 = vmul.f32 %v3518, %v3746
    %v3787 = vmul.f32 %v3519, %v3746
    %v3788 = vmul.f32 %v3520, %v3746
    %v3789 = vmul.f32 %v3521, %v3746
    %v3790 = vmul.f32 %v3522, %v3746
    %v3791 = vmul.f32 %v3523, %v3746
    %v3792 = vmul.f32 %v3524, %v3746
    %v3793 = vmul.f32 %v3525, %v3746
    %v3794 = vmul.f32 %v3526, %v3746
    %v3795 = vmul.f32 %v3527, %v3746
    %v3796 = vmul.f32 %v3528, %v3746
    %v3797 = vmul.f32 %v3529, %v3746
    %v3798 = vmul.f32 %v3530, %v3746
    %v3799 = vmul.f32 %v3531, %v3746
    %v3800 = vmul.f32 %v3532, %v3746
    %v3801 = vmul.f32 %v3533, %v3746
    %v3802 = vmul.f32 %v3534, %v3746
    %v3803 = vmul.f32 %v3535, %v3746
    %v3804 = vmul.f32 %v3536, %v3746
    %v3805 = vmul.f32 %v3537, %v3746
    %v3806 = vmul.f32 %v3538, %v3746
    %v3807 = vmul.f32 %v3539, %v3746
    %v3808 = vmul.f32 %v3540, %v3746
    %v3809 = vmul.f32 %v3541, %v3746
    %v3810 = vmul.f32 %v3542, %v3746
    %v3811 = vadd.f32 %v3679, %v3747
    %v3812 = vadd.f32 %v3680, %v3748
    %v3813 = vadd.f32 %v3681, %v3749
    %v3814 = vadd.f32 %v3682, %v3750
    %v3815 = vadd.f32 %v3683, %v3751
    %v3816 = vadd.f32 %v3684, %v3752
    %v3817 = vadd.f32 %v3685, %v3753
    %v3818 = vadd.f32 %v3686, %v3754
    %v3819 = vadd.f32 %v3687, %v3755
    %v3820 = vadd.f32 %v3688, %v3756
    %v3821 = vadd.f32 %v3689, %v3757
    %v3822 = vadd.f32 %v3690, %v3758
    %v3823 = vadd.f32 %v3691, %v3759
    %v3824 = vadd.f32 %v3692, %v3760
    %v3825 = vadd.f32 %v3693, %v3761
    %v3826 = vadd.f32 %v3694, %v3762
    %v3827 = vadd.f32 %v3695, %v3763
    %v3828 = vadd.f32 %v3696, %v3764
    %v3829 = vadd.f32 %v3697, %v3765
    %v3830 = vadd.f32 %v3698, %v3766
    %v3831 = vadd.f32 %v3699, %v3767
    %v3832 = vadd.f32 %v3700, %v3768
    %v3833 = vadd.f32 %v3701, %v3769
    %v3834 = vadd.f32 %v3702, %v3770
    %v3835 = vadd.f32 %v3703, %v3771
    %v3836 = vadd.f32 %v3704, %v3772
    %v3837 = vadd.f32 %v3705, %v3773
    %v3838 = vadd.f32 %v3706, %v3774
    %v3839 = vadd.f32 %v3707, %v3775
    %v3840 = vadd.f32 %v3708, %v3776
    %v3841 = vadd.f32 %v3709, %v3777
    %v3842 = vadd.f32 %v3710, %v3778
    %v3843 = vadd.f32 %v3711, %v3779
    %v3844 = vadd.f32 %v3712, %v3780
    %v3845 = vadd.f32 %v3713, %v3781
    %v3846 = vadd.f32 %v3714, %v3782
    %v3847 = vadd.f32 %v3715, %v3783
    %v3848 = vadd.f32 %v3716, %v3784
    %v3849 = vadd.f32 %v3717, %v3785
    %v3850 = vadd.f32 %v3718, %v3786
    %v3851 = vadd.f32 %v3719, %v3787
    %v3852 = vadd.f32 %v3720, %v3788
    %v3853 = vadd.f32 %v3721, %v3789
    %v3854 = vadd.f32 %v3722, %v3790
    %v3855 = vadd.f32 %v3723, %v3791
    %v3856 = vadd.f32 %v3724, %v3792
    %v3857 = vadd.f32 %v3725, %v3793
    %v3858 = vadd.f32 %v3726, %v3794
    %v3859 = vadd.f32 %v3727, %v3795
    %v3860 = vadd.f32 %v3728, %v3796
    %v3861 = vadd.f32 %v3729, %v3797
    %v3862 = vadd.f32 %v3730, %v3798
    %v3863 = vadd.f32 %v3731, %v3799
    %v3864 = vadd.f32 %v3732, %v3800
    %v3865 = vadd.f32 %v3733, %v3801
    %v3866 = vadd.f32 %v3734, %v3802
    %v3867 = vadd.f32 %v3735, %v3803
    %v3868 = vadd.f32 %v3736, %v3804
    %v3869 = vadd.f32 %v3737, %v3805
    %v3870 = vadd.f32 %v3738, %v3806
    %v3871 = vadd.f32 %v3739, %v3807
    %v3872 = vadd.f32 %v3740, %v3808
    %v3873 = vadd.f32 %v3741, %v3809
    %v3874 = vadd.f32 %v3742, %v3810
    %v3875 = vld [vmem:[#allocation3 + $0x1] sm:$0xff]
    %v3876 = vld [vmem:[#allocation3 + $0x9] sm:$0xff]
    %v3877 = vld [vmem:[#allocation3 + $0x19] sm:$0xff]
    %v3878 = vld [vmem:[#allocation3 + $0x21] sm:$0xff]
    %v3879 = vld [vmem:[#allocation3 + $0x31] sm:$0xff]
    %v3880 = vld [vmem:[#allocation3 + $0x39] sm:$0xff]
    %v3881 = vld [vmem:[#allocation3 + $0x49] sm:$0xff]
    %v3882 = vld [vmem:[#allocation3 + $0x51] sm:$0xff]
    %v3883 = vld [vmem:[#allocation3 + $0x61] sm:$0xff]
    %v3884 = vld [vmem:[#allocation3 + $0x69] sm:$0xff]
    %v3885 = vld [vmem:[#allocation3 + $0x79] sm:$0xff]
    %v3886 = vld [vmem:[#allocation3 + $0x81] sm:$0xff]
    %v3887 = vld [vmem:[#allocation3 + $0x91] sm:$0xff]
    %v3888 = vld [vmem:[#allocation3 + $0x99] sm:$0xff]
    %v3889 = vld [vmem:[#allocation3 + $0xa9] sm:$0xff]
    %v3890 = vld [vmem:[#allocation3 + $0xb1] sm:$0xff]
    %v3891 = vld [vmem:[#allocation3 + $0xc1] sm:$0xff]
    %v3892 = vld [vmem:[#allocation3 + $0xc9] sm:$0xff]
    %v3893 = vld [vmem:[#allocation3 + $0xd9] sm:$0xff]
    %v3894 = vld [vmem:[#allocation3 + $0xe1] sm:$0xff]
    %v3895 = vld [vmem:[#allocation3 + $0xf1] sm:$0xff]
    %v3896 = vld [vmem:[#allocation3 + $0xf9] sm:$0xff]
    %v3897 = vld [vmem:[#allocation3 + $0x109] sm:$0xff]
    %v3898 = vld [vmem:[#allocation3 + $0x111] sm:$0xff]
    %v3899 = vld [vmem:[#allocation3 + $0x121] sm:$0xff]
    %v3900 = vld [vmem:[#allocation3 + $0x129] sm:$0xff]
    %v3901 = vld [vmem:[#allocation3 + $0x139] sm:$0xff]
    %v3902 = vld [vmem:[#allocation3 + $0x141] sm:$0xff]
    %v3903 = vld [vmem:[#allocation3 + $0x151] sm:$0xff]
    %v3904 = vld [vmem:[#allocation3 + $0x159] sm:$0xff]
    %v3905 = vld [vmem:[#allocation3 + $0x169] sm:$0xff]
    %v3906 = vld [vmem:[#allocation3 + $0x171] sm:$0xff]
    %v3907 = vld [vmem:[#allocation3 + $0x181] sm:$0xff]
    %v3908 = vld [vmem:[#allocation3 + $0x189] sm:$0xff]
    %v3909 = vld [vmem:[#allocation3 + $0x199] sm:$0xff]
    %v3910 = vld [vmem:[#allocation3 + $0x1a1] sm:$0xff]
    %v3911 = vld [vmem:[#allocation3 + $0x1b1] sm:$0xff]
    %v3912 = vld [vmem:[#allocation3 + $0x1b9] sm:$0xff]
    %v3913 = vld [vmem:[#allocation3 + $0x1c9] sm:$0xff]
    %v3914 = vld [vmem:[#allocation3 + $0x1d1] sm:$0xff]
    %v3915 = vld [vmem:[#allocation3 + $0x1e1] sm:$0xff]
    %v3916 = vld [vmem:[#allocation3 + $0x1e9] sm:$0xff]
    %v3917 = vld [vmem:[#allocation3 + $0x1f9] sm:$0xff]
    %v3918 = vld [vmem:[#allocation3 + $0x201] sm:$0xff]
    %v3919 = vld [vmem:[#allocation3 + $0x211] sm:$0xff]
    %v3920 = vld [vmem:[#allocation3 + $0x219] sm:$0xff]
    %v3921 = vld [vmem:[#allocation3 + $0x229] sm:$0xff]
    %v3922 = vld [vmem:[#allocation3 + $0x231] sm:$0xff]
    %v3923 = vld [vmem:[#allocation3 + $0x241] sm:$0xff]
    %v3924 = vld [vmem:[#allocation3 + $0x249] sm:$0xff]
    %v3925 = vld [vmem:[#allocation3 + $0x259] sm:$0xff]
    %v3926 = vld [vmem:[#allocation3 + $0x261] sm:$0xff]
    %v3927 = vld [vmem:[#allocation3 + $0x271] sm:$0xff]
    %v3928 = vld [vmem:[#allocation3 + $0x279] sm:$0xff]
    %v3929 = vld [vmem:[#allocation3 + $0x289] sm:$0xff]
    %v3930 = vld [vmem:[#allocation3 + $0x291] sm:$0xff]
    %v3931 = vld [vmem:[#allocation3 + $0x2a1] sm:$0xff]
    %v3932 = vld [vmem:[#allocation3 + $0x2a9] sm:$0xff]
    %v3933 = vld [vmem:[#allocation3 + $0x2b9] sm:$0xff]
    %v3934 = vld [vmem:[#allocation3 + $0x2c1] sm:$0xff]
    %v3935 = vld [vmem:[#allocation3 + $0x2d1] sm:$0xff]
    %v3936 = vld [vmem:[#allocation3 + $0x2d9] sm:$0xff]
    %v3937 = vld [vmem:[#allocation3 + $0x2e9] sm:$0xff]
    %v3938 = vld [vmem:[#allocation3 + $0x2f1] sm:$0xff]
    %v3939 = vld [vmem:[#allocation3 + $0x301] sm:$0xff]
    %v3940 = vld [vmem:[#allocation3 + $0x309] sm:$0xff]
    %v3941 = vld [vmem:[#allocation3 + $0x319] sm:$0xff]
    %v3942 = vld [vmem:[#allocation3 + $0x321] sm:$0xff]
    %v3943 = vld [vmem:[#allocation3 + $0x331] sm:$0xff]
    %v3944 = vld [vmem:[#allocation3 + $0x339] sm:$0xff]
    %v3945 = vld [vmem:[#allocation3 + $0x349] sm:$0xff]
    %v3946 = vld [vmem:[#allocation3 + $0x351] sm:$0xff]
    %v3947 = vlaneseq
    %v3948 = vshrl.u32 %v3947, 7
    %v3949 = vsub.s32 1, %v3948
    %v3950 = vrot.slane %v3317, %v3949
    %v3951 = vmul.f32 %v3875, %v3950
    %v3952 = vmul.f32 %v3876, %v3950
    %v3953 = vmul.f32 %v3877, %v3950
    %v3954 = vmul.f32 %v3878, %v3950
    %v3955 = vmul.f32 %v3879, %v3950
    %v3956 = vmul.f32 %v3880, %v3950
    %v3957 = vmul.f32 %v3881, %v3950
    %v3958 = vmul.f32 %v3882, %v3950
    %v3959 = vmul.f32 %v3883, %v3950
    %v3960 = vmul.f32 %v3884, %v3950
    %v3961 = vmul.f32 %v3885, %v3950
    %v3962 = vmul.f32 %v3886, %v3950
    %v3963 = vmul.f32 %v3887, %v3950
    %v3964 = vmul.f32 %v3888, %v3950
    %v3965 = vmul.f32 %v3889, %v3950
    %v3966 = vmul.f32 %v3890, %v3950
    %v3967 = vmul.f32 %v3891, %v3950
    %v3968 = vmul.f32 %v3892, %v3950
    %v3969 = vmul.f32 %v3893, %v3950
    %v3970 = vmul.f32 %v3894, %v3950
    %v3971 = vmul.f32 %v3895, %v3950
    %v3972 = vmul.f32 %v3896, %v3950
    %v3973 = vmul.f32 %v3897, %v3950
    %v3974 = vmul.f32 %v3898, %v3950
    %v3975 = vmul.f32 %v3899, %v3950
    %v3976 = vmul.f32 %v3900, %v3950
    %v3977 = vmul.f32 %v3901, %v3950
    %v3978 = vmul.f32 %v3902, %v3950
    %v3979 = vmul.f32 %v3903, %v3950
    %v3980 = vmul.f32 %v3904, %v3950
    %v3981 = vmul.f32 %v3905, %v3950
    %v3982 = vmul.f32 %v3906, %v3950
    %v3983 = vmul.f32 %v3911, %v3950
    %v3984 = vmul.f32 %v3912, %v3950
    %v3985 = vmul.f32 %v3913, %v3950
    %v3986 = vmul.f32 %v3914, %v3950
    %v3987 = vmul.f32 %v3915, %v3950
    %v3988 = vmul.f32 %v3916, %v3950
    %v3989 = vmul.f32 %v3917, %v3950
    %v3990 = vmul.f32 %v3918, %v3950
    %v3991 = vmul.f32 %v3919, %v3950
    %v3992 = vmul.f32 %v3920, %v3950
    %v3993 = vmul.f32 %v3921, %v3950
    %v3994 = vmul.f32 %v3922, %v3950
    %v3995 = vmul.f32 %v3923, %v3950
    %v3996 = vmul.f32 %v3924, %v3950
    %v3997 = vmul.f32 %v3925, %v3950
    %v3998 = vmul.f32 %v3926, %v3950
    %v3999 = vmul.f32 %v3927, %v3950
    %v4000 = vmul.f32 %v3928, %v3950
    %v4001 = vmul.f32 %v3929, %v3950
    %v4002 = vmul.f32 %v3930, %v3950
    %v4003 = vmul.f32 %v3931, %v3950
    %v4004 = vmul.f32 %v3932, %v3950
    %v4005 = vmul.f32 %v3933, %v3950
    %v4006 = vmul.f32 %v3934, %v3950
    %v4007 = vmul.f32 %v3935, %v3950
    %v4008 = vmul.f32 %v3936, %v3950
    %v4009 = vmul.f32 %v3937, %v3950
    %v4010 = vmul.f32 %v3938, %v3950
    %v4011 = vmul.f32 %v3939, %v3950
    %v4012 = vmul.f32 %v3940, %v3950
    %v4013 = vmul.f32 %v3941, %v3950
    %v4014 = vmul.f32 %v3942, %v3950
    %v4015 = vadd.f32 %v3811, %v3951
    %v4016 = vadd.f32 %v3812, %v3952
    %v4017 = vadd.f32 %v3813, %v3953
    %v4018 = vadd.f32 %v3814, %v3954
    %v4019 = vadd.f32 %v3815, %v3955
    %v4020 = vadd.f32 %v3816, %v3956
    %v4021 = vadd.f32 %v3817, %v3957
    %v4022 = vadd.f32 %v3818, %v3958
    %v4023 = vadd.f32 %v3819, %v3959
    %v4024 = vadd.f32 %v3820, %v3960
    %v4025 = vadd.f32 %v3821, %v3961
    %v4026 = vadd.f32 %v3822, %v3962
    %v4027 = vadd.f32 %v3823, %v3963
    %v4028 = vadd.f32 %v3824, %v3964
    %v4029 = vadd.f32 %v3825, %v3965
    %v4030 = vadd.f32 %v3826, %v3966
    %v4031 = vadd.f32 %v3827, %v3967
    %v4032 = vadd.f32 %v3828, %v3968
    %v4033 = vadd.f32 %v3829, %v3969
    %v4034 = vadd.f32 %v3830, %v3970
    %v4035 = vadd.f32 %v3831, %v3971
    %v4036 = vadd.f32 %v3832, %v3972
    %v4037 = vadd.f32 %v3833, %v3973
    %v4038 = vadd.f32 %v3834, %v3974
    %v4039 = vadd.f32 %v3835, %v3975
    %v4040 = vadd.f32 %v3836, %v3976
    %v4041 = vadd.f32 %v3837, %v3977
    %v4042 = vadd.f32 %v3838, %v3978
    %v4043 = vadd.f32 %v3839, %v3979
    %v4044 = vadd.f32 %v3840, %v3980
    %v4045 = vadd.f32 %v3841, %v3981
    %v4046 = vadd.f32 %v3842, %v3982
    %v4047 = vadd.f32 %v3843, %v3983
    %v4048 = vadd.f32 %v3844, %v3984
    %v4049 = vadd.f32 %v3845, %v3985
    %v4050 = vadd.f32 %v3846, %v3986
    %v4051 = vadd.f32 %v3847, %v3987
    %v4052 = vadd.f32 %v3848, %v3988
    %v4053 = vadd.f32 %v3849, %v3989
    %v4054 = vadd.f32 %v3850, %v3990
    %v4055 = vadd.f32 %v3851, %v3991
    %v4056 = vadd.f32 %v3852, %v3992
    %v4057 = vadd.f32 %v3853, %v3993
    %v4058 = vadd.f32 %v3854, %v3994
    %v4059 = vadd.f32 %v3855, %v3995
    %v4060 = vadd.f32 %v3856, %v3996
    %v4061 = vadd.f32 %v3857, %v3997
    %v4062 = vadd.f32 %v3858, %v3998
    %v4063 = vadd.f32 %v3859, %v3999
    %v4064 = vadd.f32 %v3860, %v4000
    %v4065 = vadd.f32 %v3861, %v4001
    %v4066 = vadd.f32 %v3862, %v4002
    %v4067 = vadd.f32 %v3863, %v4003
    %v4068 = vadd.f32 %v3864, %v4004
    %v4069 = vadd.f32 %v3865, %v4005
    %v4070 = vadd.f32 %v3866, %v4006
    %v4071 = vadd.f32 %v3867, %v4007
    %v4072 = vadd.f32 %v3868, %v4008
    %v4073 = vadd.f32 %v3869, %v4009
    %v4074 = vadd.f32 %v3870, %v4010
    %v4075 = vadd.f32 %v3871, %v4011
    %v4076 = vadd.f32 %v3872, %v4012
    %v4077 = vadd.f32 %v3873, %v4013
    %v4078 = vadd.f32 %v3874, %v4014
    %v4079 = vlaneseq
    %v4080 = vshrl.u32 %v4079, 7
    %v4081 = vsub.s32 4, %v4080
    %v4082 = vrot.slane %v3317, %v4081
    %v4083 = vmul.f32 %v3877, %v4082
    %v4084 = vmul.f32 %v3878, %v4082
    %v4085 = vmul.f32 %v3879, %v4082
    %v4086 = vmul.f32 %v3880, %v4082
    %v4087 = vmul.f32 %v3881, %v4082
    %v4088 = vmul.f32 %v3882, %v4082
    %v4089 = vmul.f32 %v3883, %v4082
    %v4090 = vmul.f32 %v3884, %v4082
    %v4091 = vmul.f32 %v3885, %v4082
    %v4092 = vmul.f32 %v3886, %v4082
    %v4093 = vmul.f32 %v3887, %v4082
    %v4094 = vmul.f32 %v3888, %v4082
    %v4095 = vmul.f32 %v3889, %v4082
    %v4096 = vmul.f32 %v3890, %v4082
    %v4097 = vmul.f32 %v3891, %v4082
    %v4098 = vmul.f32 %v3892, %v4082
    %v4099 = vmul.f32 %v3893, %v4082
    %v4100 = vmul.f32 %v3894, %v4082
    %v4101 = vmul.f32 %v3895, %v4082
    %v4102 = vmul.f32 %v3896, %v4082
    %v4103 = vmul.f32 %v3897, %v4082
    %v4104 = vmul.f32 %v3898, %v4082
    %v4105 = vmul.f32 %v3899, %v4082
    %v4106 = vmul.f32 %v3900, %v4082
    %v4107 = vmul.f32 %v3901, %v4082
    %v4108 = vmul.f32 %v3902, %v4082
    %v4109 = vmul.f32 %v3903, %v4082
    %v4110 = vmul.f32 %v3904, %v4082
    %v4111 = vmul.f32 %v3905, %v4082
    %v4112 = vmul.f32 %v3906, %v4082
    %v4113 = vmul.f32 %v3907, %v4082
    %v4114 = vmul.f32 %v3908, %v4082
    %v4115 = vmul.f32 %v3913, %v4082
    %v4116 = vmul.f32 %v3914, %v4082
    %v4117 = vmul.f32 %v3915, %v4082
    %v4118 = vmul.f32 %v3916, %v4082
    %v4119 = vmul.f32 %v3917, %v4082
    %v4120 = vmul.f32 %v3918, %v4082
    %v4121 = vmul.f32 %v3919, %v4082
    %v4122 = vmul.f32 %v3920, %v4082
    %v4123 = vmul.f32 %v3921, %v4082
    %v4124 = vmul.f32 %v3922, %v4082
    %v4125 = vmul.f32 %v3923, %v4082
    %v4126 = vmul.f32 %v3924, %v4082
    %v4127 = vmul.f32 %v3925, %v4082
    %v4128 = vmul.f32 %v3926, %v4082
    %v4129 = vmul.f32 %v3927, %v4082
    %v4130 = vmul.f32 %v3928, %v4082
    %v4131 = vmul.f32 %v3929, %v4082
    %v4132 = vmul.f32 %v3930, %v4082
    %v4133 = vmul.f32 %v3931, %v4082
    %v4134 = vmul.f32 %v3932, %v4082
    %v4135 = vmul.f32 %v3933, %v4082
    %v4136 = vmul.f32 %v3934, %v4082
    %v4137 = vmul.f32 %v3935, %v4082
    %v4138 = vmul.f32 %v3936, %v4082
    %v4139 = vmul.f32 %v3937, %v4082
    %v4140 = vmul.f32 %v3938, %v4082
    %v4141 = vmul.f32 %v3939, %v4082
    %v4142 = vmul.f32 %v3940, %v4082
    %v4143 = vmul.f32 %v3941, %v4082
    %v4144 = vmul.f32 %v3942, %v4082
    %v4145 = vmul.f32 %v3943, %v4082
    %v4146 = vmul.f32 %v3944, %v4082
    %v4147 = vadd.f32 %v4015, %v4083
    %v4148 = vadd.f32 %v4016, %v4084
    %v4149 = vadd.f32 %v4017, %v4085
    %v4150 = vadd.f32 %v4018, %v4086
    %v4151 = vadd.f32 %v4019, %v4087
    %v4152 = vadd.f32 %v4020, %v4088
    %v4153 = vadd.f32 %v4021, %v4089
    %v4154 = vadd.f32 %v4022, %v4090
    %v4155 = vadd.f32 %v4023, %v4091
    %v4156 = vadd.f32 %v4024, %v4092
    %v4157 = vadd.f32 %v4025, %v4093
    %v4158 = vadd.f32 %v4026, %v4094
    %v4159 = vadd.f32 %v4027, %v4095
    %v4160 = vadd.f32 %v4028, %v4096
    %v4161 = vadd.f32 %v4029, %v4097
    %v4162 = vadd.f32 %v4030, %v4098
    %v4163 = vadd.f32 %v4031, %v4099
    %v4164 = vadd.f32 %v4032, %v4100
    %v4165 = vadd.f32 %v4033, %v4101
    %v4166 = vadd.f32 %v4034, %v4102
    %v4167 = vadd.f32 %v4035, %v4103
    %v4168 = vadd.f32 %v4036, %v4104
    %v4169 = vadd.f32 %v4037, %v4105
    %v4170 = vadd.f32 %v4038, %v4106
    %v4171 = vadd.f32 %v4039, %v4107
    %v4172 = vadd.f32 %v4040, %v4108
    %v4173 = vadd.f32 %v4041, %v4109
    %v4174 = vadd.f32 %v4042, %v4110
    %v4175 = vadd.f32 %v4043, %v4111
    %v4176 = vadd.f32 %v4044, %v4112
    %v4177 = vadd.f32 %v4045, %v4113
    %v4178 = vadd.f32 %v4046, %v4114
    %v4179 = vadd.f32 %v4047, %v4115
    %v4180 = vadd.f32 %v4048, %v4116
    %v4181 = vadd.f32 %v4049, %v4117
    %v4182 = vadd.f32 %v4050, %v4118
    %v4183 = vadd.f32 %v4051, %v4119
    %v4184 = vadd.f32 %v4052, %v4120
    %v4185 = vadd.f32 %v4053, %v4121
    %v4186 = vadd.f32 %v4054, %v4122
    %v4187 = vadd.f32 %v4055, %v4123
    %v4188 = vadd.f32 %v4056, %v4124
    %v4189 = vadd.f32 %v4057, %v4125
    %v4190 = vadd.f32 %v4058, %v4126
    %v4191 = vadd.f32 %v4059, %v4127
    %v4192 = vadd.f32 %v4060, %v4128
    %v4193 = vadd.f32 %v4061, %v4129
    %v4194 = vadd.f32 %v4062, %v4130
    %v4195 = vadd.f32 %v4063, %v4131
    %v4196 = vadd.f32 %v4064, %v4132
    %v4197 = vadd.f32 %v4065, %v4133
    %v4198 = vadd.f32 %v4066, %v4134
    %v4199 = vadd.f32 %v4067, %v4135
    %v4200 = vadd.f32 %v4068, %v4136
    %v4201 = vadd.f32 %v4069, %v4137
    %v4202 = vadd.f32 %v4070, %v4138
    %v4203 = vadd.f32 %v4071, %v4139
    %v4204 = vadd.f32 %v4072, %v4140
    %v4205 = vadd.f32 %v4073, %v4141
    %v4206 = vadd.f32 %v4074, %v4142
    %v4207 = vadd.f32 %v4075, %v4143
    %v4208 = vadd.f32 %v4076, %v4144
    %v4209 = vadd.f32 %v4077, %v4145
    %v4210 = vadd.f32 %v4078, %v4146
    %v4211 = vlaneseq
    %v4212 = vshrl.u32 %v4211, 7
    %v4213 = vsub.s32 7, %v4212
    %v4214 = vrot.slane %v3317, %v4213
    %v4215 = vmul.f32 %v3879, %v4214
    %v4216 = vmul.f32 %v3880, %v4214
    %v4217 = vmul.f32 %v3881, %v4214
    %v4218 = vmul.f32 %v3882, %v4214
    %v4219 = vmul.f32 %v3883, %v4214
    %v4220 = vmul.f32 %v3884, %v4214
    %v4221 = vmul.f32 %v3885, %v4214
    %v4222 = vmul.f32 %v3886, %v4214
    %v4223 = vmul.f32 %v3887, %v4214
    %v4224 = vmul.f32 %v3888, %v4214
    %v4225 = vmul.f32 %v3889, %v4214
    %v4226 = vmul.f32 %v3890, %v4214
    %v4227 = vmul.f32 %v3891, %v4214
    %v4228 = vmul.f32 %v3892, %v4214
    %v4229 = vmul.f32 %v3893, %v4214
    %v4230 = vmul.f32 %v3894, %v4214
    %v4231 = vmul.f32 %v3895, %v4214
    %v4232 = vmul.f32 %v3896, %v4214
    %v4233 = vmul.f32 %v3897, %v4214
    %v4234 = vmul.f32 %v3898, %v4214
    %v4235 = vmul.f32 %v3899, %v4214
    %v4236 = vmul.f32 %v3900, %v4214
    %v4237 = vmul.f32 %v3901, %v4214
    %v4238 = vmul.f32 %v3902, %v4214
    %v4239 = vmul.f32 %v3903, %v4214
    %v4240 = vmul.f32 %v3904, %v4214
    %v4241 = vmul.f32 %v3905, %v4214
    %v4242 = vmul.f32 %v3906, %v4214
    %v4243 = vmul.f32 %v3907, %v4214
    %v4244 = vmul.f32 %v3908, %v4214
    %v4245 = vmul.f32 %v3909, %v4214
    %v4246 = vmul.f32 %v3910, %v4214
    %v4247 = vmul.f32 %v3915, %v4214
    %v4248 = vmul.f32 %v3916, %v4214
    %v4249 = vmul.f32 %v3917, %v4214
    %v4250 = vmul.f32 %v3918, %v4214
    %v4251 = vmul.f32 %v3919, %v4214
    %v4252 = vmul.f32 %v3920, %v4214
    %v4253 = vmul.f32 %v3921, %v4214
    %v4254 = vmul.f32 %v3922, %v4214
    %v4255 = vmul.f32 %v3923, %v4214
    %v4256 = vmul.f32 %v3924, %v4214
    %v4257 = vmul.f32 %v3925, %v4214
    %v4258 = vmul.f32 %v3926, %v4214
    %v4259 = vmul.f32 %v3927, %v4214
    %v4260 = vmul.f32 %v3928, %v4214
    %v4261 = vmul.f32 %v3929, %v4214
    %v4262 = vmul.f32 %v3930, %v4214
    %v4263 = vmul.f32 %v3931, %v4214
    %v4264 = vmul.f32 %v3932, %v4214
    %v4265 = vmul.f32 %v3933, %v4214
    %v4266 = vmul.f32 %v3934, %v4214
    %v4267 = vmul.f32 %v3935, %v4214
    %v4268 = vmul.f32 %v3936, %v4214
    %v4269 = vmul.f32 %v3937, %v4214
    %v4270 = vmul.f32 %v3938, %v4214
    %v4271 = vmul.f32 %v3939, %v4214
    %v4272 = vmul.f32 %v3940, %v4214
    %v4273 = vmul.f32 %v3941, %v4214
    %v4274 = vmul.f32 %v3942, %v4214
    %v4275 = vmul.f32 %v3943, %v4214
    %v4276 = vmul.f32 %v3944, %v4214
    %v4277 = vmul.f32 %v3945, %v4214
    %v4278 = vmul.f32 %v3946, %v4214
    %v4279 = vadd.f32 %v4147, %v4215
    %v4280 = vadd.f32 %v4148, %v4216
    %v4281 = vadd.f32 %v4149, %v4217
    %v4282 = vadd.f32 %v4150, %v4218
    %v4283 = vadd.f32 %v4151, %v4219
    %v4284 = vadd.f32 %v4152, %v4220
    %v4285 = vadd.f32 %v4153, %v4221
    %v4286 = vadd.f32 %v4154, %v4222
    %v4287 = vadd.f32 %v4155, %v4223
    %v4288 = vadd.f32 %v4156, %v4224
    %v4289 = vadd.f32 %v4157, %v4225
    %v4290 = vadd.f32 %v4158, %v4226
    %v4291 = vadd.f32 %v4159, %v4227
    %v4292 = vadd.f32 %v4160, %v4228
    %v4293 = vadd.f32 %v4161, %v4229
    %v4294 = vadd.f32 %v4162, %v4230
    %v4295 = vadd.f32 %v4163, %v4231
    %v4296 = vadd.f32 %v4164, %v4232
    %v4297 = vadd.f32 %v4165, %v4233
    %v4298 = vadd.f32 %v4166, %v4234
    %v4299 = vadd.f32 %v4167, %v4235
    %v4300 = vadd.f32 %v4168, %v4236
    %v4301 = vadd.f32 %v4169, %v4237
    %v4302 = vadd.f32 %v4170, %v4238
    %v4303 = vadd.f32 %v4171, %v4239
    %v4304 = vadd.f32 %v4172, %v4240
    %v4305 = vadd.f32 %v4173, %v4241
    %v4306 = vadd.f32 %v4174, %v4242
    %v4307 = vadd.f32 %v4175, %v4243
    %v4308 = vadd.f32 %v4176, %v4244
    %v4309 = vadd.f32 %v4177, %v4245
    %v4310 = vadd.f32 %v4178, %v4246
    %v4311 = vadd.f32 %v4179, %v4247
    %v4312 = vadd.f32 %v4180, %v4248
    %v4313 = vadd.f32 %v4181, %v4249
    %v4314 = vadd.f32 %v4182, %v4250
    %v4315 = vadd.f32 %v4183, %v4251
    %v4316 = vadd.f32 %v4184, %v4252
    %v4317 = vadd.f32 %v4185, %v4253
    %v4318 = vadd.f32 %v4186, %v4254
    %v4319 = vadd.f32 %v4187, %v4255
    %v4320 = vadd.f32 %v4188, %v4256
    %v4321 = vadd.f32 %v4189, %v4257
    %v4322 = vadd.f32 %v4190, %v4258
    %v4323 = vadd.f32 %v4191, %v4259
    %v4324 = vadd.f32 %v4192, %v4260
    %v4325 = vadd.f32 %v4193, %v4261
    %v4326 = vadd.f32 %v4194, %v4262
    %v4327 = vadd.f32 %v4195, %v4263
    %v4328 = vadd.f32 %v4196, %v4264
    %v4329 = vadd.f32 %v4197, %v4265
    %v4330 = vadd.f32 %v4198, %v4266
    %v4331 = vadd.f32 %v4199, %v4267
    %v4332 = vadd.f32 %v4200, %v4268
    %v4333 = vadd.f32 %v4201, %v4269
    %v4334 = vadd.f32 %v4202, %v4270
    %v4335 = vadd.f32 %v4203, %v4271
    %v4336 = vadd.f32 %v4204, %v4272
    %v4337 = vadd.f32 %v4205, %v4273
    %v4338 = vadd.f32 %v4206, %v4274
    %v4339 = vadd.f32 %v4207, %v4275
    %v4340 = vadd.f32 %v4208, %v4276
    %v4341 = vadd.f32 %v4209, %v4277
    %v4342 = vadd.f32 %v4210, %v4278
    %v4343 = vld [vmem:[#allocation3 + $0x2] sm:$0xff]
    %v4344 = vld [vmem:[#allocation3 + $0xa] sm:$0xff]
    %v4345 = vld [vmem:[#allocation3 + $0x1a] sm:$0xff]
    %v4346 = vld [vmem:[#allocation3 + $0x22] sm:$0xff]
    %v4347 = vld [vmem:[#allocation3 + $0x32] sm:$0xff]
    %v4348 = vld [vmem:[#allocation3 + $0x3a] sm:$0xff]
    %v4349 = vld [vmem:[#allocation3 + $0x4a] sm:$0xff]
    %v4350 = vld [vmem:[#allocation3 + $0x52] sm:$0xff]
    %v4351 = vld [vmem:[#allocation3 + $0x62] sm:$0xff]
    %v4352 = vld [vmem:[#allocation3 + $0x6a] sm:$0xff]
    %v4353 = vld [vmem:[#allocation3 + $0x7a] sm:$0xff]
    %v4354 = vld [vmem:[#allocation3 + $0x82] sm:$0xff]
    %v4355 = vld [vmem:[#allocation3 + $0x92] sm:$0xff]
    %v4356 = vld [vmem:[#allocation3 + $0x9a] sm:$0xff]
    %v4357 = vld [vmem:[#allocation3 + $0xaa] sm:$0xff]
    %v4358 = vld [vmem:[#allocation3 + $0xb2] sm:$0xff]
    %v4359 = vld [vmem:[#allocation3 + $0xc2] sm:$0xff]
    %v4360 = vld [vmem:[#allocation3 + $0xca] sm:$0xff]
    %v4361 = vld [vmem:[#allocation3 + $0xda] sm:$0xff]
    %v4362 = vld [vmem:[#allocation3 + $0xe2] sm:$0xff]
    %v4363 = vld [vmem:[#allocation3 + $0xf2] sm:$0xff]
    %v4364 = vld [vmem:[#allocation3 + $0xfa] sm:$0xff]
    %v4365 = vld [vmem:[#allocation3 + $0x10a] sm:$0xff]
    %v4366 = vld [vmem:[#allocation3 + $0x112] sm:$0xff]
    %v4367 = vld [vmem:[#allocation3 + $0x122] sm:$0xff]
    %v4368 = vld [vmem:[#allocation3 + $0x12a] sm:$0xff]
    %v4369 = vld [vmem:[#allocation3 + $0x13a] sm:$0xff]
    %v4370 = vld [vmem:[#allocation3 + $0x142] sm:$0xff]
    %v4371 = vld [vmem:[#allocation3 + $0x152] sm:$0xff]
    %v4372 = vld [vmem:[#allocation3 + $0x15a] sm:$0xff]
    %v4373 = vld [vmem:[#allocation3 + $0x16a] sm:$0xff]
    %v4374 = vld [vmem:[#allocation3 + $0x172] sm:$0xff]
    %v4375 = vld [vmem:[#allocation3 + $0x182] sm:$0xff]
    %v4376 = vld [vmem:[#allocation3 + $0x18a] sm:$0xff]
    %v4377 = vld [vmem:[#allocation3 + $0x19a] sm:$0xff]
    %v4378 = vld [vmem:[#allocation3 + $0x1a2] sm:$0xff]
    %v4379 = vld [vmem:[#allocation3 + $0x1b2] sm:$0xff]
    %v4380 = vld [vmem:[#allocation3 + $0x1ba] sm:$0xff]
    %v4381 = vld [vmem:[#allocation3 + $0x1ca] sm:$0xff]
    %v4382 = vld [vmem:[#allocation3 + $0x1d2] sm:$0xff]
    %v4383 = vld [vmem:[#allocation3 + $0x1e2] sm:$0xff]
    %v4384 = vld [vmem:[#allocation3 + $0x1ea] sm:$0xff]
    %v4385 = vld [vmem:[#allocation3 + $0x1fa] sm:$0xff]
    %v4386 = vld [vmem:[#allocation3 + $0x202] sm:$0xff]
    %v4387 = vld [vmem:[#allocation3 + $0x212] sm:$0xff]
    %v4388 = vld [vmem:[#allocation3 + $0x21a] sm:$0xff]
    %v4389 = vld [vmem:[#allocation3 + $0x22a] sm:$0xff]
    %v4390 = vld [vmem:[#allocation3 + $0x232] sm:$0xff]
    %v4391 = vld [vmem:[#allocation3 + $0x242] sm:$0xff]
    %v4392 = vld [vmem:[#allocation3 + $0x24a] sm:$0xff]
    %v4393 = vld [vmem:[#allocation3 + $0x25a] sm:$0xff]
    %v4394 = vld [vmem:[#allocation3 + $0x262] sm:$0xff]
    %v4395 = vld [vmem:[#allocation3 + $0x272] sm:$0xff]
    %v4396 = vld [vmem:[#allocation3 + $0x27a] sm:$0xff]
    %v4397 = vld [vmem:[#allocation3 + $0x28a] sm:$0xff]
    %v4398 = vld [vmem:[#allocation3 + $0x292] sm:$0xff]
    %v4399 = vld [vmem:[#allocation3 + $0x2a2] sm:$0xff]
    %v4400 = vld [vmem:[#allocation3 + $0x2aa] sm:$0xff]
    %v4401 = vld [vmem:[#allocation3 + $0x2ba] sm:$0xff]
    %v4402 = vld [vmem:[#allocation3 + $0x2c2] sm:$0xff]
    %v4403 = vld [vmem:[#allocation3 + $0x2d2] sm:$0xff]
    %v4404 = vld [vmem:[#allocation3 + $0x2da] sm:$0xff]
    %v4405 = vld [vmem:[#allocation3 + $0x2ea] sm:$0xff]
    %v4406 = vld [vmem:[#allocation3 + $0x2f2] sm:$0xff]
    %v4407 = vld [vmem:[#allocation3 + $0x302] sm:$0xff]
    %v4408 = vld [vmem:[#allocation3 + $0x30a] sm:$0xff]
    %v4409 = vld [vmem:[#allocation3 + $0x31a] sm:$0xff]
    %v4410 = vld [vmem:[#allocation3 + $0x322] sm:$0xff]
    %v4411 = vld [vmem:[#allocation3 + $0x332] sm:$0xff]
    %v4412 = vld [vmem:[#allocation3 + $0x33a] sm:$0xff]
    %v4413 = vld [vmem:[#allocation3 + $0x34a] sm:$0xff]
    %v4414 = vld [vmem:[#allocation3 + $0x352] sm:$0xff]
    %v4415 = vlaneseq
    %v4416 = vshrl.u32 %v4415, 7
    %v4417 = vsub.s32 2, %v4416
    %v4418 = vrot.slane %v3317, %v4417
    %v4419 = vmul.f32 %v4343, %v4418
    %v4420 = vmul.f32 %v4344, %v4418
    %v4421 = vmul.f32 %v4345, %v4418
    %v4422 = vmul.f32 %v4346, %v4418
    %v4423 = vmul.f32 %v4347, %v4418
    %v4424 = vmul.f32 %v4348, %v4418
    %v4425 = vmul.f32 %v4349, %v4418
    %v4426 = vmul.f32 %v4350, %v4418
    %v4427 = vmul.f32 %v4351, %v4418
    %v4428 = vmul.f32 %v4352, %v4418
    %v4429 = vmul.f32 %v4353, %v4418
    %v4430 = vmul.f32 %v4354, %v4418
    %v4431 = vmul.f32 %v4355, %v4418
    %v4432 = vmul.f32 %v4356, %v4418
    %v4433 = vmul.f32 %v4357, %v4418
    %v4434 = vmul.f32 %v4358, %v4418
    %v4435 = vmul.f32 %v4359, %v4418
    %v4436 = vmul.f32 %v4360, %v4418
    %v4437 = vmul.f32 %v4361, %v4418
    %v4438 = vmul.f32 %v4362, %v4418
    %v4439 = vmul.f32 %v4363, %v4418
    %v4440 = vmul.f32 %v4364, %v4418
    %v4441 = vmul.f32 %v4365, %v4418
    %v4442 = vmul.f32 %v4366, %v4418
    %v4443 = vmul.f32 %v4367, %v4418
    %v4444 = vmul.f32 %v4368, %v4418
    %v4445 = vmul.f32 %v4369, %v4418
    %v4446 = vmul.f32 %v4370, %v4418
    %v4447 = vmul.f32 %v4371, %v4418
    %v4448 = vmul.f32 %v4372, %v4418
    %v4449 = vmul.f32 %v4373, %v4418
    %v4450 = vmul.f32 %v4374, %v4418
    %v4451 = vmul.f32 %v4379, %v4418
    %v4452 = vmul.f32 %v4380, %v4418
    %v4453 = vmul.f32 %v4381, %v4418
    %v4454 = vmul.f32 %v4382, %v4418
    %v4455 = vmul.f32 %v4383, %v4418
    %v4456 = vmul.f32 %v4384, %v4418
    %v4457 = vmul.f32 %v4385, %v4418
    %v4458 = vmul.f32 %v4386, %v4418
    %v4459 = vmul.f32 %v4387, %v4418
    %v4460 = vmul.f32 %v4388, %v4418
    %v4461 = vmul.f32 %v4389, %v4418
    %v4462 = vmul.f32 %v4390, %v4418
    %v4463 = vmul.f32 %v4391, %v4418
    %v4464 = vmul.f32 %v4392, %v4418
    %v4465 = vmul.f32 %v4393, %v4418
    %v4466 = vmul.f32 %v4394, %v4418
    %v4467 = vmul.f32 %v4395, %v4418
    %v4468 = vmul.f32 %v4396, %v4418
    %v4469 = vmul.f32 %v4397, %v4418
    %v4470 = vmul.f32 %v4398, %v4418
    %v4471 = vmul.f32 %v4399, %v4418
    %v4472 = vmul.f32 %v4400, %v4418
    %v4473 = vmul.f32 %v4401, %v4418
    %v4474 = vmul.f32 %v4402, %v4418
    %v4475 = vmul.f32 %v4403, %v4418
    %v4476 = vmul.f32 %v4404, %v4418
    %v4477 = vmul.f32 %v4405, %v4418
    %v4478 = vmul.f32 %v4406, %v4418
    %v4479 = vmul.f32 %v4407, %v4418
    %v4480 = vmul.f32 %v4408, %v4418
    %v4481 = vmul.f32 %v4409, %v4418
    %v4482 = vmul.f32 %v4410, %v4418
    %v4483 = vadd.f32 %v4279, %v4419
    %v4484 = vadd.f32 %v4280, %v4420
    %v4485 = vadd.f32 %v4281, %v4421
    %v4486 = vadd.f32 %v4282, %v4422
    %v4487 = vadd.f32 %v4283, %v4423
    %v4488 = vadd.f32 %v4284, %v4424
    %v4489 = vadd.f32 %v4285, %v4425
    %v4490 = vadd.f32 %v4286, %v4426
    %v4491 = vadd.f32 %v4287, %v4427
    %v4492 = vadd.f32 %v4288, %v4428
    %v4493 = vadd.f32 %v4289, %v4429
    %v4494 = vadd.f32 %v4290, %v4430
    %v4495 = vadd.f32 %v4291, %v4431
    %v4496 = vadd.f32 %v4292, %v4432
    %v4497 = vadd.f32 %v4293, %v4433
    %v4498 = vadd.f32 %v4294, %v4434
    %v4499 = vadd.f32 %v4295, %v4435
    %v4500 = vadd.f32 %v4296, %v4436
    %v4501 = vadd.f32 %v4297, %v4437
    %v4502 = vadd.f32 %v4298, %v4438
    %v4503 = vadd.f32 %v4299, %v4439
    %v4504 = vadd.f32 %v4300, %v4440
    %v4505 = vadd.f32 %v4301, %v4441
    %v4506 = vadd.f32 %v4302, %v4442
    %v4507 = vadd.f32 %v4303, %v4443
    %v4508 = vadd.f32 %v4304, %v4444
    %v4509 = vadd.f32 %v4305, %v4445
    %v4510 = vadd.f32 %v4306, %v4446
    %v4511 = vadd.f32 %v4307, %v4447
    %v4512 = vadd.f32 %v4308, %v4448
    %v4513 = vadd.f32 %v4309, %v4449
    %v4514 = vadd.f32 %v4310, %v4450
    %v4515 = vadd.f32 %v4311, %v4451
    %v4516 = vadd.f32 %v4312, %v4452
    %v4517 = vadd.f32 %v4313, %v4453
    %v4518 = vadd.f32 %v4314, %v4454
    %v4519 = vadd.f32 %v4315, %v4455
    %v4520 = vadd.f32 %v4316, %v4456
    %v4521 = vadd.f32 %v4317, %v4457
    %v4522 = vadd.f32 %v4318, %v4458
    %v4523 = vadd.f32 %v4319, %v4459
    %v4524 = vadd.f32 %v4320, %v4460
    %v4525 = vadd.f32 %v4321, %v4461
    %v4526 = vadd.f32 %v4322, %v4462
    %v4527 = vadd.f32 %v4323, %v4463
    %v4528 = vadd.f32 %v4324, %v4464
    %v4529 = vadd.f32 %v4325, %v4465
    %v4530 = vadd.f32 %v4326, %v4466
    %v4531 = vadd.f32 %v4327, %v4467
    %v4532 = vadd.f32 %v4328, %v4468
    %v4533 = vadd.f32 %v4329, %v4469
    %v4534 = vadd.f32 %v4330, %v4470
    %v4535 = vadd.f32 %v4331, %v4471
    %v4536 = vadd.f32 %v4332, %v4472
    %v4537 = vadd.f32 %v4333, %v4473
    %v4538 = vadd.f32 %v4334, %v4474
    %v4539 = vadd.f32 %v4335, %v4475
    %v4540 = vadd.f32 %v4336, %v4476
    %v4541 = vadd.f32 %v4337, %v4477
    %v4542 = vadd.f32 %v4338, %v4478
    %v4543 = vadd.f32 %v4339, %v4479
    %v4544 = vadd.f32 %v4340, %v4480
    %v4545 = vadd.f32 %v4341, %v4481
    %v4546 = vadd.f32 %v4342, %v4482
    %v4547 = vlaneseq
    %v4548 = vshrl.u32 %v4547, 7
    %v4549 = vsub.s32 5, %v4548
    %v4550 = vrot.slane %v3317, %v4549
    %v4551 = vmul.f32 %v4345, %v4550
    %v4552 = vmul.f32 %v4346, %v4550
    %v4553 = vmul.f32 %v4347, %v4550
    %v4554 = vmul.f32 %v4348, %v4550
    %v4555 = vmul.f32 %v4349, %v4550
    %v4556 = vmul.f32 %v4350, %v4550
    %v4557 = vmul.f32 %v4351, %v4550
    %v4558 = vmul.f32 %v4352, %v4550
    %v4559 = vmul.f32 %v4353, %v4550
    %v4560 = vmul.f32 %v4354, %v4550
    %v4561 = vmul.f32 %v4355, %v4550
    %v4562 = vmul.f32 %v4356, %v4550
    %v4563 = vmul.f32 %v4357, %v4550
    %v4564 = vmul.f32 %v4358, %v4550
    %v4565 = vmul.f32 %v4359, %v4550
    %v4566 = vmul.f32 %v4360, %v4550
    %v4567 = vmul.f32 %v4361, %v4550
    %v4568 = vmul.f32 %v4362, %v4550
    %v4569 = vmul.f32 %v4363, %v4550
    %v4570 = vmul.f32 %v4364, %v4550
    %v4571 = vmul.f32 %v4365, %v4550
    %v4572 = vmul.f32 %v4366, %v4550
    %v4573 = vmul.f32 %v4367, %v4550
    %v4574 = vmul.f32 %v4368, %v4550
    %v4575 = vmul.f32 %v4369, %v4550
    %v4576 = vmul.f32 %v4370, %v4550
    %v4577 = vmul.f32 %v4371, %v4550
    %v4578 = vmul.f32 %v4372, %v4550
    %v4579 = vmul.f32 %v4373, %v4550
    %v4580 = vmul.f32 %v4374, %v4550
    %v4581 = vmul.f32 %v4375, %v4550
    %v4582 = vmul.f32 %v4376, %v4550
    %v4583 = vmul.f32 %v4381, %v4550
    %v4584 = vmul.f32 %v4382, %v4550
    %v4585 = vmul.f32 %v4383, %v4550
    %v4586 = vmul.f32 %v4384, %v4550
    %v4587 = vmul.f32 %v4385, %v4550
    %v4588 = vmul.f32 %v4386, %v4550
    %v4589 = vmul.f32 %v4387, %v4550
    %v4590 = vmul.f32 %v4388, %v4550
    %v4591 = vmul.f32 %v4389, %v4550
    %v4592 = vmul.f32 %v4390, %v4550
    %v4593 = vmul.f32 %v4391, %v4550
    %v4594 = vmul.f32 %v4392, %v4550
    %v4595 = vmul.f32 %v4393, %v4550
    %v4596 = vmul.f32 %v4394, %v4550
    %v4597 = vmul.f32 %v4395, %v4550
    %v4598 = vmul.f32 %v4396, %v4550
    %v4599 = vmul.f32 %v4397, %v4550
    %v4600 = vmul.f32 %v4398, %v4550
    %v4601 = vmul.f32 %v4399, %v4550
    %v4602 = vmul.f32 %v4400, %v4550
    %v4603 = vmul.f32 %v4401, %v4550
    %v4604 = vmul.f32 %v4402, %v4550
    %v4605 = vmul.f32 %v4403, %v4550
    %v4606 = vmul.f32 %v4404, %v4550
    %v4607 = vmul.f32 %v4405, %v4550
    %v4608 = vmul.f32 %v4406, %v4550
    %v4609 = vmul.f32 %v4407, %v4550
    %v4610 = vmul.f32 %v4408, %v4550
    %v4611 = vmul.f32 %v4409, %v4550
    %v4612 = vmul.f32 %v4410, %v4550
    %v4613 = vmul.f32 %v4411, %v4550
    %v4614 = vmul.f32 %v4412, %v4550
    %v4615 = vadd.f32 %v4483, %v4551
    %v4616 = vadd.f32 %v4484, %v4552
    %v4617 = vadd.f32 %v4485, %v4553
    %v4618 = vadd.f32 %v4486, %v4554
    %v4619 = vadd.f32 %v4487, %v4555
    %v4620 = vadd.f32 %v4488, %v4556
    %v4621 = vadd.f32 %v4489, %v4557
    %v4622 = vadd.f32 %v4490, %v4558
    %v4623 = vadd.f32 %v4491, %v4559
    %v4624 = vadd.f32 %v4492, %v4560
    %v4625 = vadd.f32 %v4493, %v4561
    %v4626 = vadd.f32 %v4494, %v4562
    %v4627 = vadd.f32 %v4495, %v4563
    %v4628 = vadd.f32 %v4496, %v4564
    %v4629 = vadd.f32 %v4497, %v4565
    %v4630 = vadd.f32 %v4498, %v4566
    %v4631 = vadd.f32 %v4499, %v4567
    %v4632 = vadd.f32 %v4500, %v4568
    %v4633 = vadd.f32 %v4501, %v4569
    %v4634 = vadd.f32 %v4502, %v4570
    %v4635 = vadd.f32 %v4503, %v4571
    %v4636 = vadd.f32 %v4504, %v4572
    %v4637 = vadd.f32 %v4505, %v4573
    %v4638 = vadd.f32 %v4506, %v4574
    %v4639 = vadd.f32 %v4507, %v4575
    %v4640 = vadd.f32 %v4508, %v4576
    %v4641 = vadd.f32 %v4509, %v4577
    %v4642 = vadd.f32 %v4510, %v4578
    %v4643 = vadd.f32 %v4511, %v4579
    %v4644 = vadd.f32 %v4512, %v4580
    %v4645 = vadd.f32 %v4513, %v4581
    %v4646 = vadd.f32 %v4514, %v4582
    %v4647 = vadd.f32 %v4515, %v4583
    %v4648 = vadd.f32 %v4516, %v4584
    %v4649 = vadd.f32 %v4517, %v4585
    %v4650 = vadd.f32 %v4518, %v4586
    %v4651 = vadd.f32 %v4519, %v4587
    %v4652 = vadd.f32 %v4520, %v4588
    %v4653 = vadd.f32 %v4521, %v4589
    %v4654 = vadd.f32 %v4522, %v4590
    %v4655 = vadd.f32 %v4523, %v4591
    %v4656 = vadd.f32 %v4524, %v4592
    %v4657 = vadd.f32 %v4525, %v4593
    %v4658 = vadd.f32 %v4526, %v4594
    %v4659 = vadd.f32 %v4527, %v4595
    %v4660 = vadd.f32 %v4528, %v4596
    %v4661 = vadd.f32 %v4529, %v4597
    %v4662 = vadd.f32 %v4530, %v4598
    %v4663 = vadd.f32 %v4531, %v4599
    %v4664 = vadd.f32 %v4532, %v4600
    %v4665 = vadd.f32 %v4533, %v4601
    %v4666 = vadd.f32 %v4534, %v4602
    %v4667 = vadd.f32 %v4535, %v4603
    %v4668 = vadd.f32 %v4536, %v4604
    %v4669 = vadd.f32 %v4537, %v4605
    %v4670 = vadd.f32 %v4538, %v4606
    %v4671 = vadd.f32 %v4539, %v4607
    %v4672 = vadd.f32 %v4540, %v4608
    %v4673 = vadd.f32 %v4541, %v4609
    %v4674 = vadd.f32 %v4542, %v4610
    %v4675 = vadd.f32 %v4543, %v4611
    %v4676 = vadd.f32 %v4544, %v4612
    %v4677 = vadd.f32 %v4545, %v4613
    %v4678 = vadd.f32 %v4546, %v4614
    %v4679 = vlaneseq
    %v4680 = vshrl.u32 %v4679, 7
    %v4681 = vsub.s32 0, %v4680
    %v4682 = vrot.slane %v3318, %v4681
    %v4683 = vmul.f32 %v4347, %v4682
    %v4684 = vmul.f32 %v4348, %v4682
    %v4685 = vmul.f32 %v4349, %v4682
    %v4686 = vmul.f32 %v4350, %v4682
    %v4687 = vmul.f32 %v4351, %v4682
    %v4688 = vmul.f32 %v4352, %v4682
    %v4689 = vmul.f32 %v4353, %v4682
    %v4690 = vmul.f32 %v4354, %v4682
    %v4691 = vmul.f32 %v4355, %v4682
    %v4692 = vmul.f32 %v4356, %v4682
    %v4693 = vmul.f32 %v4357, %v4682
    %v4694 = vmul.f32 %v4358, %v4682
    %v4695 = vmul.f32 %v4359, %v4682
    %v4696 = vmul.f32 %v4360, %v4682
    %v4697 = vmul.f32 %v4361, %v4682
    %v4698 = vmul.f32 %v4362, %v4682
    %v4699 = vmul.f32 %v4363, %v4682
    %v4700 = vmul.f32 %v4364, %v4682
    %v4701 = vmul.f32 %v4365, %v4682
    %v4702 = vmul.f32 %v4366, %v4682
    %v4703 = vmul.f32 %v4367, %v4682
    %v4704 = vmul.f32 %v4368, %v4682
    %v4705 = vmul.f32 %v4369, %v4682
    %v4706 = vmul.f32 %v4370, %v4682
    %v4707 = vmul.f32 %v4371, %v4682
    %v4708 = vmul.f32 %v4372, %v4682
    %v4709 = vmul.f32 %v4373, %v4682
    %v4710 = vmul.f32 %v4374, %v4682
    %v4711 = vmul.f32 %v4375, %v4682
    %v4712 = vmul.f32 %v4376, %v4682
    %v4713 = vmul.f32 %v4377, %v4682
    %v4714 = vmul.f32 %v4378, %v4682
    %v4715 = vmul.f32 %v4383, %v4682
    %v4716 = vmul.f32 %v4384, %v4682
    %v4717 = vmul.f32 %v4385, %v4682
    %v4718 = vmul.f32 %v4386, %v4682
    %v4719 = vmul.f32 %v4387, %v4682
    %v4720 = vmul.f32 %v4388, %v4682
    %v4721 = vmul.f32 %v4389, %v4682
    %v4722 = vmul.f32 %v4390, %v4682
    %v4723 = vmul.f32 %v4391, %v4682
    %v4724 = vmul.f32 %v4392, %v4682
    %v4725 = vmul.f32 %v4393, %v4682
    %v4726 = vmul.f32 %v4394, %v4682
    %v4727 = vmul.f32 %v4395, %v4682
    %v4728 = vmul.f32 %v4396, %v4682
    %v4729 = vmul.f32 %v4397, %v4682
    %v4730 = vmul.f32 %v4398, %v4682
    %v4731 = vmul.f32 %v4399, %v4682
    %v4732 = vmul.f32 %v4400, %v4682
    %v4733 = vmul.f32 %v4401, %v4682
    %v4734 = vmul.f32 %v4402, %v4682
    %v4735 = vmul.f32 %v4403, %v4682
    %v4736 = vmul.f32 %v4404, %v4682
    %v4737 = vmul.f32 %v4405, %v4682
    %v4738 = vmul.f32 %v4406, %v4682
    %v4739 = vmul.f32 %v4407, %v4682
    %v4740 = vmul.f32 %v4408, %v4682
    %v4741 = vmul.f32 %v4409, %v4682
    %v4742 = vmul.f32 %v4410, %v4682
    %v4743 = vmul.f32 %v4411, %v4682
    %v4744 = vmul.f32 %v4412, %v4682
    %v4745 = vmul.f32 %v4413, %v4682
    %v4746 = vmul.f32 %v4414, %v4682
    %v4747 = vadd.f32 %v4615, %v4683
    %v4748 = vadd.f32 %v4616, %v4684
    %v4749 = vadd.f32 %v4617, %v4685
    %v4750 = vadd.f32 %v4618, %v4686
    %v4751 = vadd.f32 %v4619, %v4687
    %v4752 = vadd.f32 %v4620, %v4688
    %v4753 = vadd.f32 %v4621, %v4689
    %v4754 = vadd.f32 %v4622, %v4690
    %v4755 = vadd.f32 %v4623, %v4691
    %v4756 = vadd.f32 %v4624, %v4692
    %v4757 = vadd.f32 %v4625, %v4693
    %v4758 = vadd.f32 %v4626, %v4694
    %v4759 = vadd.f32 %v4627, %v4695
    %v4760 = vadd.f32 %v4628, %v4696
    %v4761 = vadd.f32 %v4629, %v4697
    %v4762 = vadd.f32 %v4630, %v4698
    %v4763 = vadd.f32 %v4631, %v4699
    %v4764 = vadd.f32 %v4632, %v4700
    %v4765 = vadd.f32 %v4633, %v4701
    %v4766 = vadd.f32 %v4634, %v4702
    %v4767 = vadd.f32 %v4635, %v4703
    %v4768 = vadd.f32 %v4636, %v4704
    %v4769 = vadd.f32 %v4637, %v4705
    %v4770 = vadd.f32 %v4638, %v4706
    %v4771 = vadd.f32 %v4639, %v4707
    %v4772 = vadd.f32 %v4640, %v4708
    %v4773 = vadd.f32 %v4641, %v4709
    %v4774 = vadd.f32 %v4642, %v4710
    %v4775 = vadd.f32 %v4643, %v4711
    %v4776 = vadd.f32 %v4644, %v4712
    %v4777 = vadd.f32 %v4645, %v4713
    %v4778 = vadd.f32 %v4646, %v4714
    %v4779 = vadd.f32 %v4647, %v4715
    %v4780 = vadd.f32 %v4648, %v4716
    %v4781 = vadd.f32 %v4649, %v4717
    %v4782 = vadd.f32 %v4650, %v4718
    %v4783 = vadd.f32 %v4651, %v4719
    %v4784 = vadd.f32 %v4652, %v4720
    %v4785 = vadd.f32 %v4653, %v4721
    %v4786 = vadd.f32 %v4654, %v4722
    %v4787 = vadd.f32 %v4655, %v4723
    %v4788 = vadd.f32 %v4656, %v4724
    %v4789 = vadd.f32 %v4657, %v4725
    %v4790 = vadd.f32 %v4658, %v4726
    %v4791 = vadd.f32 %v4659, %v4727
    %v4792 = vadd.f32 %v4660, %v4728
    %v4793 = vadd.f32 %v4661, %v4729
    %v4794 = vadd.f32 %v4662, %v4730
    %v4795 = vadd.f32 %v4663, %v4731
    %v4796 = vadd.f32 %v4664, %v4732
    %v4797 = vadd.f32 %v4665, %v4733
    %v4798 = vadd.f32 %v4666, %v4734
    %v4799 = vadd.f32 %v4667, %v4735
    %v4800 = vadd.f32 %v4668, %v4736
    %v4801 = vadd.f32 %v4669, %v4737
    %v4802 = vadd.f32 %v4670, %v4738
    %v4803 = vadd.f32 %v4671, %v4739
    %v4804 = vadd.f32 %v4672, %v4740
    %v4805 = vadd.f32 %v4673, %v4741
    %v4806 = vadd.f32 %v4674, %v4742
    %v4807 = vadd.f32 %v4675, %v4743
    %v4808 = vadd.f32 %v4676, %v4744
    %v4809 = vadd.f32 %v4677, %v4745
    %v4810 = vadd.f32 %v4678, %v4746
    %v4811 = vsel %vm2770, %v4747, 0.0
    %v4812 = vsel %vm2770, %v4748, 0.0
    %v4813 = vadd.f32 %v4811, %v4812
    %v4814 = vsel %vm2770, %v4749, 0.0
    %v4815 = vadd.f32 %v4813, %v4814
    %v4816 = vsel %vm2770, %v4750, 0.0
    %v4817 = vadd.f32 %v4815, %v4816
    %v4818 = vsel %vm2770, %v4751, 0.0
    %v4819 = vadd.f32 %v4817, %v4818
    %v4820 = vsel %vm2770, %v4752, 0.0
    %v4821 = vadd.f32 %v4819, %v4820
    %v4822 = vsel %vm2770, %v4753, 0.0
    %v4823 = vadd.f32 %v4821, %v4822
    %v4824 = vsel %vm2770, %v4754, 0.0
    %v4825 = vadd.f32 %v4823, %v4824
    %v4826 = vsel %vm2770, %v4755, 0.0
    %v4827 = vadd.f32 %v4825, %v4826
    %v4828 = vsel %vm2770, %v4756, 0.0
    %v4829 = vadd.f32 %v4827, %v4828
    %v4830 = vsel %vm2770, %v4757, 0.0
    %v4831 = vadd.f32 %v4829, %v4830
    %v4832 = vsel %vm2770, %v4758, 0.0
    %v4833 = vadd.f32 %v4831, %v4832
    %v4834 = vsel %vm2770, %v4759, 0.0
    %v4835 = vadd.f32 %v4833, %v4834
    %v4836 = vsel %vm2770, %v4760, 0.0
    %v4837 = vadd.f32 %v4835, %v4836
    %v4838 = vsel %vm2770, %v4761, 0.0
    %v4839 = vadd.f32 %v4837, %v4838
    %v4840 = vsel %vm2770, %v4762, 0.0
    %v4841 = vadd.f32 %v4839, %v4840
    %v4842 = vsel %vm2770, %v4763, 0.0
    %v4843 = vadd.f32 %v4841, %v4842
    %v4844 = vsel %vm2770, %v4764, 0.0
    %v4845 = vadd.f32 %v4843, %v4844
    %v4846 = vsel %vm2770, %v4765, 0.0
    %v4847 = vadd.f32 %v4845, %v4846
    %v4848 = vsel %vm2770, %v4766, 0.0
    %v4849 = vadd.f32 %v4847, %v4848
    %v4850 = vsel %vm2770, %v4767, 0.0
    %v4851 = vadd.f32 %v4849, %v4850
    %v4852 = vsel %vm2770, %v4768, 0.0
    %v4853 = vadd.f32 %v4851, %v4852
    %v4854 = vsel %vm2770, %v4769, 0.0
    %v4855 = vadd.f32 %v4853, %v4854
    %v4856 = vsel %vm2770, %v4770, 0.0
    %v4857 = vadd.f32 %v4855, %v4856
    %v4858 = vsel %vm2770, %v4771, 0.0
    %v4859 = vadd.f32 %v4857, %v4858
    %v4860 = vsel %vm2770, %v4772, 0.0
    %v4861 = vadd.f32 %v4859, %v4860
    %v4862 = vsel %vm2770, %v4773, 0.0
    %v4863 = vadd.f32 %v4861, %v4862
    %v4864 = vsel %vm2770, %v4774, 0.0
    %v4865 = vadd.f32 %v4863, %v4864
    %v4866 = vsel %vm2770, %v4775, 0.0
    %v4867 = vadd.f32 %v4865, %v4866
    %v4868 = vsel %vm2770, %v4776, 0.0
    %v4869 = vadd.f32 %v4867, %v4868
    %v4870 = vsel %vm2770, %v4777, 0.0
    %v4871 = vadd.f32 %v4869, %v4870
    %v4872 = vsel %vm2770, %v4778, 0.0
    %v4873 = vadd.f32 %v4871, %v4872
    %v4874 = vsel %vm2770, %v4779, 0.0
    %v4875 = vadd.f32 %v4873, %v4874
    %v4876 = vsel %vm2770, %v4780, 0.0
    %v4877 = vadd.f32 %v4875, %v4876
    %v4878 = vsel %vm2770, %v4781, 0.0
    %v4879 = vadd.f32 %v4877, %v4878
    %v4880 = vsel %vm2770, %v4782, 0.0
    %v4881 = vadd.f32 %v4879, %v4880
    %v4882 = vsel %vm2770, %v4783, 0.0
    %v4883 = vadd.f32 %v4881, %v4882
    %v4884 = vsel %vm2770, %v4784, 0.0
    %v4885 = vadd.f32 %v4883, %v4884
    %v4886 = vsel %vm2770, %v4785, 0.0
    %v4887 = vadd.f32 %v4885, %v4886
    %v4888 = vsel %vm2770, %v4786, 0.0
    %v4889 = vadd.f32 %v4887, %v4888
    %v4890 = vsel %vm2770, %v4787, 0.0
    %v4891 = vadd.f32 %v4889, %v4890
    %v4892 = vsel %vm2770, %v4788, 0.0
    %v4893 = vadd.f32 %v4891, %v4892
    %v4894 = vsel %vm2770, %v4789, 0.0
    %v4895 = vadd.f32 %v4893, %v4894
    %v4896 = vsel %vm2770, %v4790, 0.0
    %v4897 = vadd.f32 %v4895, %v4896
    %v4898 = vsel %vm2770, %v4791, 0.0
    %v4899 = vadd.f32 %v4897, %v4898
    %v4900 = vsel %vm2770, %v4792, 0.0
    %v4901 = vadd.f32 %v4899, %v4900
    %v4902 = vsel %vm2770, %v4793, 0.0
    %v4903 = vadd.f32 %v4901, %v4902
    %v4904 = vsel %vm2770, %v4794, 0.0
    %v4905 = vadd.f32 %v4903, %v4904
    %v4906 = vsel %vm2770, %v4795, 0.0
    %v4907 = vadd.f32 %v4905, %v4906
    %v4908 = vsel %vm2770, %v4796, 0.0
    %v4909 = vadd.f32 %v4907, %v4908
    %v4910 = vsel %vm2770, %v4797, 0.0
    %v4911 = vadd.f32 %v4909, %v4910
    %v4912 = vsel %vm2770, %v4798, 0.0
    %v4913 = vadd.f32 %v4911, %v4912
    %v4914 = vsel %vm2770, %v4799, 0.0
    %v4915 = vadd.f32 %v4913, %v4914
    %v4916 = vsel %vm2770, %v4800, 0.0
    %v4917 = vadd.f32 %v4915, %v4916
    %v4918 = vsel %vm2770, %v4801, 0.0
    %v4919 = vadd.f32 %v4917, %v4918
    %v4920 = vsel %vm2770, %v4802, 0.0
    %v4921 = vadd.f32 %v4919, %v4920
    %v4922 = vsel %vm2770, %v4803, 0.0
    %v4923 = vadd.f32 %v4921, %v4922
    %v4924 = vsel %vm2770, %v4804, 0.0
    %v4925 = vadd.f32 %v4923, %v4924
    %v4926 = vsel %vm2770, %v4805, 0.0
    %v4927 = vadd.f32 %v4925, %v4926
    %v4928 = vsel %vm2770, %v4806, 0.0
    %v4929 = vadd.f32 %v4927, %v4928
    %v4930 = vsel %vm2770, %v4807, 0.0
    %v4931 = vadd.f32 %v4929, %v4930
    %v4932 = vsel %vm2770, %v4808, 0.0
    %v4933 = vadd.f32 %v4931, %v4932
    %v4934 = vsel %vm2770, %v4809, 0.0
    %v4935 = vadd.f32 %v4933, %v4934
    %v4936 = vsel %vm2770, %v4810, 0.0
    %v4937 = vadd.f32 %v4935, %v4936
    %v4938 = vrot.slane %v4937, 4
    %v4939 = vadd.f32 %v4937, %v4938
    %v4940 = vrot.slane %v4939, 2
    %v4941 = vadd.f32 %v4939, %v4940
    %v4942 = vrot.slane %v4941, 1
    %v4943 = vadd.f32 %v4941, %v4942
    %v4944 = vmul.f32 %v4747, %v4747
    %v4945 = vmul.f32 %v4748, %v4748
    %v4946 = vmul.f32 %v4749, %v4749
    %v4947 = vmul.f32 %v4750, %v4750
    %v4948 = vmul.f32 %v4751, %v4751
    %v4949 = vmul.f32 %v4752, %v4752
    %v4950 = vmul.f32 %v4753, %v4753
    %v4951 = vmul.f32 %v4754, %v4754
    %v4952 = vmul.f32 %v4755, %v4755
    %v4953 = vmul.f32 %v4756, %v4756
    %v4954 = vmul.f32 %v4757, %v4757
    %v4955 = vmul.f32 %v4758, %v4758
    %v4956 = vmul.f32 %v4759, %v4759
    %v4957 = vmul.f32 %v4760, %v4760
    %v4958 = vmul.f32 %v4761, %v4761
    %v4959 = vmul.f32 %v4762, %v4762
    %v4960 = vmul.f32 %v4763, %v4763
    %v4961 = vmul.f32 %v4764, %v4764
    %v4962 = vmul.f32 %v4765, %v4765
    %v4963 = vmul.f32 %v4766, %v4766
    %v4964 = vmul.f32 %v4767, %v4767
    %v4965 = vmul.f32 %v4768, %v4768
    %v4966 = vmul.f32 %v4769, %v4769
    %v4967 = vmul.f32 %v4770, %v4770
    %v4968 = vmul.f32 %v4771, %v4771
    %v4969 = vmul.f32 %v4772, %v4772
    %v4970 = vmul.f32 %v4773, %v4773
    %v4971 = vmul.f32 %v4774, %v4774
    %v4972 = vmul.f32 %v4775, %v4775
    %v4973 = vmul.f32 %v4776, %v4776
    %v4974 = vmul.f32 %v4777, %v4777
    %v4975 = vmul.f32 %v4778, %v4778
    %v4976 = vmul.f32 %v4779, %v4779
    %v4977 = vmul.f32 %v4780, %v4780
    %v4978 = vmul.f32 %v4781, %v4781
    %v4979 = vmul.f32 %v4782, %v4782
    %v4980 = vmul.f32 %v4783, %v4783
    %v4981 = vmul.f32 %v4784, %v4784
    %v4982 = vmul.f32 %v4785, %v4785
    %v4983 = vmul.f32 %v4786, %v4786
    %v4984 = vmul.f32 %v4787, %v4787
    %v4985 = vmul.f32 %v4788, %v4788
    %v4986 = vmul.f32 %v4789, %v4789
    %v4987 = vmul.f32 %v4790, %v4790
    %v4988 = vmul.f32 %v4791, %v4791
    %v4989 = vmul.f32 %v4792, %v4792
    %v4990 = vmul.f32 %v4793, %v4793
    %v4991 = vmul.f32 %v4794, %v4794
    %v4992 = vmul.f32 %v4795, %v4795
    %v4993 = vmul.f32 %v4796, %v4796
    %v4994 = vmul.f32 %v4797, %v4797
    %v4995 = vmul.f32 %v4798, %v4798
    %v4996 = vmul.f32 %v4799, %v4799
    %v4997 = vmul.f32 %v4800, %v4800
    %v4998 = vmul.f32 %v4801, %v4801
    %v4999 = vmul.f32 %v4802, %v4802
    %v5000 = vmul.f32 %v4803, %v4803
    %v5001 = vmul.f32 %v4804, %v4804
    %v5002 = vmul.f32 %v4805, %v4805
    %v5003 = vmul.f32 %v4806, %v4806
    %v5004 = vmul.f32 %v4807, %v4807
    %v5005 = vmul.f32 %v4808, %v4808
    %v5006 = vmul.f32 %v4809, %v4809
    %v5007 = vmul.f32 %v4810, %v4810
    %v5008 = vsel %vm2770, %v4944, 0.0
    %v5009 = vsel %vm2770, %v4945, 0.0
    %v5010 = vadd.f32 %v5008, %v5009
    %v5011 = vsel %vm2770, %v4946, 0.0
    %v5012 = vadd.f32 %v5010, %v5011
    %v5013 = vsel %vm2770, %v4947, 0.0
    %v5014 = vadd.f32 %v5012, %v5013
    %v5015 = vsel %vm2770, %v4948, 0.0
    %v5016 = vadd.f32 %v5014, %v5015
    %v5017 = vsel %vm2770, %v4949, 0.0
    %v5018 = vadd.f32 %v5016, %v5017
    %v5019 = vsel %vm2770, %v4950, 0.0
    %v5020 = vadd.f32 %v5018, %v5019
    %v5021 = vsel %vm2770, %v4951, 0.0
    %v5022 = vadd.f32 %v5020, %v5021
    %v5023 = vsel %vm2770, %v4952, 0.0
    %v5024 = vadd.f32 %v5022, %v5023
    %v5025 = vsel %vm2770, %v4953, 0.0
    %v5026 = vadd.f32 %v5024, %v5025
    %v5027 = vsel %vm2770, %v4954, 0.0
    %v5028 = vadd.f32 %v5026, %v5027
    %v5029 = vsel %vm2770, %v4955, 0.0
    %v5030 = vadd.f32 %v5028, %v5029
    %v5031 = vsel %vm2770, %v4956, 0.0
    %v5032 = vadd.f32 %v5030, %v5031
    %v5033 = vsel %vm2770, %v4957, 0.0
    %v5034 = vadd.f32 %v5032, %v5033
    %v5035 = vsel %vm2770, %v4958, 0.0
    %v5036 = vadd.f32 %v5034, %v5035
    %v5037 = vsel %vm2770, %v4959, 0.0
    %v5038 = vadd.f32 %v5036, %v5037
    %v5039 = vsel %vm2770, %v4960, 0.0
    %v5040 = vadd.f32 %v5038, %v5039
    %v5041 = vsel %vm2770, %v4961, 0.0
    %v5042 = vadd.f32 %v5040, %v5041
    %v5043 = vsel %vm2770, %v4962, 0.0
    %v5044 = vadd.f32 %v5042, %v5043
    %v5045 = vsel %vm2770, %v4963, 0.0
    %v5046 = vadd.f32 %v5044, %v5045
    %v5047 = vsel %vm2770, %v4964, 0.0
    %v5048 = vadd.f32 %v5046, %v5047
    %v5049 = vsel %vm2770, %v4965, 0.0
    %v5050 = vadd.f32 %v5048, %v5049
    %v5051 = vsel %vm2770, %v4966, 0.0
    %v5052 = vadd.f32 %v5050, %v5051
    %v5053 = vsel %vm2770, %v4967, 0.0
    %v5054 = vadd.f32 %v5052, %v5053
    %v5055 = vsel %vm2770, %v4968, 0.0
    %v5056 = vadd.f32 %v5054, %v5055
    %v5057 = vsel %vm2770, %v4969, 0.0
    %v5058 = vadd.f32 %v5056, %v5057
    %v5059 = vsel %vm2770, %v4970, 0.0
    %v5060 = vadd.f32 %v5058, %v5059
    %v5061 = vsel %vm2770, %v4971, 0.0
    %v5062 = vadd.f32 %v5060, %v5061
    %v5063 = vsel %vm2770, %v4972, 0.0
    %v5064 = vadd.f32 %v5062, %v5063
    %v5065 = vsel %vm2770, %v4973, 0.0
    %v5066 = vadd.f32 %v5064, %v5065
    %v5067 = vsel %vm2770, %v4974, 0.0
    %v5068 = vadd.f32 %v5066, %v5067
    %v5069 = vsel %vm2770, %v4975, 0.0
    %v5070 = vadd.f32 %v5068, %v5069
    %v5071 = vsel %vm2770, %v4976, 0.0
    %v5072 = vadd.f32 %v5070, %v5071
    %v5073 = vsel %vm2770, %v4977, 0.0
    %v5074 = vadd.f32 %v5072, %v5073
    %v5075 = vsel %vm2770, %v4978, 0.0
    %v5076 = vadd.f32 %v5074, %v5075
    %v5077 = vsel %vm2770, %v4979, 0.0
    %v5078 = vadd.f32 %v5076, %v5077
    %v5079 = vsel %vm2770, %v4980, 0.0
    %v5080 = vadd.f32 %v5078, %v5079
    %v5081 = vsel %vm2770, %v4981, 0.0
    %v5082 = vadd.f32 %v5080, %v5081
    %v5083 = vsel %vm2770, %v4982, 0.0
    %v5084 = vadd.f32 %v5082, %v5083
    %v5085 = vsel %vm2770, %v4983, 0.0
    %v5086 = vadd.f32 %v5084, %v5085
    %v5087 = vsel %vm2770, %v4984, 0.0
    %v5088 = vadd.f32 %v5086, %v5087
    %v5089 = vsel %vm2770, %v4985, 0.0
    %v5090 = vadd.f32 %v5088, %v5089
    %v5091 = vsel %vm2770, %v4986, 0.0
    %v5092 = vadd.f32 %v5090, %v5091
    %v5093 = vsel %vm2770, %v4987, 0.0
    %v5094 = vadd.f32 %v5092, %v5093
    %v5095 = vsel %vm2770, %v4988, 0.0
    %v5096 = vadd.f32 %v5094, %v5095
    %v5097 = vsel %vm2770, %v4989, 0.0
    %v5098 = vadd.f32 %v5096, %v5097
    %v5099 = vsel %vm2770, %v4990, 0.0
    %v5100 = vadd.f32 %v5098, %v5099
    %v5101 = vsel %vm2770, %v4991, 0.0
    %v5102 = vadd.f32 %v5100, %v5101
    %v5103 = vsel %vm2770, %v4992, 0.0
    %v5104 = vadd.f32 %v5102, %v5103
    %v5105 = vsel %vm2770, %v4993, 0.0
    %v5106 = vadd.f32 %v5104, %v5105
    %v5107 = vsel %vm2770, %v4994, 0.0
    %v5108 = vadd.f32 %v5106, %v5107
    %v5109 = vsel %vm2770, %v4995, 0.0
    %v5110 = vadd.f32 %v5108, %v5109
    %v5111 = vsel %vm2770, %v4996, 0.0
    %v5112 = vadd.f32 %v5110, %v5111
    %v5113 = vsel %vm2770, %v4997, 0.0
    %v5114 = vadd.f32 %v5112, %v5113
    %v5115 = vsel %vm2770, %v4998, 0.0
    %v5116 = vadd.f32 %v5114, %v5115
    %v5117 = vsel %vm2770, %v4999, 0.0
    %v5118 = vadd.f32 %v5116, %v5117
    %v5119 = vsel %vm2770, %v5000, 0.0
    %v5120 = vadd.f32 %v5118, %v5119
    %v5121 = vsel %vm2770, %v5001, 0.0
    %v5122 = vadd.f32 %v5120, %v5121
    %v5123 = vsel %vm2770, %v5002, 0.0
    %v5124 = vadd.f32 %v5122, %v5123
    %v5125 = vsel %vm2770, %v5003, 0.0
    %v5126 = vadd.f32 %v5124, %v5125
    %v5127 = vsel %vm2770, %v5004, 0.0
    %v5128 = vadd.f32 %v5126, %v5127
    %v5129 = vsel %vm2770, %v5005, 0.0
    %v5130 = vadd.f32 %v5128, %v5129
    %v5131 = vsel %vm2770, %v5006, 0.0
    %v5132 = vadd.f32 %v5130, %v5131
    %v5133 = vsel %vm2770, %v5007, 0.0
    %v5134 = vadd.f32 %v5132, %v5133
    %v5135 = vrot.slane %v5134, 4
    %v5136 = vadd.f32 %v5134, %v5135
    %v5137 = vrot.slane %v5136, 2
    %v5138 = vadd.f32 %v5136, %v5137
    %v5139 = vrot.slane %v5138, 1
    %v5140 = vadd.f32 %v5138, %v5139
    %v5141 = vmul.f32 %v4943, 0.001953125
    %v5142 = vmul.f32 %v5140, 0.001953125
    %v5143 = vmul.f32 %v5141, %v5141
    %v5144 = vsub.f32 %v5142, %v5143
    %v5145 = vmax.f32 %v5144, 0.0
    %v5146 = vld [vmem:[%s9] sm:$0x1]
    %v5147 = vadd.f32 %v5145, 1e-05
    %v5148 = vrsqrt.pop %v5147
    %v5149 = vmul.f32 %v5146, %v5148
    %v5150 = vld [vmem:[%s10] sm:$0x1]
    %v5151 = vmul.f32 %v5141, %v5149
    %v5152 = vsub.f32 %v5150, %v5151
    %v5154 = vlaneseq
    %v5155 = vshrl.u32 %v5154, 7
    %v5156 = vsub.s32 0, %v5155
    %v5157 = vrot.slane %v5149, %v5156
    %v5159 = vmul.f32 %v4747, %v5157
    %v5160 = vmul.f32 %v4748, %v5157
    %v5161 = vmul.f32 %v4749, %v5157
    %v5162 = vmul.f32 %v4750, %v5157
    %v5163 = vmul.f32 %v4751, %v5157
    %v5164 = vmul.f32 %v4752, %v5157
    %v5165 = vmul.f32 %v4753, %v5157
    %v5166 = vmul.f32 %v4754, %v5157
    %v5167 = vmul.f32 %v4755, %v5157
    %v5168 = vmul.f32 %v4756, %v5157
    %v5169 = vmul.f32 %v4757, %v5157
    %v5170 = vmul.f32 %v4758, %v5157
    %v5171 = vmul.f32 %v4759, %v5157
    %v5172 = vmul.f32 %v4760, %v5157
    %v5173 = vmul.f32 %v4761, %v5157
    %v5174 = vmul.f32 %v4762, %v5157
    %v5175 = vmul.f32 %v4763, %v5157
    %v5176 = vmul.f32 %v4764, %v5157
    %v5177 = vmul.f32 %v4765, %v5157
    %v5178 = vmul.f32 %v4766, %v5157
    %v5179 = vmul.f32 %v4767, %v5157
    %v5180 = vmul.f32 %v4768, %v5157
    %v5181 = vmul.f32 %v4769, %v5157
    %v5182 = vmul.f32 %v4770, %v5157
    %v5183 = vmul.f32 %v4771, %v5157
    %v5184 = vmul.f32 %v4772, %v5157
    %v5185 = vmul.f32 %v4773, %v5157
    %v5186 = vmul.f32 %v4774, %v5157
    %v5187 = vmul.f32 %v4775, %v5157
    %v5188 = vmul.f32 %v4776, %v5157
    %v5189 = vmul.f32 %v4777, %v5157
    %v5190 = vmul.f32 %v4778, %v5157
    %v5191 = vmul.f32 %v4779, %v5157
    %v5192 = vmul.f32 %v4780, %v5157
    %v5193 = vmul.f32 %v4781, %v5157
    %v5194 = vmul.f32 %v4782, %v5157
    %v5195 = vmul.f32 %v4783, %v5157
    %v5196 = vmul.f32 %v4784, %v5157
    %v5197 = vmul.f32 %v4785, %v5157
    %v5198 = vmul.f32 %v4786, %v5157
    %v5199 = vmul.f32 %v4787, %v5157
    %v5200 = vmul.f32 %v4788, %v5157
    %v5201 = vmul.f32 %v4789, %v5157
    %v5202 = vmul.f32 %v4790, %v5157
    %v5203 = vmul.f32 %v4791, %v5157
    %v5204 = vmul.f32 %v4792, %v5157
    %v5205 = vmul.f32 %v4793, %v5157
    %v5206 = vmul.f32 %v4794, %v5157
    %v5207 = vmul.f32 %v4795, %v5157
    %v5208 = vmul.f32 %v4796, %v5157
    %v5209 = vmul.f32 %v4797, %v5157
    %v5210 = vmul.f32 %v4798, %v5157
    %v5211 = vmul.f32 %v4799, %v5157
    %v5212 = vmul.f32 %v4800, %v5157
    %v5213 = vmul.f32 %v4801, %v5157
    %v5214 = vmul.f32 %v4802, %v5157
    %v5215 = vmul.f32 %v4803, %v5157
    %v5216 = vmul.f32 %v4804, %v5157
    %v5217 = vmul.f32 %v4805, %v5157
    %v5218 = vmul.f32 %v4806, %v5157
    %v5219 = vmul.f32 %v4807, %v5157
    %v5220 = vmul.f32 %v4808, %v5157
    %v5221 = vmul.f32 %v4809, %v5157
    %v5222 = vmul.f32 %v4810, %v5157
    %v5224 = vlaneseq
    %v5225 = vshrl.u32 %v5224, 7
    %v5226 = vsub.s32 0, %v5225
    %v5227 = vrot.slane %v5152, %v5226
    %v5229 = vadd.f32 %v5159, %v5227
    %v5230 = vadd.f32 %v5160, %v5227
    %v5231 = vadd.f32 %v5161, %v5227
    %v5232 = vadd.f32 %v5162, %v5227
    %v5233 = vadd.f32 %v5163, %v5227
    %v5234 = vadd.f32 %v5164, %v5227
    %v5235 = vadd.f32 %v5165, %v5227
    %v5236 = vadd.f32 %v5166, %v5227
    %v5237 = vadd.f32 %v5167, %v5227
    %v5238 = vadd.f32 %v5168, %v5227
    %v5239 = vadd.f32 %v5169, %v5227
    %v5240 = vadd.f32 %v5170, %v5227
    %v5241 = vadd.f32 %v5171, %v5227
    %v5242 = vadd.f32 %v5172, %v5227
    %v5243 = vadd.f32 %v5173, %v5227
    %v5244 = vadd.f32 %v5174, %v5227
    %v5245 = vadd.f32 %v5175, %v5227
    %v5246 = vadd.f32 %v5176, %v5227
    %v5247 = vadd.f32 %v5177, %v5227
    %v5248 = vadd.f32 %v5178, %v5227
    %v5249 = vadd.f32 %v5179, %v5227
    %v5250 = vadd.f32 %v5180, %v5227
    %v5251 = vadd.f32 %v5181, %v5227
    %v5252 = vadd.f32 %v5182, %v5227
    %v5253 = vadd.f32 %v5183, %v5227
    %v5254 = vadd.f32 %v5184, %v5227
    %v5255 = vadd.f32 %v5185, %v5227
    %v5256 = vadd.f32 %v5186, %v5227
    %v5257 = vadd.f32 %v5187, %v5227
    %v5258 = vadd.f32 %v5188, %v5227
    %v5259 = vadd.f32 %v5189, %v5227
    %v5260 = vadd.f32 %v5190, %v5227
    %v5261 = vadd.f32 %v5191, %v5227
    %v5262 = vadd.f32 %v5192, %v5227
    %v5263 = vadd.f32 %v5193, %v5227
    %v5264 = vadd.f32 %v5194, %v5227
    %v5265 = vadd.f32 %v5195, %v5227
    %v5266 = vadd.f32 %v5196, %v5227
    %v5267 = vadd.f32 %v5197, %v5227
    %v5268 = vadd.f32 %v5198, %v5227
    %v5269 = vadd.f32 %v5199, %v5227
    %v5270 = vadd.f32 %v5200, %v5227
    %v5271 = vadd.f32 %v5201, %v5227
    %v5272 = vadd.f32 %v5202, %v5227
    %v5273 = vadd.f32 %v5203, %v5227
    %v5274 = vadd.f32 %v5204, %v5227
    %v5275 = vadd.f32 %v5205, %v5227
    %v5276 = vadd.f32 %v5206, %v5227
    %v5277 = vadd.f32 %v5207, %v5227
    %v5278 = vadd.f32 %v5208, %v5227
    %v5279 = vadd.f32 %v5209, %v5227
    %v5280 = vadd.f32 %v5210, %v5227
    %v5281 = vadd.f32 %v5211, %v5227
    %v5282 = vadd.f32 %v5212, %v5227
    %v5283 = vadd.f32 %v5213, %v5227
    %v5284 = vadd.f32 %v5214, %v5227
    %v5285 = vadd.f32 %v5215, %v5227
    %v5286 = vadd.f32 %v5216, %v5227
    %v5287 = vadd.f32 %v5217, %v5227
    %v5288 = vadd.f32 %v5218, %v5227
    %v5289 = vadd.f32 %v5219, %v5227
    %v5290 = vadd.f32 %v5220, %v5227
    %v5291 = vadd.f32 %v5221, %v5227
    %v5292 = vadd.f32 %v5222, %v5227
    %v5293 = vmax.f32 %v5229, 0.0
    %v5294 = vmax.f32 %v5230, 0.0
    %v5295 = vmax.f32 %v5231, 0.0
    %v5296 = vmax.f32 %v5232, 0.0
    %v5297 = vmax.f32 %v5233, 0.0
    %v5298 = vmax.f32 %v5234, 0.0
    %v5299 = vmax.f32 %v5235, 0.0
    %v5300 = vmax.f32 %v5236, 0.0
    %v5301 = vmax.f32 %v5237, 0.0
    %v5302 = vmax.f32 %v5238, 0.0
    %v5303 = vmax.f32 %v5239, 0.0
    %v5304 = vmax.f32 %v5240, 0.0
    %v5305 = vmax.f32 %v5241, 0.0
    %v5306 = vmax.f32 %v5242, 0.0
    %v5307 = vmax.f32 %v5243, 0.0
    %v5308 = vmax.f32 %v5244, 0.0
    %v5309 = vmax.f32 %v5245, 0.0
    %v5310 = vmax.f32 %v5246, 0.0
    %v5311 = vmax.f32 %v5247, 0.0
    %v5312 = vmax.f32 %v5248, 0.0
    %v5313 = vmax.f32 %v5249, 0.0
    %v5314 = vmax.f32 %v5250, 0.0
    %v5315 = vmax.f32 %v5251, 0.0
    %v5316 = vmax.f32 %v5252, 0.0
    %v5317 = vmax.f32 %v5253, 0.0
    %v5318 = vmax.f32 %v5254, 0.0
    %v5319 = vmax.f32 %v5255, 0.0
    %v5320 = vmax.f32 %v5256, 0.0
    %v5321 = vmax.f32 %v5257, 0.0
    %v5322 = vmax.f32 %v5258, 0.0
    %v5323 = vmax.f32 %v5259, 0.0
    %v5324 = vmax.f32 %v5260, 0.0
    %v5325 = vmax.f32 %v5261, 0.0
    %v5326 = vmax.f32 %v5262, 0.0
    %v5327 = vmax.f32 %v5263, 0.0
    %v5328 = vmax.f32 %v5264, 0.0
    %v5329 = vmax.f32 %v5265, 0.0
    %v5330 = vmax.f32 %v5266, 0.0
    %v5331 = vmax.f32 %v5267, 0.0
    %v5332 = vmax.f32 %v5268, 0.0
    %v5333 = vmax.f32 %v5269, 0.0
    %v5334 = vmax.f32 %v5270, 0.0
    %v5335 = vmax.f32 %v5271, 0.0
    %v5336 = vmax.f32 %v5272, 0.0
    %v5337 = vmax.f32 %v5273, 0.0
    %v5338 = vmax.f32 %v5274, 0.0
    %v5339 = vmax.f32 %v5275, 0.0
    %v5340 = vmax.f32 %v5276, 0.0
    %v5341 = vmax.f32 %v5277, 0.0
    %v5342 = vmax.f32 %v5278, 0.0
    %v5343 = vmax.f32 %v5279, 0.0
    %v5344 = vmax.f32 %v5280, 0.0
    %v5345 = vmax.f32 %v5281, 0.0
    %v5346 = vmax.f32 %v5282, 0.0
    %v5347 = vmax.f32 %v5283, 0.0
    %v5348 = vmax.f32 %v5284, 0.0
    %v5349 = vmax.f32 %v5285, 0.0
    %v5350 = vmax.f32 %v5286, 0.0
    %v5351 = vmax.f32 %v5287, 0.0
    %v5352 = vmax.f32 %v5288, 0.0
    %v5353 = vmax.f32 %v5289, 0.0
    %v5354 = vmax.f32 %v5290, 0.0
    %v5355 = vmax.f32 %v5291, 0.0
    %v5356 = vmax.f32 %v5292, 0.0
    %v5357 = vld [vmem:[%s11] sm:$0xff]
    %v5358 = vld [vmem:[%s11 + $0x8] sm:$0xff]
    %v5359 = vld [vmem:[%s11 + $0x10] sm:$0xff]
    %v5360 = vld [vmem:[%s11 + $0x18] sm:$0xff]
    %v5362 = vsel %vm2770, %v5293, 0
    %v5365 = vsel %vm2770, %v5294, 0
    %v5368 = vsel %vm2770, %v5295, 0
    %v5371 = vsel %vm2770, %v5296, 0
    %v5374 = vsel %vm2770, %v5297, 0
    %v5377 = vsel %vm2770, %v5298, 0
    %v5380 = vsel %vm2770, %v5299, 0
    %v5383 = vsel %vm2770, %v5300, 0
    %v5386 = vsel %vm2770, %v5301, 0
    %v5389 = vsel %vm2770, %v5302, 0
    %v5392 = vsel %vm2770, %v5303, 0
    %v5395 = vsel %vm2770, %v5304, 0
    %v5398 = vsel %vm2770, %v5305, 0
    %v5401 = vsel %vm2770, %v5306, 0
    %v5404 = vsel %vm2770, %v5307, 0
    %v5407 = vsel %vm2770, %v5308, 0
    %v5410 = vsel %vm2770, %v5309, 0
    %v5413 = vsel %vm2770, %v5310, 0
    %v5416 = vsel %vm2770, %v5311, 0
    %v5419 = vsel %vm2770, %v5312, 0
    %v5422 = vsel %vm2770, %v5313, 0
    %v5425 = vsel %vm2770, %v5314, 0
    %v5428 = vsel %vm2770, %v5315, 0
    %v5431 = vsel %vm2770, %v5316, 0
    %v5434 = vsel %vm2770, %v5317, 0
    %v5437 = vsel %vm2770, %v5318, 0
    %v5440 = vsel %vm2770, %v5319, 0
    %v5443 = vsel %vm2770, %v5320, 0
    %v5446 = vsel %vm2770, %v5321, 0
    %v5449 = vsel %vm2770, %v5322, 0
    %v5452 = vsel %vm2770, %v5323, 0
    %v5455 = vsel %vm2770, %v5324, 0
    %v5458 = vsel %vm2770, %v5325, 0
    %v5461 = vsel %vm2770, %v5326, 0
    %v5464 = vsel %vm2770, %v5327, 0
    %v5467 = vsel %vm2770, %v5328, 0
    %v5470 = vsel %vm2770, %v5329, 0
    %v5473 = vsel %vm2770, %v5330, 0
    %v5476 = vsel %vm2770, %v5331, 0
    %v5479 = vsel %vm2770, %v5332, 0
    %v5482 = vsel %vm2770, %v5333, 0
    %v5485 = vsel %vm2770, %v5334, 0
    %v5488 = vsel %vm2770, %v5335, 0
    %v5491 = vsel %vm2770, %v5336, 0
    %v5494 = vsel %vm2770, %v5337, 0
    %v5497 = vsel %vm2770, %v5338, 0
    %v5500 = vsel %vm2770, %v5339, 0
    %v5503 = vsel %vm2770, %v5340, 0
    %v5506 = vsel %vm2770, %v5341, 0
    %v5509 = vsel %vm2770, %v5342, 0
    %v5512 = vsel %vm2770, %v5343, 0
    %v5515 = vsel %vm2770, %v5344, 0
    %v5518 = vsel %vm2770, %v5345, 0
    %v5521 = vsel %vm2770, %v5346, 0
    %v5524 = vsel %vm2770, %v5347, 0
    %v5527 = vsel %vm2770, %v5348, 0
    %v5530 = vsel %vm2770, %v5349, 0
    %v5533 = vsel %vm2770, %v5350, 0
    %v5536 = vsel %vm2770, %v5351, 0
    %v5539 = vsel %vm2770, %v5352, 0
    %v5542 = vsel %vm2770, %v5353, 0
    %v5545 = vsel %vm2770, %v5354, 0
    %v5548 = vsel %vm2770, %v5355, 0
    %v5551 = vsel %vm2770, %v5356, 0
    %5553 = vmatprep.subr.mxu0 0.0
    %5554 = vmatpush1.msra.mxu0 %v5357
    %5555 = vmatprep.subr.mxu0 0.0
    %5556 = vmatpush1.msra.mxu0 %v5358
    %5557 = vmatprep.subr.mxu0 0.0
    %5558 = vmatpush1.msra.mxu0 %v5359
    %5559 = vmatprep.subr.mxu0 0.0
    %5560 = vmatpush1.msra.mxu0 %v5360
    %5561 = vmatprep.subr.mxu0 0.0
    %5562 = vmatpush1.msra.mxu0 0.0
    %5563 = vmatprep.subr.mxu0 0.0
    %5564 = vmatpush1.msra.mxu0 0.0
    %5565 = vmatprep.subr.mxu0 0.0
    %5566 = vmatpush1.msra.mxu0 0.0
    %5567 = vmatprep.subr.mxu0 0.0
    %5568 = vmatpush1.msra.mxu0 0.0
    %5569 = vmatprep.subr.mxu0 0.0
    %5570 = vmatpush1.msra.mxu0 0.0
    %5571 = vmatprep.subr.mxu0 0.0
    %5572 = vmatpush1.msra.mxu0 0.0
    %5573 = vmatprep.subr.mxu0 0.0
    %5574 = vmatpush1.msra.mxu0 0.0
    %5575 = vmatprep.subr.mxu0 0.0
    %5576 = vmatpush1.msra.mxu0 0.0
    %5577 = vmatprep.subr.mxu0 0.0
    %5578 = vmatpush1.msra.mxu0 0.0
    %5579 = vmatprep.subr.mxu0 0.0
    %5580 = vmatpush1.msra.mxu0 0.0
    %5581 = vmatprep.subr.mxu0 0.0
    %5582 = vmatpush1.msra.mxu0 0.0
    %5583 = vmatprep.subr.mxu0 0.0
    %5584 = vmatpush1.msra.mxu0 0.0
    %5585 = vmatprep.subr.mxu0 0.0
    %5586 = vmatpush1.msra.mxu0 0.0
    %5587 = vmatprep.subr.mxu0 0.0
    %5588 = vmatpush1.msra.mxu0 0.0
    %5589 = vmatprep.subr.mxu0 0.0
    %5590 = vmatpush1.msra.mxu0 0.0
    %5591 = vmatprep.subr.mxu0 0.0
    %5592 = vmatpush1.msra.mxu0 0.0
    %5593 = vmatprep.subr.mxu0 0.0
    %5594 = vmatpush1.msra.mxu0 0.0
    %5595 = vmatprep.subr.mxu0 0.0
    %5596 = vmatpush1.msra.mxu0 0.0
    %5597 = vmatprep.subr.mxu0 0.0
    %5598 = vmatpush1.msra.mxu0 0.0
    %5599 = vmatprep.subr.mxu0 0.0
    %5600 = vmatpush1.msra.mxu0 0.0
    %5601 = vmatprep.subr.mxu0 0.0
    %5602 = vmatpush1.msra.mxu0 0.0
    %5603 = vmatprep.subr.mxu0 0.0
    %5604 = vmatpush1.msra.mxu0 0.0
    %5605 = vmatprep.subr.mxu0 0.0
    %5606 = vmatpush1.msra.mxu0 0.0
    %5607 = vmatprep.subr.mxu0 0.0
    %5608 = vmatpush1.msra.mxu0 0.0
    %5609 = vmatprep.subr.mxu0 0.0
    %5610 = vmatpush1.msra.mxu0 0.0
    %5611 = vmatprep.subr.mxu0 0.0
    %5612 = vmatpush1.msra.mxu0 0.0
    %5613 = vmatprep.subr.mxu0 0.0
    %5614 = vmatpush1.msra.mxu0 0.0
    %5615 = vmatprep.subr.mxu0 0.0
    %5616 = vmatpush1.msra.mxu0 0.0
    %5617 = vmatprep.mubr.f32.mxu0 0.0
    %5618 = vmatmul.mubr.f32.gmra.mrb[0].mxu0 %v5362
    %v5619 = vpop.f32.mrb[0].mxu0
    %v5620 = vadd.f32 0.0, %v5619
    %v5621 = vpop.f32.mrb[0].mxu0
    %5622 = vmatprep.mubr.f32.mxu0 0.0
    %5623 = vmatmul.mubr.f32.gmra.mrb[0].mxu0 %v5365
    %v5624 = vpop.f32.mrb[0].mxu0
    %v5625 = vadd.f32 0.0, %v5624
    %v5626 = vpop.f32.mrb[0].mxu0
    %5627 = vmatprep.mubr.f32.mxu0 0.0
    %5628 = vmatmul.mubr.f32.gmra.mrb[0].mxu0 %v5368
    %v5629 = vpop.f32.mrb[0].mxu0
    %v5630 = vadd.f32 0.0, %v5629
    %v5631 = vpop.f32.mrb[0].mxu0
    %5632 = vmatprep.mubr.f32.mxu0 0.0
    %5633 = vmatmul.mubr.f32.gmra.mrb[0].mxu0 %v5371
    %v5634 = vpop.f32.mrb[0].mxu0
    %v5635 = vadd.f32 0.0, %v5634
    %v5636 = vpop.f32.mrb[0].mxu0
    %5637 = vmatprep.mubr.f32.mxu0 0.0
    %5638 = vmatmul.mubr.f32.gmra.mrb[0].mxu0 %v5374
    %v5639 = vpop.f32.mrb[0].mxu0
    %v5640 = vadd.f32 0.0, %v5639
    %v5641 = vpop.f32.mrb[0].mxu0
    %5642 = vmatprep.mubr.f32.mxu0 0.0
    %5643 = vmatmul.mubr.f32.gmra.mrb[0].mxu0 %v5377
    %v5644 = vpop.f32.mrb[0].mxu0
    %v5645 = vadd.f32 0.0, %v5644
    %v5646 = vpop.f32.mrb[0].mxu0
    %5647 = vmatprep.mubr.f32.mxu0 0.0
    %5648 = vmatmul.mubr.f32.gmra.mrb[0].mxu0 %v5380
    %v5649 = vpop.f32.mrb[0].mxu0
    %v5650 = vadd.f32 0.0, %v5649
    %v5651 = vpop.f32.mrb[0].mxu0
    %5652 = vmatprep.mubr.f32.mxu0 0.0
    %5653 = vmatmul.mubr.f32.gmra.mrb[0].mxu0 %v5383
    %v5654 = vpop.f32.mrb[0].mxu0
    %v5655 = vadd.f32 0.0, %v5654
    %v5656 = vpop.f32.mrb[0].mxu0
    %5657 = vmatprep.mubr.f32.mxu0 0.0
    %5658 = vmatmul.mubr.f32.gmra.mrb[0].mxu0 %v5386
    %v5659 = vpop.f32.mrb[0].mxu0
    %v5660 = vadd.f32 0.0, %v5659
    %v5661 = vpop.f32.mrb[0].mxu0
    %5662 = vmatprep.mubr.f32.mxu0 0.0
    %5663 = vmatmul.mubr.f32.gmra.mrb[0].mxu0 %v5389
    %v5664 = vpop.f32.mrb[0].mxu0
    %v5665 = vadd.f32 0.0, %v5664
    %v5666 = vpop.f32.mrb[0].mxu0
    %5667 = vmatprep.mubr.f32.mxu0 0.0
    %5668 = vmatmul.mubr.f32.gmra.mrb[0].mxu0 %v5392
    %v5669 = vpop.f32.mrb[0].mxu0
    %v5670 = vadd.f32 0.0, %v5669
    %v5671 = vpop.f32.mrb[0].mxu0
    %5672 = vmatprep.mubr.f32.mxu0 0.0
    %5673 = vmatmul.mubr.f32.gmra.mrb[0].mxu0 %v5395
    %v5674 = vpop.f32.mrb[0].mxu0
    %v5675 = vadd.f32 0.0, %v5674
    %v5676 = vpop.f32.mrb[0].mxu0
    %5677 = vmatprep.mubr.f32.mxu0 0.0
    %5678 = vmatmul.mubr.f32.gmra.mrb[0].mxu0 %v5398
    %v5679 = vpop.f32.mrb[0].mxu0
    %v5680 = vadd.f32 0.0, %v5679
    %v5681 = vpop.f32.mrb[0].mxu0
    %5682 = vmatprep.mubr.f32.mxu0 0.0
    %5683 = vmatmul.mubr.f32.gmra.mrb[0].mxu0 %v5401
    %v5684 = vpop.f32.mrb[0].mxu0
    %v5685 = vadd.f32 0.0, %v5684
    %v5686 = vpop.f32.mrb[0].mxu0
    %5687 = vmatprep.mubr.f32.mxu0 0.0
    %5688 = vmatmul.mubr.f32.gmra.mrb[0].mxu0 %v5404
    %v5689 = vpop.f32.mrb[0].mxu0
    %v5690 = vadd.f32 0.0, %v5689
    %v5691 = vpop.f32.mrb[0].mxu0
    %5692 = vmatprep.mubr.f32.mxu0 0.0
    %5693 = vmatmul.mubr.f32.gmra.mrb[0].mxu0 %v5407
    %v5694 = vpop.f32.mrb[0].mxu0
    %v5695 = vadd.f32 0.0, %v5694
    %v5696 = vpop.f32.mrb[0].mxu0
    %5697 = vmatprep.mubr.f32.mxu0 0.0
    %5698 = vmatmul.mubr.f32.gmra.mrb[0].mxu0 %v5410
    %v5699 = vpop.f32.mrb[0].mxu0
    %v5700 = vadd.f32 0.0, %v5699
    %v5701 = vpop.f32.mrb[0].mxu0
    %5702 = vmatprep.mubr.f32.mxu0 0.0
    %5703 = vmatmul.mubr.f32.gmra.mrb[0].mxu0 %v5413
    %v5704 = vpop.f32.mrb[0].mxu0
    %v5705 = vadd.f32 0.0, %v5704
    %v5706 = vpop.f32.mrb[0].mxu0
    %5707 = vmatprep.mubr.f32.mxu0 0.0
    %5708 = vmatmul.mubr.f32.gmra.mrb[0].mxu0 %v5416
    %v5709 = vpop.f32.mrb[0].mxu0
    %v5710 = vadd.f32 0.0, %v5709
    %v5711 = vpop.f32.mrb[0].mxu0
    %5712 = vmatprep.mubr.f32.mxu0 0.0
    %5713 = vmatmul.mubr.f32.gmra.mrb[0].mxu0 %v5419
    %v5714 = vpop.f32.mrb[0].mxu0
    %v5715 = vadd.f32 0.0, %v5714
    %v5716 = vpop.f32.mrb[0].mxu0
    %5717 = vmatprep.mubr.f32.mxu0 0.0
    %5718 = vmatmul.mubr.f32.gmra.mrb[0].mxu0 %v5422
    %v5719 = vpop.f32.mrb[0].mxu0
    %v5720 = vadd.f32 0.0, %v5719
    %v5721 = vpop.f32.mrb[0].mxu0
    %5722 = vmatprep.mubr.f32.mxu0 0.0
    %5723 = vmatmul.mubr.f32.gmra.mrb[0].mxu0 %v5425
    %v5724 = vpop.f32.mrb[0].mxu0
    %v5725 = vadd.f32 0.0, %v5724
    %v5726 = vpop.f32.mrb[0].mxu0
    %5727 = vmatprep.mubr.f32.mxu0 0.0
    %5728 = vmatmul.mubr.f32.gmra.mrb[0].mxu0 %v5428
    %v5729 = vpop.f32.mrb[0].mxu0
    %v5730 = vadd.f32 0.0, %v5729
    %v5731 = vpop.f32.mrb[0].mxu0
    %5732 = vmatprep.mubr.f32.mxu0 0.0
    %5733 = vmatmul.mubr.f32.gmra.mrb[0].mxu0 %v5431
    %v5734 = vpop.f32.mrb[0].mxu0
    %v5735 = vadd.f32 0.0, %v5734
    %v5736 = vpop.f32.mrb[0].mxu0
    %5737 = vmatprep.mubr.f32.mxu0 0.0
    %5738 = vmatmul.mubr.f32.gmra.mrb[0].mxu0 %v5434
    %v5739 = vpop.f32.mrb[0].mxu0
    %v5740 = vadd.f32 0.0, %v5739
    %v5741 = vpop.f32.mrb[0].mxu0
    %5742 = vmatprep.mubr.f32.mxu0 0.0
    %5743 = vmatmul.mubr.f32.gmra.mrb[0].mxu0 %v5437
    %v5744 = vpop.f32.mrb[0].mxu0
    %v5745 = vadd.f32 0.0, %v5744
    %v5746 = vpop.f32.mrb[0].mxu0
    %5747 = vmatprep.mubr.f32.mxu0 0.0
    %5748 = vmatmul.mubr.f32.gmra.mrb[0].mxu0 %v5440
    %v5749 = vpop.f32.mrb[0].mxu0
    %v5750 = vadd.f32 0.0, %v5749
    %v5751 = vpop.f32.mrb[0].mxu0
    %5752 = vmatprep.mubr.f32.mxu0 0.0
    %5753 = vmatmul.mubr.f32.gmra.mrb[0].mxu0 %v5443
    %v5754 = vpop.f32.mrb[0].mxu0
    %v5755 = vadd.f32 0.0, %v5754
    %v5756 = vpop.f32.mrb[0].mxu0
    %5757 = vmatprep.mubr.f32.mxu0 0.0
    %5758 = vmatmul.mubr.f32.gmra.mrb[0].mxu0 %v5446
    %v5759 = vpop.f32.mrb[0].mxu0
    %v5760 = vadd.f32 0.0, %v5759
    %v5761 = vpop.f32.mrb[0].mxu0
    %5762 = vmatprep.mubr.f32.mxu0 0.0
    %5763 = vmatmul.mubr.f32.gmra.mrb[0].mxu0 %v5449
    %v5764 = vpop.f32.mrb[0].mxu0
    %v5765 = vadd.f32 0.0, %v5764
    %v5766 = vpop.f32.mrb[0].mxu0
    %5767 = vmatprep.mubr.f32.mxu0 0.0
    %5768 = vmatmul.mubr.f32.gmra.mrb[0].mxu0 %v5452
    %v5769 = vpop.f32.mrb[0].mxu0
    %v5770 = vadd.f32 0.0, %v5769
    %v5771 = vpop.f32.mrb[0].mxu0
    %5772 = vmatprep.mubr.f32.mxu0 0.0
    %5773 = vmatmul.mubr.f32.gmra.mrb[0].mxu0 %v5455
    %v5774 = vpop.f32.mrb[0].mxu0
    %v5775 = vadd.f32 0.0, %v5774
    %v5776 = vpop.f32.mrb[0].mxu0
    %5777 = vmatprep.mubr.f32.mxu0 0.0
    %5778 = vmatmul.mubr.f32.gmra.mrb[0].mxu0 %v5458
    %v5779 = vpop.f32.mrb[0].mxu0
    %v5780 = vadd.f32 0.0, %v5779
    %v5781 = vpop.f32.mrb[0].mxu0
    %5782 = vmatprep.mubr.f32.mxu0 0.0
    %5783 = vmatmul.mubr.f32.gmra.mrb[0].mxu0 %v5461
    %v5784 = vpop.f32.mrb[0].mxu0
    %v5785 = vadd.f32 0.0, %v5784
    %v5786 = vpop.f32.mrb[0].mxu0
    %5787 = vmatprep.mubr.f32.mxu0 0.0
    %5788 = vmatmul.mubr.f32.gmra.mrb[0].mxu0 %v5464
    %v5789 = vpop.f32.mrb[0].mxu0
    %v5790 = vadd.f32 0.0, %v5789
    %v5791 = vpop.f32.mrb[0].mxu0
    %5792 = vmatprep.mubr.f32.mxu0 0.0
    %5793 = vmatmul.mubr.f32.gmra.mrb[0].mxu0 %v5467
    %v5794 = vpop.f32.mrb[0].mxu0
    %v5795 = vadd.f32 0.0, %v5794
    %v5796 = vpop.f32.mrb[0].mxu0
    %5797 = vmatprep.mubr.f32.mxu0 0.0
    %5798 = vmatmul.mubr.f32.gmra.mrb[0].mxu0 %v5470
    %v5799 = vpop.f32.mrb[0].mxu0
    %v5800 = vadd.f32 0.0, %v5799
    %v5801 = vpop.f32.mrb[0].mxu0
    %5802 = vmatprep.mubr.f32.mxu0 0.0
    %5803 = vmatmul.mubr.f32.gmra.mrb[0].mxu0 %v5473
    %v5804 = vpop.f32.mrb[0].mxu0
    %v5805 = vadd.f32 0.0, %v5804
    %v5806 = vpop.f32.mrb[0].mxu0
    %5807 = vmatprep.mubr.f32.mxu0 0.0
    %5808 = vmatmul.mubr.f32.gmra.mrb[0].mxu0 %v5476
    %v5809 = vpop.f32.mrb[0].mxu0
    %v5810 = vadd.f32 0.0, %v5809
    %v5811 = vpop.f32.mrb[0].mxu0
    %5812 = vmatprep.mubr.f32.mxu0 0.0
    %5813 = vmatmul.mubr.f32.gmra.mrb[0].mxu0 %v5479
    %v5814 = vpop.f32.mrb[0].mxu0
    %v5815 = vadd.f32 0.0, %v5814
    %v5816 = vpop.f32.mrb[0].mxu0
    %5817 = vmatprep.mubr.f32.mxu0 0.0
    %5818 = vmatmul.mubr.f32.gmra.mrb[0].mxu0 %v5482
    %v5819 = vpop.f32.mrb[0].mxu0
    %v5820 = vadd.f32 0.0, %v5819
    %v5821 = vpop.f32.mrb[0].mxu0
    %5822 = vmatprep.mubr.f32.mxu0 0.0
    %5823 = vmatmul.mubr.f32.gmra.mrb[0].mxu0 %v5485
    %v5824 = vpop.f32.mrb[0].mxu0
    %v5825 = vadd.f32 0.0, %v5824
    %v5826 = vpop.f32.mrb[0].mxu0
    %5827 = vmatprep.mubr.f32.mxu0 0.0
    %5828 = vmatmul.mubr.f32.gmra.mrb[0].mxu0 %v5488
    %v5829 = vpop.f32.mrb[0].mxu0
    %v5830 = vadd.f32 0.0, %v5829
    %v5831 = vpop.f32.mrb[0].mxu0
    %5832 = vmatprep.mubr.f32.mxu0 0.0
    %5833 = vmatmul.mubr.f32.gmra.mrb[0].mxu0 %v5491
    %v5834 = vpop.f32.mrb[0].mxu0
    %v5835 = vadd.f32 0.0, %v5834
    %v5836 = vpop.f32.mrb[0].mxu0
    %5837 = vmatprep.mubr.f32.mxu0 0.0
    %5838 = vmatmul.mubr.f32.gmra.mrb[0].mxu0 %v5494
    %v5839 = vpop.f32.mrb[0].mxu0
    %v5840 = vadd.f32 0.0, %v5839
    %v5841 = vpop.f32.mrb[0].mxu0
    %5842 = vmatprep.mubr.f32.mxu0 0.0
    %5843 = vmatmul.mubr.f32.gmra.mrb[0].mxu0 %v5497
    %v5844 = vpop.f32.mrb[0].mxu0
    %v5845 = vadd.f32 0.0, %v5844
    %v5846 = vpop.f32.mrb[0].mxu0
    %5847 = vmatprep.mubr.f32.mxu0 0.0
    %5848 = vmatmul.mubr.f32.gmra.mrb[0].mxu0 %v5500
    %v5849 = vpop.f32.mrb[0].mxu0
    %v5850 = vadd.f32 0.0, %v5849
    %v5851 = vpop.f32.mrb[0].mxu0
    %5852 = vmatprep.mubr.f32.mxu0 0.0
    %5853 = vmatmul.mubr.f32.gmra.mrb[0].mxu0 %v5503
    %v5854 = vpop.f32.mrb[0].mxu0
    %v5855 = vadd.f32 0.0, %v5854
    %v5856 = vpop.f32.mrb[0].mxu0
    %5857 = vmatprep.mubr.f32.mxu0 0.0
    %5858 = vmatmul.mubr.f32.gmra.mrb[0].mxu0 %v5506
    %v5859 = vpop.f32.mrb[0].mxu0
    %v5860 = vadd.f32 0.0, %v5859
    %v5861 = vpop.f32.mrb[0].mxu0
    %5862 = vmatprep.mubr.f32.mxu0 0.0
    %5863 = vmatmul.mubr.f32.gmra.mrb[0].mxu0 %v5509
    %v5864 = vpop.f32.mrb[0].mxu0
    %v5865 = vadd.f32 0.0, %v5864
    %v5866 = vpop.f32.mrb[0].mxu0
    %5867 = vmatprep.mubr.f32.mxu0 0.0
    %5868 = vmatmul.mubr.f32.gmra.mrb[0].mxu0 %v5512
    %v5869 = vpop.f32.mrb[0].mxu0
    %v5870 = vadd.f32 0.0, %v5869
    %v5871 = vpop.f32.mrb[0].mxu0
    %5872 = vmatprep.mubr.f32.mxu0 0.0
    %5873 = vmatmul.mubr.f32.gmra.mrb[0].mxu0 %v5515
    %v5874 = vpop.f32.mrb[0].mxu0
    %v5875 = vadd.f32 0.0, %v5874
    %v5876 = vpop.f32.mrb[0].mxu0
    %5877 = vmatprep.mubr.f32.mxu0 0.0
    %5878 = vmatmul.mubr.f32.gmra.mrb[0].mxu0 %v5518
    %v5879 = vpop.f32.mrb[0].mxu0
    %v5880 = vadd.f32 0.0, %v5879
    %v5881 = vpop.f32.mrb[0].mxu0
    %5882 = vmatprep.mubr.f32.mxu0 0.0
    %5883 = vmatmul.mubr.f32.gmra.mrb[0].mxu0 %v5521
    %v5884 = vpop.f32.mrb[0].mxu0
    %v5885 = vadd.f32 0.0, %v5884
    %v5886 = vpop.f32.mrb[0].mxu0
    %5887 = vmatprep.mubr.f32.mxu0 0.0
    %5888 = vmatmul.mubr.f32.gmra.mrb[0].mxu0 %v5524
    %v5889 = vpop.f32.mrb[0].mxu0
    %v5890 = vadd.f32 0.0, %v5889
    %v5891 = vpop.f32.mrb[0].mxu0
    %5892 = vmatprep.mubr.f32.mxu0 0.0
    %5893 = vmatmul.mubr.f32.gmra.mrb[0].mxu0 %v5527
    %v5894 = vpop.f32.mrb[0].mxu0
    %v5895 = vadd.f32 0.0, %v5894
    %v5896 = vpop.f32.mrb[0].mxu0
    %5897 = vmatprep.mubr.f32.mxu0 0.0
    %5898 = vmatmul.mubr.f32.gmra.mrb[0].mxu0 %v5530
    %v5899 = vpop.f32.mrb[0].mxu0
    %v5900 = vadd.f32 0.0, %v5899
    %v5901 = vpop.f32.mrb[0].mxu0
    %5902 = vmatprep.mubr.f32.mxu0 0.0
    %5903 = vmatmul.mubr.f32.gmra.mrb[0].mxu0 %v5533
    %v5904 = vpop.f32.mrb[0].mxu0
    %v5905 = vadd.f32 0.0, %v5904
    %v5906 = vpop.f32.mrb[0].mxu0
    %5907 = vmatprep.mubr.f32.mxu0 0.0
    %5908 = vmatmul.mubr.f32.gmra.mrb[0].mxu0 %v5536
    %v5909 = vpop.f32.mrb[0].mxu0
    %v5910 = vadd.f32 0.0, %v5909
    %v5911 = vpop.f32.mrb[0].mxu0
    %5912 = vmatprep.mubr.f32.mxu0 0.0
    %5913 = vmatmul.mubr.f32.gmra.mrb[0].mxu0 %v5539
    %v5914 = vpop.f32.mrb[0].mxu0
    %v5915 = vadd.f32 0.0, %v5914
    %v5916 = vpop.f32.mrb[0].mxu0
    %5917 = vmatprep.mubr.f32.mxu0 0.0
    %5918 = vmatmul.mubr.f32.gmra.mrb[0].mxu0 %v5542
    %v5919 = vpop.f32.mrb[0].mxu0
    %v5920 = vadd.f32 0.0, %v5919
    %v5921 = vpop.f32.mrb[0].mxu0
    %5922 = vmatprep.mubr.f32.mxu0 0.0
    %5923 = vmatmul.mubr.f32.gmra.mrb[0].mxu0 %v5545
    %v5924 = vpop.f32.mrb[0].mxu0
    %v5925 = vadd.f32 0.0, %v5924
    %v5926 = vpop.f32.mrb[0].mxu0
    %5927 = vmatprep.mubr.f32.mxu0 0.0
    %5928 = vmatmul.mubr.f32.gmra.mrb[0].mxu0 %v5548
    %v5929 = vpop.f32.mrb[0].mxu0
    %v5930 = vadd.f32 0.0, %v5929
    %v5931 = vpop.f32.mrb[0].mxu0
    %5932 = vmatprep.mubr.f32.mxu0 0.0
    %5933 = vmatmul.mubr.f32.gmra.mrb[0].mxu0 %v5551
    %v5934 = vpop.f32.mrb[0].mxu0
    %v5935 = vadd.f32 0.0, %v5934
    %v5936 = vpop.f32.mrb[0].mxu0
    %5937 = vdwg.mxu0
    %v5938 = vadd.f32 %v5620, %v5625
    %v5939 = vadd.f32 %v5938, %v5630
    %v5940 = vadd.f32 %v5939, %v5635
    %v5941 = vadd.f32 %v5940, %v5640
    %v5942 = vadd.f32 %v5941, %v5645
    %v5943 = vadd.f32 %v5942, %v5650
    %v5944 = vadd.f32 %v5943, %v5655
    %v5945 = vadd.f32 %v5944, %v5660
    %v5946 = vadd.f32 %v5945, %v5665
    %v5947 = vadd.f32 %v5946, %v5670
    %v5948 = vadd.f32 %v5947, %v5675
    %v5949 = vadd.f32 %v5948, %v5680
    %v5950 = vadd.f32 %v5949, %v5685
    %v5951 = vadd.f32 %v5950, %v5690
    %v5952 = vadd.f32 %v5951, %v5695
    %v5953 = vadd.f32 %v5952, %v5700
    %v5954 = vadd.f32 %v5953, %v5705
    %v5955 = vadd.f32 %v5954, %v5710
    %v5956 = vadd.f32 %v5955, %v5715
    %v5957 = vadd.f32 %v5956, %v5720
    %v5958 = vadd.f32 %v5957, %v5725
    %v5959 = vadd.f32 %v5958, %v5730
    %v5960 = vadd.f32 %v5959, %v5735
    %v5961 = vadd.f32 %v5960, %v5740
    %v5962 = vadd.f32 %v5961, %v5745
    %v5963 = vadd.f32 %v5962, %v5750
    %v5964 = vadd.f32 %v5963, %v5755
    %v5965 = vadd.f32 %v5964, %v5760
    %v5966 = vadd.f32 %v5965, %v5765
    %v5967 = vadd.f32 %v5966, %v5770
    %v5968 = vadd.f32 %v5967, %v5775
    %v5969 = vadd.f32 %v5968, %v5780
    %v5970 = vadd.f32 %v5969, %v5785
    %v5971 = vadd.f32 %v5970, %v5790
    %v5972 = vadd.f32 %v5971, %v5795
    %v5973 = vadd.f32 %v5972, %v5800
    %v5974 = vadd.f32 %v5973, %v5805
    %v5975 = vadd.f32 %v5974, %v5810
    %v5976 = vadd.f32 %v5975, %v5815
    %v5977 = vadd.f32 %v5976, %v5820
    %v5978 = vadd.f32 %v5977, %v5825
    %v5979 = vadd.f32 %v5978, %v5830
    %v5980 = vadd.f32 %v5979, %v5835
    %v5981 = vadd.f32 %v5980, %v5840
    %v5982 = vadd.f32 %v5981, %v5845
    %v5983 = vadd.f32 %v5982, %v5850
    %v5984 = vadd.f32 %v5983, %v5855
    %v5985 = vadd.f32 %v5984, %v5860
    %v5986 = vadd.f32 %v5985, %v5865
    %v5987 = vadd.f32 %v5986, %v5870
    %v5988 = vadd.f32 %v5987, %v5875
    %v5989 = vadd.f32 %v5988, %v5880
    %v5990 = vadd.f32 %v5989, %v5885
    %v5991 = vadd.f32 %v5990, %v5890
    %v5992 = vadd.f32 %v5991, %v5895
    %v5993 = vadd.f32 %v5992, %v5900
    %v5994 = vadd.f32 %v5993, %v5905
    %v5995 = vadd.f32 %v5994, %v5910
    %v5996 = vadd.f32 %v5995, %v5915
    %v5997 = vadd.f32 %v5996, %v5920
    %v5998 = vadd.f32 %v5997, %v5925
    %v5999 = vadd.f32 %v5998, %v5930
    %v6000 = vadd.f32 %v5999, %v5935
    %v6001 = vrot.slane %v6000, 4
    %v6002 = vadd.f32 %v6000, %v6001
    %v6003 = vrot.slane %v6002, 2
    %v6004 = vadd.f32 %v6002, %v6003
    %v6005 = vrot.slane %v6004, 1
    %v6006 = vadd.f32 %v6004, %v6005
    %v6007 = vmul.f32 %v5620, %v5620
    %v6008 = vmul.f32 %v5625, %v5625
    %v6009 = vmul.f32 %v5630, %v5630
    %v6010 = vmul.f32 %v5635, %v5635
    %v6011 = vmul.f32 %v5640, %v5640
    %v6012 = vmul.f32 %v5645, %v5645
    %v6013 = vmul.f32 %v5650, %v5650
    %v6014 = vmul.f32 %v5655, %v5655
    %v6015 = vmul.f32 %v5660, %v5660
    %v6016 = vmul.f32 %v5665, %v5665
    %v6017 = vmul.f32 %v5670, %v5670
    %v6018 = vmul.f32 %v5675, %v5675
    %v6019 = vmul.f32 %v5680, %v5680
    %v6020 = vmul.f32 %v5685, %v5685
    %v6021 = vmul.f32 %v5690, %v5690
    %v6022 = vmul.f32 %v5695, %v5695
    %v6023 = vmul.f32 %v5700, %v5700
    %v6024 = vmul.f32 %v5705, %v5705
    %v6025 = vmul.f32 %v5710, %v5710
    %v6026 = vmul.f32 %v5715, %v5715
    %v6027 = vmul.f32 %v5720, %v5720
    %v6028 = vmul.f32 %v5725, %v5725
    %v6029 = vmul.f32 %v5730, %v5730
    %v6030 = vmul.f32 %v5735, %v5735
    %v6031 = vmul.f32 %v5740, %v5740
    %v6032 = vmul.f32 %v5745, %v5745
    %v6033 = vmul.f32 %v5750, %v5750
    %v6034 = vmul.f32 %v5755, %v5755
    %v6035 = vmul.f32 %v5760, %v5760
    %v6036 = vmul.f32 %v5765, %v5765
    %v6037 = vmul.f32 %v5770, %v5770
    %v6038 = vmul.f32 %v5775, %v5775
    %v6039 = vmul.f32 %v5780, %v5780
    %v6040 = vmul.f32 %v5785, %v5785
    %v6041 = vmul.f32 %v5790, %v5790
    %v6042 = vmul.f32 %v5795, %v5795
    %v6043 = vmul.f32 %v5800, %v5800
    %v6044 = vmul.f32 %v5805, %v5805
    %v6045 = vmul.f32 %v5810, %v5810
    %v6046 = vmul.f32 %v5815, %v5815
    %v6047 = vmul.f32 %v5820, %v5820
    %v6048 = vmul.f32 %v5825, %v5825
    %v6049 = vmul.f32 %v5830, %v5830
    %v6050 = vmul.f32 %v5835, %v5835
    %v6051 = vmul.f32 %v5840, %v5840
    %v6052 = vmul.f32 %v5845, %v5845
    %v6053 = vmul.f32 %v5850, %v5850
    %v6054 = vmul.f32 %v5855, %v5855
    %v6055 = vmul.f32 %v5860, %v5860
    %v6056 = vmul.f32 %v5865, %v5865
    %v6057 = vmul.f32 %v5870, %v5870
    %v6058 = vmul.f32 %v5875, %v5875
    %v6059 = vmul.f32 %v5880, %v5880
    %v6060 = vmul.f32 %v5885, %v5885
    %v6061 = vmul.f32 %v5890, %v5890
    %v6062 = vmul.f32 %v5895, %v5895
    %v6063 = vmul.f32 %v5900, %v5900
    %v6064 = vmul.f32 %v5905, %v5905
    %v6065 = vmul.f32 %v5910, %v5910
    %v6066 = vmul.f32 %v5915, %v5915
    %v6067 = vmul.f32 %v5920, %v5920
    %v6068 = vmul.f32 %v5925, %v5925
    %v6069 = vmul.f32 %v5930, %v5930
    %v6070 = vmul.f32 %v5935, %v5935
    %v6071 = vadd.f32 %v6007, %v6008
    %v6072 = vadd.f32 %v6071, %v6009
    %v6073 = vadd.f32 %v6072, %v6010
    %v6074 = vadd.f32 %v6073, %v6011
    %v6075 = vadd.f32 %v6074, %v6012
    %v6076 = vadd.f32 %v6075, %v6013
    %v6077 = vadd.f32 %v6076, %v6014
    %v6078 = vadd.f32 %v6077, %v6015
    %v6079 = vadd.f32 %v6078, %v6016
    %v6080 = vadd.f32 %v6079, %v6017
    %v6081 = vadd.f32 %v6080, %v6018
    %v6082 = vadd.f32 %v6081, %v6019
    %v6083 = vadd.f32 %v6082, %v6020
    %v6084 = vadd.f32 %v6083, %v6021
    %v6085 = vadd.f32 %v6084, %v6022
    %v6086 = vadd.f32 %v6085, %v6023
    %v6087 = vadd.f32 %v6086, %v6024
    %v6088 = vadd.f32 %v6087, %v6025
    %v6089 = vadd.f32 %v6088, %v6026
    %v6090 = vadd.f32 %v6089, %v6027
    %v6091 = vadd.f32 %v6090, %v6028
    %v6092 = vadd.f32 %v6091, %v6029
    %v6093 = vadd.f32 %v6092, %v6030
    %v6094 = vadd.f32 %v6093, %v6031
    %v6095 = vadd.f32 %v6094, %v6032
    %v6096 = vadd.f32 %v6095, %v6033
    %v6097 = vadd.f32 %v6096, %v6034
    %v6098 = vadd.f32 %v6097, %v6035
    %v6099 = vadd.f32 %v6098, %v6036
    %v6100 = vadd.f32 %v6099, %v6037
    %v6101 = vadd.f32 %v6100, %v6038
    %v6102 = vadd.f32 %v6101, %v6039
    %v6103 = vadd.f32 %v6102, %v6040
    %v6104 = vadd.f32 %v6103, %v6041
    %v6105 = vadd.f32 %v6104, %v6042
    %v6106 = vadd.f32 %v6105, %v6043
    %v6107 = vadd.f32 %v6106, %v6044
    %v6108 = vadd.f32 %v6107, %v6045
    %v6109 = vadd.f32 %v6108, %v6046
    %v6110 = vadd.f32 %v6109, %v6047
    %v6111 = vadd.f32 %v6110, %v6048
    %v6112 = vadd.f32 %v6111, %v6049
    %v6113 = vadd.f32 %v6112, %v6050
    %v6114 = vadd.f32 %v6113, %v6051
    %v6115 = vadd.f32 %v6114, %v6052
    %v6116 = vadd.f32 %v6115, %v6053
    %v6117 = vadd.f32 %v6116, %v6054
    %v6118 = vadd.f32 %v6117, %v6055
    %v6119 = vadd.f32 %v6118, %v6056
    %v6120 = vadd.f32 %v6119, %v6057
    %v6121 = vadd.f32 %v6120, %v6058
    %v6122 = vadd.f32 %v6121, %v6059
    %v6123 = vadd.f32 %v6122, %v6060
    %v6124 = vadd.f32 %v6123, %v6061
    %v6125 = vadd.f32 %v6124, %v6062
    %v6126 = vadd.f32 %v6125, %v6063
    %v6127 = vadd.f32 %v6126, %v6064
    %v6128 = vadd.f32 %v6127, %v6065
    %v6129 = vadd.f32 %v6128, %v6066
    %v6130 = vadd.f32 %v6129, %v6067
    %v6131 = vadd.f32 %v6130, %v6068
    %v6132 = vadd.f32 %v6131, %v6069
    %v6133 = vadd.f32 %v6132, %v6070
    %v6134 = vrot.slane %v6133, 4
    %v6135 = vadd.f32 %v6133, %v6134
    %v6136 = vrot.slane %v6135, 2
    %v6137 = vadd.f32 %v6135, %v6136
    %v6138 = vrot.slane %v6137, 1
    %v6139 = vadd.f32 %v6137, %v6138
    %v6140 = vmul.f32 %v6006, 0.001953125
    %v6141 = vmul.f32 %v6139, 0.001953125
    %v6142 = vmul.f32 %v6140, %v6140
    %v6143 = vsub.f32 %v6141, %v6142
    %v6144 = vmax.f32 %v6143, 0.0
    %v6145 = vld [vmem:[%s12] sm:$0x1]
    %v6146 = vadd.f32 %v6144, 1e-05
    %v6147 = vrsqrt.pop %v6146
    %v6148 = vmul.f32 %v6145, %v6147
    %v6149 = vld [vmem:[%s13] sm:$0x1]
    %v6150 = vmul.f32 %v6140, %v6148
    %v6151 = vsub.f32 %v6149, %v6150
    %v6153 = vlaneseq
    %v6154 = vshrl.u32 %v6153, 7
    %v6155 = vsub.s32 0, %v6154
    %v6156 = vrot.slane %v6148, %v6155
    %v6158 = vmul.f32 %v5620, %v6156
    %v6159 = vmul.f32 %v5625, %v6156
    %v6160 = vmul.f32 %v5630, %v6156
    %v6161 = vmul.f32 %v5635, %v6156
    %v6162 = vmul.f32 %v5640, %v6156
    %v6163 = vmul.f32 %v5645, %v6156
    %v6164 = vmul.f32 %v5650, %v6156
    %v6165 = vmul.f32 %v5655, %v6156
    %v6166 = vmul.f32 %v5660, %v6156
    %v6167 = vmul.f32 %v5665, %v6156
    %v6168 = vmul.f32 %v5670, %v6156
    %v6169 = vmul.f32 %v5675, %v6156
    %v6170 = vmul.f32 %v5680, %v6156
    %v6171 = vmul.f32 %v5685, %v6156
    %v6172 = vmul.f32 %v5690, %v6156
    %v6173 = vmul.f32 %v5695, %v6156
    %v6174 = vmul.f32 %v5700, %v6156
    %v6175 = vmul.f32 %v5705, %v6156
    %v6176 = vmul.f32 %v5710, %v6156
    %v6177 = vmul.f32 %v5715, %v6156
    %v6178 = vmul.f32 %v5720, %v6156
    %v6179 = vmul.f32 %v5725, %v6156
    %v6180 = vmul.f32 %v5730, %v6156
    %v6181 = vmul.f32 %v5735, %v6156
    %v6182 = vmul.f32 %v5740, %v6156
    %v6183 = vmul.f32 %v5745, %v6156
    %v6184 = vmul.f32 %v5750, %v6156
    %v6185 = vmul.f32 %v5755, %v6156
    %v6186 = vmul.f32 %v5760, %v6156
    %v6187 = vmul.f32 %v5765, %v6156
    %v6188 = vmul.f32 %v5770, %v6156
    %v6189 = vmul.f32 %v5775, %v6156
    %v6190 = vmul.f32 %v5780, %v6156
    %v6191 = vmul.f32 %v5785, %v6156
    %v6192 = vmul.f32 %v5790, %v6156
    %v6193 = vmul.f32 %v5795, %v6156
    %v6194 = vmul.f32 %v5800, %v6156
    %v6195 = vmul.f32 %v5805, %v6156
    %v6196 = vmul.f32 %v5810, %v6156
    %v6197 = vmul.f32 %v5815, %v6156
    %v6198 = vmul.f32 %v5820, %v6156
    %v6199 = vmul.f32 %v5825, %v6156
    %v6200 = vmul.f32 %v5830, %v6156
    %v6201 = vmul.f32 %v5835, %v6156
    %v6202 = vmul.f32 %v5840, %v6156
    %v6203 = vmul.f32 %v5845, %v6156
    %v6204 = vmul.f32 %v5850, %v6156
    %v6205 = vmul.f32 %v5855, %v6156
    %v6206 = vmul.f32 %v5860, %v6156
    %v6207 = vmul.f32 %v5865, %v6156
    %v6208 = vmul.f32 %v5870, %v6156
    %v6209 = vmul.f32 %v5875, %v6156
    %v6210 = vmul.f32 %v5880, %v6156
    %v6211 = vmul.f32 %v5885, %v6156
    %v6212 = vmul.f32 %v5890, %v6156
    %v6213 = vmul.f32 %v5895, %v6156
    %v6214 = vmul.f32 %v5900, %v6156
    %v6215 = vmul.f32 %v5905, %v6156
    %v6216 = vmul.f32 %v5910, %v6156
    %v6217 = vmul.f32 %v5915, %v6156
    %v6218 = vmul.f32 %v5920, %v6156
    %v6219 = vmul.f32 %v5925, %v6156
    %v6220 = vmul.f32 %v5930, %v6156
    %v6221 = vmul.f32 %v5935, %v6156
    %v6223 = vlaneseq
    %v6224 = vshrl.u32 %v6223, 7
    %v6225 = vsub.s32 0, %v6224
    %v6226 = vrot.slane %v6151, %v6225
    %v6228 = vadd.f32 %v6158, %v6226
    %v6229 = vadd.f32 %v6159, %v6226
    %v6230 = vadd.f32 %v6160, %v6226
    %v6231 = vadd.f32 %v6161, %v6226
    %v6232 = vadd.f32 %v6162, %v6226
    %v6233 = vadd.f32 %v6163, %v6226
    %v6234 = vadd.f32 %v6164, %v6226
    %v6235 = vadd.f32 %v6165, %v6226
    %v6236 = vadd.f32 %v6166, %v6226
    %v6237 = vadd.f32 %v6167, %v6226
    %v6238 = vadd.f32 %v6168, %v6226
    %v6239 = vadd.f32 %v6169, %v6226
    %v6240 = vadd.f32 %v6170, %v6226
    %v6241 = vadd.f32 %v6171, %v6226
    %v6242 = vadd.f32 %v6172, %v6226
    %v6243 = vadd.f32 %v6173, %v6226
    %v6244 = vadd.f32 %v6174, %v6226
    %v6245 = vadd.f32 %v6175, %v6226
    %v6246 = vadd.f32 %v6176, %v6226
    %v6247 = vadd.f32 %v6177, %v6226
    %v6248 = vadd.f32 %v6178, %v6226
    %v6249 = vadd.f32 %v6179, %v6226
    %v6250 = vadd.f32 %v6180, %v6226
    %v6251 = vadd.f32 %v6181, %v6226
    %v6252 = vadd.f32 %v6182, %v6226
    %v6253 = vadd.f32 %v6183, %v6226
    %v6254 = vadd.f32 %v6184, %v6226
    %v6255 = vadd.f32 %v6185, %v6226
    %v6256 = vadd.f32 %v6186, %v6226
    %v6257 = vadd.f32 %v6187, %v6226
    %v6258 = vadd.f32 %v6188, %v6226
    %v6259 = vadd.f32 %v6189, %v6226
    %v6260 = vadd.f32 %v6190, %v6226
    %v6261 = vadd.f32 %v6191, %v6226
    %v6262 = vadd.f32 %v6192, %v6226
    %v6263 = vadd.f32 %v6193, %v6226
    %v6264 = vadd.f32 %v6194, %v6226
    %v6265 = vadd.f32 %v6195, %v6226
    %v6266 = vadd.f32 %v6196, %v6226
    %v6267 = vadd.f32 %v6197, %v6226
    %v6268 = vadd.f32 %v6198, %v6226
    %v6269 = vadd.f32 %v6199, %v6226
    %v6270 = vadd.f32 %v6200, %v6226
    %v6271 = vadd.f32 %v6201, %v6226
    %v6272 = vadd.f32 %v6202, %v6226
    %v6273 = vadd.f32 %v6203, %v6226
    %v6274 = vadd.f32 %v6204, %v6226
    %v6275 = vadd.f32 %v6205, %v6226
    %v6276 = vadd.f32 %v6206, %v6226
    %v6277 = vadd.f32 %v6207, %v6226
    %v6278 = vadd.f32 %v6208, %v6226
    %v6279 = vadd.f32 %v6209, %v6226
    %v6280 = vadd.f32 %v6210, %v6226
    %v6281 = vadd.f32 %v6211, %v6226
    %v6282 = vadd.f32 %v6212, %v6226
    %v6283 = vadd.f32 %v6213, %v6226
    %v6284 = vadd.f32 %v6214, %v6226
    %v6285 = vadd.f32 %v6215, %v6226
    %v6286 = vadd.f32 %v6216, %v6226
    %v6287 = vadd.f32 %v6217, %v6226
    %v6288 = vadd.f32 %v6218, %v6226
    %v6289 = vadd.f32 %v6219, %v6226
    %v6290 = vadd.f32 %v6220, %v6226
    %v6291 = vadd.f32 %v6221, %v6226
    %v6292 = vmax.f32 %v6228, 0.0
    %v6293 = vmax.f32 %v6229, 0.0
    %v6294 = vmax.f32 %v6230, 0.0
    %v6295 = vmax.f32 %v6231, 0.0
    %v6296 = vmax.f32 %v6232, 0.0
    %v6297 = vmax.f32 %v6233, 0.0
    %v6298 = vmax.f32 %v6234, 0.0
    %v6299 = vmax.f32 %v6235, 0.0
    %v6300 = vmax.f32 %v6236, 0.0
    %v6301 = vmax.f32 %v6237, 0.0
    %v6302 = vmax.f32 %v6238, 0.0
    %v6303 = vmax.f32 %v6239, 0.0
    %v6304 = vmax.f32 %v6240, 0.0
    %v6305 = vmax.f32 %v6241, 0.0
    %v6306 = vmax.f32 %v6242, 0.0
    %v6307 = vmax.f32 %v6243, 0.0
    %v6308 = vmax.f32 %v6244, 0.0
    %v6309 = vmax.f32 %v6245, 0.0
    %v6310 = vmax.f32 %v6246, 0.0
    %v6311 = vmax.f32 %v6247, 0.0
    %v6312 = vmax.f32 %v6248, 0.0
    %v6313 = vmax.f32 %v6249, 0.0
    %v6314 = vmax.f32 %v6250, 0.0
    %v6315 = vmax.f32 %v6251, 0.0
    %v6316 = vmax.f32 %v6252, 0.0
    %v6317 = vmax.f32 %v6253, 0.0
    %v6318 = vmax.f32 %v6254, 0.0
    %v6319 = vmax.f32 %v6255, 0.0
    %v6320 = vmax.f32 %v6256, 0.0
    %v6321 = vmax.f32 %v6257, 0.0
    %v6322 = vmax.f32 %v6258, 0.0
    %v6323 = vmax.f32 %v6259, 0.0
    %v6324 = vmax.f32 %v6260, 0.0
    %v6325 = vmax.f32 %v6261, 0.0
    %v6326 = vmax.f32 %v6262, 0.0
    %v6327 = vmax.f32 %v6263, 0.0
    %v6328 = vmax.f32 %v6264, 0.0
    %v6329 = vmax.f32 %v6265, 0.0
    %v6330 = vmax.f32 %v6266, 0.0
    %v6331 = vmax.f32 %v6267, 0.0
    %v6332 = vmax.f32 %v6268, 0.0
    %v6333 = vmax.f32 %v6269, 0.0
    %v6334 = vmax.f32 %v6270, 0.0
    %v6335 = vmax.f32 %v6271, 0.0
    %v6336 = vmax.f32 %v6272, 0.0
    %v6337 = vmax.f32 %v6273, 0.0
    %v6338 = vmax.f32 %v6274, 0.0
    %v6339 = vmax.f32 %v6275, 0.0
    %v6340 = vmax.f32 %v6276, 0.0
    %v6341 = vmax.f32 %v6277, 0.0
    %v6342 = vmax.f32 %v6278, 0.0
    %v6343 = vmax.f32 %v6279, 0.0
    %v6344 = vmax.f32 %v6280, 0.0
    %v6345 = vmax.f32 %v6281, 0.0
    %v6346 = vmax.f32 %v6282, 0.0
    %v6347 = vmax.f32 %v6283, 0.0
    %v6348 = vmax.f32 %v6284, 0.0
    %v6349 = vmax.f32 %v6285, 0.0
    %v6350 = vmax.f32 %v6286, 0.0
    %v6351 = vmax.f32 %v6287, 0.0
    %v6352 = vmax.f32 %v6288, 0.0
    %v6353 = vmax.f32 %v6289, 0.0
    %v6354 = vmax.f32 %v6290, 0.0
    %v6355 = vmax.f32 %v6291, 0.0
    %v6356 = vlaneseq
    %v6357 = vand.u32 %v6356, 127
    %vm6358 = vcmp.ge.s32.totalorder %v6357, 96
    %v6359 = vsel %vm6358, 1.0, 0.5
    %v6360 = vsel %vm6358, 0.0, 0.5
    %v6361 = vmul.f32 %v6292, %v6359
    %v6362 = vmul.f32 %v6293, %v6359
    %v6363 = vmul.f32 %v6294, %v6359
    %v6364 = vmul.f32 %v6295, %v6359
    %v6365 = vmul.f32 %v6296, %v6359
    %v6366 = vmul.f32 %v6297, %v6359
    %v6367 = vmul.f32 %v6298, %v6359
    %v6368 = vmul.f32 %v6299, %v6359
    %v6369 = vmul.f32 %v6300, %v6359
    %v6370 = vmul.f32 %v6301, %v6359
    %v6371 = vmul.f32 %v6302, %v6359
    %v6372 = vmul.f32 %v6303, %v6359
    %v6373 = vmul.f32 %v6304, %v6359
    %v6374 = vmul.f32 %v6305, %v6359
    %v6375 = vmul.f32 %v6306, %v6359
    %v6376 = vmul.f32 %v6307, %v6359
    %v6377 = vmul.f32 %v6308, %v6359
    %v6378 = vmul.f32 %v6309, %v6359
    %v6379 = vmul.f32 %v6310, %v6359
    %v6380 = vmul.f32 %v6311, %v6359
    %v6381 = vmul.f32 %v6312, %v6359
    %v6382 = vmul.f32 %v6313, %v6359
    %v6383 = vmul.f32 %v6314, %v6359
    %v6384 = vmul.f32 %v6315, %v6359
    %v6385 = vmul.f32 %v6316, %v6359
    %v6386 = vmul.f32 %v6317, %v6359
    %v6387 = vmul.f32 %v6318, %v6359
    %v6388 = vmul.f32 %v6319, %v6359
    %v6389 = vmul.f32 %v6320, %v6359
    %v6390 = vmul.f32 %v6321, %v6359
    %v6391 = vmul.f32 %v6322, %v6359
    %v6392 = vmul.f32 %v6323, %v6359
    %v6393 = vmul.f32 %v6324, %v6359
    %v6394 = vmul.f32 %v6325, %v6359
    %v6395 = vmul.f32 %v6326, %v6359
    %v6396 = vmul.f32 %v6327, %v6359
    %v6397 = vmul.f32 %v6328, %v6359
    %v6398 = vmul.f32 %v6329, %v6359
    %v6399 = vmul.f32 %v6330, %v6359
    %v6400 = vmul.f32 %v6331, %v6359
    %v6401 = vmul.f32 %v6332, %v6359
    %v6402 = vmul.f32 %v6333, %v6359
    %v6403 = vmul.f32 %v6334, %v6359
    %v6404 = vmul.f32 %v6335, %v6359
    %v6405 = vmul.f32 %v6336, %v6359
    %v6406 = vmul.f32 %v6337, %v6359
    %v6407 = vmul.f32 %v6338, %v6359
    %v6408 = vmul.f32 %v6339, %v6359
    %v6409 = vmul.f32 %v6340, %v6359
    %v6410 = vmul.f32 %v6341, %v6359
    %v6411 = vmul.f32 %v6342, %v6359
    %v6412 = vmul.f32 %v6343, %v6359
    %v6413 = vmul.f32 %v6344, %v6359
    %v6414 = vmul.f32 %v6345, %v6359
    %v6415 = vmul.f32 %v6346, %v6359
    %v6416 = vmul.f32 %v6347, %v6359
    %v6417 = vmul.f32 %v6348, %v6359
    %v6418 = vmul.f32 %v6349, %v6359
    %v6419 = vmul.f32 %v6350, %v6359
    %v6420 = vmul.f32 %v6351, %v6359
    %v6421 = vmul.f32 %v6352, %v6359
    %v6422 = vmul.f32 %v6353, %v6359
    %v6423 = vmul.f32 %v6354, %v6359
    %v6424 = vmul.f32 %v6355, %v6359
    %v6425 = vtanh.pop %v6361
    %v6426 = vtanh.pop %v6362
    %v6427 = vtanh.pop %v6363
    %v6428 = vtanh.pop %v6364
    %v6429 = vtanh.pop %v6365
    %v6430 = vtanh.pop %v6366
    %v6431 = vtanh.pop %v6367
    %v6432 = vtanh.pop %v6368
    %v6433 = vtanh.pop %v6369
    %v6434 = vtanh.pop %v6370
    %v6435 = vtanh.pop %v6371
    %v6436 = vtanh.pop %v6372
    %v6437 = vtanh.pop %v6373
    %v6438 = vtanh.pop %v6374
    %v6439 = vtanh.pop %v6375
    %v6440 = vtanh.pop %v6376
    %v6441 = vtanh.pop %v6377
    %v6442 = vtanh.pop %v6378
    %v6443 = vtanh.pop %v6379
    %v6444 = vtanh.pop %v6380
    %v6445 = vtanh.pop %v6381
    %v6446 = vtanh.pop %v6382
    %v6447 = vtanh.pop %v6383
    %v6448 = vtanh.pop %v6384
    %v6449 = vtanh.pop %v6385
    %v6450 = vtanh.pop %v6386
    %v6451 = vtanh.pop %v6387
    %v6452 = vtanh.pop %v6388
    %v6453 = vtanh.pop %v6389
    %v6454 = vtanh.pop %v6390
    %v6455 = vtanh.pop %v6391
    %v6456 = vtanh.pop %v6392
    %v6457 = vtanh.pop %v6393
    %v6458 = vtanh.pop %v6394
    %v6459 = vtanh.pop %v6395
    %v6460 = vtanh.pop %v6396
    %v6461 = vtanh.pop %v6397
    %v6462 = vtanh.pop %v6398
    %v6463 = vtanh.pop %v6399
    %v6464 = vtanh.pop %v6400
    %v6465 = vtanh.pop %v6401
    %v6466 = vtanh.pop %v6402
    %v6467 = vtanh.pop %v6403
    %v6468 = vtanh.pop %v6404
    %v6469 = vtanh.pop %v6405
    %v6470 = vtanh.pop %v6406
    %v6471 = vtanh.pop %v6407
    %v6472 = vtanh.pop %v6408
    %v6473 = vtanh.pop %v6409
    %v6474 = vtanh.pop %v6410
    %v6475 = vtanh.pop %v6411
    %v6476 = vtanh.pop %v6412
    %v6477 = vtanh.pop %v6413
    %v6478 = vtanh.pop %v6414
    %v6479 = vtanh.pop %v6415
    %v6480 = vtanh.pop %v6416
    %v6481 = vtanh.pop %v6417
    %v6482 = vtanh.pop %v6418
    %v6483 = vtanh.pop %v6419
    %v6484 = vtanh.pop %v6420
    %v6485 = vtanh.pop %v6421
    %v6486 = vtanh.pop %v6422
    %v6487 = vtanh.pop %v6423
    %v6488 = vtanh.pop %v6424
    %v6489 = vmul.f32 %v6425, %v6359
    %v6490 = vmul.f32 %v6426, %v6359
    %v6491 = vmul.f32 %v6427, %v6359
    %v6492 = vmul.f32 %v6428, %v6359
    %v6493 = vmul.f32 %v6429, %v6359
    %v6494 = vmul.f32 %v6430, %v6359
    %v6495 = vmul.f32 %v6431, %v6359
    %v6496 = vmul.f32 %v6432, %v6359
    %v6497 = vmul.f32 %v6433, %v6359
    %v6498 = vmul.f32 %v6434, %v6359
    %v6499 = vmul.f32 %v6435, %v6359
    %v6500 = vmul.f32 %v6436, %v6359
    %v6501 = vmul.f32 %v6437, %v6359
    %v6502 = vmul.f32 %v6438, %v6359
    %v6503 = vmul.f32 %v6439, %v6359
    %v6504 = vmul.f32 %v6440, %v6359
    %v6505 = vmul.f32 %v6441, %v6359
    %v6506 = vmul.f32 %v6442, %v6359
    %v6507 = vmul.f32 %v6443, %v6359
    %v6508 = vmul.f32 %v6444, %v6359
    %v6509 = vmul.f32 %v6445, %v6359
    %v6510 = vmul.f32 %v6446, %v6359
    %v6511 = vmul.f32 %v6447, %v6359
    %v6512 = vmul.f32 %v6448, %v6359
    %v6513 = vmul.f32 %v6449, %v6359
    %v6514 = vmul.f32 %v6450, %v6359
    %v6515 = vmul.f32 %v6451, %v6359
    %v6516 = vmul.f32 %v6452, %v6359
    %v6517 = vmul.f32 %v6453, %v6359
    %v6518 = vmul.f32 %v6454, %v6359
    %v6519 = vmul.f32 %v6455, %v6359
    %v6520 = vmul.f32 %v6456, %v6359
    %v6521 = vmul.f32 %v6457, %v6359
    %v6522 = vmul.f32 %v6458, %v6359
    %v6523 = vmul.f32 %v6459, %v6359
    %v6524 = vmul.f32 %v6460, %v6359
    %v6525 = vmul.f32 %v6461, %v6359
    %v6526 = vmul.f32 %v6462, %v6359
    %v6527 = vmul.f32 %v6463, %v6359
    %v6528 = vmul.f32 %v6464, %v6359
    %v6529 = vmul.f32 %v6465, %v6359
    %v6530 = vmul.f32 %v6466, %v6359
    %v6531 = vmul.f32 %v6467, %v6359
    %v6532 = vmul.f32 %v6468, %v6359
    %v6533 = vmul.f32 %v6469, %v6359
    %v6534 = vmul.f32 %v6470, %v6359
    %v6535 = vmul.f32 %v6471, %v6359
    %v6536 = vmul.f32 %v6472, %v6359
    %v6537 = vmul.f32 %v6473, %v6359
    %v6538 = vmul.f32 %v6474, %v6359
    %v6539 = vmul.f32 %v6475, %v6359
    %v6540 = vmul.f32 %v6476, %v6359
    %v6541 = vmul.f32 %v6477, %v6359
    %v6542 = vmul.f32 %v6478, %v6359
    %v6543 = vmul.f32 %v6479, %v6359
    %v6544 = vmul.f32 %v6480, %v6359
    %v6545 = vmul.f32 %v6481, %v6359
    %v6546 = vmul.f32 %v6482, %v6359
    %v6547 = vmul.f32 %v6483, %v6359
    %v6548 = vmul.f32 %v6484, %v6359
    %v6549 = vmul.f32 %v6485, %v6359
    %v6550 = vmul.f32 %v6486, %v6359
    %v6551 = vmul.f32 %v6487, %v6359
    %v6552 = vmul.f32 %v6488, %v6359
    %v6553 = vadd.f32 %v6489, %v6360
    %v6554 = vadd.f32 %v6490, %v6360
    %v6555 = vadd.f32 %v6491, %v6360
    %v6556 = vadd.f32 %v6492, %v6360
    %v6557 = vadd.f32 %v6493, %v6360
    %v6558 = vadd.f32 %v6494, %v6360
    %v6559 = vadd.f32 %v6495, %v6360
    %v6560 = vadd.f32 %v6496, %v6360
    %v6561 = vadd.f32 %v6497, %v6360
    %v6562 = vadd.f32 %v6498, %v6360
    %v6563 = vadd.f32 %v6499, %v6360
    %v6564 = vadd.f32 %v6500, %v6360
    %v6565 = vadd.f32 %v6501, %v6360
    %v6566 = vadd.f32 %v6502, %v6360
    %v6567 = vadd.f32 %v6503, %v6360
    %v6568 = vadd.f32 %v6504, %v6360
    %v6569 = vadd.f32 %v6505, %v6360
    %v6570 = vadd.f32 %v6506, %v6360
    %v6571 = vadd.f32 %v6507, %v6360
    %v6572 = vadd.f32 %v6508, %v6360
    %v6573 = vadd.f32 %v6509, %v6360
    %v6574 = vadd.f32 %v6510, %v6360
    %v6575 = vadd.f32 %v6511, %v6360
    %v6576 = vadd.f32 %v6512, %v6360
    %v6577 = vadd.f32 %v6513, %v6360
    %v6578 = vadd.f32 %v6514, %v6360
    %v6579 = vadd.f32 %v6515, %v6360
    %v6580 = vadd.f32 %v6516, %v6360
    %v6581 = vadd.f32 %v6517, %v6360
    %v6582 = vadd.f32 %v6518, %v6360
    %v6583 = vadd.f32 %v6519, %v6360
    %v6584 = vadd.f32 %v6520, %v6360
    %v6585 = vadd.f32 %v6521, %v6360
    %v6586 = vadd.f32 %v6522, %v6360
    %v6587 = vadd.f32 %v6523, %v6360
    %v6588 = vadd.f32 %v6524, %v6360
    %v6589 = vadd.f32 %v6525, %v6360
    %v6590 = vadd.f32 %v6526, %v6360
    %v6591 = vadd.f32 %v6527, %v6360
    %v6592 = vadd.f32 %v6528, %v6360
    %v6593 = vadd.f32 %v6529, %v6360
    %v6594 = vadd.f32 %v6530, %v6360
    %v6595 = vadd.f32 %v6531, %v6360
    %v6596 = vadd.f32 %v6532, %v6360
    %v6597 = vadd.f32 %v6533, %v6360
    %v6598 = vadd.f32 %v6534, %v6360
    %v6599 = vadd.f32 %v6535, %v6360
    %v6600 = vadd.f32 %v6536, %v6360
    %v6601 = vadd.f32 %v6537, %v6360
    %v6602 = vadd.f32 %v6538, %v6360
    %v6603 = vadd.f32 %v6539, %v6360
    %v6604 = vadd.f32 %v6540, %v6360
    %v6605 = vadd.f32 %v6541, %v6360
    %v6606 = vadd.f32 %v6542, %v6360
    %v6607 = vadd.f32 %v6543, %v6360
    %v6608 = vadd.f32 %v6544, %v6360
    %v6609 = vadd.f32 %v6545, %v6360
    %v6610 = vadd.f32 %v6546, %v6360
    %v6611 = vadd.f32 %v6547, %v6360
    %v6612 = vadd.f32 %v6548, %v6360
    %v6613 = vadd.f32 %v6549, %v6360
    %v6614 = vadd.f32 %v6550, %v6360
    %v6615 = vadd.f32 %v6551, %v6360
    %v6616 = vadd.f32 %v6552, %v6360
    %v6617 = vld [vmem:[#allocation7] sm:$0xff]
    %v6618 = vld [vmem:[#allocation7 + $0x8] sm:$0xff]
    %v6619 = vld [vmem:[#allocation7 + $0x10] sm:$0xff]
    %v6620 = vld [vmem:[#allocation7 + $0x18] sm:$0xff]
    %v6621 = vld [vmem:[#allocation7 + $0x20] sm:$0xff]
    %v6622 = vld [vmem:[#allocation7 + $0x28] sm:$0xff]
    %v6623 = vld [vmem:[#allocation7 + $0x30] sm:$0xff]
    %v6624 = vld [vmem:[#allocation7 + $0x38] sm:$0xff]
    %v6625 = vld [vmem:[#allocation7 + $0x40] sm:$0xff]
    %v6626 = vld [vmem:[#allocation7 + $0x48] sm:$0xff]
    %v6627 = vld [vmem:[#allocation7 + $0x50] sm:$0xff]
    %v6628 = vld [vmem:[#allocation7 + $0x58] sm:$0xff]
    %v6629 = vld [vmem:[#allocation7 + $0x60] sm:$0xff]
    %v6630 = vld [vmem:[#allocation7 + $0x68] sm:$0xff]
    %v6631 = vld [vmem:[#allocation7 + $0x70] sm:$0xff]
    %v6632 = vld [vmem:[#allocation7 + $0x78] sm:$0xff]
    %v6633 = vld [vmem:[#allocation7 + $0x80] sm:$0xff]
    %v6634 = vld [vmem:[#allocation7 + $0x88] sm:$0xff]
    %v6635 = vld [vmem:[#allocation7 + $0x90] sm:$0xff]
    %v6636 = vld [vmem:[#allocation7 + $0x98] sm:$0xff]
    %v6637 = vld [vmem:[#allocation7 + $0xa0] sm:$0xff]
    %v6638 = vld [vmem:[#allocation7 + $0xa8] sm:$0xff]
    %v6639 = vld [vmem:[#allocation7 + $0xb0] sm:$0xff]
    %v6640 = vld [vmem:[#allocation7 + $0xb8] sm:$0xff]
    %v6641 = vld [vmem:[#allocation7 + $0xc0] sm:$0xff]
    %v6642 = vld [vmem:[#allocation7 + $0xc8] sm:$0xff]
    %v6643 = vld [vmem:[#allocation7 + $0xd0] sm:$0xff]
    %v6644 = vld [vmem:[#allocation7 + $0xd8] sm:$0xff]
    %v6645 = vld [vmem:[#allocation7 + $0xe0] sm:$0xff]
    %v6646 = vld [vmem:[#allocation7 + $0xe8] sm:$0xff]
    %v6647 = vld [vmem:[#allocation7 + $0xf0] sm:$0xff]
    %v6648 = vld [vmem:[#allocation7 + $0xf8] sm:$0xff]
    %v6649 = vld [vmem:[#allocation7 + $0x100] sm:$0xff]
    %v6650 = vld [vmem:[#allocation7 + $0x108] sm:$0xff]
    %v6651 = vld [vmem:[#allocation7 + $0x110] sm:$0xff]
    %v6652 = vld [vmem:[#allocation7 + $0x118] sm:$0xff]
    %v6653 = vld [vmem:[#allocation7 + $0x120] sm:$0xff]
    %v6654 = vld [vmem:[#allocation7 + $0x128] sm:$0xff]
    %v6655 = vld [vmem:[#allocation7 + $0x130] sm:$0xff]
    %v6656 = vld [vmem:[#allocation7 + $0x138] sm:$0xff]
    %v6657 = vld [vmem:[#allocation7 + $0x140] sm:$0xff]
    %v6658 = vld [vmem:[#allocation7 + $0x148] sm:$0xff]
    %v6659 = vld [vmem:[#allocation7 + $0x150] sm:$0xff]
    %v6660 = vld [vmem:[#allocation7 + $0x158] sm:$0xff]
    %v6661 = vld [vmem:[#allocation7 + $0x160] sm:$0xff]
    %v6662 = vld [vmem:[#allocation7 + $0x168] sm:$0xff]
    %v6663 = vld [vmem:[#allocation7 + $0x170] sm:$0xff]
    %v6664 = vld [vmem:[#allocation7 + $0x178] sm:$0xff]
    %v6665 = vld [vmem:[#allocation7 + $0x180] sm:$0xff]
    %v6666 = vld [vmem:[#allocation7 + $0x188] sm:$0xff]
    %v6667 = vld [vmem:[#allocation7 + $0x190] sm:$0xff]
    %v6668 = vld [vmem:[#allocation7 + $0x198] sm:$0xff]
    %v6669 = vld [vmem:[#allocation7 + $0x1a0] sm:$0xff]
    %v6670 = vld [vmem:[#allocation7 + $0x1a8] sm:$0xff]
    %v6671 = vld [vmem:[#allocation7 + $0x1b0] sm:$0xff]
    %v6672 = vld [vmem:[#allocation7 + $0x1b8] sm:$0xff]
    %v6673 = vld [vmem:[#allocation7 + $0x1c0] sm:$0xff]
    %v6674 = vld [vmem:[#allocation7 + $0x1c8] sm:$0xff]
    %v6675 = vld [vmem:[#allocation7 + $0x1d0] sm:$0xff]
    %v6676 = vld [vmem:[#allocation7 + $0x1d8] sm:$0xff]
    %v6677 = vld [vmem:[#allocation7 + $0x1e0] sm:$0xff]
    %v6678 = vld [vmem:[#allocation7 + $0x1e8] sm:$0xff]
    %v6679 = vld [vmem:[#allocation7 + $0x1f0] sm:$0xff]
    %v6680 = vld [vmem:[#allocation7 + $0x1f8] sm:$0xff]
    %6745 = vrot.lane.b32.xlu0 %v6617, 32
    %v6746 = vpop.permute.xlu0 %6745
    %6747 = vrot.lane.b32.xlu0 %v6618, 32
    %v6748 = vpop.permute.xlu0 %6747
    %6749 = vrot.lane.b32.xlu0 %v6619, 32
    %v6750 = vpop.permute.xlu0 %6749
    %6751 = vrot.lane.b32.xlu0 %v6620, 32
    %v6752 = vpop.permute.xlu0 %6751
    %6753 = vrot.lane.b32.xlu0 %v6621, 32
    %v6754 = vpop.permute.xlu0 %6753
    %6755 = vrot.lane.b32.xlu0 %v6622, 32
    %v6756 = vpop.permute.xlu0 %6755
    %6757 = vrot.lane.b32.xlu0 %v6623, 32
    %v6758 = vpop.permute.xlu0 %6757
    %6759 = vrot.lane.b32.xlu0 %v6624, 32
    %v6760 = vpop.permute.xlu0 %6759
    %6761 = vrot.lane.b32.xlu0 %v6625, 32
    %v6762 = vpop.permute.xlu0 %6761
    %6763 = vrot.lane.b32.xlu0 %v6626, 32
    %v6764 = vpop.permute.xlu0 %6763
    %6765 = vrot.lane.b32.xlu0 %v6627, 32
    %v6766 = vpop.permute.xlu0 %6765
    %6767 = vrot.lane.b32.xlu0 %v6628, 32
    %v6768 = vpop.permute.xlu0 %6767
    %6769 = vrot.lane.b32.xlu0 %v6629, 32
    %v6770 = vpop.permute.xlu0 %6769
    %6771 = vrot.lane.b32.xlu0 %v6630, 32
    %v6772 = vpop.permute.xlu0 %6771
    %6773 = vrot.lane.b32.xlu0 %v6631, 32
    %v6774 = vpop.permute.xlu0 %6773
    %6775 = vrot.lane.b32.xlu0 %v6632, 32
    %v6776 = vpop.permute.xlu0 %6775
    %6777 = vrot.lane.b32.xlu0 %v6633, 32
    %v6778 = vpop.permute.xlu0 %6777
    %6779 = vrot.lane.b32.xlu0 %v6634, 32
    %v6780 = vpop.permute.xlu0 %6779
    %6781 = vrot.lane.b32.xlu0 %v6635, 32
    %v6782 = vpop.permute.xlu0 %6781
    %6783 = vrot.lane.b32.xlu0 %v6636, 32
    %v6784 = vpop.permute.xlu0 %6783
    %6785 = vrot.lane.b32.xlu0 %v6637, 32
    %v6786 = vpop.permute.xlu0 %6785
    %6787 = vrot.lane.b32.xlu0 %v6638, 32
    %v6788 = vpop.permute.xlu0 %6787
    %6789 = vrot.lane.b32.xlu0 %v6639, 32
    %v6790 = vpop.permute.xlu0 %6789
    %6791 = vrot.lane.b32.xlu0 %v6640, 32
    %v6792 = vpop.permute.xlu0 %6791
    %6793 = vrot.lane.b32.xlu0 %v6641, 32
    %v6794 = vpop.permute.xlu0 %6793
    %6795 = vrot.lane.b32.xlu0 %v6642, 32
    %v6796 = vpop.permute.xlu0 %6795
    %6797 = vrot.lane.b32.xlu0 %v6643, 32
    %v6798 = vpop.permute.xlu0 %6797
    %6799 = vrot.lane.b32.xlu0 %v6644, 32
    %v6800 = vpop.permute.xlu0 %6799
    %6801 = vrot.lane.b32.xlu0 %v6645, 32
    %v6802 = vpop.permute.xlu0 %6801
    %6803 = vrot.lane.b32.xlu0 %v6646, 32
    %v6804 = vpop.permute.xlu0 %6803
    %6805 = vrot.lane.b32.xlu0 %v6647, 32
    %v6806 = vpop.permute.xlu0 %6805
    %6807 = vrot.lane.b32.xlu0 %v6648, 32
    %v6808 = vpop.permute.xlu0 %6807
    %6809 = vrot.lane.b32.xlu0 %v6649, 32
    %v6810 = vpop.permute.xlu0 %6809
    %6811 = vrot.lane.b32.xlu0 %v6650, 32
    %v6812 = vpop.permute.xlu0 %6811
    %6813 = vrot.lane.b32.xlu0 %v6651, 32
    %v6814 = vpop.permute.xlu0 %6813
    %6815 = vrot.lane.b32.xlu0 %v6652, 32
    %v6816 = vpop.permute.xlu0 %6815
    %6817 = vrot.lane.b32.xlu0 %v6653, 32
    %v6818 = vpop.permute.xlu0 %6817
    %6819 = vrot.lane.b32.xlu0 %v6654, 32
    %v6820 = vpop.permute.xlu0 %6819
    %6821 = vrot.lane.b32.xlu0 %v6655, 32
    %v6822 = vpop.permute.xlu0 %6821
    %6823 = vrot.lane.b32.xlu0 %v6656, 32
    %v6824 = vpop.permute.xlu0 %6823
    %6825 = vrot.lane.b32.xlu0 %v6657, 32
    %v6826 = vpop.permute.xlu0 %6825
    %6827 = vrot.lane.b32.xlu0 %v6658, 32
    %v6828 = vpop.permute.xlu0 %6827
    %6829 = vrot.lane.b32.xlu0 %v6659, 32
    %v6830 = vpop.permute.xlu0 %6829
    %6831 = vrot.lane.b32.xlu0 %v6660, 32
    %v6832 = vpop.permute.xlu0 %6831
    %6833 = vrot.lane.b32.xlu0 %v6661, 32
    %v6834 = vpop.permute.xlu0 %6833
    %6835 = vrot.lane.b32.xlu0 %v6662, 32
    %v6836 = vpop.permute.xlu0 %6835
    %6837 = vrot.lane.b32.xlu0 %v6663, 32
    %v6838 = vpop.permute.xlu0 %6837
    %6839 = vrot.lane.b32.xlu0 %v6664, 32
    %v6840 = vpop.permute.xlu0 %6839
    %6841 = vrot.lane.b32.xlu0 %v6665, 32
    %v6842 = vpop.permute.xlu0 %6841
    %6843 = vrot.lane.b32.xlu0 %v6666, 32
    %v6844 = vpop.permute.xlu0 %6843
    %6845 = vrot.lane.b32.xlu0 %v6667, 32
    %v6846 = vpop.permute.xlu0 %6845
    %6847 = vrot.lane.b32.xlu0 %v6668, 32
    %v6848 = vpop.permute.xlu0 %6847
    %6849 = vrot.lane.b32.xlu0 %v6669, 32
    %v6850 = vpop.permute.xlu0 %6849
    %6851 = vrot.lane.b32.xlu0 %v6670, 32
    %v6852 = vpop.permute.xlu0 %6851
    %6853 = vrot.lane.b32.xlu0 %v6671, 32
    %v6854 = vpop.permute.xlu0 %6853
    %6855 = vrot.lane.b32.xlu0 %v6672, 32
    %v6856 = vpop.permute.xlu0 %6855
    %6857 = vrot.lane.b32.xlu0 %v6673, 32
    %v6858 = vpop.permute.xlu0 %6857
    %6859 = vrot.lane.b32.xlu0 %v6674, 32
    %v6860 = vpop.permute.xlu0 %6859
    %6861 = vrot.lane.b32.xlu0 %v6675, 32
    %v6862 = vpop.permute.xlu0 %6861
    %6863 = vrot.lane.b32.xlu0 %v6676, 32
    %v6864 = vpop.permute.xlu0 %6863
    %6865 = vrot.lane.b32.xlu0 %v6677, 32
    %v6866 = vpop.permute.xlu0 %6865
    %6867 = vrot.lane.b32.xlu0 %v6678, 32
    %v6868 = vpop.permute.xlu0 %6867
    %6869 = vrot.lane.b32.xlu0 %v6679, 32
    %v6870 = vpop.permute.xlu0 %6869
    %6871 = vrot.lane.b32.xlu0 %v6680, 32
    %v6872 = vpop.permute.xlu0 %6871
    %v6937 = vmul.f32 %v6553, %v6746
    %v6938 = vmul.f32 %v6554, %v6748
    %v6939 = vmul.f32 %v6555, %v6750
    %v6940 = vmul.f32 %v6556, %v6752
    %v6941 = vmul.f32 %v6557, %v6754
    %v6942 = vmul.f32 %v6558, %v6756
    %v6943 = vmul.f32 %v6559, %v6758
    %v6944 = vmul.f32 %v6560, %v6760
    %v6945 = vmul.f32 %v6561, %v6762
    %v6946 = vmul.f32 %v6562, %v6764
    %v6947 = vmul.f32 %v6563, %v6766
    %v6948 = vmul.f32 %v6564, %v6768
    %v6949 = vmul.f32 %v6565, %v6770
    %v6950 = vmul.f32 %v6566, %v6772
    %v6951 = vmul.f32 %v6567, %v6774
    %v6952 = vmul.f32 %v6568, %v6776
    %v6953 = vmul.f32 %v6569, %v6778
    %v6954 = vmul.f32 %v6570, %v6780
    %v6955 = vmul.f32 %v6571, %v6782
    %v6956 = vmul.f32 %v6572, %v6784
    %v6957 = vmul.f32 %v6573, %v6786
    %v6958 = vmul.f32 %v6574, %v6788
    %v6959 = vmul.f32 %v6575, %v6790
    %v6960 = vmul.f32 %v6576, %v6792
    %v6961 = vmul.f32 %v6577, %v6794
    %v6962 = vmul.f32 %v6578, %v6796
    %v6963 = vmul.f32 %v6579, %v6798
    %v6964 = vmul.f32 %v6580, %v6800
    %v6965 = vmul.f32 %v6581, %v6802
    %v6966 = vmul.f32 %v6582, %v6804
    %v6967 = vmul.f32 %v6583, %v6806
    %v6968 = vmul.f32 %v6584, %v6808
    %v6969 = vmul.f32 %v6585, %v6810
    %v6970 = vmul.f32 %v6586, %v6812
    %v6971 = vmul.f32 %v6587, %v6814
    %v6972 = vmul.f32 %v6588, %v6816
    %v6973 = vmul.f32 %v6589, %v6818
    %v6974 = vmul.f32 %v6590, %v6820
    %v6975 = vmul.f32 %v6591, %v6822
    %v6976 = vmul.f32 %v6592, %v6824
    %v6977 = vmul.f32 %v6593, %v6826
    %v6978 = vmul.f32 %v6594, %v6828
    %v6979 = vmul.f32 %v6595, %v6830
    %v6980 = vmul.f32 %v6596, %v6832
    %v6981 = vmul.f32 %v6597, %v6834
    %v6982 = vmul.f32 %v6598, %v6836
    %v6983 = vmul.f32 %v6599, %v6838
    %v6984 = vmul.f32 %v6600, %v6840
    %v6985 = vmul.f32 %v6601, %v6842
    %v6986 = vmul.f32 %v6602, %v6844
    %v6987 = vmul.f32 %v6603, %v6846
    %v6988 = vmul.f32 %v6604, %v6848
    %v6989 = vmul.f32 %v6605, %v6850
    %v6990 = vmul.f32 %v6606, %v6852
    %v6991 = vmul.f32 %v6607, %v6854
    %v6992 = vmul.f32 %v6608, %v6856
    %v6993 = vmul.f32 %v6609, %v6858
    %v6994 = vmul.f32 %v6610, %v6860
    %v6995 = vmul.f32 %v6611, %v6862
    %v6996 = vmul.f32 %v6612, %v6864
    %v6997 = vmul.f32 %v6613, %v6866
    %v6998 = vmul.f32 %v6614, %v6868
    %v6999 = vmul.f32 %v6615, %v6870
    %v7000 = vmul.f32 %v6616, %v6872
    %7065 = vrot.lane.b32.xlu0 %v6553, 32
    %v7066 = vpop.permute.xlu0 %7065
    %7067 = vrot.lane.b32.xlu0 %v6554, 32
    %v7068 = vpop.permute.xlu0 %7067
    %7069 = vrot.lane.b32.xlu0 %v6555, 32
    %v7070 = vpop.permute.xlu0 %7069
    %7071 = vrot.lane.b32.xlu0 %v6556, 32
    %v7072 = vpop.permute.xlu0 %7071
    %7073 = vrot.lane.b32.xlu0 %v6557, 32
    %v7074 = vpop.permute.xlu0 %7073
    %7075 = vrot.lane.b32.xlu0 %v6558, 32
    %v7076 = vpop.permute.xlu0 %7075
    %7077 = vrot.lane.b32.xlu0 %v6559, 32
    %v7078 = vpop.permute.xlu0 %7077
    %7079 = vrot.lane.b32.xlu0 %v6560, 32
    %v7080 = vpop.permute.xlu0 %7079
    %7081 = vrot.lane.b32.xlu0 %v6561, 32
    %v7082 = vpop.permute.xlu0 %7081
    %7083 = vrot.lane.b32.xlu0 %v6562, 32
    %v7084 = vpop.permute.xlu0 %7083
    %7085 = vrot.lane.b32.xlu0 %v6563, 32
    %v7086 = vpop.permute.xlu0 %7085
    %7087 = vrot.lane.b32.xlu0 %v6564, 32
    %v7088 = vpop.permute.xlu0 %7087
    %7089 = vrot.lane.b32.xlu0 %v6565, 32
    %v7090 = vpop.permute.xlu0 %7089
    %7091 = vrot.lane.b32.xlu0 %v6566, 32
    %v7092 = vpop.permute.xlu0 %7091
    %7093 = vrot.lane.b32.xlu0 %v6567, 32
    %v7094 = vpop.permute.xlu0 %7093
    %7095 = vrot.lane.b32.xlu0 %v6568, 32
    %v7096 = vpop.permute.xlu0 %7095
    %7097 = vrot.lane.b32.xlu0 %v6569, 32
    %v7098 = vpop.permute.xlu0 %7097
    %7099 = vrot.lane.b32.xlu0 %v6570, 32
    %v7100 = vpop.permute.xlu0 %7099
    %7101 = vrot.lane.b32.xlu0 %v6571, 32
    %v7102 = vpop.permute.xlu0 %7101
    %7103 = vrot.lane.b32.xlu0 %v6572, 32
    %v7104 = vpop.permute.xlu0 %7103
    %7105 = vrot.lane.b32.xlu0 %v6573, 32
    %v7106 = vpop.permute.xlu0 %7105
    %7107 = vrot.lane.b32.xlu0 %v6574, 32
    %v7108 = vpop.permute.xlu0 %7107
    %7109 = vrot.lane.b32.xlu0 %v6575, 32
    %v7110 = vpop.permute.xlu0 %7109
    %7111 = vrot.lane.b32.xlu0 %v6576, 32
    %v7112 = vpop.permute.xlu0 %7111
    %7113 = vrot.lane.b32.xlu0 %v6577, 32
    %v7114 = vpop.permute.xlu0 %7113
    %7115 = vrot.lane.b32.xlu0 %v6578, 32
    %v7116 = vpop.permute.xlu0 %7115
    %7117 = vrot.lane.b32.xlu0 %v6579, 32
    %v7118 = vpop.permute.xlu0 %7117
    %7119 = vrot.lane.b32.xlu0 %v6580, 32
    %v7120 = vpop.permute.xlu0 %7119
    %7121 = vrot.lane.b32.xlu0 %v6581, 32
    %v7122 = vpop.permute.xlu0 %7121
    %7123 = vrot.lane.b32.xlu0 %v6582, 32
    %v7124 = vpop.permute.xlu0 %7123
    %7125 = vrot.lane.b32.xlu0 %v6583, 32
    %v7126 = vpop.permute.xlu0 %7125
    %7127 = vrot.lane.b32.xlu0 %v6584, 32
    %v7128 = vpop.permute.xlu0 %7127
    %7129 = vrot.lane.b32.xlu0 %v6585, 32
    %v7130 = vpop.permute.xlu0 %7129
    %7131 = vrot.lane.b32.xlu0 %v6586, 32
    %v7132 = vpop.permute.xlu0 %7131
    %7133 = vrot.lane.b32.xlu0 %v6587, 32
    %v7134 = vpop.permute.xlu0 %7133
    %7135 = vrot.lane.b32.xlu0 %v6588, 32
    %v7136 = vpop.permute.xlu0 %7135
    %7137 = vrot.lane.b32.xlu0 %v6589, 32
    %v7138 = vpop.permute.xlu0 %7137
    %7139 = vrot.lane.b32.xlu0 %v6590, 32
    %v7140 = vpop.permute.xlu0 %7139
    %7141 = vrot.lane.b32.xlu0 %v6591, 32
    %v7142 = vpop.permute.xlu0 %7141
    %7143 = vrot.lane.b32.xlu0 %v6592, 32
    %v7144 = vpop.permute.xlu0 %7143
    %7145 = vrot.lane.b32.xlu0 %v6593, 32
    %v7146 = vpop.permute.xlu0 %7145
    %7147 = vrot.lane.b32.xlu0 %v6594, 32
    %v7148 = vpop.permute.xlu0 %7147
    %7149 = vrot.lane.b32.xlu0 %v6595, 32
    %v7150 = vpop.permute.xlu0 %7149
    %7151 = vrot.lane.b32.xlu0 %v6596, 32
    %v7152 = vpop.permute.xlu0 %7151
    %7153 = vrot.lane.b32.xlu0 %v6597, 32
    %v7154 = vpop.permute.xlu0 %7153
    %7155 = vrot.lane.b32.xlu0 %v6598, 32
    %v7156 = vpop.permute.xlu0 %7155
    %7157 = vrot.lane.b32.xlu0 %v6599, 32
    %v7158 = vpop.permute.xlu0 %7157
    %7159 = vrot.lane.b32.xlu0 %v6600, 32
    %v7160 = vpop.permute.xlu0 %7159
    %7161 = vrot.lane.b32.xlu0 %v6601, 32
    %v7162 = vpop.permute.xlu0 %7161
    %7163 = vrot.lane.b32.xlu0 %v6602, 32
    %v7164 = vpop.permute.xlu0 %7163
    %7165 = vrot.lane.b32.xlu0 %v6603, 32
    %v7166 = vpop.permute.xlu0 %7165
    %7167 = vrot.lane.b32.xlu0 %v6604, 32
    %v7168 = vpop.permute.xlu0 %7167
    %7169 = vrot.lane.b32.xlu0 %v6605, 32
    %v7170 = vpop.permute.xlu0 %7169
    %7171 = vrot.lane.b32.xlu0 %v6606, 32
    %v7172 = vpop.permute.xlu0 %7171
    %7173 = vrot.lane.b32.xlu0 %v6607, 32
    %v7174 = vpop.permute.xlu0 %7173
    %7175 = vrot.lane.b32.xlu0 %v6608, 32
    %v7176 = vpop.permute.xlu0 %7175
    %7177 = vrot.lane.b32.xlu0 %v6609, 32
    %v7178 = vpop.permute.xlu0 %7177
    %7179 = vrot.lane.b32.xlu0 %v6610, 32
    %v7180 = vpop.permute.xlu0 %7179
    %7181 = vrot.lane.b32.xlu0 %v6611, 32
    %v7182 = vpop.permute.xlu0 %7181
    %7183 = vrot.lane.b32.xlu0 %v6612, 32
    %v7184 = vpop.permute.xlu0 %7183
    %7185 = vrot.lane.b32.xlu0 %v6613, 32
    %v7186 = vpop.permute.xlu0 %7185
    %7187 = vrot.lane.b32.xlu0 %v6614, 32
    %v7188 = vpop.permute.xlu0 %7187
    %7189 = vrot.lane.b32.xlu0 %v6615, 32
    %v7190 = vpop.permute.xlu0 %7189
    %7191 = vrot.lane.b32.xlu0 %v6616, 32
    %v7192 = vpop.permute.xlu0 %7191
    %v7257 = vmul.f32 %v6553, %v7066
    %v7258 = vmul.f32 %v6554, %v7068
    %v7259 = vmul.f32 %v6555, %v7070
    %v7260 = vmul.f32 %v6556, %v7072
    %v7261 = vmul.f32 %v6557, %v7074
    %v7262 = vmul.f32 %v6558, %v7076
    %v7263 = vmul.f32 %v6559, %v7078
    %v7264 = vmul.f32 %v6560, %v7080
    %v7265 = vmul.f32 %v6561, %v7082
    %v7266 = vmul.f32 %v6562, %v7084
    %v7267 = vmul.f32 %v6563, %v7086
    %v7268 = vmul.f32 %v6564, %v7088
    %v7269 = vmul.f32 %v6565, %v7090
    %v7270 = vmul.f32 %v6566, %v7092
    %v7271 = vmul.f32 %v6567, %v7094
    %v7272 = vmul.f32 %v6568, %v7096
    %v7273 = vmul.f32 %v6569, %v7098
    %v7274 = vmul.f32 %v6570, %v7100
    %v7275 = vmul.f32 %v6571, %v7102
    %v7276 = vmul.f32 %v6572, %v7104
    %v7277 = vmul.f32 %v6573, %v7106
    %v7278 = vmul.f32 %v6574, %v7108
    %v7279 = vmul.f32 %v6575, %v7110
    %v7280 = vmul.f32 %v6576, %v7112
    %v7281 = vmul.f32 %v6577, %v7114
    %v7282 = vmul.f32 %v6578, %v7116
    %v7283 = vmul.f32 %v6579, %v7118
    %v7284 = vmul.f32 %v6580, %v7120
    %v7285 = vmul.f32 %v6581, %v7122
    %v7286 = vmul.f32 %v6582, %v7124
    %v7287 = vmul.f32 %v6583, %v7126
    %v7288 = vmul.f32 %v6584, %v7128
    %v7289 = vmul.f32 %v6585, %v7130
    %v7290 = vmul.f32 %v6586, %v7132
    %v7291 = vmul.f32 %v6587, %v7134
    %v7292 = vmul.f32 %v6588, %v7136
    %v7293 = vmul.f32 %v6589, %v7138
    %v7294 = vmul.f32 %v6590, %v7140
    %v7295 = vmul.f32 %v6591, %v7142
    %v7296 = vmul.f32 %v6592, %v7144
    %v7297 = vmul.f32 %v6593, %v7146
    %v7298 = vmul.f32 %v6594, %v7148
    %v7299 = vmul.f32 %v6595, %v7150
    %v7300 = vmul.f32 %v6596, %v7152
    %v7301 = vmul.f32 %v6597, %v7154
    %v7302 = vmul.f32 %v6598, %v7156
    %v7303 = vmul.f32 %v6599, %v7158
    %v7304 = vmul.f32 %v6600, %v7160
    %v7305 = vmul.f32 %v6601, %v7162
    %v7306 = vmul.f32 %v6602, %v7164
    %v7307 = vmul.f32 %v6603, %v7166
    %v7308 = vmul.f32 %v6604, %v7168
    %v7309 = vmul.f32 %v6605, %v7170
    %v7310 = vmul.f32 %v6606, %v7172
    %v7311 = vmul.f32 %v6607, %v7174
    %v7312 = vmul.f32 %v6608, %v7176
    %v7313 = vmul.f32 %v6609, %v7178
    %v7314 = vmul.f32 %v6610, %v7180
    %v7315 = vmul.f32 %v6611, %v7182
    %v7316 = vmul.f32 %v6612, %v7184
    %v7317 = vmul.f32 %v6613, %v7186
    %v7318 = vmul.f32 %v6614, %v7188
    %v7319 = vmul.f32 %v6615, %v7190
    %v7320 = vmul.f32 %v6616, %v7192
    %7385 = vrot.lane.b32.xlu0 %v7257, 32
    %v7386 = vpop.permute.xlu0 %7385
    %7387 = vrot.lane.b32.xlu0 %v7258, 32
    %v7388 = vpop.permute.xlu0 %7387
    %7389 = vrot.lane.b32.xlu0 %v7259, 32
    %v7390 = vpop.permute.xlu0 %7389
    %7391 = vrot.lane.b32.xlu0 %v7260, 32
    %v7392 = vpop.permute.xlu0 %7391
    %7393 = vrot.lane.b32.xlu0 %v7261, 32
    %v7394 = vpop.permute.xlu0 %7393
    %7395 = vrot.lane.b32.xlu0 %v7262, 32
    %v7396 = vpop.permute.xlu0 %7395
    %7397 = vrot.lane.b32.xlu0 %v7263, 32
    %v7398 = vpop.permute.xlu0 %7397
    %7399 = vrot.lane.b32.xlu0 %v7264, 32
    %v7400 = vpop.permute.xlu0 %7399
    %7401 = vrot.lane.b32.xlu0 %v7265, 32
    %v7402 = vpop.permute.xlu0 %7401
    %7403 = vrot.lane.b32.xlu0 %v7266, 32
    %v7404 = vpop.permute.xlu0 %7403
    %7405 = vrot.lane.b32.xlu0 %v7267, 32
    %v7406 = vpop.permute.xlu0 %7405
    %7407 = vrot.lane.b32.xlu0 %v7268, 32
    %v7408 = vpop.permute.xlu0 %7407
    %7409 = vrot.lane.b32.xlu0 %v7269, 32
    %v7410 = vpop.permute.xlu0 %7409
    %7411 = vrot.lane.b32.xlu0 %v7270, 32
    %v7412 = vpop.permute.xlu0 %7411
    %7413 = vrot.lane.b32.xlu0 %v7271, 32
    %v7414 = vpop.permute.xlu0 %7413
    %7415 = vrot.lane.b32.xlu0 %v7272, 32
    %v7416 = vpop.permute.xlu0 %7415
    %7417 = vrot.lane.b32.xlu0 %v7273, 32
    %v7418 = vpop.permute.xlu0 %7417
    %7419 = vrot.lane.b32.xlu0 %v7274, 32
    %v7420 = vpop.permute.xlu0 %7419
    %7421 = vrot.lane.b32.xlu0 %v7275, 32
    %v7422 = vpop.permute.xlu0 %7421
    %7423 = vrot.lane.b32.xlu0 %v7276, 32
    %v7424 = vpop.permute.xlu0 %7423
    %7425 = vrot.lane.b32.xlu0 %v7277, 32
    %v7426 = vpop.permute.xlu0 %7425
    %7427 = vrot.lane.b32.xlu0 %v7278, 32
    %v7428 = vpop.permute.xlu0 %7427
    %7429 = vrot.lane.b32.xlu0 %v7279, 32
    %v7430 = vpop.permute.xlu0 %7429
    %7431 = vrot.lane.b32.xlu0 %v7280, 32
    %v7432 = vpop.permute.xlu0 %7431
    %7433 = vrot.lane.b32.xlu0 %v7281, 32
    %v7434 = vpop.permute.xlu0 %7433
    %7435 = vrot.lane.b32.xlu0 %v7282, 32
    %v7436 = vpop.permute.xlu0 %7435
    %7437 = vrot.lane.b32.xlu0 %v7283, 32
    %v7438 = vpop.permute.xlu0 %7437
    %7439 = vrot.lane.b32.xlu0 %v7284, 32
    %v7440 = vpop.permute.xlu0 %7439
    %7441 = vrot.lane.b32.xlu0 %v7285, 32
    %v7442 = vpop.permute.xlu0 %7441
    %7443 = vrot.lane.b32.xlu0 %v7286, 32
    %v7444 = vpop.permute.xlu0 %7443
    %7445 = vrot.lane.b32.xlu0 %v7287, 32
    %v7446 = vpop.permute.xlu0 %7445
    %7447 = vrot.lane.b32.xlu0 %v7288, 32
    %v7448 = vpop.permute.xlu0 %7447
    %7449 = vrot.lane.b32.xlu0 %v7289, 32
    %v7450 = vpop.permute.xlu0 %7449
    %7451 = vrot.lane.b32.xlu0 %v7290, 32
    %v7452 = vpop.permute.xlu0 %7451
    %7453 = vrot.lane.b32.xlu0 %v7291, 32
    %v7454 = vpop.permute.xlu0 %7453
    %7455 = vrot.lane.b32.xlu0 %v7292, 32
    %v7456 = vpop.permute.xlu0 %7455
    %7457 = vrot.lane.b32.xlu0 %v7293, 32
    %v7458 = vpop.permute.xlu0 %7457
    %7459 = vrot.lane.b32.xlu0 %v7294, 32
    %v7460 = vpop.permute.xlu0 %7459
    %7461 = vrot.lane.b32.xlu0 %v7295, 32
    %v7462 = vpop.permute.xlu0 %7461
    %7463 = vrot.lane.b32.xlu0 %v7296, 32
    %v7464 = vpop.permute.xlu0 %7463
    %7465 = vrot.lane.b32.xlu0 %v7297, 32
    %v7466 = vpop.permute.xlu0 %7465
    %7467 = vrot.lane.b32.xlu0 %v7298, 32
    %v7468 = vpop.permute.xlu0 %7467
    %7469 = vrot.lane.b32.xlu0 %v7299, 32
    %v7470 = vpop.permute.xlu0 %7469
    %7471 = vrot.lane.b32.xlu0 %v7300, 32
    %v7472 = vpop.permute.xlu0 %7471
    %7473 = vrot.lane.b32.xlu0 %v7301, 32
    %v7474 = vpop.permute.xlu0 %7473
    %7475 = vrot.lane.b32.xlu0 %v7302, 32
    %v7476 = vpop.permute.xlu0 %7475
    %7477 = vrot.lane.b32.xlu0 %v7303, 32
    %v7478 = vpop.permute.xlu0 %7477
    %7479 = vrot.lane.b32.xlu0 %v7304, 32
    %v7480 = vpop.permute.xlu0 %7479
    %7481 = vrot.lane.b32.xlu0 %v7305, 32
    %v7482 = vpop.permute.xlu0 %7481
    %7483 = vrot.lane.b32.xlu0 %v7306, 32
    %v7484 = vpop.permute.xlu0 %7483
    %7485 = vrot.lane.b32.xlu0 %v7307, 32
    %v7486 = vpop.permute.xlu0 %7485
    %7487 = vrot.lane.b32.xlu0 %v7308, 32
    %v7488 = vpop.permute.xlu0 %7487
    %7489 = vrot.lane.b32.xlu0 %v7309, 32
    %v7490 = vpop.permute.xlu0 %7489
    %7491 = vrot.lane.b32.xlu0 %v7310, 32
    %v7492 = vpop.permute.xlu0 %7491
    %7493 = vrot.lane.b32.xlu0 %v7311, 32
    %v7494 = vpop.permute.xlu0 %7493
    %7495 = vrot.lane.b32.xlu0 %v7312, 32
    %v7496 = vpop.permute.xlu0 %7495
    %7497 = vrot.lane.b32.xlu0 %v7313, 32
    %v7498 = vpop.permute.xlu0 %7497
    %7499 = vrot.lane.b32.xlu0 %v7314, 32
    %v7500 = vpop.permute.xlu0 %7499
    %7501 = vrot.lane.b32.xlu0 %v7315, 32
    %v7502 = vpop.permute.xlu0 %7501
    %7503 = vrot.lane.b32.xlu0 %v7316, 32
    %v7504 = vpop.permute.xlu0 %7503
    %7505 = vrot.lane.b32.xlu0 %v7317, 32
    %v7506 = vpop.permute.xlu0 %7505
    %7507 = vrot.lane.b32.xlu0 %v7318, 32
    %v7508 = vpop.permute.xlu0 %7507
    %7509 = vrot.lane.b32.xlu0 %v7319, 32
    %v7510 = vpop.permute.xlu0 %7509
    %7511 = vrot.lane.b32.xlu0 %v7320, 32
    %v7512 = vpop.permute.xlu0 %7511
    %v7577 = vadd.f32 %v6937, %v7386
    %v7578 = vadd.f32 %v6938, %v7388
    %v7579 = vadd.f32 %v6939, %v7390
    %v7580 = vadd.f32 %v6940, %v7392
    %v7581 = vadd.f32 %v6941, %v7394
    %v7582 = vadd.f32 %v6942, %v7396
    %v7583 = vadd.f32 %v6943, %v7398
    %v7584 = vadd.f32 %v6944, %v7400
    %v7585 = vadd.f32 %v6945, %v7402
    %v7586 = vadd.f32 %v6946, %v7404
    %v7587 = vadd.f32 %v6947, %v7406
    %v7588 = vadd.f32 %v6948, %v7408
    %v7589 = vadd.f32 %v6949, %v7410
    %v7590 = vadd.f32 %v6950, %v7412
    %v7591 = vadd.f32 %v6951, %v7414
    %v7592 = vadd.f32 %v6952, %v7416
    %v7593 = vadd.f32 %v6953, %v7418
    %v7594 = vadd.f32 %v6954, %v7420
    %v7595 = vadd.f32 %v6955, %v7422
    %v7596 = vadd.f32 %v6956, %v7424
    %v7597 = vadd.f32 %v6957, %v7426
    %v7598 = vadd.f32 %v6958, %v7428
    %v7599 = vadd.f32 %v6959, %v7430
    %v7600 = vadd.f32 %v6960, %v7432
    %v7601 = vadd.f32 %v6961, %v7434
    %v7602 = vadd.f32 %v6962, %v7436
    %v7603 = vadd.f32 %v6963, %v7438
    %v7604 = vadd.f32 %v6964, %v7440
    %v7605 = vadd.f32 %v6965, %v7442
    %v7606 = vadd.f32 %v6966, %v7444
    %v7607 = vadd.f32 %v6967, %v7446
    %v7608 = vadd.f32 %v6968, %v7448
    %v7609 = vadd.f32 %v6969, %v7450
    %v7610 = vadd.f32 %v6970, %v7452
    %v7611 = vadd.f32 %v6971, %v7454
    %v7612 = vadd.f32 %v6972, %v7456
    %v7613 = vadd.f32 %v6973, %v7458
    %v7614 = vadd.f32 %v6974, %v7460
    %v7615 = vadd.f32 %v6975, %v7462
    %v7616 = vadd.f32 %v6976, %v7464
    %v7617 = vadd.f32 %v6977, %v7466
    %v7618 = vadd.f32 %v6978, %v7468
    %v7619 = vadd.f32 %v6979, %v7470
    %v7620 = vadd.f32 %v6980, %v7472
    %v7621 = vadd.f32 %v6981, %v7474
    %v7622 = vadd.f32 %v6982, %v7476
    %v7623 = vadd.f32 %v6983, %v7478
    %v7624 = vadd.f32 %v6984, %v7480
    %v7625 = vadd.f32 %v6985, %v7482
    %v7626 = vadd.f32 %v6986, %v7484
    %v7627 = vadd.f32 %v6987, %v7486
    %v7628 = vadd.f32 %v6988, %v7488
    %v7629 = vadd.f32 %v6989, %v7490
    %v7630 = vadd.f32 %v6990, %v7492
    %v7631 = vadd.f32 %v6991, %v7494
    %v7632 = vadd.f32 %v6992, %v7496
    %v7633 = vadd.f32 %v6993, %v7498
    %v7634 = vadd.f32 %v6994, %v7500
    %v7635 = vadd.f32 %v6995, %v7502
    %v7636 = vadd.f32 %v6996, %v7504
    %v7637 = vadd.f32 %v6997, %v7506
    %v7638 = vadd.f32 %v6998, %v7508
    %v7639 = vadd.f32 %v6999, %v7510
    %v7640 = vadd.f32 %v7000, %v7512
    %v7641 = vtanh.pop %v7577
    %v7642 = vtanh.pop %v7578
    %v7643 = vtanh.pop %v7579
    %v7644 = vtanh.pop %v7580
    %v7645 = vtanh.pop %v7581
    %v7646 = vtanh.pop %v7582
    %v7647 = vtanh.pop %v7583
    %v7648 = vtanh.pop %v7584
    %v7649 = vtanh.pop %v7585
    %v7650 = vtanh.pop %v7586
    %v7651 = vtanh.pop %v7587
    %v7652 = vtanh.pop %v7588
    %v7653 = vtanh.pop %v7589
    %v7654 = vtanh.pop %v7590
    %v7655 = vtanh.pop %v7591
    %v7656 = vtanh.pop %v7592
    %v7657 = vtanh.pop %v7593
    %v7658 = vtanh.pop %v7594
    %v7659 = vtanh.pop %v7595
    %v7660 = vtanh.pop %v7596
    %v7661 = vtanh.pop %v7597
    %v7662 = vtanh.pop %v7598
    %v7663 = vtanh.pop %v7599
    %v7664 = vtanh.pop %v7600
    %v7665 = vtanh.pop %v7601
    %v7666 = vtanh.pop %v7602
    %v7667 = vtanh.pop %v7603
    %v7668 = vtanh.pop %v7604
    %v7669 = vtanh.pop %v7605
    %v7670 = vtanh.pop %v7606
    %v7671 = vtanh.pop %v7607
    %v7672 = vtanh.pop %v7608
    %v7673 = vtanh.pop %v7609
    %v7674 = vtanh.pop %v7610
    %v7675 = vtanh.pop %v7611
    %v7676 = vtanh.pop %v7612
    %v7677 = vtanh.pop %v7613
    %v7678 = vtanh.pop %v7614
    %v7679 = vtanh.pop %v7615
    %v7680 = vtanh.pop %v7616
    %v7681 = vtanh.pop %v7617
    %v7682 = vtanh.pop %v7618
    %v7683 = vtanh.pop %v7619
    %v7684 = vtanh.pop %v7620
    %v7685 = vtanh.pop %v7621
    %v7686 = vtanh.pop %v7622
    %v7687 = vtanh.pop %v7623
    %v7688 = vtanh.pop %v7624
    %v7689 = vtanh.pop %v7625
    %v7690 = vtanh.pop %v7626
    %v7691 = vtanh.pop %v7627
    %v7692 = vtanh.pop %v7628
    %v7693 = vtanh.pop %v7629
    %v7694 = vtanh.pop %v7630
    %v7695 = vtanh.pop %v7631
    %v7696 = vtanh.pop %v7632
    %v7697 = vtanh.pop %v7633
    %v7698 = vtanh.pop %v7634
    %v7699 = vtanh.pop %v7635
    %v7700 = vtanh.pop %v7636
    %v7701 = vtanh.pop %v7637
    %v7702 = vtanh.pop %v7638
    %v7703 = vtanh.pop %v7639
    %v7704 = vtanh.pop %v7640
    %7769 = vrot.lane.b32.xlu0 %v7641, 32
    %v7770 = vpop.permute.xlu0 %7769
    %7771 = vrot.lane.b32.xlu0 %v7642, 32
    %v7772 = vpop.permute.xlu0 %7771
    %7773 = vrot.lane.b32.xlu0 %v7643, 32
    %v7774 = vpop.permute.xlu0 %7773
    %7775 = vrot.lane.b32.xlu0 %v7644, 32
    %v7776 = vpop.permute.xlu0 %7775
    %7777 = vrot.lane.b32.xlu0 %v7645, 32
    %v7778 = vpop.permute.xlu0 %7777
    %7779 = vrot.lane.b32.xlu0 %v7646, 32
    %v7780 = vpop.permute.xlu0 %7779
    %7781 = vrot.lane.b32.xlu0 %v7647, 32
    %v7782 = vpop.permute.xlu0 %7781
    %7783 = vrot.lane.b32.xlu0 %v7648, 32
    %v7784 = vpop.permute.xlu0 %7783
    %7785 = vrot.lane.b32.xlu0 %v7649, 32
    %v7786 = vpop.permute.xlu0 %7785
    %7787 = vrot.lane.b32.xlu0 %v7650, 32
    %v7788 = vpop.permute.xlu0 %7787
    %7789 = vrot.lane.b32.xlu0 %v7651, 32
    %v7790 = vpop.permute.xlu0 %7789
    %7791 = vrot.lane.b32.xlu0 %v7652, 32
    %v7792 = vpop.permute.xlu0 %7791
    %7793 = vrot.lane.b32.xlu0 %v7653, 32
    %v7794 = vpop.permute.xlu0 %7793
    %7795 = vrot.lane.b32.xlu0 %v7654, 32
    %v7796 = vpop.permute.xlu0 %7795
    %7797 = vrot.lane.b32.xlu0 %v7655, 32
    %v7798 = vpop.permute.xlu0 %7797
    %7799 = vrot.lane.b32.xlu0 %v7656, 32
    %v7800 = vpop.permute.xlu0 %7799
    %7801 = vrot.lane.b32.xlu0 %v7657, 32
    %v7802 = vpop.permute.xlu0 %7801
    %7803 = vrot.lane.b32.xlu0 %v7658, 32
    %v7804 = vpop.permute.xlu0 %7803
    %7805 = vrot.lane.b32.xlu0 %v7659, 32
    %v7806 = vpop.permute.xlu0 %7805
    %7807 = vrot.lane.b32.xlu0 %v7660, 32
    %v7808 = vpop.permute.xlu0 %7807
    %7809 = vrot.lane.b32.xlu0 %v7661, 32
    %v7810 = vpop.permute.xlu0 %7809
    %7811 = vrot.lane.b32.xlu0 %v7662, 32
    %v7812 = vpop.permute.xlu0 %7811
    %7813 = vrot.lane.b32.xlu0 %v7663, 32
    %v7814 = vpop.permute.xlu0 %7813
    %7815 = vrot.lane.b32.xlu0 %v7664, 32
    %v7816 = vpop.permute.xlu0 %7815
    %7817 = vrot.lane.b32.xlu0 %v7665, 32
    %v7818 = vpop.permute.xlu0 %7817
    %7819 = vrot.lane.b32.xlu0 %v7666, 32
    %v7820 = vpop.permute.xlu0 %7819
    %7821 = vrot.lane.b32.xlu0 %v7667, 32
    %v7822 = vpop.permute.xlu0 %7821
    %7823 = vrot.lane.b32.xlu0 %v7668, 32
    %v7824 = vpop.permute.xlu0 %7823
    %7825 = vrot.lane.b32.xlu0 %v7669, 32
    %v7826 = vpop.permute.xlu0 %7825
    %7827 = vrot.lane.b32.xlu0 %v7670, 32
    %v7828 = vpop.permute.xlu0 %7827
    %7829 = vrot.lane.b32.xlu0 %v7671, 32
    %v7830 = vpop.permute.xlu0 %7829
    %7831 = vrot.lane.b32.xlu0 %v7672, 32
    %v7832 = vpop.permute.xlu0 %7831
    %7833 = vrot.lane.b32.xlu0 %v7673, 32
    %v7834 = vpop.permute.xlu0 %7833
    %7835 = vrot.lane.b32.xlu0 %v7674, 32
    %v7836 = vpop.permute.xlu0 %7835
    %7837 = vrot.lane.b32.xlu0 %v7675, 32
    %v7838 = vpop.permute.xlu0 %7837
    %7839 = vrot.lane.b32.xlu0 %v7676, 32
    %v7840 = vpop.permute.xlu0 %7839
    %7841 = vrot.lane.b32.xlu0 %v7677, 32
    %v7842 = vpop.permute.xlu0 %7841
    %7843 = vrot.lane.b32.xlu0 %v7678, 32
    %v7844 = vpop.permute.xlu0 %7843
    %7845 = vrot.lane.b32.xlu0 %v7679, 32
    %v7846 = vpop.permute.xlu0 %7845
    %7847 = vrot.lane.b32.xlu0 %v7680, 32
    %v7848 = vpop.permute.xlu0 %7847
    %7849 = vrot.lane.b32.xlu0 %v7681, 32
    %v7850 = vpop.permute.xlu0 %7849
    %7851 = vrot.lane.b32.xlu0 %v7682, 32
    %v7852 = vpop.permute.xlu0 %7851
    %7853 = vrot.lane.b32.xlu0 %v7683, 32
    %v7854 = vpop.permute.xlu0 %7853
    %7855 = vrot.lane.b32.xlu0 %v7684, 32
    %v7856 = vpop.permute.xlu0 %7855
    %7857 = vrot.lane.b32.xlu0 %v7685, 32
    %v7858 = vpop.permute.xlu0 %7857
    %7859 = vrot.lane.b32.xlu0 %v7686, 32
    %v7860 = vpop.permute.xlu0 %7859
    %7861 = vrot.lane.b32.xlu0 %v7687, 32
    %v7862 = vpop.permute.xlu0 %7861
    %7863 = vrot.lane.b32.xlu0 %v7688, 32
    %v7864 = vpop.permute.xlu0 %7863
    %7865 = vrot.lane.b32.xlu0 %v7689, 32
    %v7866 = vpop.permute.xlu0 %7865
    %7867 = vrot.lane.b32.xlu0 %v7690, 32
    %v7868 = vpop.permute.xlu0 %7867
    %7869 = vrot.lane.b32.xlu0 %v7691, 32
    %v7870 = vpop.permute.xlu0 %7869
    %7871 = vrot.lane.b32.xlu0 %v7692, 32
    %v7872 = vpop.permute.xlu0 %7871
    %7873 = vrot.lane.b32.xlu0 %v7693, 32
    %v7874 = vpop.permute.xlu0 %7873
    %7875 = vrot.lane.b32.xlu0 %v7694, 32
    %v7876 = vpop.permute.xlu0 %7875
    %7877 = vrot.lane.b32.xlu0 %v7695, 32
    %v7878 = vpop.permute.xlu0 %7877
    %7879 = vrot.lane.b32.xlu0 %v7696, 32
    %v7880 = vpop.permute.xlu0 %7879
    %7881 = vrot.lane.b32.xlu0 %v7697, 32
    %v7882 = vpop.permute.xlu0 %7881
    %7883 = vrot.lane.b32.xlu0 %v7698, 32
    %v7884 = vpop.permute.xlu0 %7883
    %7885 = vrot.lane.b32.xlu0 %v7699, 32
    %v7886 = vpop.permute.xlu0 %7885
    %7887 = vrot.lane.b32.xlu0 %v7700, 32
    %v7888 = vpop.permute.xlu0 %7887
    %7889 = vrot.lane.b32.xlu0 %v7701, 32
    %v7890 = vpop.permute.xlu0 %7889
    %7891 = vrot.lane.b32.xlu0 %v7702, 32
    %v7892 = vpop.permute.xlu0 %7891
    %7893 = vrot.lane.b32.xlu0 %v7703, 32
    %v7894 = vpop.permute.xlu0 %7893
    %7895 = vrot.lane.b32.xlu0 %v7704, 32
    %v7896 = vpop.permute.xlu0 %7895
    %v7961 = vmul.f32 %v6553, %v7770
    %v7962 = vmul.f32 %v6554, %v7772
    %v7963 = vmul.f32 %v6555, %v7774
    %v7964 = vmul.f32 %v6556, %v7776
    %v7965 = vmul.f32 %v6557, %v7778
    %v7966 = vmul.f32 %v6558, %v7780
    %v7967 = vmul.f32 %v6559, %v7782
    %v7968 = vmul.f32 %v6560, %v7784
    %v7969 = vmul.f32 %v6561, %v7786
    %v7970 = vmul.f32 %v6562, %v7788
    %v7971 = vmul.f32 %v6563, %v7790
    %v7972 = vmul.f32 %v6564, %v7792
    %v7973 = vmul.f32 %v6565, %v7794
    %v7974 = vmul.f32 %v6566, %v7796
    %v7975 = vmul.f32 %v6567, %v7798
    %v7976 = vmul.f32 %v6568, %v7800
    %v7977 = vmul.f32 %v6569, %v7802
    %v7978 = vmul.f32 %v6570, %v7804
    %v7979 = vmul.f32 %v6571, %v7806
    %v7980 = vmul.f32 %v6572, %v7808
    %v7981 = vmul.f32 %v6573, %v7810
    %v7982 = vmul.f32 %v6574, %v7812
    %v7983 = vmul.f32 %v6575, %v7814
    %v7984 = vmul.f32 %v6576, %v7816
    %v7985 = vmul.f32 %v6577, %v7818
    %v7986 = vmul.f32 %v6578, %v7820
    %v7987 = vmul.f32 %v6579, %v7822
    %v7988 = vmul.f32 %v6580, %v7824
    %v7989 = vmul.f32 %v6581, %v7826
    %v7990 = vmul.f32 %v6582, %v7828
    %v7991 = vmul.f32 %v6583, %v7830
    %v7992 = vmul.f32 %v6584, %v7832
    %v7993 = vmul.f32 %v6585, %v7834
    %v7994 = vmul.f32 %v6586, %v7836
    %v7995 = vmul.f32 %v6587, %v7838
    %v7996 = vmul.f32 %v6588, %v7840
    %v7997 = vmul.f32 %v6589, %v7842
    %v7998 = vmul.f32 %v6590, %v7844
    %v7999 = vmul.f32 %v6591, %v7846
    %v8000 = vmul.f32 %v6592, %v7848
    %v8001 = vmul.f32 %v6593, %v7850
    %v8002 = vmul.f32 %v6594, %v7852
    %v8003 = vmul.f32 %v6595, %v7854
    %v8004 = vmul.f32 %v6596, %v7856
    %v8005 = vmul.f32 %v6597, %v7858
    %v8006 = vmul.f32 %v6598, %v7860
    %v8007 = vmul.f32 %v6599, %v7862
    %v8008 = vmul.f32 %v6600, %v7864
    %v8009 = vmul.f32 %v6601, %v7866
    %v8010 = vmul.f32 %v6602, %v7868
    %v8011 = vmul.f32 %v6603, %v7870
    %v8012 = vmul.f32 %v6604, %v7872
    %v8013 = vmul.f32 %v6605, %v7874
    %v8014 = vmul.f32 %v6606, %v7876
    %v8015 = vmul.f32 %v6607, %v7878
    %v8016 = vmul.f32 %v6608, %v7880
    %v8017 = vmul.f32 %v6609, %v7882
    %v8018 = vmul.f32 %v6610, %v7884
    %v8019 = vmul.f32 %v6611, %v7886
    %v8020 = vmul.f32 %v6612, %v7888
    %v8021 = vmul.f32 %v6613, %v7890
    %v8022 = vmul.f32 %v6614, %v7892
    %v8023 = vmul.f32 %v6615, %v7894
    %v8024 = vmul.f32 %v6616, %v7896
    %8089 = vrot.lane.b32.xlu0 %v7961, 64
    %v8090 = vpop.permute.xlu0 %8089
    %8091 = vrot.lane.b32.xlu0 %v7962, 64
    %v8092 = vpop.permute.xlu0 %8091
    %8093 = vrot.lane.b32.xlu0 %v7963, 64
    %v8094 = vpop.permute.xlu0 %8093
    %8095 = vrot.lane.b32.xlu0 %v7964, 64
    %v8096 = vpop.permute.xlu0 %8095
    %8097 = vrot.lane.b32.xlu0 %v7965, 64
    %v8098 = vpop.permute.xlu0 %8097
    %8099 = vrot.lane.b32.xlu0 %v7966, 64
    %v8100 = vpop.permute.xlu0 %8099
    %8101 = vrot.lane.b32.xlu0 %v7967, 64
    %v8102 = vpop.permute.xlu0 %8101
    %8103 = vrot.lane.b32.xlu0 %v7968, 64
    %v8104 = vpop.permute.xlu0 %8103
    %8105 = vrot.lane.b32.xlu0 %v7969, 64
    %v8106 = vpop.permute.xlu0 %8105
    %8107 = vrot.lane.b32.xlu0 %v7970, 64
    %v8108 = vpop.permute.xlu0 %8107
    %8109 = vrot.lane.b32.xlu0 %v7971, 64
    %v8110 = vpop.permute.xlu0 %8109
    %8111 = vrot.lane.b32.xlu0 %v7972, 64
    %v8112 = vpop.permute.xlu0 %8111
    %8113 = vrot.lane.b32.xlu0 %v7973, 64
    %v8114 = vpop.permute.xlu0 %8113
    %8115 = vrot.lane.b32.xlu0 %v7974, 64
    %v8116 = vpop.permute.xlu0 %8115
    %8117 = vrot.lane.b32.xlu0 %v7975, 64
    %v8118 = vpop.permute.xlu0 %8117
    %8119 = vrot.lane.b32.xlu0 %v7976, 64
    %v8120 = vpop.permute.xlu0 %8119
    %8121 = vrot.lane.b32.xlu0 %v7977, 64
    %v8122 = vpop.permute.xlu0 %8121
    %8123 = vrot.lane.b32.xlu0 %v7978, 64
    %v8124 = vpop.permute.xlu0 %8123
    %8125 = vrot.lane.b32.xlu0 %v7979, 64
    %v8126 = vpop.permute.xlu0 %8125
    %8127 = vrot.lane.b32.xlu0 %v7980, 64
    %v8128 = vpop.permute.xlu0 %8127
    %8129 = vrot.lane.b32.xlu0 %v7981, 64
    %v8130 = vpop.permute.xlu0 %8129
    %8131 = vrot.lane.b32.xlu0 %v7982, 64
    %v8132 = vpop.permute.xlu0 %8131
    %8133 = vrot.lane.b32.xlu0 %v7983, 64
    %v8134 = vpop.permute.xlu0 %8133
    %8135 = vrot.lane.b32.xlu0 %v7984, 64
    %v8136 = vpop.permute.xlu0 %8135
    %8137 = vrot.lane.b32.xlu0 %v7985, 64
    %v8138 = vpop.permute.xlu0 %8137
    %8139 = vrot.lane.b32.xlu0 %v7986, 64
    %v8140 = vpop.permute.xlu0 %8139
    %8141 = vrot.lane.b32.xlu0 %v7987, 64
    %v8142 = vpop.permute.xlu0 %8141
    %8143 = vrot.lane.b32.xlu0 %v7988, 64
    %v8144 = vpop.permute.xlu0 %8143
    %8145 = vrot.lane.b32.xlu0 %v7989, 64
    %v8146 = vpop.permute.xlu0 %8145
    %8147 = vrot.lane.b32.xlu0 %v7990, 64
    %v8148 = vpop.permute.xlu0 %8147
    %8149 = vrot.lane.b32.xlu0 %v7991, 64
    %v8150 = vpop.permute.xlu0 %8149
    %8151 = vrot.lane.b32.xlu0 %v7992, 64
    %v8152 = vpop.permute.xlu0 %8151
    %8153 = vrot.lane.b32.xlu0 %v7993, 64
    %v8154 = vpop.permute.xlu0 %8153
    %8155 = vrot.lane.b32.xlu0 %v7994, 64
    %v8156 = vpop.permute.xlu0 %8155
    %8157 = vrot.lane.b32.xlu0 %v7995, 64
    %v8158 = vpop.permute.xlu0 %8157
    %8159 = vrot.lane.b32.xlu0 %v7996, 64
    %v8160 = vpop.permute.xlu0 %8159
    %8161 = vrot.lane.b32.xlu0 %v7997, 64
    %v8162 = vpop.permute.xlu0 %8161
    %8163 = vrot.lane.b32.xlu0 %v7998, 64
    %v8164 = vpop.permute.xlu0 %8163
    %8165 = vrot.lane.b32.xlu0 %v7999, 64
    %v8166 = vpop.permute.xlu0 %8165
    %8167 = vrot.lane.b32.xlu0 %v8000, 64
    %v8168 = vpop.permute.xlu0 %8167
    %8169 = vrot.lane.b32.xlu0 %v8001, 64
    %v8170 = vpop.permute.xlu0 %8169
    %8171 = vrot.lane.b32.xlu0 %v8002, 64
    %v8172 = vpop.permute.xlu0 %8171
    %8173 = vrot.lane.b32.xlu0 %v8003, 64
    %v8174 = vpop.permute.xlu0 %8173
    %8175 = vrot.lane.b32.xlu0 %v8004, 64
    %v8176 = vpop.permute.xlu0 %8175
    %8177 = vrot.lane.b32.xlu0 %v8005, 64
    %v8178 = vpop.permute.xlu0 %8177
    %8179 = vrot.lane.b32.xlu0 %v8006, 64
    %v8180 = vpop.permute.xlu0 %8179
    %8181 = vrot.lane.b32.xlu0 %v8007, 64
    %v8182 = vpop.permute.xlu0 %8181
    %8183 = vrot.lane.b32.xlu0 %v8008, 64
    %v8184 = vpop.permute.xlu0 %8183
    %8185 = vrot.lane.b32.xlu0 %v8009, 64
    %v8186 = vpop.permute.xlu0 %8185
    %8187 = vrot.lane.b32.xlu0 %v8010, 64
    %v8188 = vpop.permute.xlu0 %8187
    %8189 = vrot.lane.b32.xlu0 %v8011, 64
    %v8190 = vpop.permute.xlu0 %8189
    %8191 = vrot.lane.b32.xlu0 %v8012, 64
    %v8192 = vpop.permute.xlu0 %8191
    %8193 = vrot.lane.b32.xlu0 %v8013, 64
    %v8194 = vpop.permute.xlu0 %8193
    %8195 = vrot.lane.b32.xlu0 %v8014, 64
    %v8196 = vpop.permute.xlu0 %8195
    %8197 = vrot.lane.b32.xlu0 %v8015, 64
    %v8198 = vpop.permute.xlu0 %8197
    %8199 = vrot.lane.b32.xlu0 %v8016, 64
    %v8200 = vpop.permute.xlu0 %8199
    %8201 = vrot.lane.b32.xlu0 %v8017, 64
    %v8202 = vpop.permute.xlu0 %8201
    %8203 = vrot.lane.b32.xlu0 %v8018, 64
    %v8204 = vpop.permute.xlu0 %8203
    %8205 = vrot.lane.b32.xlu0 %v8019, 64
    %v8206 = vpop.permute.xlu0 %8205
    %8207 = vrot.lane.b32.xlu0 %v8020, 64
    %v8208 = vpop.permute.xlu0 %8207
    %8209 = vrot.lane.b32.xlu0 %v8021, 64
    %v8210 = vpop.permute.xlu0 %8209
    %8211 = vrot.lane.b32.xlu0 %v8022, 64
    %v8212 = vpop.permute.xlu0 %8211
    %8213 = vrot.lane.b32.xlu0 %v8023, 64
    %v8214 = vpop.permute.xlu0 %8213
    %8215 = vrot.lane.b32.xlu0 %v8024, 64
    %v8216 = vpop.permute.xlu0 %8215
    %8281 = vst.msk [vmem:[#allocation9] sm:$0xff] %vm2770, %v8090
    %8282 = vst.msk [vmem:[#allocation9 + $0x8] sm:$0xff] %vm2770, %v8092
    %8283 = vst.msk [vmem:[#allocation9 + $0x10] sm:$0xff] %vm2770, %v8094
    %8284 = vst.msk [vmem:[#allocation9 + $0x18] sm:$0xff] %vm2770, %v8096
    %8285 = vst.msk [vmem:[#allocation9 + $0x20] sm:$0xff] %vm2770, %v8098
    %8286 = vst.msk [vmem:[#allocation9 + $0x28] sm:$0xff] %vm2770, %v8100
    %8287 = vst.msk [vmem:[#allocation9 + $0x30] sm:$0xff] %vm2770, %v8102
    %8288 = vst.msk [vmem:[#allocation9 + $0x38] sm:$0xff] %vm2770, %v8104
    %8289 = vst.msk [vmem:[#allocation9 + $0x40] sm:$0xff] %vm2770, %v8106
    %8290 = vst.msk [vmem:[#allocation9 + $0x48] sm:$0xff] %vm2770, %v8108
    %8291 = vst.msk [vmem:[#allocation9 + $0x50] sm:$0xff] %vm2770, %v8110
    %8292 = vst.msk [vmem:[#allocation9 + $0x58] sm:$0xff] %vm2770, %v8112
    %8293 = vst.msk [vmem:[#allocation9 + $0x60] sm:$0xff] %vm2770, %v8114
    %8294 = vst.msk [vmem:[#allocation9 + $0x68] sm:$0xff] %vm2770, %v8116
    %8295 = vst.msk [vmem:[#allocation9 + $0x70] sm:$0xff] %vm2770, %v8118
    %8296 = vst.msk [vmem:[#allocation9 + $0x78] sm:$0xff] %vm2770, %v8120
    %8297 = vst.msk [vmem:[#allocation9 + $0x80] sm:$0xff] %vm2770, %v8122
    %8298 = vst.msk [vmem:[#allocation9 + $0x88] sm:$0xff] %vm2770, %v8124
    %8299 = vst.msk [vmem:[#allocation9 + $0x90] sm:$0xff] %vm2770, %v8126
    %8300 = vst.msk [vmem:[#allocation9 + $0x98] sm:$0xff] %vm2770, %v8128
    %8301 = vst.msk [vmem:[#allocation9 + $0xa0] sm:$0xff] %vm2770, %v8130
    %8302 = vst.msk [vmem:[#allocation9 + $0xa8] sm:$0xff] %vm2770, %v8132
    %8303 = vst.msk [vmem:[#allocation9 + $0xb0] sm:$0xff] %vm2770, %v8134
    %8304 = vst.msk [vmem:[#allocation9 + $0xb8] sm:$0xff] %vm2770, %v8136
    %8305 = vst.msk [vmem:[#allocation9 + $0xc0] sm:$0xff] %vm2770, %v8138
    %8306 = vst.msk [vmem:[#allocation9 + $0xc8] sm:$0xff] %vm2770, %v8140
    %8307 = vst.msk [vmem:[#allocation9 + $0xd0] sm:$0xff] %vm2770, %v8142
    %8308 = vst.msk [vmem:[#allocation9 + $0xd8] sm:$0xff] %vm2770, %v8144
    %8309 = vst.msk [vmem:[#allocation9 + $0xe0] sm:$0xff] %vm2770, %v8146
    %8310 = vst.msk [vmem:[#allocation9 + $0xe8] sm:$0xff] %vm2770, %v8148
    %8311 = vst.msk [vmem:[#allocation9 + $0xf0] sm:$0xff] %vm2770, %v8150
    %8312 = vst.msk [vmem:[#allocation9 + $0xf8] sm:$0xff] %vm2770, %v8152
    %8313 = vst.msk [vmem:[#allocation9 + $0x100] sm:$0xff] %vm2770, %v8154
    %8314 = vst.msk [vmem:[#allocation9 + $0x108] sm:$0xff] %vm2770, %v8156
    %8315 = vst.msk [vmem:[#allocation9 + $0x110] sm:$0xff] %vm2770, %v8158
    %8316 = vst.msk [vmem:[#allocation9 + $0x118] sm:$0xff] %vm2770, %v8160
    %8317 = vst.msk [vmem:[#allocation9 + $0x120] sm:$0xff] %vm2770, %v8162
    %8318 = vst.msk [vmem:[#allocation9 + $0x128] sm:$0xff] %vm2770, %v8164
    %8319 = vst.msk [vmem:[#allocation9 + $0x130] sm:$0xff] %vm2770, %v8166
    %8320 = vst.msk [vmem:[#allocation9 + $0x138] sm:$0xff] %vm2770, %v8168
    %8321 = vst.msk [vmem:[#allocation9 + $0x140] sm:$0xff] %vm2770, %v8170
    %8322 = vst.msk [vmem:[#allocation9 + $0x148] sm:$0xff] %vm2770, %v8172
    %8323 = vst.msk [vmem:[#allocation9 + $0x150] sm:$0xff] %vm2770, %v8174
    %8324 = vst.msk [vmem:[#allocation9 + $0x158] sm:$0xff] %vm2770, %v8176
    %8325 = vst.msk [vmem:[#allocation9 + $0x160] sm:$0xff] %vm2770, %v8178
    %8326 = vst.msk [vmem:[#allocation9 + $0x168] sm:$0xff] %vm2770, %v8180
    %8327 = vst.msk [vmem:[#allocation9 + $0x170] sm:$0xff] %vm2770, %v8182
    %8328 = vst.msk [vmem:[#allocation9 + $0x178] sm:$0xff] %vm2770, %v8184
    %8329 = vst.msk [vmem:[#allocation9 + $0x180] sm:$0xff] %vm2770, %v8186
    %8330 = vst.msk [vmem:[#allocation9 + $0x188] sm:$0xff] %vm2770, %v8188
    %8331 = vst.msk [vmem:[#allocation9 + $0x190] sm:$0xff] %vm2770, %v8190
    %8332 = vst.msk [vmem:[#allocation9 + $0x198] sm:$0xff] %vm2770, %v8192
    %8333 = vst.msk [vmem:[#allocation9 + $0x1a0] sm:$0xff] %vm2770, %v8194
    %8334 = vst.msk [vmem:[#allocation9 + $0x1a8] sm:$0xff] %vm2770, %v8196
    %8335 = vst.msk [vmem:[#allocation9 + $0x1b0] sm:$0xff] %vm2770, %v8198
    %8336 = vst.msk [vmem:[#allocation9 + $0x1b8] sm:$0xff] %vm2770, %v8200
    %8337 = vst.msk [vmem:[#allocation9 + $0x1c0] sm:$0xff] %vm2770, %v8202
    %8338 = vst.msk [vmem:[#allocation9 + $0x1c8] sm:$0xff] %vm2770, %v8204
    %8339 = vst.msk [vmem:[#allocation9 + $0x1d0] sm:$0xff] %vm2770, %v8206
    %8340 = vst.msk [vmem:[#allocation9 + $0x1d8] sm:$0xff] %vm2770, %v8208
    %8341 = vst.msk [vmem:[#allocation9 + $0x1e0] sm:$0xff] %vm2770, %v8210
    %8342 = vst.msk [vmem:[#allocation9 + $0x1e8] sm:$0xff] %vm2770, %v8212
    %8343 = vst.msk [vmem:[#allocation9 + $0x1f0] sm:$0xff] %vm2770, %v8214
    %8344 = vst.msk [vmem:[#allocation9 + $0x1f8] sm:$0xff] %vm2770, %v8216
    %8409 = vrot.lane.b32.xlu0 %v7577, 96
    %v8410 = vpop.permute.xlu0 %8409
    %8411 = vrot.lane.b32.xlu0 %v7578, 96
    %v8412 = vpop.permute.xlu0 %8411
    %8413 = vrot.lane.b32.xlu0 %v7579, 96
    %v8414 = vpop.permute.xlu0 %8413
    %8415 = vrot.lane.b32.xlu0 %v7580, 96
    %v8416 = vpop.permute.xlu0 %8415
    %8417 = vrot.lane.b32.xlu0 %v7581, 96
    %v8418 = vpop.permute.xlu0 %8417
    %8419 = vrot.lane.b32.xlu0 %v7582, 96
    %v8420 = vpop.permute.xlu0 %8419
    %8421 = vrot.lane.b32.xlu0 %v7583, 96
    %v8422 = vpop.permute.xlu0 %8421
    %8423 = vrot.lane.b32.xlu0 %v7584, 96
    %v8424 = vpop.permute.xlu0 %8423
    %8425 = vrot.lane.b32.xlu0 %v7585, 96
    %v8426 = vpop.permute.xlu0 %8425
    %8427 = vrot.lane.b32.xlu0 %v7586, 96
    %v8428 = vpop.permute.xlu0 %8427
    %8429 = vrot.lane.b32.xlu0 %v7587, 96
    %v8430 = vpop.permute.xlu0 %8429
    %8431 = vrot.lane.b32.xlu0 %v7588, 96
    %v8432 = vpop.permute.xlu0 %8431
    %8433 = vrot.lane.b32.xlu0 %v7589, 96
    %v8434 = vpop.permute.xlu0 %8433
    %8435 = vrot.lane.b32.xlu0 %v7590, 96
    %v8436 = vpop.permute.xlu0 %8435
    %8437 = vrot.lane.b32.xlu0 %v7591, 96
    %v8438 = vpop.permute.xlu0 %8437
    %8439 = vrot.lane.b32.xlu0 %v7592, 96
    %v8440 = vpop.permute.xlu0 %8439
    %8441 = vrot.lane.b32.xlu0 %v7593, 96
    %v8442 = vpop.permute.xlu0 %8441
    %8443 = vrot.lane.b32.xlu0 %v7594, 96
    %v8444 = vpop.permute.xlu0 %8443
    %8445 = vrot.lane.b32.xlu0 %v7595, 96
    %v8446 = vpop.permute.xlu0 %8445
    %8447 = vrot.lane.b32.xlu0 %v7596, 96
    %v8448 = vpop.permute.xlu0 %8447
    %8449 = vrot.lane.b32.xlu0 %v7597, 96
    %v8450 = vpop.permute.xlu0 %8449
    %8451 = vrot.lane.b32.xlu0 %v7598, 96
    %v8452 = vpop.permute.xlu0 %8451
    %8453 = vrot.lane.b32.xlu0 %v7599, 96
    %v8454 = vpop.permute.xlu0 %8453
    %8455 = vrot.lane.b32.xlu0 %v7600, 96
    %v8456 = vpop.permute.xlu0 %8455
    %8457 = vrot.lane.b32.xlu0 %v7601, 96
    %v8458 = vpop.permute.xlu0 %8457
    %8459 = vrot.lane.b32.xlu0 %v7602, 96
    %v8460 = vpop.permute.xlu0 %8459
    %8461 = vrot.lane.b32.xlu0 %v7603, 96
    %v8462 = vpop.permute.xlu0 %8461
    %8463 = vrot.lane.b32.xlu0 %v7604, 96
    %v8464 = vpop.permute.xlu0 %8463
    %8465 = vrot.lane.b32.xlu0 %v7605, 96
    %v8466 = vpop.permute.xlu0 %8465
    %8467 = vrot.lane.b32.xlu0 %v7606, 96
    %v8468 = vpop.permute.xlu0 %8467
    %8469 = vrot.lane.b32.xlu0 %v7607, 96
    %v8470 = vpop.permute.xlu0 %8469
    %8471 = vrot.lane.b32.xlu0 %v7608, 96
    %v8472 = vpop.permute.xlu0 %8471
    %8473 = vrot.lane.b32.xlu0 %v7609, 96
    %v8474 = vpop.permute.xlu0 %8473
    %8475 = vrot.lane.b32.xlu0 %v7610, 96
    %v8476 = vpop.permute.xlu0 %8475
    %8477 = vrot.lane.b32.xlu0 %v7611, 96
    %v8478 = vpop.permute.xlu0 %8477
    %8479 = vrot.lane.b32.xlu0 %v7612, 96
    %v8480 = vpop.permute.xlu0 %8479
    %8481 = vrot.lane.b32.xlu0 %v7613, 96
    %v8482 = vpop.permute.xlu0 %8481
    %8483 = vrot.lane.b32.xlu0 %v7614, 96
    %v8484 = vpop.permute.xlu0 %8483
    %8485 = vrot.lane.b32.xlu0 %v7615, 96
    %v8486 = vpop.permute.xlu0 %8485
    %8487 = vrot.lane.b32.xlu0 %v7616, 96
    %v8488 = vpop.permute.xlu0 %8487
    %8489 = vrot.lane.b32.xlu0 %v7617, 96
    %v8490 = vpop.permute.xlu0 %8489
    %8491 = vrot.lane.b32.xlu0 %v7618, 96
    %v8492 = vpop.permute.xlu0 %8491
    %8493 = vrot.lane.b32.xlu0 %v7619, 96
    %v8494 = vpop.permute.xlu0 %8493
    %8495 = vrot.lane.b32.xlu0 %v7620, 96
    %v8496 = vpop.permute.xlu0 %8495
    %8497 = vrot.lane.b32.xlu0 %v7621, 96
    %v8498 = vpop.permute.xlu0 %8497
    %8499 = vrot.lane.b32.xlu0 %v7622, 96
    %v8500 = vpop.permute.xlu0 %8499
    %8501 = vrot.lane.b32.xlu0 %v7623, 96
    %v8502 = vpop.permute.xlu0 %8501
    %8503 = vrot.lane.b32.xlu0 %v7624, 96
    %v8504 = vpop.permute.xlu0 %8503
    %8505 = vrot.lane.b32.xlu0 %v7625, 96
    %v8506 = vpop.permute.xlu0 %8505
    %8507 = vrot.lane.b32.xlu0 %v7626, 96
    %v8508 = vpop.permute.xlu0 %8507
    %8509 = vrot.lane.b32.xlu0 %v7627, 96
    %v8510 = vpop.permute.xlu0 %8509
    %8511 = vrot.lane.b32.xlu0 %v7628, 96
    %v8512 = vpop.permute.xlu0 %8511
    %8513 = vrot.lane.b32.xlu0 %v7629, 96
    %v8514 = vpop.permute.xlu0 %8513
    %8515 = vrot.lane.b32.xlu0 %v7630, 96
    %v8516 = vpop.permute.xlu0 %8515
    %8517 = vrot.lane.b32.xlu0 %v7631, 96
    %v8518 = vpop.permute.xlu0 %8517
    %8519 = vrot.lane.b32.xlu0 %v7632, 96
    %v8520 = vpop.permute.xlu0 %8519
    %8521 = vrot.lane.b32.xlu0 %v7633, 96
    %v8522 = vpop.permute.xlu0 %8521
    %8523 = vrot.lane.b32.xlu0 %v7634, 96
    %v8524 = vpop.permute.xlu0 %8523
    %8525 = vrot.lane.b32.xlu0 %v7635, 96
    %v8526 = vpop.permute.xlu0 %8525
    %8527 = vrot.lane.b32.xlu0 %v7636, 96
    %v8528 = vpop.permute.xlu0 %8527
    %8529 = vrot.lane.b32.xlu0 %v7637, 96
    %v8530 = vpop.permute.xlu0 %8529
    %8531 = vrot.lane.b32.xlu0 %v7638, 96
    %v8532 = vpop.permute.xlu0 %8531
    %8533 = vrot.lane.b32.xlu0 %v7639, 96
    %v8534 = vpop.permute.xlu0 %8533
    %8535 = vrot.lane.b32.xlu0 %v7640, 96
    %v8536 = vpop.permute.xlu0 %8535
    %8601 = vst.msk [vmem:[#allocation10] sm:$0xff] %vm2770, %v8410
    %8602 = vst.msk [vmem:[#allocation10 + $0x8] sm:$0xff] %vm2770, %v8412
    %8603 = vst.msk [vmem:[#allocation10 + $0x10] sm:$0xff] %vm2770, %v8414
    %8604 = vst.msk [vmem:[#allocation10 + $0x18] sm:$0xff] %vm2770, %v8416
    %8605 = vst.msk [vmem:[#allocation10 + $0x20] sm:$0xff] %vm2770, %v8418
    %8606 = vst.msk [vmem:[#allocation10 + $0x28] sm:$0xff] %vm2770, %v8420
    %8607 = vst.msk [vmem:[#allocation10 + $0x30] sm:$0xff] %vm2770, %v8422
    %8608 = vst.msk [vmem:[#allocation10 + $0x38] sm:$0xff] %vm2770, %v8424
    %8609 = vst.msk [vmem:[#allocation10 + $0x40] sm:$0xff] %vm2770, %v8426
    %8610 = vst.msk [vmem:[#allocation10 + $0x48] sm:$0xff] %vm2770, %v8428
    %8611 = vst.msk [vmem:[#allocation10 + $0x50] sm:$0xff] %vm2770, %v8430
    %8612 = vst.msk [vmem:[#allocation10 + $0x58] sm:$0xff] %vm2770, %v8432
    %8613 = vst.msk [vmem:[#allocation10 + $0x60] sm:$0xff] %vm2770, %v8434
    %8614 = vst.msk [vmem:[#allocation10 + $0x68] sm:$0xff] %vm2770, %v8436
    %8615 = vst.msk [vmem:[#allocation10 + $0x70] sm:$0xff] %vm2770, %v8438
    %8616 = vst.msk [vmem:[#allocation10 + $0x78] sm:$0xff] %vm2770, %v8440
    %8617 = vst.msk [vmem:[#allocation10 + $0x80] sm:$0xff] %vm2770, %v8442
    %8618 = vst.msk [vmem:[#allocation10 + $0x88] sm:$0xff] %vm2770, %v8444
    %8619 = vst.msk [vmem:[#allocation10 + $0x90] sm:$0xff] %vm2770, %v8446
    %8620 = vst.msk [vmem:[#allocation10 + $0x98] sm:$0xff] %vm2770, %v8448
    %8621 = vst.msk [vmem:[#allocation10 + $0xa0] sm:$0xff] %vm2770, %v8450
    %8622 = vst.msk [vmem:[#allocation10 + $0xa8] sm:$0xff] %vm2770, %v8452
    %8623 = vst.msk [vmem:[#allocation10 + $0xb0] sm:$0xff] %vm2770, %v8454
    %8624 = vst.msk [vmem:[#allocation10 + $0xb8] sm:$0xff] %vm2770, %v8456
    %8625 = vst.msk [vmem:[#allocation10 + $0xc0] sm:$0xff] %vm2770, %v8458
    %8626 = vst.msk [vmem:[#allocation10 + $0xc8] sm:$0xff] %vm2770, %v8460
    %8627 = vst.msk [vmem:[#allocation10 + $0xd0] sm:$0xff] %vm2770, %v8462
    %8628 = vst.msk [vmem:[#allocation10 + $0xd8] sm:$0xff] %vm2770, %v8464
    %8629 = vst.msk [vmem:[#allocation10 + $0xe0] sm:$0xff] %vm2770, %v8466
    %8630 = vst.msk [vmem:[#allocation10 + $0xe8] sm:$0xff] %vm2770, %v8468
    %8631 = vst.msk [vmem:[#allocation10 + $0xf0] sm:$0xff] %vm2770, %v8470
    %8632 = vst.msk [vmem:[#allocation10 + $0xf8] sm:$0xff] %vm2770, %v8472
    %8633 = vst.msk [vmem:[#allocation10 + $0x100] sm:$0xff] %vm2770, %v8474
    %8634 = vst.msk [vmem:[#allocation10 + $0x108] sm:$0xff] %vm2770, %v8476
    %8635 = vst.msk [vmem:[#allocation10 + $0x110] sm:$0xff] %vm2770, %v8478
    %8636 = vst.msk [vmem:[#allocation10 + $0x118] sm:$0xff] %vm2770, %v8480
    %8637 = vst.msk [vmem:[#allocation10 + $0x120] sm:$0xff] %vm2770, %v8482
    %8638 = vst.msk [vmem:[#allocation10 + $0x128] sm:$0xff] %vm2770, %v8484
    %8639 = vst.msk [vmem:[#allocation10 + $0x130] sm:$0xff] %vm2770, %v8486
    %8640 = vst.msk [vmem:[#allocation10 + $0x138] sm:$0xff] %vm2770, %v8488
    %8641 = vst.msk [vmem:[#allocation10 + $0x140] sm:$0xff] %vm2770, %v8490
    %8642 = vst.msk [vmem:[#allocation10 + $0x148] sm:$0xff] %vm2770, %v8492
    %8643 = vst.msk [vmem:[#allocation10 + $0x150] sm:$0xff] %vm2770, %v8494
    %8644 = vst.msk [vmem:[#allocation10 + $0x158] sm:$0xff] %vm2770, %v8496
    %8645 = vst.msk [vmem:[#allocation10 + $0x160] sm:$0xff] %vm2770, %v8498
    %8646 = vst.msk [vmem:[#allocation10 + $0x168] sm:$0xff] %vm2770, %v8500
    %8647 = vst.msk [vmem:[#allocation10 + $0x170] sm:$0xff] %vm2770, %v8502
    %8648 = vst.msk [vmem:[#allocation10 + $0x178] sm:$0xff] %vm2770, %v8504
    %8649 = vst.msk [vmem:[#allocation10 + $0x180] sm:$0xff] %vm2770, %v8506
    %8650 = vst.msk [vmem:[#allocation10 + $0x188] sm:$0xff] %vm2770, %v8508
    %8651 = vst.msk [vmem:[#allocation10 + $0x190] sm:$0xff] %vm2770, %v8510
    %8652 = vst.msk [vmem:[#allocation10 + $0x198] sm:$0xff] %vm2770, %v8512
    %8653 = vst.msk [vmem:[#allocation10 + $0x1a0] sm:$0xff] %vm2770, %v8514
    %8654 = vst.msk [vmem:[#allocation10 + $0x1a8] sm:$0xff] %vm2770, %v8516
    %8655 = vst.msk [vmem:[#allocation10 + $0x1b0] sm:$0xff] %vm2770, %v8518
    %8656 = vst.msk [vmem:[#allocation10 + $0x1b8] sm:$0xff] %vm2770, %v8520
    %8657 = vst.msk [vmem:[#allocation10 + $0x1c0] sm:$0xff] %vm2770, %v8522
    %8658 = vst.msk [vmem:[#allocation10 + $0x1c8] sm:$0xff] %vm2770, %v8524
    %8659 = vst.msk [vmem:[#allocation10 + $0x1d0] sm:$0xff] %vm2770, %v8526
    %8660 = vst.msk [vmem:[#allocation10 + $0x1d8] sm:$0xff] %vm2770, %v8528
    %8661 = vst.msk [vmem:[#allocation10 + $0x1e0] sm:$0xff] %vm2770, %v8530
    %8662 = vst.msk [vmem:[#allocation10 + $0x1e8] sm:$0xff] %vm2770, %v8532
    %8663 = vst.msk [vmem:[#allocation10 + $0x1f0] sm:$0xff] %vm2770, %v8534
    %8664 = vst.msk [vmem:[#allocation10 + $0x1f8] sm:$0xff] %vm2770, %v8536
    // Predicated region
    $region66: #{tpu_custom_call.1} parent=1 // pred_check
      _
    $region67: #{tpu_custom_call.1} parent=1 // pred_check_branch
      %8666 = sbr.rel (0) target = $region69
    $region68: #{tpu_custom_call.1} parent=1 // pred_region
      %s8668 = ssub.s32 8192, 8192
      %8669 = vsyncadd [#allocation6], %s8668
      %s8670 = sshll.u32 [#allocation9], 4
      %s8671 = int_to_ptr.vmem [resolvable:$true] %s8670
      %8676 = dma.vmem_to_hbm [thread:$0]  %s8671, 8192, %s14, [#allocation6], 128, 128, 8
    $region69: #{tpu_custom_call.1} parent=1 // pred_fallthru
      _
    // Predicated region
    $region70: #{tpu_custom_call.1} parent=1 // pred_check
      _
    $region71: #{tpu_custom_call.1} parent=1 // pred_check_branch
      %8678 = sbr.rel (0) target = $region73
    $region72: #{tpu_custom_call.1} parent=1 // pred_region
      %s8680 = ssub.s32 8192, 8192
      %8681 = vsyncadd [#allocation11], %s8680
      %s8682 = sshll.u32 [#allocation10], 4
      %s8683 = int_to_ptr.vmem [resolvable:$true] %s8682
      %8688 = dma.vmem_to_hbm [thread:$0]  %s8683, 8192, %s15, [#allocation11], 128, 128, 8
    $region73: #{tpu_custom_call.1} parent=1 // pred_fallthru
      _
    // Predicated region
    $region74: #{tpu_custom_call.1} parent=1 // pred_check
      _
    $region75: #{tpu_custom_call.1} parent=1 // pred_check_branch
      %8690 = sbr.rel (0) target = $region77
    $region76: #{tpu_custom_call.1} parent=1 // pred_region
      %8691 = dma.done [#allocation6], 8192
    $region77: #{tpu_custom_call.1} parent=1 // pred_fallthru
      _
    // Predicated region
    $region78: #{tpu_custom_call.1} parent=1 // pred_check
      _
    $region79: #{tpu_custom_call.1} parent=1 // pred_check_branch
      %8693 = sbr.rel (0) target = $region81
    $region80: #{tpu_custom_call.1} parent=1 // pred_region
      %8694 = dma.done [#allocation11], 8192
    $region81: #{tpu_custom_call.1} parent=1 // pred_fallthru
      _
    %8695 = vsyncpa [#allocation5], 1
    %8696 = vsyncpa [#allocation8], 1
    %8697 = vsyncpa [#allocation6], 1
    %8698 = vsyncpa [#allocation11], 1

</llo_original>
